<compile_context>
chip_gen: v6e
topology: v6e:2x2x1
jax: 0.10.0
libtpu: 0.0.40
codegen_flags: <defaults>
</compile_context>

<pallas_src>
from functools import partial

import jax
import jax.numpy as jnp
from jax.experimental import pallas as pl
from jax.experimental.pallas import tpu as pltpu


# ----------------------------- in-kernel math -----------------------------

def _gelu(x):
    # tanh-approximate GELU; tanh lowers to the EUP (its own VLIW slot).
    c = 0.7978845608028654  # sqrt(2/pi)
    return 0.5 * x * (1.0 + jnp.tanh(c * (x + 0.044715 * x * x * x)))


def _shift_zero(v, d, axis):
    """y[i] = v[i + d] along `axis`, zero-filled at the border (static d)."""
    if d == 0:
        return v
    n = v.shape[axis]
    zshape = list(v.shape)
    zshape[axis] = abs(d)
    z = jnp.zeros(zshape, v.dtype)
    if d > 0:
        core = jax.lax.slice_in_dim(v, d, n, axis=axis)
        return jnp.concatenate([core, z], axis=axis)
    core = jax.lax.slice_in_dim(v, 0, n + d, axis=axis)
    return jnp.concatenate([z, core], axis=axis)


# ------------------------------- matmul kernels -----------------------------

def _mm_kernel(x_ref, w_ref, b_ref, o_ref, acc_ref, *, act):
    @pl.when(pl.program_id(2) == 0)
    def _():
        acc_ref[...] = jnp.zeros_like(acc_ref)

    acc_ref[...] += jnp.dot(x_ref[...].astype(jnp.bfloat16),
                            w_ref[...].astype(jnp.bfloat16),
                            preferred_element_type=jnp.float32)

    @pl.when(pl.program_id(2) == pl.num_programs(2) - 1)
    def _():
        y = acc_ref[...] + b_ref[...]
        if act:
            y = _gelu(y)
        o_ref[...] = y


def _mm_res_kernel(x_ref, w_ref, b_ref, r_ref, o_ref, acc_ref, *, act):
    @pl.when(pl.program_id(2) == 0)
    def _():
        acc_ref[...] = jnp.zeros_like(acc_ref)

    acc_ref[...] += jnp.dot(x_ref[...].astype(jnp.bfloat16),
                            w_ref[...].astype(jnp.bfloat16),
                            preferred_element_type=jnp.float32)

    @pl.when(pl.program_id(2) == pl.num_programs(2) - 1)
    def _():
        y = acc_ref[...] + b_ref[...]
        if act:
            y = _gelu(y)
        o_ref[...] = y + r_ref[...]          # fused residual add


def _mm_dual_kernel(x_ref, w1_ref, b1_ref, w2_ref, b2_ref, o_ref, acc1, acc2):
    # Fused conv2_1 / conv2_2: shared LHS, two accumulators, GELU + add epilogue.
    @pl.when(pl.program_id(2) == 0)
    def _():
        acc1[...] = jnp.zeros_like(acc1)
        acc2[...] = jnp.zeros_like(acc2)

    xb = x_ref[...].astype(jnp.bfloat16)
    acc1[...] += jnp.dot(xb, w1_ref[...].astype(jnp.bfloat16),
                         preferred_element_type=jnp.float32)
    acc2[...] += jnp.dot(xb, w2_ref[...].astype(jnp.bfloat16),
                         preferred_element_type=jnp.float32)

    @pl.when(pl.program_id(2) == pl.num_programs(2) - 1)
    def _():
        o_ref[...] = _gelu(acc1[...] + b1_ref[...]) + _gelu(acc2[...] + b2_ref[...])


# --------------------------- other compute kernels ---------------------------

def _gn_kernel(x_ref, g_ref, b_ref, o_ref, *, eps, apply_gelu, inv_cnt):
    # GroupNorm(1, C): per-sample mean/var over all (HW, C) elements.
    # Single pass (E[x^2]-E[x]^2); reduce sublane (HW) axis first, lanes last.
    x = x_ref[0]                                       # (HW, C)
    s1 = jnp.sum(x, axis=0, keepdims=True)             # (1, C)  sublane reduce
    s2 = jnp.sum(x * x, axis=0, keepdims=True)         # (1, C)
    mean = jnp.sum(s1, axis=1, keepdims=True) * inv_cnt    # (1, 1)
    ex2 = jnp.sum(s2, axis=1, keepdims=True) * inv_cnt
    var = jnp.maximum(ex2 - mean * mean, 0.0)
    scale = jax.lax.rsqrt(var + eps)                   # (1, 1)
    y = (x - mean) * scale * g_ref[...] + b_ref[...]
    if apply_gelu:
        y = _gelu(y)
    o_ref[0] = y


def _dw3x3_kernel(x_ref, w_ref, b_ref, o_ref):
    # Depthwise 3x3, stride 1, pad 1. Border handled in-kernel with zero-filled
    # shifts (slice + concat); no pre-padded HBM copy of the activation.
    x = x_ref[0]                                       # (H, W, C)
    wv = w_ref[...]                                    # (3, 3, C)
    acc = jnp.zeros(x.shape, jnp.float32)
    for dy in (-1, 0, 1):
        xh = _shift_zero(x, dy, 0)                     # shift along H (cheap)
        for dx in (-1, 0, 1):
            tap = _shift_zero(xh, dx, 1)               # shift along W (sublane)
            acc = acc + tap * wv[dy + 1:dy + 2, dx + 1:dx + 2, :]
    o_ref[0] = acc + b_ref[...]


def _gn_pool_head_kernel(x_ref, g_ref, b_ref, w_ref, hb_ref, o_ref,
                         *, eps, inv_hw, inv_cnt):
    # Final GroupNorm + AdaptiveAvgPool2d(1) + Linear head, fused per sample.
    # Pooling commutes with the per-channel affine of GN, so the normalized
    # full-size tensor is never materialized.
    x = x_ref[0]                                       # (HW, C)
    s1 = jnp.sum(x, axis=0, keepdims=True)             # (1, C)
    s2 = jnp.sum(x * x, axis=0, keepdims=True)
    mean = jnp.sum(s1, axis=1, keepdims=True) * inv_cnt
    ex2 = jnp.sum(s2, axis=1, keepdims=True) * inv_cnt
    var = jnp.maximum(ex2 - mean * mean, 0.0)
    scale = jax.lax.rsqrt(var + eps)
    pooled = (s1 * inv_hw - mean) * scale * g_ref[...] + b_ref[...]   # (1, C)
    o_ref[0] = jnp.dot(pooled.astype(jnp.bfloat16),
                       w_ref[...].astype(jnp.bfloat16),
                       preferred_element_type=jnp.float32) + hb_ref[...]


# ------------------------------ pallas wrappers -----------------------------

def _pick_tile(dim, target, align):
    """Largest tile <= target that is a multiple of `align` and divides `dim`
    (or the full dim when it is small / has no suitable divisor)."""
    if dim <= target:
        return dim
    t = (target // align) * align
    while t >= align:
        if dim % t == 0:
            return t
        t -= align
    return dim


def _mm_tiles(M, K, N):
    # Sized so double-buffered blocks stay well under v7x's 32 MiB scoped VMEM.
    tm = _pick_tile(M, 256, 8)
    tk = _pick_tile(K, 512, 128)
    tn = _pick_tile(N, 256, 128)
    return tm, tk, tn


_MM_SEMANTICS = pltpu.CompilerParams(
    dimension_semantics=("parallel", "parallel", "arbitrary"))
_PAR_SEMANTICS = pltpu.CompilerParams(dimension_semantics=("parallel",))


def pallas_linear(x2d, w, b, *, act=False, residual=None):
    M, K = x2d.shape
    N = w.shape[1]
    tm, tk, tn = _mm_tiles(M, K, N)
    grid = (M // tm, N // tn, K // tk)
    b2 = b.reshape(1, N)

    in_specs = [pl.BlockSpec((tm, tk), lambda i, j, k: (i, k)),
                pl.BlockSpec((tk, tn), lambda i, j, k: (k, j)),
                pl.BlockSpec((1, tn), lambda i, j, k: (0, j))]
    args = [x2d, w, b2]
    if residual is None:
        kern = partial(_mm_kernel, act=act)
    else:
        in_specs.append(pl.BlockSpec((tm, tn), lambda i, j, k: (i, j)))
        args.append(residual)
        kern = partial(_mm_res_kernel, act=act)

    return pl.pallas_call(
        kern,
        grid=grid,
        in_specs=in_specs,
        out_specs=pl.BlockSpec((tm, tn), lambda i, j, k: (i, j)),
        out_shape=jax.ShapeDtypeStruct((M, N), jnp.float32),
        scratch_shapes=[pltpu.VMEM((tm, tn), jnp.float32)],
        compiler_params=_MM_SEMANTICS,
    )(*args)


def pallas_dual_linear(x2d, w1, b1, w2, b2):
    M, K = x2d.shape
    N = w1.shape[1]
    tm, tk, tn = _mm_tiles(M, K, N)
    grid = (M // tm, N // tn, K // tk)
    return pl.pallas_call(
        _mm_dual_kernel,
        grid=grid,
        in_specs=[pl.BlockSpec((tm, tk), lambda i, j, k: (i, k)),
                  pl.BlockSpec((tk, tn), lambda i, j, k: (k, j)),
                  pl.BlockSpec((1, tn), lambda i, j, k: (0, j)),
                  pl.BlockSpec((tk, tn), lambda i, j, k: (k, j)),
                  pl.BlockSpec((1, tn), lambda i, j, k: (0, j))],
        out_specs=pl.BlockSpec((tm, tn), lambda i, j, k: (i, j)),
        out_shape=jax.ShapeDtypeStruct((M, N), jnp.float32),
        scratch_shapes=[pltpu.VMEM((tm, tn), jnp.float32),
                        pltpu.VMEM((tm, tn), jnp.float32)],
        compiler_params=_MM_SEMANTICS,
    )(x2d, w1, b1.reshape(1, N), w2, b2.reshape(1, N))


def conv1x1(x, w, b, *, act=False, residual=None):
    N, H, W, C = x.shape
    Cout = w.shape[1]
    res2d = None if residual is None else residual.reshape(N * H * W, Cout)
    y = pallas_linear(x.reshape(N * H * W, C), w, b, act=act, residual=res2d)
    return y.reshape(N, H, W, Cout)


def conv1x1_dual_gelu_add(x, w1, b1, w2, b2):
    N, H, W, C = x.shape
    y = pallas_dual_linear(x.reshape(N * H * W, C), w1, b1, w2, b2)
    return y.reshape(N, H, W, w1.shape[1])


def group_norm(x, gamma, beta, act=False):
    N, H, W, C = x.shape
    HW = H * W
    x3 = x.reshape(N, HW, C)
    kern = partial(_gn_kernel, eps=1e-5, apply_gelu=act, inv_cnt=1.0 / float(HW * C))
    y = pl.pallas_call(
        kern,
        grid=(N,),
        in_specs=[pl.BlockSpec((1, HW, C), lambda n: (n, 0, 0)),
                  pl.BlockSpec((1, C), lambda n: (0, 0)),
                  pl.BlockSpec((1, C), lambda n: (0, 0))],
        out_specs=pl.BlockSpec((1, HW, C), lambda n: (n, 0, 0)),
        out_shape=jax.ShapeDtypeStruct((N, HW, C), jnp.float32),
        compiler_params=_PAR_SEMANTICS,
    )(x3, gamma.reshape(1, C), beta.reshape(1, C))
    return y.reshape(N, H, W, C)


def dwconv3x3(x, w, b):
    N, H, W, C = x.shape
    return pl.pallas_call(
        _dw3x3_kernel,
        grid=(N,),
        in_specs=[pl.BlockSpec((1, H, W, C), lambda n: (n, 0, 0, 0)),
                  pl.BlockSpec((3, 3, C), lambda n: (0, 0, 0)),
                  pl.BlockSpec((1, C), lambda n: (0, 0))],
        out_specs=pl.BlockSpec((1, H, W, C), lambda n: (n, 0, 0, 0)),
        out_shape=jax.ShapeDtypeStruct((N, H, W, C), jnp.float32),
        compiler_params=_PAR_SEMANTICS,
    )(x, w, b.reshape(1, C))


def gn_pool_head(x, gamma, beta, w_head, b_head):
    N, H, W, C = x.shape
    HW = H * W
    ncls = w_head.shape[1]
    npad = ((ncls + 127) // 128) * 128                 # lane-dense head output
    wp = jnp.zeros((C, npad), jnp.float32).at[:, :ncls].set(w_head)
    bp = jnp.zeros((1, npad), jnp.float32).at[:, :ncls].set(b_head.reshape(1, ncls))
    x3 = x.reshape(N, HW, C)
    kern = partial(_gn_pool_head_kernel, eps=1e-5,
                   inv_hw=1.0 / float(HW), inv_cnt=1.0 / float(HW * C))
    y = pl.pallas_call(
        kern,
        grid=(N,),
        in_specs=[pl.BlockSpec((1, HW, C), lambda n: (n, 0, 0)),
                  pl.BlockSpec((1, C), lambda n: (0, 0)),
                  pl.BlockSpec((1, C), lambda n: (0, 0)),
                  pl.BlockSpec((C, npad), lambda n: (0, 0)),
                  pl.BlockSpec((1, npad), lambda n: (0, 0))],
        out_specs=pl.BlockSpec((1, 1, npad), lambda n: (n, 0, 0)),
        out_shape=jax.ShapeDtypeStruct((N, 1, npad), jnp.float32),
        compiler_params=_PAR_SEMANTICS,
    )(x3, gamma.reshape(1, C), beta.reshape(1, C), wp, bp)
    return y[:, 0, :ncls]


# ------------------------------ parameters ---------------------------------

def _init_conv(key, cin, cout, bias=True):
    kw, kb = jax.random.split(key)
    w = jax.random.normal(kw, (cin, cout), jnp.float32) / jnp.sqrt(float(cin))
    b = (0.02 * jax.random.normal(kb, (cout,), jnp.float32)) if bias \
        else jnp.zeros((cout,), jnp.float32)
    return {"w": w, "b": b}


def _init_gn(c):
    # PyTorch GroupNorm default: weight=1, bias=0.
    return {"g": jnp.ones((c,), jnp.float32), "b": jnp.zeros((c,), jnp.float32)}


def build_params(key, *, img_size, patch_size, in_chans, embed_dim, depths,
                 mlp_ratio, num_classes, lif_bias=True):
    keys = jax.random.split(key, 128)
    ki = iter(list(keys))
    num_layers = len(depths)
    embed_dims = [embed_dim * (2 ** i) for i in range(num_layers)]

    params = {
        "patch_embed": {
            "proj": _init_conv(next(ki), in_chans * patch_size * patch_size, embed_dims[0]),
            "norm": _init_gn(embed_dims[0]),            # patch_norm=True, norm_layer=MyNorm
        }
    }

    layers = []
    for i in range(num_layers):
        dim = embed_dims[i]
        hidden = int(dim * mlp_ratio)
        blocks = []
        for _ in range(depths[i]):
            blocks.append({
                "norm1": _init_gn(dim),
                "lif": {
                    "conv1": _init_conv(next(ki), dim, dim, lif_bias),
                    "n1": _init_gn(dim),
                    "dw_w": 0.1 * jax.random.normal(next(ki), (3, 3, dim), jnp.float32),
                    "dw_b": (0.02 * jax.random.normal(next(ki), (dim,), jnp.float32)
                             if lif_bias else jnp.zeros((dim,), jnp.float32)),
                    "n2": _init_gn(dim),
                    "conv2_1": _init_conv(next(ki), dim, dim, lif_bias),
                    "conv2_2": _init_conv(next(ki), dim, dim, lif_bias),
                    "n3": _init_gn(dim),
                    "conv3": _init_conv(next(ki), dim, dim, lif_bias),
                },
                "norm2": _init_gn(dim),
                "mlp": {
                    "fc1": _init_conv(next(ki), dim, hidden),
                    "fc2": _init_conv(next(ki), hidden, dim),
                },
            })
        layer = {"blocks": blocks}
        if i < num_layers - 1:
            layer["downsample"] = {
                "norm": _init_gn(4 * dim),
                "reduction": _init_conv(next(ki), 4 * dim, 2 * dim, bias=False),
            }
        layers.append(layer)

    params["layers"] = layers
    params["norm"] = _init_gn(embed_dims[-1])
    params["head"] = {
        "w": 0.02 * jax.random.normal(next(ki), (embed_dims[-1], num_classes), jnp.float32),
        "b": jnp.zeros((num_classes,), jnp.float32),
    }
    return params


# ------------------------------- forward -----------------------------------

def _space_to_depth(x):
    # PatchMerging gather: matches torch.cat([x0, x1, x2, x3], 1) channel order
    # (x0=(he,we), x1=(ho,we), x2=(he,wo), x3=(ho,wo)) -> channel blocks ordered
    # by (w_parity, h_parity); done as one reshape/transpose pass (no strided gathers).
    N, H, W, C = x.shape
    x = x.reshape(N, H // 2, 2, W // 2, 2, C)          # (N, h, hp, w, wp, C)
    x = x.transpose(0, 1, 3, 4, 2, 5)                  # (N, h, w, wp, hp, C)
    return x.reshape(N, H // 2, W // 2, 4 * C)


def lif_module_fwd(x, p, shortcut):
    x = conv1x1(x, p["conv1"]["w"], p["conv1"]["b"])
    x = group_norm(x, p["n1"]["g"], p["n1"]["b"], act=True)    # norm1 + GELU fused
    x = dwconv3x3(x, p["dw_w"], p["dw_b"])
    x = group_norm(x, p["n2"]["g"], p["n2"]["b"], act=True)    # norm2 + GELU fused
    # TODO(synk): LIFSpike source not provided; with lif=-1 (module default) it is identity.
    x = conv1x1_dual_gelu_add(x, p["conv2_1"]["w"], p["conv2_1"]["b"],
                              p["conv2_2"]["w"], p["conv2_2"]["b"])
    x = group_norm(x, p["n3"]["g"], p["n3"]["b"])
    # conv3 with the block-level residual (shortcut) fused into the epilogue.
    x = conv1x1(x, p["conv3"]["w"], p["conv3"]["b"], residual=shortcut)
    return x


def snnmlp_forward(params, x_nchw, patch_size):
    N, Cin, H, W = x_nchw.shape
    P = patch_size
    Hp, Wp = H // P, W // P

    # PatchEmbed: kernel=stride=P conv == im2col (glue) + tiled Pallas matmul.
    xcol = (x_nchw.reshape(N, Cin, Hp, P, Wp, P)
            .transpose(0, 2, 4, 1, 3, 5)
            .reshape(N * Hp * Wp, Cin * P * P))
    pe = params["patch_embed"]
    x = pallas_linear(xcol, pe["proj"]["w"], pe["proj"]["b"]).reshape(N, Hp, Wp, -1)
    x = group_norm(x, pe["norm"]["g"], pe["norm"]["b"])
    # pos_drop: identity (inference)

    for layer in params["layers"]:
        for blk in layer["blocks"]:
            shortcut = x
            y = group_norm(x, blk["norm1"]["g"], blk["norm1"]["b"])
            x = lif_module_fwd(y, blk["lif"], shortcut)          # drop_path: identity
            y = group_norm(x, blk["norm2"]["g"], blk["norm2"]["b"])
            y = conv1x1(y, blk["mlp"]["fc1"]["w"], blk["mlp"]["fc1"]["b"], act=True)
            x = conv1x1(y, blk["mlp"]["fc2"]["w"], blk["mlp"]["fc2"]["b"], residual=x)
        if "downsample" in layer:
            d = layer["downsample"]
            x = _space_to_depth(x)
            x = group_norm(x, d["norm"]["g"], d["norm"]["b"])
            x = conv1x1(x, d["reduction"]["w"], d["reduction"]["b"])  # bias=False (zeros)

    # Final GroupNorm + AdaptiveAvgPool2d(1) + head fused into one kernel.
    logits = gn_pool_head(x, params["norm"]["g"], params["norm"]["b"],
                          params["head"]["w"], params["head"]["b"])
    return logits


# --------------------------------- main -------------------------------------

if __name__ == "__main__":
    cfg = dict(img_size=16, patch_size=4, in_chans=3, embed_dim=16,
               depths=[1, 1], mlp_ratio=2.0, num_classes=10)

    key = jax.random.PRNGKey(0)
    kp, kx = jax.random.split(key)
    params = build_params(kp, **cfg)

    x = jax.random.normal(
        kx, (2, cfg["in_chans"], cfg["img_size"], cfg["img_size"]), jnp.float32)

    fwd = jax.jit(partial(snnmlp_forward, patch_size=cfg["patch_size"]))
    logits = fwd(params, x)
    jax.block_until_ready(logits)
    assert logits.shape == (2, cfg["num_classes"])
    assert bool(jnp.all(jnp.isfinite(logits)))
    print("KERNEL_OK")
</pallas_src>

<mosaic_0001>
module attributes {stable_mosaic.version = 11 : i64} {
  func.func @_gn_kernel(%arg0: i32, %arg1: memref<1x16x16xf32, #tpu.memory_space<vmem>>, %arg2: memref<1x16xf32, #tpu.memory_space<vmem>>, %arg3: memref<1x16xf32, #tpu.memory_space<vmem>>, %arg4: memref<1x16x16xf32, #tpu.memory_space<vmem>>) attributes {dimension_semantics = [#tpu.dimension_semantics<parallel>], iteration_bounds = array<i64: 2>, scalar_prefetch = 0 : i64, scratch_operands = 0 : i64, tpu.core_type = #tpu.core_type<tc>, window_params = [{transform_indices = @transform_0, window_bounds = array<i64: 1, 16, 16>}, {pipeline_mode = #tpu.pipeline_mode<synchronous>, transform_indices = @transform_1, window_bounds = array<i64: 1, 16>}, {pipeline_mode = #tpu.pipeline_mode<synchronous>, transform_indices = @transform_2, window_bounds = array<i64: 1, 16>}, {transform_indices = @transform_3, window_bounds = array<i64: 1, 16, 16>}]} {
    %c0 = arith.constant 0 : index
    %c0_0 = arith.constant 0 : index
    %c0_1 = arith.constant 0 : index
    %0 = vector.load %arg1[%c0, %c0_0, %c0_1] : memref<1x16x16xf32, #tpu.memory_space<vmem>>, vector<1x16x16xf32>
    %1 = vector.shape_cast %0 : vector<1x16x16xf32> to vector<16x16xf32>
    %cst = arith.constant dense<0.000000e+00> : vector<16xf32>
    %2 = vector.multi_reduction <add>, %1, %cst [0] : vector<16x16xf32> to vector<16xf32>
    %3 = vector.shape_cast %2 : vector<16xf32> to vector<1x16xf32>
    %4 = arith.mulf %1, %1 : vector<16x16xf32>
    %cst_2 = arith.constant dense<0.000000e+00> : vector<16xf32>
    %5 = vector.multi_reduction <add>, %4, %cst_2 [0] : vector<16x16xf32> to vector<16xf32>
    %6 = vector.shape_cast %5 : vector<16xf32> to vector<1x16xf32>
    %cst_3 = arith.constant dense<0.000000e+00> : vector<1xf32>
    %7 = vector.multi_reduction <add>, %3, %cst_3 [1] : vector<1x16xf32> to vector<1xf32>
    %8 = vector.shape_cast %7 : vector<1xf32> to vector<1x1xf32>
    %cst_4 = arith.constant 3.906250e-03 : f32
    %9 = vector.broadcast %cst_4 : f32 to vector<1x1xf32>
    %10 = arith.mulf %8, %9 : vector<1x1xf32>
    %cst_5 = arith.constant dense<0.000000e+00> : vector<1xf32>
    %11 = vector.multi_reduction <add>, %6, %cst_5 [1] : vector<1x16xf32> to vector<1xf32>
    %12 = vector.shape_cast %11 : vector<1xf32> to vector<1x1xf32>
    %cst_6 = arith.constant 3.906250e-03 : f32
    %13 = vector.broadcast %cst_6 : f32 to vector<1x1xf32>
    %14 = arith.mulf %12, %13 : vector<1x1xf32>
    %15 = arith.mulf %10, %10 : vector<1x1xf32>
    %16 = arith.subf %14, %15 : vector<1x1xf32>
    %cst_7 = arith.constant 0.000000e+00 : f32
    %17 = vector.broadcast %cst_7 : f32 to vector<1x1xf32>
    %18 = arith.maximumf %16, %17 : vector<1x1xf32>
    %cst_8 = arith.constant 9.99999974E-6 : f32
    %19 = vector.broadcast %cst_8 : f32 to vector<1x1xf32>
    %20 = arith.addf %18, %19 : vector<1x1xf32>
    %21 = math.rsqrt %20 : vector<1x1xf32>
    %22 = vector.broadcast %10 : vector<1x1xf32> to vector<16x16xf32>
    %23 = arith.subf %1, %22 : vector<16x16xf32>
    %24 = vector.broadcast %21 : vector<1x1xf32> to vector<16x16xf32>
    %25 = arith.mulf %23, %24 : vector<16x16xf32>
    %c0_9 = arith.constant 0 : index
    %c0_10 = arith.constant 0 : index
    %26 = vector.load %arg2[%c0_9, %c0_10] : memref<1x16xf32, #tpu.memory_space<vmem>>, vector<1x16xf32>
    %27 = vector.broadcast %26 : vector<1x16xf32> to vector<16x16xf32>
    %28 = arith.mulf %25, %27 : vector<16x16xf32>
    %c0_11 = arith.constant 0 : index
    %c0_12 = arith.constant 0 : index
    %29 = vector.load %arg3[%c0_11, %c0_12] : memref<1x16xf32, #tpu.memory_space<vmem>>, vector<1x16xf32>
    %30 = vector.broadcast %29 : vector<1x16xf32> to vector<16x16xf32>
    %31 = arith.addf %28, %30 : vector<16x16xf32>
    %c0_13 = arith.constant 0 : index
    %c0_14 = arith.constant 0 : index
    %c0_15 = arith.constant 0 : index
    %32 = vector.load %arg4[%c0_13, %c0_14, %c0_15] : memref<1x16x16xf32, #tpu.memory_space<vmem>>, vector<1x16x16xf32>
    %33 = vector.shape_cast %32 : vector<1x16x16xf32> to vector<16x16xf32>
    %34 = vector.shape_cast %31 : vector<16x16xf32> to vector<1x16x16xf32>
    tpu.vector_store %arg4[%c0_13, %c0_14, %c0_15], %34 {strides = array<i32>} : memref<1x16x16xf32, #tpu.memory_space<vmem>>, vector<1x16x16xf32>,
    return
  }
  func.func @transform_0(%arg0: i32) -> (i32, i32, i32) {
    %c0_i32 = arith.constant 0 : i32
    %c0_i32_0 = arith.constant 0 : i32
    %c0_i32_1 = arith.constant 0 : i32
    return %arg0, %c0_i32, %c0_i32_0 : i32, i32, i32
  }
  func.func @transform_1(%arg0: i32) -> (i32, i32) {
    %c0_i32 = arith.constant 0 : i32
    %c0_i32_0 = arith.constant 0 : i32
    %c0_i32_1 = arith.constant 0 : i32
    return %c0_i32, %c0_i32_0 : i32, i32
  }
  func.func @transform_2(%arg0: i32) -> (i32, i32) {
    %c0_i32 = arith.constant 0 : i32
    %c0_i32_0 = arith.constant 0 : i32
    %c0_i32_1 = arith.constant 0 : i32
    return %c0_i32, %c0_i32_0 : i32, i32
  }
  func.func @transform_3(%arg0: i32) -> (i32, i32, i32) {
    %c0_i32 = arith.constant 0 : i32
    %c0_i32_0 = arith.constant 0 : i32
    %c0_i32_1 = arith.constant 0 : i32
    return %arg0, %c0_i32, %c0_i32_0 : i32, i32, i32
  }
}

module attributes {stable_mosaic.version = 11 : i64} {
  func.func @_mm_kernel(%arg0: i32, %arg1: i32, %arg2: i32, %arg3: memref<32x48xf32, #tpu.memory_space<vmem>>, %arg4: memref<48x16xf32, #tpu.memory_space<vmem>>, %arg5: memref<1x16xf32, #tpu.memory_space<vmem>>, %arg6: memref<32x16xf32, #tpu.memory_space<vmem>>, %arg7: memref<32x16xf32, #tpu.memory_space<vmem>>) attributes {dimension_semantics = [#tpu.dimension_semantics<parallel>, #tpu.dimension_semantics<parallel>, #tpu.dimension_semantics<arbitrary>], iteration_bounds = array<i64: 1, 1, 1>, scalar_prefetch = 0 : i64, scratch_operands = 1 : i64, tpu.core_type = #tpu.core_type<tc>, window_params = [{transform_indices = @transform_0, window_bounds = array<i64: 32, 48>}, {transform_indices = @transform_1, window_bounds = array<i64: 48, 16>}, {transform_indices = @transform_2, window_bounds = array<i64: 1, 16>}, {transform_indices = @transform_3, window_bounds = array<i64: 32, 16>}]} {
    %c0_i32 = arith.constant 0 : i32
    %0 = arith.cmpi eq, %arg2, %c0_i32 : i32
    %1 = arith.extui %0 : i1 to i32
    %c0_i32_0 = arith.constant 0 : i32
    %2 = arith.cmpi ne, %1, %c0_i32_0 : i32
    scf.if %2 {
      %cst_10 = arith.constant 0.000000e+00 : f32
      %14 = vector.broadcast %cst_10 : f32 to vector<32x16xf32>
      %c0_11 = arith.constant 0 : index
      %c0_12 = arith.constant 0 : index
      %15 = vector.load %arg7[%c0_11, %c0_12] : memref<32x16xf32, #tpu.memory_space<vmem>>, vector<32x16xf32>
      tpu.vector_store %arg7[%c0_11, %c0_12], %14 {strides = array<i32>} : memref<32x16xf32, #tpu.memory_space<vmem>>, vector<32x16xf32>,
    } else {
    }
    %c0 = arith.constant 0 : index
    %c0_1 = arith.constant 0 : index
    %3 = vector.load %arg7[%c0, %c0_1] : memref<32x16xf32, #tpu.memory_space<vmem>>, vector<32x16xf32>
    %c0_2 = arith.constant 0 : index
    %c0_3 = arith.constant 0 : index
    %4 = vector.load %arg3[%c0_2, %c0_3] : memref<32x48xf32, #tpu.memory_space<vmem>>, vector<32x48xf32>
    %5 = arith.truncf %4 : vector<32x48xf32> to vector<32x48xbf16>
    %c0_4 = arith.constant 0 : index
    %c0_5 = arith.constant 0 : index
    %6 = vector.load %arg4[%c0_4, %c0_5] : memref<48x16xf32, #tpu.memory_space<vmem>>, vector<48x16xf32>
    %7 = arith.truncf %6 : vector<48x16xf32> to vector<48x16xbf16>
    %cst = arith.constant dense<0.000000e+00> : vector<32x16xf32>
    %8 = tpu.matmul %5, %7, %cst {dimension_numbers = #tpu.dot_dimension_numbers<[1], [0], [0], [1], [0, 0, 1, 1], [], []>} : vector<32x48xbf16>, vector<48x16xbf16>, vector<32x16xf32> -> vector<32x16xf32>
    %9 = arith.addf %3, %8 : vector<32x16xf32>
    %c0_6 = arith.constant 0 : index
    %c0_7 = arith.constant 0 : index
    %10 = vector.load %arg7[%c0_6, %c0_7] : memref<32x16xf32, #tpu.memory_space<vmem>>, vector<32x16xf32>
    tpu.vector_store %arg7[%c0_6, %c0_7], %9 {strides = array<i32>} : memref<32x16xf32, #tpu.memory_space<vmem>>, vector<32x16xf32>,
    %c0_i32_8 = arith.constant 0 : i32
    %11 = arith.cmpi eq, %arg2, %c0_i32_8 : i32
    %12 = arith.extui %11 : i1 to i32
    %c0_i32_9 = arith.constant 0 : i32
    %13 = arith.cmpi ne, %12, %c0_i32_9 : i32
    scf.if %13 {
      %c0_10 = arith.constant 0 : index
      %c0_11 = arith.constant 0 : index
      %14 = vector.load %arg7[%c0_10, %c0_11] : memref<32x16xf32, #tpu.memory_space<vmem>>, vector<32x16xf32>
      %c0_12 = arith.constant 0 : index
      %c0_13 = arith.constant 0 : index
      %15 = vector.load %arg5[%c0_12, %c0_13] : memref<1x16xf32, #tpu.memory_space<vmem>>, vector<1x16xf32>
      %16 = vector.broadcast %15 : vector<1x16xf32> to vector<32x16xf32>
      %17 = arith.addf %14, %16 : vector<32x16xf32>
      %c0_14 = arith.constant 0 : index
      %c0_15 = arith.constant 0 : index
      %18 = vector.load %arg6[%c0_14, %c0_15] : memref<32x16xf32, #tpu.memory_space<vmem>>, vector<32x16xf32>
      tpu.vector_store %arg6[%c0_14, %c0_15], %17 {strides = array<i32>} : memref<32x16xf32, #tpu.memory_space<vmem>>, vector<32x16xf32>,
    } else {
    }
    return
  }
  func.func @transform_0(%arg0: i32, %arg1: i32, %arg2: i32) -> (i32, i32) {
    %c0_i32 = arith.constant 0 : i32
    return %arg0, %arg2 : i32, i32
  }
  func.func @transform_1(%arg0: i32, %arg1: i32, %arg2: i32) -> (i32, i32) {
    %c0_i32 = arith.constant 0 : i32
    return %arg2, %arg1 : i32, i32
  }
  func.func @transform_2(%arg0: i32, %arg1: i32, %arg2: i32) -> (i32, i32) {
    %c0_i32 = arith.constant 0 : i32
    %c0_i32_0 = arith.constant 0 : i32
    return %c0_i32, %arg1 : i32, i32
  }
  func.func @transform_3(%arg0: i32, %arg1: i32, %arg2: i32) -> (i32, i32) {
    %c0_i32 = arith.constant 0 : i32
    return %arg0, %arg1 : i32, i32
  }
}

module attributes {stable_mosaic.version = 11 : i64} {
  func.func @_gn_kernel(%arg0: i32, %arg1: memref<1x16x16xf32, #tpu.memory_space<vmem>>, %arg2: memref<1x16xf32, #tpu.memory_space<vmem>>, %arg3: memref<1x16xf32, #tpu.memory_space<vmem>>, %arg4: memref<1x16x16xf32, #tpu.memory_space<vmem>>) attributes {dimension_semantics = [#tpu.dimension_semantics<parallel>], iteration_bounds = array<i64: 2>, scalar_prefetch = 0 : i64, scratch_operands = 0 : i64, tpu.core_type = #tpu.core_type<tc>, window_params = [{transform_indices = @transform_0, window_bounds = array<i64: 1, 16, 16>}, {pipeline_mode = #tpu.pipeline_mode<synchronous>, transform_indices = @transform_1, window_bounds = array<i64: 1, 16>}, {pipeline_mode = #tpu.pipeline_mode<synchronous>, transform_indices = @transform_2, window_bounds = array<i64: 1, 16>}, {transform_indices = @transform_3, window_bounds = array<i64: 1, 16, 16>}]} {
    %c0 = arith.constant 0 : index
    %c0_0 = arith.constant 0 : index
    %c0_1 = arith.constant 0 : index
    %0 = vector.load %arg1[%c0, %c0_0, %c0_1] : memref<1x16x16xf32, #tpu.memory_space<vmem>>, vector<1x16x16xf32>
    %1 = vector.shape_cast %0 : vector<1x16x16xf32> to vector<16x16xf32>
    %cst = arith.constant dense<0.000000e+00> : vector<16xf32>
    %2 = vector.multi_reduction <add>, %1, %cst [0] : vector<16x16xf32> to vector<16xf32>
    %3 = vector.shape_cast %2 : vector<16xf32> to vector<1x16xf32>
    %4 = arith.mulf %1, %1 : vector<16x16xf32>
    %cst_2 = arith.constant dense<0.000000e+00> : vector<16xf32>
    %5 = vector.multi_reduction <add>, %4, %cst_2 [0] : vector<16x16xf32> to vector<16xf32>
    %6 = vector.shape_cast %5 : vector<16xf32> to vector<1x16xf32>
    %cst_3 = arith.constant dense<0.000000e+00> : vector<1xf32>
    %7 = vector.multi_reduction <add>, %3, %cst_3 [1] : vector<1x16xf32> to vector<1xf32>
    %8 = vector.shape_cast %7 : vector<1xf32> to vector<1x1xf32>
    %cst_4 = arith.constant 3.906250e-03 : f32
    %9 = vector.broadcast %cst_4 : f32 to vector<1x1xf32>
    %10 = arith.mulf %8, %9 : vector<1x1xf32>
    %cst_5 = arith.constant dense<0.000000e+00> : vector<1xf32>
    %11 = vector.multi_reduction <add>, %6, %cst_5 [1] : vector<1x16xf32> to vector<1xf32>
    %12 = vector.shape_cast %11 : vector<1xf32> to vector<1x1xf32>
    %cst_6 = arith.constant 3.906250e-03 : f32
    %13 = vector.broadcast %cst_6 : f32 to vector<1x1xf32>
    %14 = arith.mulf %12, %13 : vector<1x1xf32>
    %15 = arith.mulf %10, %10 : vector<1x1xf32>
    %16 = arith.subf %14, %15 : vector<1x1xf32>
    %cst_7 = arith.constant 0.000000e+00 : f32
    %17 = vector.broadcast %cst_7 : f32 to vector<1x1xf32>
    %18 = arith.maximumf %16, %17 : vector<1x1xf32>
    %cst_8 = arith.constant 9.99999974E-6 : f32
    %19 = vector.broadcast %cst_8 : f32 to vector<1x1xf32>
    %20 = arith.addf %18, %19 : vector<1x1xf32>
    %21 = math.rsqrt %20 : vector<1x1xf32>
    %22 = vector.broadcast %10 : vector<1x1xf32> to vector<16x16xf32>
    %23 = arith.subf %1, %22 : vector<16x16xf32>
    %24 = vector.broadcast %21 : vector<1x1xf32> to vector<16x16xf32>
    %25 = arith.mulf %23, %24 : vector<16x16xf32>
    %c0_9 = arith.constant 0 : index
    %c0_10 = arith.constant 0 : index
    %26 = vector.load %arg2[%c0_9, %c0_10] : memref<1x16xf32, #tpu.memory_space<vmem>>, vector<1x16xf32>
    %27 = vector.broadcast %26 : vector<1x16xf32> to vector<16x16xf32>
    %28 = arith.mulf %25, %27 : vector<16x16xf32>
    %c0_11 = arith.constant 0 : index
    %c0_12 = arith.constant 0 : index
    %29 = vector.load %arg3[%c0_11, %c0_12] : memref<1x16xf32, #tpu.memory_space<vmem>>, vector<1x16xf32>
    %30 = vector.broadcast %29 : vector<1x16xf32> to vector<16x16xf32>
    %31 = arith.addf %28, %30 : vector<16x16xf32>
    %cst_13 = arith.constant 5.000000e-01 : f32
    %32 = vector.broadcast %cst_13 : f32 to vector<16x16xf32>
    %33 = arith.mulf %32, %31 : vector<16x16xf32>
    %cst_14 = arith.constant 4.471500e-02 : f32
    %34 = vector.broadcast %cst_14 : f32 to vector<16x16xf32>
    %35 = arith.mulf %34, %31 : vector<16x16xf32>
    %36 = arith.mulf %35, %31 : vector<16x16xf32>
    %37 = arith.mulf %36, %31 : vector<16x16xf32>
    %38 = arith.addf %31, %37 : vector<16x16xf32>
    %cst_15 = arith.constant 0.797884583 : f32
    %39 = vector.broadcast %cst_15 : f32 to vector<16x16xf32>
    %40 = arith.mulf %39, %38 : vector<16x16xf32>
    %41 = math.tanh %40 : vector<16x16xf32>
    %cst_16 = arith.constant 1.000000e+00 : f32
    %42 = vector.broadcast %cst_16 : f32 to vector<16x16xf32>
    %43 = arith.addf %42, %41 : vector<16x16xf32>
    %44 = arith.mulf %33, %43 : vector<16x16xf32>
    %c0_17 = arith.constant 0 : index
    %c0_18 = arith.constant 0 : index
    %c0_19 = arith.constant 0 : index
    %45 = vector.load %arg4[%c0_17, %c0_18, %c0_19] : memref<1x16x16xf32, #tpu.memory_space<vmem>>, vector<1x16x16xf32>
    %46 = vector.shape_cast %45 : vector<1x16x16xf32> to vector<16x16xf32>
    %47 = vector.shape_cast %44 : vector<16x16xf32> to vector<1x16x16xf32>
    tpu.vector_store %arg4[%c0_17, %c0_18, %c0_19], %47 {strides = array<i32>} : memref<1x16x16xf32, #tpu.memory_space<vmem>>, vector<1x16x16xf32>,
    return
  }
  func.func @transform_0(%arg0: i32) -> (i32, i32, i32) {
    %c0_i32 = arith.constant 0 : i32
    %c0_i32_0 = arith.constant 0 : i32
    %c0_i32_1 = arith.constant 0 : i32
    return %arg0, %c0_i32, %c0_i32_0 : i32, i32, i32
  }
  func.func @transform_1(%arg0: i32) -> (i32, i32) {
    %c0_i32 = arith.constant 0 : i32
    %c0_i32_0 = arith.constant 0 : i32
    %c0_i32_1 = arith.constant 0 : i32
    return %c0_i32, %c0_i32_0 : i32, i32
  }
  func.func @transform_2(%arg0: i32) -> (i32, i32) {
    %c0_i32 = arith.constant 0 : i32
    %c0_i32_0 = arith.constant 0 : i32
    %c0_i32_1 = arith.constant 0 : i32
    return %c0_i32, %c0_i32_0 : i32, i32
  }
  func.func @transform_3(%arg0: i32) -> (i32, i32, i32) {
    %c0_i32 = arith.constant 0 : i32
    %c0_i32_0 = arith.constant 0 : i32
    %c0_i32_1 = arith.constant 0 : i32
    return %arg0, %c0_i32, %c0_i32_0 : i32, i32, i32
  }
}

module attributes {stable_mosaic.version = 11 : i64} {
  func.func @_mm_kernel(%arg0: i32, %arg1: i32, %arg2: i32, %arg3: memref<32x16xf32, #tpu.memory_space<vmem>>, %arg4: memref<16x16xf32, #tpu.memory_space<vmem>>, %arg5: memref<1x16xf32, #tpu.memory_space<vmem>>, %arg6: memref<32x16xf32, #tpu.memory_space<vmem>>, %arg7: memref<32x16xf32, #tpu.memory_space<vmem>>) attributes {dimension_semantics = [#tpu.dimension_semantics<parallel>, #tpu.dimension_semantics<parallel>, #tpu.dimension_semantics<arbitrary>], iteration_bounds = array<i64: 1, 1, 1>, scalar_prefetch = 0 : i64, scratch_operands = 1 : i64, tpu.core_type = #tpu.core_type<tc>, window_params = [{transform_indices = @transform_0, window_bounds = array<i64: 32, 16>}, {transform_indices = @transform_1, window_bounds = array<i64: 16, 16>}, {transform_indices = @transform_2, window_bounds = array<i64: 1, 16>}, {transform_indices = @transform_3, window_bounds = array<i64: 32, 16>}]} {
    %c0_i32 = arith.constant 0 : i32
    %0 = arith.cmpi eq, %arg2, %c0_i32 : i32
    %1 = arith.extui %0 : i1 to i32
    %c0_i32_0 = arith.constant 0 : i32
    %2 = arith.cmpi ne, %1, %c0_i32_0 : i32
    scf.if %2 {
      %cst_10 = arith.constant 0.000000e+00 : f32
      %14 = vector.broadcast %cst_10 : f32 to vector<32x16xf32>
      %c0_11 = arith.constant 0 : index
      %c0_12 = arith.constant 0 : index
      %15 = vector.load %arg7[%c0_11, %c0_12] : memref<32x16xf32, #tpu.memory_space<vmem>>, vector<32x16xf32>
      tpu.vector_store %arg7[%c0_11, %c0_12], %14 {strides = array<i32>} : memref<32x16xf32, #tpu.memory_space<vmem>>, vector<32x16xf32>,
    } else {
    }
    %c0 = arith.constant 0 : index
    %c0_1 = arith.constant 0 : index
    %3 = vector.load %arg7[%c0, %c0_1] : memref<32x16xf32, #tpu.memory_space<vmem>>, vector<32x16xf32>
    %c0_2 = arith.constant 0 : index
    %c0_3 = arith.constant 0 : index
    %4 = vector.load %arg3[%c0_2, %c0_3] : memref<32x16xf32, #tpu.memory_space<vmem>>, vector<32x16xf32>
    %5 = arith.truncf %4 : vector<32x16xf32> to vector<32x16xbf16>
    %c0_4 = arith.constant 0 : index
    %c0_5 = arith.constant 0 : index
    %6 = vector.load %arg4[%c0_4, %c0_5] : memref<16x16xf32, #tpu.memory_space<vmem>>, vector<16x16xf32>
    %7 = arith.truncf %6 : vector<16x16xf32> to vector<16x16xbf16>
    %cst = arith.constant dense<0.000000e+00> : vector<32x16xf32>
    %8 = tpu.matmul %5, %7, %cst {dimension_numbers = #tpu.dot_dimension_numbers<[1], [0], [0], [1], [0, 0, 1, 1], [], []>} : vector<32x16xbf16>, vector<16x16xbf16>, vector<32x16xf32> -> vector<32x16xf32>
    %9 = arith.addf %3, %8 : vector<32x16xf32>
    %c0_6 = arith.constant 0 : index
    %c0_7 = arith.constant 0 : index
    %10 = vector.load %arg7[%c0_6, %c0_7] : memref<32x16xf32, #tpu.memory_space<vmem>>, vector<32x16xf32>
    tpu.vector_store %arg7[%c0_6, %c0_7], %9 {strides = array<i32>} : memref<32x16xf32, #tpu.memory_space<vmem>>, vector<32x16xf32>,
    %c0_i32_8 = arith.constant 0 : i32
    %11 = arith.cmpi eq, %arg2, %c0_i32_8 : i32
    %12 = arith.extui %11 : i1 to i32
    %c0_i32_9 = arith.constant 0 : i32
    %13 = arith.cmpi ne, %12, %c0_i32_9 : i32
    scf.if %13 {
      %c0_10 = arith.constant 0 : index
      %c0_11 = arith.constant 0 : index
      %14 = vector.load %arg7[%c0_10, %c0_11] : memref<32x16xf32, #tpu.memory_space<vmem>>, vector<32x16xf32>
      %c0_12 = arith.constant 0 : index
      %c0_13 = arith.constant 0 : index
      %15 = vector.load %arg5[%c0_12, %c0_13] : memref<1x16xf32, #tpu.memory_space<vmem>>, vector<1x16xf32>
      %16 = vector.broadcast %15 : vector<1x16xf32> to vector<32x16xf32>
      %17 = arith.addf %14, %16 : vector<32x16xf32>
      %c0_14 = arith.constant 0 : index
      %c0_15 = arith.constant 0 : index
      %18 = vector.load %arg6[%c0_14, %c0_15] : memref<32x16xf32, #tpu.memory_space<vmem>>, vector<32x16xf32>
      tpu.vector_store %arg6[%c0_14, %c0_15], %17 {strides = array<i32>} : memref<32x16xf32, #tpu.memory_space<vmem>>, vector<32x16xf32>,
    } else {
    }
    return
  }
  func.func @transform_0(%arg0: i32, %arg1: i32, %arg2: i32) -> (i32, i32) {
    %c0_i32 = arith.constant 0 : i32
    return %arg0, %arg2 : i32, i32
  }
  func.func @transform_1(%arg0: i32, %arg1: i32, %arg2: i32) -> (i32, i32) {
    %c0_i32 = arith.constant 0 : i32
    return %arg2, %arg1 : i32, i32
  }
  func.func @transform_2(%arg0: i32, %arg1: i32, %arg2: i32) -> (i32, i32) {
    %c0_i32 = arith.constant 0 : i32
    %c0_i32_0 = arith.constant 0 : i32
    return %c0_i32, %arg1 : i32, i32
  }
  func.func @transform_3(%arg0: i32, %arg1: i32, %arg2: i32) -> (i32, i32) {
    %c0_i32 = arith.constant 0 : i32
    return %arg0, %arg1 : i32, i32
  }
}

module attributes {stable_mosaic.version = 11 : i64} {
  func.func @_dw3x3_kernel(%arg0: i32, %arg1: memref<1x4x4x16xf32, #tpu.memory_space<vmem>>, %arg2: memref<3x3x16xf32, #tpu.memory_space<vmem>>, %arg3: memref<1x16xf32, #tpu.memory_space<vmem>>, %arg4: memref<1x4x4x16xf32, #tpu.memory_space<vmem>>) attributes {dimension_semantics = [#tpu.dimension_semantics<parallel>], iteration_bounds = array<i64: 2>, scalar_prefetch = 0 : i64, scratch_operands = 0 : i64, tpu.core_type = #tpu.core_type<tc>, window_params = [{transform_indices = @transform_0, window_bounds = array<i64: 1, 4, 4, 16>}, {pipeline_mode = #tpu.pipeline_mode<synchronous>, transform_indices = @transform_1, window_bounds = array<i64: 3, 3, 16>}, {pipeline_mode = #tpu.pipeline_mode<synchronous>, transform_indices = @transform_2, window_bounds = array<i64: 1, 16>}, {transform_indices = @transform_3, window_bounds = array<i64: 1, 4, 4, 16>}]} {
    %c0 = arith.constant 0 : index
    %c0_0 = arith.constant 0 : index
    %c0_1 = arith.constant 0 : index
    %c0_2 = arith.constant 0 : index
    %0 = vector.load %arg1[%c0, %c0_0, %c0_1, %c0_2] : memref<1x4x4x16xf32, #tpu.memory_space<vmem>>, vector<1x4x4x16xf32>
    %1 = vector.shape_cast %0 : vector<1x4x4x16xf32> to vector<4x4x16xf32>
    %c0_3 = arith.constant 0 : index
    %c0_4 = arith.constant 0 : index
    %c0_5 = arith.constant 0 : index
    %2 = vector.load %arg2[%c0_3, %c0_4, %c0_5] : memref<3x3x16xf32, #tpu.memory_space<vmem>>, vector<3x3x16xf32>
    %cst = arith.constant 0.000000e+00 : f32
    %3 = vector.broadcast %cst : f32 to vector<4x4x16xf32>
    %cst_6 = arith.constant 0.000000e+00 : f32
    %4 = vector.broadcast %cst_6 : f32 to vector<1x4x16xf32>
    %5 = vector.extract_strided_slice %1 {offsets = [0, 0, 0], sizes = [3, 4, 16], strides = [1, 1, 1]} : vector<4x4x16xf32> to vector<3x4x16xf32>
    %6 = tpu.concatenate %4, %5 in 0 : vector<1x4x16xf32>, vector<3x4x16xf32> -> vector<4x4x16xf32>
    %cst_7 = arith.constant 0.000000e+00 : f32
    %7 = vector.broadcast %cst_7 : f32 to vector<4x1x16xf32>
    %8 = vector.extract_strided_slice %6 {offsets = [0, 0, 0], sizes = [4, 3, 16], strides = [1, 1, 1]} : vector<4x4x16xf32> to vector<4x3x16xf32>
    %9 = tpu.concatenate %7, %8 in 1 : vector<4x1x16xf32>, vector<4x3x16xf32> -> vector<4x4x16xf32>
    %10 = vector.extract_strided_slice %2 {offsets = [0, 0, 0], sizes = [1, 1, 16], strides = [1, 1, 1]} : vector<3x3x16xf32> to vector<1x1x16xf32>
    %11 = vector.broadcast %10 : vector<1x1x16xf32> to vector<4x4x16xf32>
    %12 = arith.mulf %9, %11 : vector<4x4x16xf32>
    %13 = arith.addf %3, %12 : vector<4x4x16xf32>
    %14 = vector.extract_strided_slice %2 {offsets = [0, 1, 0], sizes = [1, 1, 16], strides = [1, 1, 1]} : vector<3x3x16xf32> to vector<1x1x16xf32>
    %15 = vector.broadcast %14 : vector<1x1x16xf32> to vector<4x4x16xf32>
    %16 = arith.mulf %6, %15 : vector<4x4x16xf32>
    %17 = arith.addf %13, %16 : vector<4x4x16xf32>
    %cst_8 = arith.constant 0.000000e+00 : f32
    %18 = vector.broadcast %cst_8 : f32 to vector<4x1x16xf32>
    %19 = vector.extract_strided_slice %6 {offsets = [0, 1, 0], sizes = [4, 3, 16], strides = [1, 1, 1]} : vector<4x4x16xf32> to vector<4x3x16xf32>
    %20 = tpu.concatenate %19, %18 in 1 : vector<4x3x16xf32>, vector<4x1x16xf32> -> vector<4x4x16xf32>
    %21 = vector.extract_strided_slice %2 {offsets = [0, 2, 0], sizes = [1, 1, 16], strides = [1, 1, 1]} : vector<3x3x16xf32> to vector<1x1x16xf32>
    %22 = vector.broadcast %21 : vector<1x1x16xf32> to vector<4x4x16xf32>
    %23 = arith.mulf %20, %22 : vector<4x4x16xf32>
    %24 = arith.addf %17, %23 : vector<4x4x16xf32>
    %cst_9 = arith.constant 0.000000e+00 : f32
    %25 = vector.broadcast %cst_9 : f32 to vector<4x1x16xf32>
    %26 = vector.extract_strided_slice %1 {offsets = [0, 0, 0], sizes = [4, 3, 16], strides = [1, 1, 1]} : vector<4x4x16xf32> to vector<4x3x16xf32>
    %27 = tpu.concatenate %25, %26 in 1 : vector<4x1x16xf32>, vector<4x3x16xf32> -> vector<4x4x16xf32>
    %28 = vector.extract_strided_slice %2 {offsets = [1, 0, 0], sizes = [1, 1, 16], strides = [1, 1, 1]} : vector<3x3x16xf32> to vector<1x1x16xf32>
    %29 = vector.broadcast %28 : vector<1x1x16xf32> to vector<4x4x16xf32>
    %30 = arith.mulf %27, %29 : vector<4x4x16xf32>
    %31 = arith.addf %24, %30 : vector<4x4x16xf32>
    %32 = vector.extract_strided_slice %2 {offsets = [1, 1, 0], sizes = [1, 1, 16], strides = [1, 1, 1]} : vector<3x3x16xf32> to vector<1x1x16xf32>
    %33 = vector.broadcast %32 : vector<1x1x16xf32> to vector<4x4x16xf32>
    %34 = arith.mulf %1, %33 : vector<4x4x16xf32>
    %35 = arith.addf %31, %34 : vector<4x4x16xf32>
    %cst_10 = arith.constant 0.000000e+00 : f32
    %36 = vector.broadcast %cst_10 : f32 to vector<4x1x16xf32>
    %37 = vector.extract_strided_slice %1 {offsets = [0, 1, 0], sizes = [4, 3, 16], strides = [1, 1, 1]} : vector<4x4x16xf32> to vector<4x3x16xf32>
    %38 = tpu.concatenate %37, %36 in 1 : vector<4x3x16xf32>, vector<4x1x16xf32> -> vector<4x4x16xf32>
    %39 = vector.extract_strided_slice %2 {offsets = [1, 2, 0], sizes = [1, 1, 16], strides = [1, 1, 1]} : vector<3x3x16xf32> to vector<1x1x16xf32>
    %40 = vector.broadcast %39 : vector<1x1x16xf32> to vector<4x4x16xf32>
    %41 = arith.mulf %38, %40 : vector<4x4x16xf32>
    %42 = arith.addf %35, %41 : vector<4x4x16xf32>
    %cst_11 = arith.constant 0.000000e+00 : f32
    %43 = vector.broadcast %cst_11 : f32 to vector<1x4x16xf32>
    %44 = vector.extract_strided_slice %1 {offsets = [1, 0, 0], sizes = [3, 4, 16], strides = [1, 1, 1]} : vector<4x4x16xf32> to vector<3x4x16xf32>
    %45 = tpu.concatenate %44, %43 in 0 : vector<3x4x16xf32>, vector<1x4x16xf32> -> vector<4x4x16xf32>
    %cst_12 = arith.constant 0.000000e+00 : f32
    %46 = vector.broadcast %cst_12 : f32 to vector<4x1x16xf32>
    %47 = vector.extract_strided_slice %45 {offsets = [0, 0, 0], sizes = [4, 3, 16], strides = [1, 1, 1]} : vector<4x4x16xf32> to vector<4x3x16xf32>
    %48 = tpu.concatenate %46, %47 in 1 : vector<4x1x16xf32>, vector<4x3x16xf32> -> vector<4x4x16xf32>
    %49 = vector.extract_strided_slice %2 {offsets = [2, 0, 0], sizes = [1, 1, 16], strides = [1, 1, 1]} : vector<3x3x16xf32> to vector<1x1x16xf32>
    %50 = vector.broadcast %49 : vector<1x1x16xf32> to vector<4x4x16xf32>
    %51 = arith.mulf %48, %50 : vector<4x4x16xf32>
    %52 = arith.addf %42, %51 : vector<4x4x16xf32>
    %53 = vector.extract_strided_slice %2 {offsets = [2, 1, 0], sizes = [1, 1, 16], strides = [1, 1, 1]} : vector<3x3x16xf32> to vector<1x1x16xf32>
    %54 = vector.broadcast %53 : vector<1x1x16xf32> to vector<4x4x16xf32>
    %55 = arith.mulf %45, %54 : vector<4x4x16xf32>
    %56 = arith.addf %52, %55 : vector<4x4x16xf32>
    %cst_13 = arith.constant 0.000000e+00 : f32
    %57 = vector.broadcast %cst_13 : f32 to vector<4x1x16xf32>
    %58 = vector.extract_strided_slice %45 {offsets = [0, 1, 0], sizes = [4, 3, 16], strides = [1, 1, 1]} : vector<4x4x16xf32> to vector<4x3x16xf32>
    %59 = tpu.concatenate %58, %57 in 1 : vector<4x3x16xf32>, vector<4x1x16xf32> -> vector<4x4x16xf32>
    %60 = vector.extract_strided_slice %2 {offsets = [2, 2, 0], sizes = [1, 1, 16], strides = [1, 1, 1]} : vector<3x3x16xf32> to vector<1x1x16xf32>
    %61 = vector.broadcast %60 : vector<1x1x16xf32> to vector<4x4x16xf32>
    %62 = arith.mulf %59, %61 : vector<4x4x16xf32>
    %63 = arith.addf %56, %62 : vector<4x4x16xf32>
    %c0_14 = arith.constant 0 : index
    %c0_15 = arith.constant 0 : index
    %64 = vector.load %arg3[%c0_14, %c0_15] : memref<1x16xf32, #tpu.memory_space<vmem>>, vector<1x16xf32>
    %65 = vector.shape_cast %64 : vector<1x16xf32> to vector<1x1x16xf32>
    %66 = vector.broadcast %65 : vector<1x1x16xf32> to vector<4x4x16xf32>
    %67 = arith.addf %63, %66 : vector<4x4x16xf32>
    %c0_16 = arith.constant 0 : index
    %c0_17 = arith.constant 0 : index
    %c0_18 = arith.constant 0 : index
    %c0_19 = arith.constant 0 : index
    %68 = vector.load %arg4[%c0_16, %c0_17, %c0_18, %c0_19] : memref<1x4x4x16xf32, #tpu.memory_space<vmem>>, vector<1x4x4x16xf32>
    %69 = vector.shape_cast %68 : vector<1x4x4x16xf32> to vector<4x4x16xf32>
    %70 = vector.shape_cast %67 : vector<4x4x16xf32> to vector<1x4x4x16xf32>
    tpu.vector_store %arg4[%c0_16, %c0_17, %c0_18, %c0_19], %70 {strides = array<i32>} : memref<1x4x4x16xf32, #tpu.memory_space<vmem>>, vector<1x4x4x16xf32>,
    return
  }
  func.func @transform_0(%arg0: i32) -> (i32, i32, i32, i32) {
    %c0_i32 = arith.constant 0 : i32
    %c0_i32_0 = arith.constant 0 : i32
    %c0_i32_1 = arith.constant 0 : i32
    %c0_i32_2 = arith.constant 0 : i32
    return %arg0, %c0_i32, %c0_i32_0, %c0_i32_1 : i32, i32, i32, i32
  }
  func.func @transform_1(%arg0: i32) -> (i32, i32, i32) {
    %c0_i32 = arith.constant 0 : i32
    %c0_i32_0 = arith.constant 0 : i32
    %c0_i32_1 = arith.constant 0 : i32
    %c0_i32_2 = arith.constant 0 : i32
    return %c0_i32, %c0_i32_0, %c0_i32_1 : i32, i32, i32
  }
  func.func @transform_2(%arg0: i32) -> (i32, i32) {
    %c0_i32 = arith.constant 0 : i32
    %c0_i32_0 = arith.constant 0 : i32
    %c0_i32_1 = arith.constant 0 : i32
    return %c0_i32, %c0_i32_0 : i32, i32
  }
  func.func @transform_3(%arg0: i32) -> (i32, i32, i32, i32) {
    %c0_i32 = arith.constant 0 : i32
    %c0_i32_0 = arith.constant 0 : i32
    %c0_i32_1 = arith.constant 0 : i32
    %c0_i32_2 = arith.constant 0 : i32
    return %arg0, %c0_i32, %c0_i32_0, %c0_i32_1 : i32, i32, i32, i32
  }
}

module attributes {stable_mosaic.version = 11 : i64} {
  func.func @_mm_res_kernel(%arg0: i32, %arg1: i32, %arg2: i32, %arg3: memref<32x16xf32, #tpu.memory_space<vmem>>, %arg4: memref<16x16xf32, #tpu.memory_space<vmem>>, %arg5: memref<1x16xf32, #tpu.memory_space<vmem>>, %arg6: memref<32x16xf32, #tpu.memory_space<vmem>>, %arg7: memref<32x16xf32, #tpu.memory_space<vmem>>, %arg8: memref<32x16xf32, #tpu.memory_space<vmem>>) attributes {dimension_semantics = [#tpu.dimension_semantics<parallel>, #tpu.dimension_semantics<parallel>, #tpu.dimension_semantics<arbitrary>], iteration_bounds = array<i64: 1, 1, 1>, scalar_prefetch = 0 : i64, scratch_operands = 1 : i64, tpu.core_type = #tpu.core_type<tc>, window_params = [{transform_indices = @transform_0, window_bounds = array<i64: 32, 16>}, {transform_indices = @transform_1, window_bounds = array<i64: 16, 16>}, {transform_indices = @transform_2, window_bounds = array<i64: 1, 16>}, {transform_indices = @transform_3, window_bounds = array<i64: 32, 16>}, {transform_indices = @transform_4, window_bounds = array<i64: 32, 16>}]} {
    %c0_i32 = arith.constant 0 : i32
    %0 = arith.cmpi eq, %arg2, %c0_i32 : i32
    %1 = arith.extui %0 : i1 to i32
    %c0_i32_0 = arith.constant 0 : i32
    %2 = arith.cmpi ne, %1, %c0_i32_0 : i32
    scf.if %2 {
      %cst_10 = arith.constant 0.000000e+00 : f32
      %14 = vector.broadcast %cst_10 : f32 to vector<32x16xf32>
      %c0_11 = arith.constant 0 : index
      %c0_12 = arith.constant 0 : index
      %15 = vector.load %arg8[%c0_11, %c0_12] : memref<32x16xf32, #tpu.memory_space<vmem>>, vector<32x16xf32>
      tpu.vector_store %arg8[%c0_11, %c0_12], %14 {strides = array<i32>} : memref<32x16xf32, #tpu.memory_space<vmem>>, vector<32x16xf32>,
    } else {
    }
    %c0 = arith.constant 0 : index
    %c0_1 = arith.constant 0 : index
    %3 = vector.load %arg8[%c0, %c0_1] : memref<32x16xf32, #tpu.memory_space<vmem>>, vector<32x16xf32>
    %c0_2 = arith.constant 0 : index
    %c0_3 = arith.constant 0 : index
    %4 = vector.load %arg3[%c0_2, %c0_3] : memref<32x16xf32, #tpu.memory_space<vmem>>, vector<32x16xf32>
    %5 = arith.truncf %4 : vector<32x16xf32> to vector<32x16xbf16>
    %c0_4 = arith.constant 0 : index
    %c0_5 = arith.constant 0 : index
    %6 = vector.load %arg4[%c0_4, %c0_5] : memref<16x16xf32, #tpu.memory_space<vmem>>, vector<16x16xf32>
    %7 = arith.truncf %6 : vector<16x16xf32> to vector<16x16xbf16>
    %cst = arith.constant dense<0.000000e+00> : vector<32x16xf32>
    %8 = tpu.matmul %5, %7, %cst {dimension_numbers = #tpu.dot_dimension_numbers<[1], [0], [0], [1], [0, 0, 1, 1], [], []>} : vector<32x16xbf16>, vector<16x16xbf16>, vector<32x16xf32> -> vector<32x16xf32>
    %9 = arith.addf %3, %8 : vector<32x16xf32>
    %c0_6 = arith.constant 0 : index
    %c0_7 = arith.constant 0 : index
    %10 = vector.load %arg8[%c0_6, %c0_7] : memref<32x16xf32, #tpu.memory_space<vmem>>, vector<32x16xf32>
    tpu.vector_store %arg8[%c0_6, %c0_7], %9 {strides = array<i32>} : memref<32x16xf32, #tpu.memory_space<vmem>>, vector<32x16xf32>,
    %c0_i32_8 = arith.constant 0 : i32
    %11 = arith.cmpi eq, %arg2, %c0_i32_8 : i32
    %12 = arith.extui %11 : i1 to i32
    %c0_i32_9 = arith.constant 0 : i32
    %13 = arith.cmpi ne, %12, %c0_i32_9 : i32
    scf.if %13 {
      %c0_10 = arith.constant 0 : index
      %c0_11 = arith.constant 0 : index
      %14 = vector.load %arg8[%c0_10, %c0_11] : memref<32x16xf32, #tpu.memory_space<vmem>>, vector<32x16xf32>
      %c0_12 = arith.constant 0 : index
      %c0_13 = arith.constant 0 : index
      %15 = vector.load %arg5[%c0_12, %c0_13] : memref<1x16xf32, #tpu.memory_space<vmem>>, vector<1x16xf32>
      %16 = vector.broadcast %15 : vector<1x16xf32> to vector<32x16xf32>
      %17 = arith.addf %14, %16 : vector<32x16xf32>
      %c0_14 = arith.constant 0 : index
      %c0_15 = arith.constant 0 : index
      %18 = vector.load %arg6[%c0_14, %c0_15] : memref<32x16xf32, #tpu.memory_space<vmem>>, vector<32x16xf32>
      %19 = arith.addf %17, %18 : vector<32x16xf32>
      %c0_16 = arith.constant 0 : index
      %c0_17 = arith.constant 0 : index
      %20 = vector.load %arg7[%c0_16, %c0_17] : memref<32x16xf32, #tpu.memory_space<vmem>>, vector<32x16xf32>
      tpu.vector_store %arg7[%c0_16, %c0_17], %19 {strides = array<i32>} : memref<32x16xf32, #tpu.memory_space<vmem>>, vector<32x16xf32>,
    } else {
    }
    return
  }
  func.func @transform_0(%arg0: i32, %arg1: i32, %arg2: i32) -> (i32, i32) {
    %c0_i32 = arith.constant 0 : i32
    return %arg0, %arg2 : i32, i32
  }
  func.func @transform_1(%arg0: i32, %arg1: i32, %arg2: i32) -> (i32, i32) {
    %c0_i32 = arith.constant 0 : i32
    return %arg2, %arg1 : i32, i32
  }
  func.func @transform_2(%arg0: i32, %arg1: i32, %arg2: i32) -> (i32, i32) {
    %c0_i32 = arith.constant 0 : i32
    %c0_i32_0 = arith.constant 0 : i32
    return %c0_i32, %arg1 : i32, i32
  }
  func.func @transform_3(%arg0: i32, %arg1: i32, %arg2: i32) -> (i32, i32) {
    %c0_i32 = arith.constant 0 : i32
    return %arg0, %arg1 : i32, i32
  }
  func.func @transform_4(%arg0: i32, %arg1: i32, %arg2: i32) -> (i32, i32) {
    %c0_i32 = arith.constant 0 : i32
    return %arg0, %arg1 : i32, i32
  }
}

module attributes {stable_mosaic.version = 11 : i64} {
  func.func @_mm_dual_kernel(%arg0: i32, %arg1: i32, %arg2: i32, %arg3: memref<32x16xf32, #tpu.memory_space<vmem>>, %arg4: memref<16x16xf32, #tpu.memory_space<vmem>>, %arg5: memref<1x16xf32, #tpu.memory_space<vmem>>, %arg6: memref<16x16xf32, #tpu.memory_space<vmem>>, %arg7: memref<1x16xf32, #tpu.memory_space<vmem>>, %arg8: memref<32x16xf32, #tpu.memory_space<vmem>>, %arg9: memref<32x16xf32, #tpu.memory_space<vmem>>, %arg10: memref<32x16xf32, #tpu.memory_space<vmem>>) attributes {dimension_semantics = [#tpu.dimension_semantics<parallel>, #tpu.dimension_semantics<parallel>, #tpu.dimension_semantics<arbitrary>], iteration_bounds = array<i64: 1, 1, 1>, scalar_prefetch = 0 : i64, scratch_operands = 2 : i64, tpu.core_type = #tpu.core_type<tc>, window_params = [{transform_indices = @transform_0, window_bounds = array<i64: 32, 16>}, {transform_indices = @transform_1, window_bounds = array<i64: 16, 16>}, {transform_indices = @transform_2, window_bounds = array<i64: 1, 16>}, {transform_indices = @transform_3, window_bounds = array<i64: 16, 16>}, {transform_indices = @transform_4, window_bounds = array<i64: 1, 16>}, {transform_indices = @transform_5, window_bounds = array<i64: 32, 16>}]} {
    %c0_i32 = arith.constant 0 : i32
    %0 = arith.cmpi eq, %arg2, %c0_i32 : i32
    %1 = arith.extui %0 : i1 to i32
    %c0_i32_0 = arith.constant 0 : i32
    %2 = arith.cmpi ne, %1, %c0_i32_0 : i32
    scf.if %2 {
      %cst_17 = arith.constant 0.000000e+00 : f32
      %20 = vector.broadcast %cst_17 : f32 to vector<32x16xf32>
      %c0_18 = arith.constant 0 : index
      %c0_19 = arith.constant 0 : index
      %21 = vector.load %arg9[%c0_18, %c0_19] : memref<32x16xf32, #tpu.memory_space<vmem>>, vector<32x16xf32>
      tpu.vector_store %arg9[%c0_18, %c0_19], %20 {strides = array<i32>} : memref<32x16xf32, #tpu.memory_space<vmem>>, vector<32x16xf32>,
      %cst_20 = arith.constant 0.000000e+00 : f32
      %22 = vector.broadcast %cst_20 : f32 to vector<32x16xf32>
      %c0_21 = arith.constant 0 : index
      %c0_22 = arith.constant 0 : index
      %23 = vector.load %arg10[%c0_21, %c0_22] : memref<32x16xf32, #tpu.memory_space<vmem>>, vector<32x16xf32>
      tpu.vector_store %arg10[%c0_21, %c0_22], %22 {strides = array<i32>} : memref<32x16xf32, #tpu.memory_space<vmem>>, vector<32x16xf32>,
    } else {
    }
    %c0 = arith.constant 0 : index
    %c0_1 = arith.constant 0 : index
    %3 = vector.load %arg3[%c0, %c0_1] : memref<32x16xf32, #tpu.memory_space<vmem>>, vector<32x16xf32>
    %4 = arith.truncf %3 : vector<32x16xf32> to vector<32x16xbf16>
    %c0_2 = arith.constant 0 : index
    %c0_3 = arith.constant 0 : index
    %5 = vector.load %arg9[%c0_2, %c0_3] : memref<32x16xf32, #tpu.memory_space<vmem>>, vector<32x16xf32>
    %c0_4 = arith.constant 0 : index
    %c0_5 = arith.constant 0 : index
    %6 = vector.load %arg4[%c0_4, %c0_5] : memref<16x16xf32, #tpu.memory_space<vmem>>, vector<16x16xf32>
    %7 = arith.truncf %6 : vector<16x16xf32> to vector<16x16xbf16>
    %cst = arith.constant dense<0.000000e+00> : vector<32x16xf32>
    %8 = tpu.matmul %4, %7, %cst {dimension_numbers = #tpu.dot_dimension_numbers<[1], [0], [0], [1], [0, 0, 1, 1], [], []>} : vector<32x16xbf16>, vector<16x16xbf16>, vector<32x16xf32> -> vector<32x16xf32>
    %9 = arith.addf %5, %8 : vector<32x16xf32>
    %c0_6 = arith.constant 0 : index
    %c0_7 = arith.constant 0 : index
    %10 = vector.load %arg9[%c0_6, %c0_7] : memref<32x16xf32, #tpu.memory_space<vmem>>, vector<32x16xf32>
    tpu.vector_store %arg9[%c0_6, %c0_7], %9 {strides = array<i32>} : memref<32x16xf32, #tpu.memory_space<vmem>>, vector<32x16xf32>,
    %c0_8 = arith.constant 0 : index
    %c0_9 = arith.constant 0 : index
    %11 = vector.load %arg10[%c0_8, %c0_9] : memref<32x16xf32, #tpu.memory_space<vmem>>, vector<32x16xf32>
    %c0_10 = arith.constant 0 : index
    %c0_11 = arith.constant 0 : index
    %12 = vector.load %arg6[%c0_10, %c0_11] : memref<16x16xf32, #tpu.memory_space<vmem>>, vector<16x16xf32>
    %13 = arith.truncf %12 : vector<16x16xf32> to vector<16x16xbf16>
    %cst_12 = arith.constant dense<0.000000e+00> : vector<32x16xf32>
    %14 = tpu.matmul %4, %13, %cst_12 {dimension_numbers = #tpu.dot_dimension_numbers<[1], [0], [0], [1], [0, 0, 1, 1], [], []>} : vector<32x16xbf16>, vector<16x16xbf16>, vector<32x16xf32> -> vector<32x16xf32>
    %15 = arith.addf %11, %14 : vector<32x16xf32>
    %c0_13 = arith.constant 0 : index
    %c0_14 = arith.constant 0 : index
    %16 = vector.load %arg10[%c0_13, %c0_14] : memref<32x16xf32, #tpu.memory_space<vmem>>, vector<32x16xf32>
    tpu.vector_store %arg10[%c0_13, %c0_14], %15 {strides = array<i32>} : memref<32x16xf32, #tpu.memory_space<vmem>>, vector<32x16xf32>,
    %c0_i32_15 = arith.constant 0 : i32
    %17 = arith.cmpi eq, %arg2, %c0_i32_15 : i32
    %18 = arith.extui %17 : i1 to i32
    %c0_i32_16 = arith.constant 0 : i32
    %19 = arith.cmpi ne, %18, %c0_i32_16 : i32
    scf.if %19 {
      %c0_17 = arith.constant 0 : index
      %c0_18 = arith.constant 0 : index
      %20 = vector.load %arg9[%c0_17, %c0_18] : memref<32x16xf32, #tpu.memory_space<vmem>>, vector<32x16xf32>
      %c0_19 = arith.constant 0 : index
      %c0_20 = arith.constant 0 : index
      %21 = vector.load %arg5[%c0_19, %c0_20] : memref<1x16xf32, #tpu.memory_space<vmem>>, vector<1x16xf32>
      %22 = vector.broadcast %21 : vector<1x16xf32> to vector<32x16xf32>
      %23 = arith.addf %20, %22 : vector<32x16xf32>
      %cst_21 = arith.constant 5.000000e-01 : f32
      %24 = vector.broadcast %cst_21 : f32 to vector<32x16xf32>
      %25 = arith.mulf %24, %23 : vector<32x16xf32>
      %cst_22 = arith.constant 4.471500e-02 : f32
      %26 = vector.broadcast %cst_22 : f32 to vector<32x16xf32>
      %27 = arith.mulf %26, %23 : vector<32x16xf32>
      %28 = arith.mulf %27, %23 : vector<32x16xf32>
      %29 = arith.mulf %28, %23 : vector<32x16xf32>
      %30 = arith.addf %23, %29 : vector<32x16xf32>
      %cst_23 = arith.constant 0.797884583 : f32
      %31 = vector.broadcast %cst_23 : f32 to vector<32x16xf32>
      %32 = arith.mulf %31, %30 : vector<32x16xf32>
      %33 = math.tanh %32 : vector<32x16xf32>
      %cst_24 = arith.constant 1.000000e+00 : f32
      %34 = vector.broadcast %cst_24 : f32 to vector<32x16xf32>
      %35 = arith.addf %34, %33 : vector<32x16xf32>
      %36 = arith.mulf %25, %35 : vector<32x16xf32>
      %c0_25 = arith.constant 0 : index
      %c0_26 = arith.constant 0 : index
      %37 = vector.load %arg10[%c0_25, %c0_26] : memref<32x16xf32, #tpu.memory_space<vmem>>, vector<32x16xf32>
      %c0_27 = arith.constant 0 : index
      %c0_28 = arith.constant 0 : index
      %38 = vector.load %arg7[%c0_27, %c0_28] : memref<1x16xf32, #tpu.memory_space<vmem>>, vector<1x16xf32>
      %39 = vector.broadcast %38 : vector<1x16xf32> to vector<32x16xf32>
      %40 = arith.addf %37, %39 : vector<32x16xf32>
      %cst_29 = arith.constant 5.000000e-01 : f32
      %41 = vector.broadcast %cst_29 : f32 to vector<32x16xf32>
      %42 = arith.mulf %41, %40 : vector<32x16xf32>
      %cst_30 = arith.constant 4.471500e-02 : f32
      %43 = vector.broadcast %cst_30 : f32 to vector<32x16xf32>
      %44 = arith.mulf %43, %40 : vector<32x16xf32>
      %45 = arith.mulf %44, %40 : vector<32x16xf32>
      %46 = arith.mulf %45, %40 : vector<32x16xf32>
      %47 = arith.addf %40, %46 : vector<32x16xf32>
      %cst_31 = arith.constant 0.797884583 : f32
      %48 = vector.broadcast %cst_31 : f32 to vector<32x16xf32>
      %49 = arith.mulf %48, %47 : vector<32x16xf32>
      %50 = math.tanh %49 : vector<32x16xf32>
      %cst_32 = arith.constant 1.000000e+00 : f32
      %51 = vector.broadcast %cst_32 : f32 to vector<32x16xf32>
      %52 = arith.addf %51, %50 : vector<32x16xf32>
      %53 = arith.mulf %42, %52 : vector<32x16xf32>
      %54 = arith.addf %36, %53 : vector<32x16xf32>
      %c0_33 = arith.constant 0 : index
      %c0_34 = arith.constant 0 : index
      %55 = vector.load %arg8[%c0_33, %c0_34] : memref<32x16xf32, #tpu.memory_space<vmem>>, vector<32x16xf32>
      tpu.vector_store %arg8[%c0_33, %c0_34], %54 {strides = array<i32>} : memref<32x16xf32, #tpu.memory_space<vmem>>, vector<32x16xf32>,
    } else {
    }
    return
  }
  func.func @transform_0(%arg0: i32, %arg1: i32, %arg2: i32) -> (i32, i32) {
    %c0_i32 = arith.constant 0 : i32
    return %arg0, %arg2 : i32, i32
  }
  func.func @transform_1(%arg0: i32, %arg1: i32, %arg2: i32) -> (i32, i32) {
    %c0_i32 = arith.constant 0 : i32
    return %arg2, %arg1 : i32, i32
  }
  func.func @transform_2(%arg0: i32, %arg1: i32, %arg2: i32) -> (i32, i32) {
    %c0_i32 = arith.constant 0 : i32
    %c0_i32_0 = arith.constant 0 : i32
    return %c0_i32, %arg1 : i32, i32
  }
  func.func @transform_3(%arg0: i32, %arg1: i32, %arg2: i32) -> (i32, i32) {
    %c0_i32 = arith.constant 0 : i32
    return %arg2, %arg1 : i32, i32
  }
  func.func @transform_4(%arg0: i32, %arg1: i32, %arg2: i32) -> (i32, i32) {
    %c0_i32 = arith.constant 0 : i32
    %c0_i32_0 = arith.constant 0 : i32
    return %c0_i32, %arg1 : i32, i32
  }
  func.func @transform_5(%arg0: i32, %arg1: i32, %arg2: i32) -> (i32, i32) {
    %c0_i32 = arith.constant 0 : i32
    return %arg0, %arg1 : i32, i32
  }
}

module attributes {stable_mosaic.version = 11 : i64} {
  func.func @_mm_kernel(%arg0: i32, %arg1: i32, %arg2: i32, %arg3: memref<32x16xf32, #tpu.memory_space<vmem>>, %arg4: memref<16x32xf32, #tpu.memory_space<vmem>>, %arg5: memref<1x32xf32, #tpu.memory_space<vmem>>, %arg6: memref<32x32xf32, #tpu.memory_space<vmem>>, %arg7: memref<32x32xf32, #tpu.memory_space<vmem>>) attributes {dimension_semantics = [#tpu.dimension_semantics<parallel>, #tpu.dimension_semantics<parallel>, #tpu.dimension_semantics<arbitrary>], iteration_bounds = array<i64: 1, 1, 1>, scalar_prefetch = 0 : i64, scratch_operands = 1 : i64, tpu.core_type = #tpu.core_type<tc>, window_params = [{transform_indices = @transform_0, window_bounds = array<i64: 32, 16>}, {transform_indices = @transform_1, window_bounds = array<i64: 16, 32>}, {transform_indices = @transform_2, window_bounds = array<i64: 1, 32>}, {transform_indices = @transform_3, window_bounds = array<i64: 32, 32>}]} {
    %c0_i32 = arith.constant 0 : i32
    %0 = arith.cmpi eq, %arg2, %c0_i32 : i32
    %1 = arith.extui %0 : i1 to i32
    %c0_i32_0 = arith.constant 0 : i32
    %2 = arith.cmpi ne, %1, %c0_i32_0 : i32
    scf.if %2 {
      %cst_10 = arith.constant 0.000000e+00 : f32
      %14 = vector.broadcast %cst_10 : f32 to vector<32x32xf32>
      %c0_11 = arith.constant 0 : index
      %c0_12 = arith.constant 0 : index
      %15 = vector.load %arg7[%c0_11, %c0_12] : memref<32x32xf32, #tpu.memory_space<vmem>>, vector<32x32xf32>
      tpu.vector_store %arg7[%c0_11, %c0_12], %14 {strides = array<i32>} : memref<32x32xf32, #tpu.memory_space<vmem>>, vector<32x32xf32>,
    } else {
    }
    %c0 = arith.constant 0 : index
    %c0_1 = arith.constant 0 : index
    %3 = vector.load %arg7[%c0, %c0_1] : memref<32x32xf32, #tpu.memory_space<vmem>>, vector<32x32xf32>
    %c0_2 = arith.constant 0 : index
    %c0_3 = arith.constant 0 : index
    %4 = vector.load %arg3[%c0_2, %c0_3] : memref<32x16xf32, #tpu.memory_space<vmem>>, vector<32x16xf32>
    %5 = arith.truncf %4 : vector<32x16xf32> to vector<32x16xbf16>
    %c0_4 = arith.constant 0 : index
    %c0_5 = arith.constant 0 : index
    %6 = vector.load %arg4[%c0_4, %c0_5] : memref<16x32xf32, #tpu.memory_space<vmem>>, vector<16x32xf32>
    %7 = arith.truncf %6 : vector<16x32xf32> to vector<16x32xbf16>
    %cst = arith.constant dense<0.000000e+00> : vector<32x32xf32>
    %8 = tpu.matmul %5, %7, %cst {dimension_numbers = #tpu.dot_dimension_numbers<[1], [0], [0], [1], [0, 0, 1, 1], [], []>} : vector<32x16xbf16>, vector<16x32xbf16>, vector<32x32xf32> -> vector<32x32xf32>
    %9 = arith.addf %3, %8 : vector<32x32xf32>
    %c0_6 = arith.constant 0 : index
    %c0_7 = arith.constant 0 : index
    %10 = vector.load %arg7[%c0_6, %c0_7] : memref<32x32xf32, #tpu.memory_space<vmem>>, vector<32x32xf32>
    tpu.vector_store %arg7[%c0_6, %c0_7], %9 {strides = array<i32>} : memref<32x32xf32, #tpu.memory_space<vmem>>, vector<32x32xf32>,
    %c0_i32_8 = arith.constant 0 : i32
    %11 = arith.cmpi eq, %arg2, %c0_i32_8 : i32
    %12 = arith.extui %11 : i1 to i32
    %c0_i32_9 = arith.constant 0 : i32
    %13 = arith.cmpi ne, %12, %c0_i32_9 : i32
    scf.if %13 {
      %c0_10 = arith.constant 0 : index
      %c0_11 = arith.constant 0 : index
      %14 = vector.load %arg7[%c0_10, %c0_11] : memref<32x32xf32, #tpu.memory_space<vmem>>, vector<32x32xf32>
      %c0_12 = arith.constant 0 : index
      %c0_13 = arith.constant 0 : index
      %15 = vector.load %arg5[%c0_12, %c0_13] : memref<1x32xf32, #tpu.memory_space<vmem>>, vector<1x32xf32>
      %16 = vector.broadcast %15 : vector<1x32xf32> to vector<32x32xf32>
      %17 = arith.addf %14, %16 : vector<32x32xf32>
      %cst_14 = arith.constant 5.000000e-01 : f32
      %18 = vector.broadcast %cst_14 : f32 to vector<32x32xf32>
      %19 = arith.mulf %18, %17 : vector<32x32xf32>
      %cst_15 = arith.constant 4.471500e-02 : f32
      %20 = vector.broadcast %cst_15 : f32 to vector<32x32xf32>
      %21 = arith.mulf %20, %17 : vector<32x32xf32>
      %22 = arith.mulf %21, %17 : vector<32x32xf32>
      %23 = arith.mulf %22, %17 : vector<32x32xf32>
      %24 = arith.addf %17, %23 : vector<32x32xf32>
      %cst_16 = arith.constant 0.797884583 : f32
      %25 = vector.broadcast %cst_16 : f32 to vector<32x32xf32>
      %26 = arith.mulf %25, %24 : vector<32x32xf32>
      %27 = math.tanh %26 : vector<32x32xf32>
      %cst_17 = arith.constant 1.000000e+00 : f32
      %28 = vector.broadcast %cst_17 : f32 to vector<32x32xf32>
      %29 = arith.addf %28, %27 : vector<32x32xf32>
      %30 = arith.mulf %19, %29 : vector<32x32xf32>
      %c0_18 = arith.constant 0 : index
      %c0_19 = arith.constant 0 : index
      %31 = vector.load %arg6[%c0_18, %c0_19] : memref<32x32xf32, #tpu.memory_space<vmem>>, vector<32x32xf32>
      tpu.vector_store %arg6[%c0_18, %c0_19], %30 {strides = array<i32>} : memref<32x32xf32, #tpu.memory_space<vmem>>, vector<32x32xf32>,
    } else {
    }
    return
  }
  func.func @transform_0(%arg0: i32, %arg1: i32, %arg2: i32) -> (i32, i32) {
    %c0_i32 = arith.constant 0 : i32
    return %arg0, %arg2 : i32, i32
  }
  func.func @transform_1(%arg0: i32, %arg1: i32, %arg2: i32) -> (i32, i32) {
    %c0_i32 = arith.constant 0 : i32
    return %arg2, %arg1 : i32, i32
  }
  func.func @transform_2(%arg0: i32, %arg1: i32, %arg2: i32) -> (i32, i32) {
    %c0_i32 = arith.constant 0 : i32
    %c0_i32_0 = arith.constant 0 : i32
    return %c0_i32, %arg1 : i32, i32
  }
  func.func @transform_3(%arg0: i32, %arg1: i32, %arg2: i32) -> (i32, i32) {
    %c0_i32 = arith.constant 0 : i32
    return %arg0, %arg1 : i32, i32
  }
}

module attributes {stable_mosaic.version = 11 : i64} {
  func.func @_mm_res_kernel(%arg0: i32, %arg1: i32, %arg2: i32, %arg3: memref<32x32xf32, #tpu.memory_space<vmem>>, %arg4: memref<32x16xf32, #tpu.memory_space<vmem>>, %arg5: memref<1x16xf32, #tpu.memory_space<vmem>>, %arg6: memref<32x16xf32, #tpu.memory_space<vmem>>, %arg7: memref<32x16xf32, #tpu.memory_space<vmem>>, %arg8: memref<32x16xf32, #tpu.memory_space<vmem>>) attributes {dimension_semantics = [#tpu.dimension_semantics<parallel>, #tpu.dimension_semantics<parallel>, #tpu.dimension_semantics<arbitrary>], iteration_bounds = array<i64: 1, 1, 1>, scalar_prefetch = 0 : i64, scratch_operands = 1 : i64, tpu.core_type = #tpu.core_type<tc>, window_params = [{transform_indices = @transform_0, window_bounds = array<i64: 32, 32>}, {transform_indices = @transform_1, window_bounds = array<i64: 32, 16>}, {transform_indices = @transform_2, window_bounds = array<i64: 1, 16>}, {transform_indices = @transform_3, window_bounds = array<i64: 32, 16>}, {transform_indices = @transform_4, window_bounds = array<i64: 32, 16>}]} {
    %c0_i32 = arith.constant 0 : i32
    %0 = arith.cmpi eq, %arg2, %c0_i32 : i32
    %1 = arith.extui %0 : i1 to i32
    %c0_i32_0 = arith.constant 0 : i32
    %2 = arith.cmpi ne, %1, %c0_i32_0 : i32
    scf.if %2 {
      %cst_10 = arith.constant 0.000000e+00 : f32
      %14 = vector.broadcast %cst_10 : f32 to vector<32x16xf32>
      %c0_11 = arith.constant 0 : index
      %c0_12 = arith.constant 0 : index
      %15 = vector.load %arg8[%c0_11, %c0_12] : memref<32x16xf32, #tpu.memory_space<vmem>>, vector<32x16xf32>
      tpu.vector_store %arg8[%c0_11, %c0_12], %14 {strides = array<i32>} : memref<32x16xf32, #tpu.memory_space<vmem>>, vector<32x16xf32>,
    } else {
    }
    %c0 = arith.constant 0 : index
    %c0_1 = arith.constant 0 : index
    %3 = vector.load %arg8[%c0, %c0_1] : memref<32x16xf32, #tpu.memory_space<vmem>>, vector<32x16xf32>
    %c0_2 = arith.constant 0 : index
    %c0_3 = arith.constant 0 : index
    %4 = vector.load %arg3[%c0_2, %c0_3] : memref<32x32xf32, #tpu.memory_space<vmem>>, vector<32x32xf32>
    %5 = arith.truncf %4 : vector<32x32xf32> to vector<32x32xbf16>
    %c0_4 = arith.constant 0 : index
    %c0_5 = arith.constant 0 : index
    %6 = vector.load %arg4[%c0_4, %c0_5] : memref<32x16xf32, #tpu.memory_space<vmem>>, vector<32x16xf32>
    %7 = arith.truncf %6 : vector<32x16xf32> to vector<32x16xbf16>
    %cst = arith.constant dense<0.000000e+00> : vector<32x16xf32>
    %8 = tpu.matmul %5, %7, %cst {dimension_numbers = #tpu.dot_dimension_numbers<[1], [0], [0], [1], [0, 0, 1, 1], [], []>} : vector<32x32xbf16>, vector<32x16xbf16>, vector<32x16xf32> -> vector<32x16xf32>
    %9 = arith.addf %3, %8 : vector<32x16xf32>
    %c0_6 = arith.constant 0 : index
    %c0_7 = arith.constant 0 : index
    %10 = vector.load %arg8[%c0_6, %c0_7] : memref<32x16xf32, #tpu.memory_space<vmem>>, vector<32x16xf32>
    tpu.vector_store %arg8[%c0_6, %c0_7], %9 {strides = array<i32>} : memref<32x16xf32, #tpu.memory_space<vmem>>, vector<32x16xf32>,
    %c0_i32_8 = arith.constant 0 : i32
    %11 = arith.cmpi eq, %arg2, %c0_i32_8 : i32
    %12 = arith.extui %11 : i1 to i32
    %c0_i32_9 = arith.constant 0 : i32
    %13 = arith.cmpi ne, %12, %c0_i32_9 : i32
    scf.if %13 {
      %c0_10 = arith.constant 0 : index
      %c0_11 = arith.constant 0 : index
      %14 = vector.load %arg8[%c0_10, %c0_11] : memref<32x16xf32, #tpu.memory_space<vmem>>, vector<32x16xf32>
      %c0_12 = arith.constant 0 : index
      %c0_13 = arith.constant 0 : index
      %15 = vector.load %arg5[%c0_12, %c0_13] : memref<1x16xf32, #tpu.memory_space<vmem>>, vector<1x16xf32>
      %16 = vector.broadcast %15 : vector<1x16xf32> to vector<32x16xf32>
      %17 = arith.addf %14, %16 : vector<32x16xf32>
      %c0_14 = arith.constant 0 : index
      %c0_15 = arith.constant 0 : index
      %18 = vector.load %arg6[%c0_14, %c0_15] : memref<32x16xf32, #tpu.memory_space<vmem>>, vector<32x16xf32>
      %19 = arith.addf %17, %18 : vector<32x16xf32>
      %c0_16 = arith.constant 0 : index
      %c0_17 = arith.constant 0 : index
      %20 = vector.load %arg7[%c0_16, %c0_17] : memref<32x16xf32, #tpu.memory_space<vmem>>, vector<32x16xf32>
      tpu.vector_store %arg7[%c0_16, %c0_17], %19 {strides = array<i32>} : memref<32x16xf32, #tpu.memory_space<vmem>>, vector<32x16xf32>,
    } else {
    }
    return
  }
  func.func @transform_0(%arg0: i32, %arg1: i32, %arg2: i32) -> (i32, i32) {
    %c0_i32 = arith.constant 0 : i32
    return %arg0, %arg2 : i32, i32
  }
  func.func @transform_1(%arg0: i32, %arg1: i32, %arg2: i32) -> (i32, i32) {
    %c0_i32 = arith.constant 0 : i32
    return %arg2, %arg1 : i32, i32
  }
  func.func @transform_2(%arg0: i32, %arg1: i32, %arg2: i32) -> (i32, i32) {
    %c0_i32 = arith.constant 0 : i32
    %c0_i32_0 = arith.constant 0 : i32
    return %c0_i32, %arg1 : i32, i32
  }
  func.func @transform_3(%arg0: i32, %arg1: i32, %arg2: i32) -> (i32, i32) {
    %c0_i32 = arith.constant 0 : i32
    return %arg0, %arg1 : i32, i32
  }
  func.func @transform_4(%arg0: i32, %arg1: i32, %arg2: i32) -> (i32, i32) {
    %c0_i32 = arith.constant 0 : i32
    return %arg0, %arg1 : i32, i32
  }
}

module attributes {stable_mosaic.version = 11 : i64} {
  func.func @_gn_kernel(%arg0: i32, %arg1: memref<1x4x64xf32, #tpu.memory_space<vmem>>, %arg2: memref<1x64xf32, #tpu.memory_space<vmem>>, %arg3: memref<1x64xf32, #tpu.memory_space<vmem>>, %arg4: memref<1x4x64xf32, #tpu.memory_space<vmem>>) attributes {dimension_semantics = [#tpu.dimension_semantics<parallel>], iteration_bounds = array<i64: 2>, scalar_prefetch = 0 : i64, scratch_operands = 0 : i64, tpu.core_type = #tpu.core_type<tc>, window_params = [{transform_indices = @transform_0, window_bounds = array<i64: 1, 4, 64>}, {pipeline_mode = #tpu.pipeline_mode<synchronous>, transform_indices = @transform_1, window_bounds = array<i64: 1, 64>}, {pipeline_mode = #tpu.pipeline_mode<synchronous>, transform_indices = @transform_2, window_bounds = array<i64: 1, 64>}, {transform_indices = @transform_3, window_bounds = array<i64: 1, 4, 64>}]} {
    %c0 = arith.constant 0 : index
    %c0_0 = arith.constant 0 : index
    %c0_1 = arith.constant 0 : index
    %0 = vector.load %arg1[%c0, %c0_0, %c0_1] : memref<1x4x64xf32, #tpu.memory_space<vmem>>, vector<1x4x64xf32>
    %1 = vector.shape_cast %0 : vector<1x4x64xf32> to vector<4x64xf32>
    %cst = arith.constant dense<0.000000e+00> : vector<64xf32>
    %2 = vector.multi_reduction <add>, %1, %cst [0] : vector<4x64xf32> to vector<64xf32>
    %3 = vector.shape_cast %2 : vector<64xf32> to vector<1x64xf32>
    %4 = arith.mulf %1, %1 : vector<4x64xf32>
    %cst_2 = arith.constant dense<0.000000e+00> : vector<64xf32>
    %5 = vector.multi_reduction <add>, %4, %cst_2 [0] : vector<4x64xf32> to vector<64xf32>
    %6 = vector.shape_cast %5 : vector<64xf32> to vector<1x64xf32>
    %cst_3 = arith.constant dense<0.000000e+00> : vector<1xf32>
    %7 = vector.multi_reduction <add>, %3, %cst_3 [1] : vector<1x64xf32> to vector<1xf32>
    %8 = vector.shape_cast %7 : vector<1xf32> to vector<1x1xf32>
    %cst_4 = arith.constant 3.906250e-03 : f32
    %9 = vector.broadcast %cst_4 : f32 to vector<1x1xf32>
    %10 = arith.mulf %8, %9 : vector<1x1xf32>
    %cst_5 = arith.constant dense<0.000000e+00> : vector<1xf32>
    %11 = vector.multi_reduction <add>, %6, %cst_5 [1] : vector<1x64xf32> to vector<1xf32>
    %12 = vector.shape_cast %11 : vector<1xf32> to vector<1x1xf32>
    %cst_6 = arith.constant 3.906250e-03 : f32
    %13 = vector.broadcast %cst_6 : f32 to vector<1x1xf32>
    %14 = arith.mulf %12, %13 : vector<1x1xf32>
    %15 = arith.mulf %10, %10 : vector<1x1xf32>
    %16 = arith.subf %14, %15 : vector<1x1xf32>
    %cst_7 = arith.constant 0.000000e+00 : f32
    %17 = vector.broadcast %cst_7 : f32 to vector<1x1xf32>
    %18 = arith.maximumf %16, %17 : vector<1x1xf32>
    %cst_8 = arith.constant 9.99999974E-6 : f32
    %19 = vector.broadcast %cst_8 : f32 to vector<1x1xf32>
    %20 = arith.addf %18, %19 : vector<1x1xf32>
    %21 = math.rsqrt %20 : vector<1x1xf32>
    %22 = vector.broadcast %10 : vector<1x1xf32> to vector<4x64xf32>
    %23 = arith.subf %1, %22 : vector<4x64xf32>
    %24 = vector.broadcast %21 : vector<1x1xf32> to vector<4x64xf32>
    %25 = arith.mulf %23, %24 : vector<4x64xf32>
    %c0_9 = arith.constant 0 : index
    %c0_10 = arith.constant 0 : index
    %26 = vector.load %arg2[%c0_9, %c0_10] : memref<1x64xf32, #tpu.memory_space<vmem>>, vector<1x64xf32>
    %27 = vector.broadcast %26 : vector<1x64xf32> to vector<4x64xf32>
    %28 = arith.mulf %25, %27 : vector<4x64xf32>
    %c0_11 = arith.constant 0 : index
    %c0_12 = arith.constant 0 : index
    %29 = vector.load %arg3[%c0_11, %c0_12] : memref<1x64xf32, #tpu.memory_space<vmem>>, vector<1x64xf32>
    %30 = vector.broadcast %29 : vector<1x64xf32> to vector<4x64xf32>
    %31 = arith.addf %28, %30 : vector<4x64xf32>
    %c0_13 = arith.constant 0 : index
    %c0_14 = arith.constant 0 : index
    %c0_15 = arith.constant 0 : index
    %32 = vector.load %arg4[%c0_13, %c0_14, %c0_15] : memref<1x4x64xf32, #tpu.memory_space<vmem>>, vector<1x4x64xf32>
    %33 = vector.shape_cast %32 : vector<1x4x64xf32> to vector<4x64xf32>
    %34 = vector.shape_cast %31 : vector<4x64xf32> to vector<1x4x64xf32>
    tpu.vector_store %arg4[%c0_13, %c0_14, %c0_15], %34 {strides = array<i32>} : memref<1x4x64xf32, #tpu.memory_space<vmem>>, vector<1x4x64xf32>,
    return
  }
  func.func @transform_0(%arg0: i32) -> (i32, i32, i32) {
    %c0_i32 = arith.constant 0 : i32
    %c0_i32_0 = arith.constant 0 : i32
    %c0_i32_1 = arith.constant 0 : i32
    return %arg0, %c0_i32, %c0_i32_0 : i32, i32, i32
  }
  func.func @transform_1(%arg0: i32) -> (i32, i32) {
    %c0_i32 = arith.constant 0 : i32
    %c0_i32_0 = arith.constant 0 : i32
    %c0_i32_1 = arith.constant 0 : i32
    return %c0_i32, %c0_i32_0 : i32, i32
  }
  func.func @transform_2(%arg0: i32) -> (i32, i32) {
    %c0_i32 = arith.constant 0 : i32
    %c0_i32_0 = arith.constant 0 : i32
    %c0_i32_1 = arith.constant 0 : i32
    return %c0_i32, %c0_i32_0 : i32, i32
  }
  func.func @transform_3(%arg0: i32) -> (i32, i32, i32) {
    %c0_i32 = arith.constant 0 : i32
    %c0_i32_0 = arith.constant 0 : i32
    %c0_i32_1 = arith.constant 0 : i32
    return %arg0, %c0_i32, %c0_i32_0 : i32, i32, i32
  }
}

module attributes {stable_mosaic.version = 11 : i64} {
  func.func @_mm_kernel(%arg0: i32, %arg1: i32, %arg2: i32, %arg3: memref<8x64xf32, #tpu.memory_space<vmem>>, %arg4: memref<64x32xf32, #tpu.memory_space<vmem>>, %arg5: memref<1x32xf32, #tpu.memory_space<vmem>>, %arg6: memref<8x32xf32, #tpu.memory_space<vmem>>, %arg7: memref<8x32xf32, #tpu.memory_space<vmem>>) attributes {dimension_semantics = [#tpu.dimension_semantics<parallel>, #tpu.dimension_semantics<parallel>, #tpu.dimension_semantics<arbitrary>], iteration_bounds = array<i64: 1, 1, 1>, scalar_prefetch = 0 : i64, scratch_operands = 1 : i64, tpu.core_type = #tpu.core_type<tc>, window_params = [{transform_indices = @transform_0, window_bounds = array<i64: 8, 64>}, {transform_indices = @transform_1, window_bounds = array<i64: 64, 32>}, {transform_indices = @transform_2, window_bounds = array<i64: 1, 32>}, {transform_indices = @transform_3, window_bounds = array<i64: 8, 32>}]} {
    %c0_i32 = arith.constant 0 : i32
    %0 = arith.cmpi eq, %arg2, %c0_i32 : i32
    %1 = arith.extui %0 : i1 to i32
    %c0_i32_0 = arith.constant 0 : i32
    %2 = arith.cmpi ne, %1, %c0_i32_0 : i32
    scf.if %2 {
      %cst_10 = arith.constant 0.000000e+00 : f32
      %14 = vector.broadcast %cst_10 : f32 to vector<8x32xf32>
      %c0_11 = arith.constant 0 : index
      %c0_12 = arith.constant 0 : index
      %15 = vector.load %arg7[%c0_11, %c0_12] : memref<8x32xf32, #tpu.memory_space<vmem>>, vector<8x32xf32>
      tpu.vector_store %arg7[%c0_11, %c0_12], %14 {strides = array<i32>} : memref<8x32xf32, #tpu.memory_space<vmem>>, vector<8x32xf32>,
    } else {
    }
    %c0 = arith.constant 0 : index
    %c0_1 = arith.constant 0 : index
    %3 = vector.load %arg7[%c0, %c0_1] : memref<8x32xf32, #tpu.memory_space<vmem>>, vector<8x32xf32>
    %c0_2 = arith.constant 0 : index
    %c0_3 = arith.constant 0 : index
    %4 = vector.load %arg3[%c0_2, %c0_3] : memref<8x64xf32, #tpu.memory_space<vmem>>, vector<8x64xf32>
    %5 = arith.truncf %4 : vector<8x64xf32> to vector<8x64xbf16>
    %c0_4 = arith.constant 0 : index
    %c0_5 = arith.constant 0 : index
    %6 = vector.load %arg4[%c0_4, %c0_5] : memref<64x32xf32, #tpu.memory_space<vmem>>, vector<64x32xf32>
    %7 = arith.truncf %6 : vector<64x32xf32> to vector<64x32xbf16>
    %cst = arith.constant dense<0.000000e+00> : vector<8x32xf32>
    %8 = tpu.matmul %5, %7, %cst {dimension_numbers = #tpu.dot_dimension_numbers<[1], [0], [0], [1], [0, 0, 1, 1], [], []>} : vector<8x64xbf16>, vector<64x32xbf16>, vector<8x32xf32> -> vector<8x32xf32>
    %9 = arith.addf %3, %8 : vector<8x32xf32>
    %c0_6 = arith.constant 0 : index
    %c0_7 = arith.constant 0 : index
    %10 = vector.load %arg7[%c0_6, %c0_7] : memref<8x32xf32, #tpu.memory_space<vmem>>, vector<8x32xf32>
    tpu.vector_store %arg7[%c0_6, %c0_7], %9 {strides = array<i32>} : memref<8x32xf32, #tpu.memory_space<vmem>>, vector<8x32xf32>,
    %c0_i32_8 = arith.constant 0 : i32
    %11 = arith.cmpi eq, %arg2, %c0_i32_8 : i32
    %12 = arith.extui %11 : i1 to i32
    %c0_i32_9 = arith.constant 0 : i32
    %13 = arith.cmpi ne, %12, %c0_i32_9 : i32
    scf.if %13 {
      %c0_10 = arith.constant 0 : index
      %c0_11 = arith.constant 0 : index
      %14 = vector.load %arg7[%c0_10, %c0_11] : memref<8x32xf32, #tpu.memory_space<vmem>>, vector<8x32xf32>
      %c0_12 = arith.constant 0 : index
      %c0_13 = arith.constant 0 : index
      %15 = vector.load %arg5[%c0_12, %c0_13] : memref<1x32xf32, #tpu.memory_space<vmem>>, vector<1x32xf32>
      %16 = vector.broadcast %15 : vector<1x32xf32> to vector<8x32xf32>
      %17 = arith.addf %14, %16 : vector<8x32xf32>
      %c0_14 = arith.constant 0 : index
      %c0_15 = arith.constant 0 : index
      %18 = vector.load %arg6[%c0_14, %c0_15] : memref<8x32xf32, #tpu.memory_space<vmem>>, vector<8x32xf32>
      tpu.vector_store %arg6[%c0_14, %c0_15], %17 {strides = array<i32>} : memref<8x32xf32, #tpu.memory_space<vmem>>, vector<8x32xf32>,
    } else {
    }
    return
  }
  func.func @transform_0(%arg0: i32, %arg1: i32, %arg2: i32) -> (i32, i32) {
    %c0_i32 = arith.constant 0 : i32
    return %arg0, %arg2 : i32, i32
  }
  func.func @transform_1(%arg0: i32, %arg1: i32, %arg2: i32) -> (i32, i32) {
    %c0_i32 = arith.constant 0 : i32
    return %arg2, %arg1 : i32, i32
  }
  func.func @transform_2(%arg0: i32, %arg1: i32, %arg2: i32) -> (i32, i32) {
    %c0_i32 = arith.constant 0 : i32
    %c0_i32_0 = arith.constant 0 : i32
    return %c0_i32, %arg1 : i32, i32
  }
  func.func @transform_3(%arg0: i32, %arg1: i32, %arg2: i32) -> (i32, i32) {
    %c0_i32 = arith.constant 0 : i32
    return %arg0, %arg1 : i32, i32
  }
}

module attributes {stable_mosaic.version = 11 : i64} {
  func.func @_gn_kernel(%arg0: i32, %arg1: memref<1x4x32xf32, #tpu.memory_space<vmem>>, %arg2: memref<1x32xf32, #tpu.memory_space<vmem>>, %arg3: memref<1x32xf32, #tpu.memory_space<vmem>>, %arg4: memref<1x4x32xf32, #tpu.memory_space<vmem>>) attributes {dimension_semantics = [#tpu.dimension_semantics<parallel>], iteration_bounds = array<i64: 2>, scalar_prefetch = 0 : i64, scratch_operands = 0 : i64, tpu.core_type = #tpu.core_type<tc>, window_params = [{transform_indices = @transform_0, window_bounds = array<i64: 1, 4, 32>}, {pipeline_mode = #tpu.pipeline_mode<synchronous>, transform_indices = @transform_1, window_bounds = array<i64: 1, 32>}, {pipeline_mode = #tpu.pipeline_mode<synchronous>, transform_indices = @transform_2, window_bounds = array<i64: 1, 32>}, {transform_indices = @transform_3, window_bounds = array<i64: 1, 4, 32>}]} {
    %c0 = arith.constant 0 : index
    %c0_0 = arith.constant 0 : index
    %c0_1 = arith.constant 0 : index
    %0 = vector.load %arg1[%c0, %c0_0, %c0_1] : memref<1x4x32xf32, #tpu.memory_space<vmem>>, vector<1x4x32xf32>
    %1 = vector.shape_cast %0 : vector<1x4x32xf32> to vector<4x32xf32>
    %cst = arith.constant dense<0.000000e+00> : vector<32xf32>
    %2 = vector.multi_reduction <add>, %1, %cst [0] : vector<4x32xf32> to vector<32xf32>
    %3 = vector.shape_cast %2 : vector<32xf32> to vector<1x32xf32>
    %4 = arith.mulf %1, %1 : vector<4x32xf32>
    %cst_2 = arith.constant dense<0.000000e+00> : vector<32xf32>
    %5 = vector.multi_reduction <add>, %4, %cst_2 [0] : vector<4x32xf32> to vector<32xf32>
    %6 = vector.shape_cast %5 : vector<32xf32> to vector<1x32xf32>
    %cst_3 = arith.constant dense<0.000000e+00> : vector<1xf32>
    %7 = vector.multi_reduction <add>, %3, %cst_3 [1] : vector<1x32xf32> to vector<1xf32>
    %8 = vector.shape_cast %7 : vector<1xf32> to vector<1x1xf32>
    %cst_4 = arith.constant 7.812500e-03 : f32
    %9 = vector.broadcast %cst_4 : f32 to vector<1x1xf32>
    %10 = arith.mulf %8, %9 : vector<1x1xf32>
    %cst_5 = arith.constant dense<0.000000e+00> : vector<1xf32>
    %11 = vector.multi_reduction <add>, %6, %cst_5 [1] : vector<1x32xf32> to vector<1xf32>
    %12 = vector.shape_cast %11 : vector<1xf32> to vector<1x1xf32>
    %cst_6 = arith.constant 7.812500e-03 : f32
    %13 = vector.broadcast %cst_6 : f32 to vector<1x1xf32>
    %14 = arith.mulf %12, %13 : vector<1x1xf32>
    %15 = arith.mulf %10, %10 : vector<1x1xf32>
    %16 = arith.subf %14, %15 : vector<1x1xf32>
    %cst_7 = arith.constant 0.000000e+00 : f32
    %17 = vector.broadcast %cst_7 : f32 to vector<1x1xf32>
    %18 = arith.maximumf %16, %17 : vector<1x1xf32>
    %cst_8 = arith.constant 9.99999974E-6 : f32
    %19 = vector.broadcast %cst_8 : f32 to vector<1x1xf32>
    %20 = arith.addf %18, %19 : vector<1x1xf32>
    %21 = math.rsqrt %20 : vector<1x1xf32>
    %22 = vector.broadcast %10 : vector<1x1xf32> to vector<4x32xf32>
    %23 = arith.subf %1, %22 : vector<4x32xf32>
    %24 = vector.broadcast %21 : vector<1x1xf32> to vector<4x32xf32>
    %25 = arith.mulf %23, %24 : vector<4x32xf32>
    %c0_9 = arith.constant 0 : index
    %c0_10 = arith.constant 0 : index
    %26 = vector.load %arg2[%c0_9, %c0_10] : memref<1x32xf32, #tpu.memory_space<vmem>>, vector<1x32xf32>
    %27 = vector.broadcast %26 : vector<1x32xf32> to vector<4x32xf32>
    %28 = arith.mulf %25, %27 : vector<4x32xf32>
    %c0_11 = arith.constant 0 : index
    %c0_12 = arith.constant 0 : index
    %29 = vector.load %arg3[%c0_11, %c0_12] : memref<1x32xf32, #tpu.memory_space<vmem>>, vector<1x32xf32>
    %30 = vector.broadcast %29 : vector<1x32xf32> to vector<4x32xf32>
    %31 = arith.addf %28, %30 : vector<4x32xf32>
    %c0_13 = arith.constant 0 : index
    %c0_14 = arith.constant 0 : index
    %c0_15 = arith.constant 0 : index
    %32 = vector.load %arg4[%c0_13, %c0_14, %c0_15] : memref<1x4x32xf32, #tpu.memory_space<vmem>>, vector<1x4x32xf32>
    %33 = vector.shape_cast %32 : vector<1x4x32xf32> to vector<4x32xf32>
    %34 = vector.shape_cast %31 : vector<4x32xf32> to vector<1x4x32xf32>
    tpu.vector_store %arg4[%c0_13, %c0_14, %c0_15], %34 {strides = array<i32>} : memref<1x4x32xf32, #tpu.memory_space<vmem>>, vector<1x4x32xf32>,
    return
  }
  func.func @transform_0(%arg0: i32) -> (i32, i32, i32) {
    %c0_i32 = arith.constant 0 : i32
    %c0_i32_0 = arith.constant 0 : i32
    %c0_i32_1 = arith.constant 0 : i32
    return %arg0, %c0_i32, %c0_i32_0 : i32, i32, i32
  }
  func.func @transform_1(%arg0: i32) -> (i32, i32) {
    %c0_i32 = arith.constant 0 : i32
    %c0_i32_0 = arith.constant 0 : i32
    %c0_i32_1 = arith.constant 0 : i32
    return %c0_i32, %c0_i32_0 : i32, i32
  }
  func.func @transform_2(%arg0: i32) -> (i32, i32) {
    %c0_i32 = arith.constant 0 : i32
    %c0_i32_0 = arith.constant 0 : i32
    %c0_i32_1 = arith.constant 0 : i32
    return %c0_i32, %c0_i32_0 : i32, i32
  }
  func.func @transform_3(%arg0: i32) -> (i32, i32, i32) {
    %c0_i32 = arith.constant 0 : i32
    %c0_i32_0 = arith.constant 0 : i32
    %c0_i32_1 = arith.constant 0 : i32
    return %arg0, %c0_i32, %c0_i32_0 : i32, i32, i32
  }
}

module attributes {stable_mosaic.version = 11 : i64} {
  func.func @_mm_kernel(%arg0: i32, %arg1: i32, %arg2: i32, %arg3: memref<8x32xf32, #tpu.memory_space<vmem>>, %arg4: memref<32x32xf32, #tpu.memory_space<vmem>>, %arg5: memref<1x32xf32, #tpu.memory_space<vmem>>, %arg6: memref<8x32xf32, #tpu.memory_space<vmem>>, %arg7: memref<8x32xf32, #tpu.memory_space<vmem>>) attributes {dimension_semantics = [#tpu.dimension_semantics<parallel>, #tpu.dimension_semantics<parallel>, #tpu.dimension_semantics<arbitrary>], iteration_bounds = array<i64: 1, 1, 1>, scalar_prefetch = 0 : i64, scratch_operands = 1 : i64, tpu.core_type = #tpu.core_type<tc>, window_params = [{transform_indices = @transform_0, window_bounds = array<i64: 8, 32>}, {transform_indices = @transform_1, window_bounds = array<i64: 32, 32>}, {transform_indices = @transform_2, window_bounds = array<i64: 1, 32>}, {transform_indices = @transform_3, window_bounds = array<i64: 8, 32>}]} {
    %c0_i32 = arith.constant 0 : i32
    %0 = arith.cmpi eq, %arg2, %c0_i32 : i32
    %1 = arith.extui %0 : i1 to i32
    %c0_i32_0 = arith.constant 0 : i32
    %2 = arith.cmpi ne, %1, %c0_i32_0 : i32
    scf.if %2 {
      %cst_10 = arith.constant 0.000000e+00 : f32
      %14 = vector.broadcast %cst_10 : f32 to vector<8x32xf32>
      %c0_11 = arith.constant 0 : index
      %c0_12 = arith.constant 0 : index
      %15 = vector.load %arg7[%c0_11, %c0_12] : memref<8x32xf32, #tpu.memory_space<vmem>>, vector<8x32xf32>
      tpu.vector_store %arg7[%c0_11, %c0_12], %14 {strides = array<i32>} : memref<8x32xf32, #tpu.memory_space<vmem>>, vector<8x32xf32>,
    } else {
    }
    %c0 = arith.constant 0 : index
    %c0_1 = arith.constant 0 : index
    %3 = vector.load %arg7[%c0, %c0_1] : memref<8x32xf32, #tpu.memory_space<vmem>>, vector<8x32xf32>
    %c0_2 = arith.constant 0 : index
    %c0_3 = arith.constant 0 : index
    %4 = vector.load %arg3[%c0_2, %c0_3] : memref<8x32xf32, #tpu.memory_space<vmem>>, vector<8x32xf32>
    %5 = arith.truncf %4 : vector<8x32xf32> to vector<8x32xbf16>
    %c0_4 = arith.constant 0 : index
    %c0_5 = arith.constant 0 : index
    %6 = vector.load %arg4[%c0_4, %c0_5] : memref<32x32xf32, #tpu.memory_space<vmem>>, vector<32x32xf32>
    %7 = arith.truncf %6 : vector<32x32xf32> to vector<32x32xbf16>
    %cst = arith.constant dense<0.000000e+00> : vector<8x32xf32>
    %8 = tpu.matmul %5, %7, %cst {dimension_numbers = #tpu.dot_dimension_numbers<[1], [0], [0], [1], [0, 0, 1, 1], [], []>} : vector<8x32xbf16>, vector<32x32xbf16>, vector<8x32xf32> -> vector<8x32xf32>
    %9 = arith.addf %3, %8 : vector<8x32xf32>
    %c0_6 = arith.constant 0 : index
    %c0_7 = arith.constant 0 : index
    %10 = vector.load %arg7[%c0_6, %c0_7] : memref<8x32xf32, #tpu.memory_space<vmem>>, vector<8x32xf32>
    tpu.vector_store %arg7[%c0_6, %c0_7], %9 {strides = array<i32>} : memref<8x32xf32, #tpu.memory_space<vmem>>, vector<8x32xf32>,
    %c0_i32_8 = arith.constant 0 : i32
    %11 = arith.cmpi eq, %arg2, %c0_i32_8 : i32
    %12 = arith.extui %11 : i1 to i32
    %c0_i32_9 = arith.constant 0 : i32
    %13 = arith.cmpi ne, %12, %c0_i32_9 : i32
    scf.if %13 {
      %c0_10 = arith.constant 0 : index
      %c0_11 = arith.constant 0 : index
      %14 = vector.load %arg7[%c0_10, %c0_11] : memref<8x32xf32, #tpu.memory_space<vmem>>, vector<8x32xf32>
      %c0_12 = arith.constant 0 : index
      %c0_13 = arith.constant 0 : index
      %15 = vector.load %arg5[%c0_12, %c0_13] : memref<1x32xf32, #tpu.memory_space<vmem>>, vector<1x32xf32>
      %16 = vector.broadcast %15 : vector<1x32xf32> to vector<8x32xf32>
      %17 = arith.addf %14, %16 : vector<8x32xf32>
      %c0_14 = arith.constant 0 : index
      %c0_15 = arith.constant 0 : index
      %18 = vector.load %arg6[%c0_14, %c0_15] : memref<8x32xf32, #tpu.memory_space<vmem>>, vector<8x32xf32>
      tpu.vector_store %arg6[%c0_14, %c0_15], %17 {strides = array<i32>} : memref<8x32xf32, #tpu.memory_space<vmem>>, vector<8x32xf32>,
    } else {
    }
    return
  }
  func.func @transform_0(%arg0: i32, %arg1: i32, %arg2: i32) -> (i32, i32) {
    %c0_i32 = arith.constant 0 : i32
    return %arg0, %arg2 : i32, i32
  }
  func.func @transform_1(%arg0: i32, %arg1: i32, %arg2: i32) -> (i32, i32) {
    %c0_i32 = arith.constant 0 : i32
    return %arg2, %arg1 : i32, i32
  }
  func.func @transform_2(%arg0: i32, %arg1: i32, %arg2: i32) -> (i32, i32) {
    %c0_i32 = arith.constant 0 : i32
    %c0_i32_0 = arith.constant 0 : i32
    return %c0_i32, %arg1 : i32, i32
  }
  func.func @transform_3(%arg0: i32, %arg1: i32, %arg2: i32) -> (i32, i32) {
    %c0_i32 = arith.constant 0 : i32
    return %arg0, %arg1 : i32, i32
  }
}

module attributes {stable_mosaic.version = 11 : i64} {
  func.func @_gn_kernel(%arg0: i32, %arg1: memref<1x4x32xf32, #tpu.memory_space<vmem>>, %arg2: memref<1x32xf32, #tpu.memory_space<vmem>>, %arg3: memref<1x32xf32, #tpu.memory_space<vmem>>, %arg4: memref<1x4x32xf32, #tpu.memory_space<vmem>>) attributes {dimension_semantics = [#tpu.dimension_semantics<parallel>], iteration_bounds = array<i64: 2>, scalar_prefetch = 0 : i64, scratch_operands = 0 : i64, tpu.core_type = #tpu.core_type<tc>, window_params = [{transform_indices = @transform_0, window_bounds = array<i64: 1, 4, 32>}, {pipeline_mode = #tpu.pipeline_mode<synchronous>, transform_indices = @transform_1, window_bounds = array<i64: 1, 32>}, {pipeline_mode = #tpu.pipeline_mode<synchronous>, transform_indices = @transform_2, window_bounds = array<i64: 1, 32>}, {transform_indices = @transform_3, window_bounds = array<i64: 1, 4, 32>}]} {
    %c0 = arith.constant 0 : index
    %c0_0 = arith.constant 0 : index
    %c0_1 = arith.constant 0 : index
    %0 = vector.load %arg1[%c0, %c0_0, %c0_1] : memref<1x4x32xf32, #tpu.memory_space<vmem>>, vector<1x4x32xf32>
    %1 = vector.shape_cast %0 : vector<1x4x32xf32> to vector<4x32xf32>
    %cst = arith.constant dense<0.000000e+00> : vector<32xf32>
    %2 = vector.multi_reduction <add>, %1, %cst [0] : vector<4x32xf32> to vector<32xf32>
    %3 = vector.shape_cast %2 : vector<32xf32> to vector<1x32xf32>
    %4 = arith.mulf %1, %1 : vector<4x32xf32>
    %cst_2 = arith.constant dense<0.000000e+00> : vector<32xf32>
    %5 = vector.multi_reduction <add>, %4, %cst_2 [0] : vector<4x32xf32> to vector<32xf32>
    %6 = vector.shape_cast %5 : vector<32xf32> to vector<1x32xf32>
    %cst_3 = arith.constant dense<0.000000e+00> : vector<1xf32>
    %7 = vector.multi_reduction <add>, %3, %cst_3 [1] : vector<1x32xf32> to vector<1xf32>
    %8 = vector.shape_cast %7 : vector<1xf32> to vector<1x1xf32>
    %cst_4 = arith.constant 7.812500e-03 : f32
    %9 = vector.broadcast %cst_4 : f32 to vector<1x1xf32>
    %10 = arith.mulf %8, %9 : vector<1x1xf32>
    %cst_5 = arith.constant dense<0.000000e+00> : vector<1xf32>
    %11 = vector.multi_reduction <add>, %6, %cst_5 [1] : vector<1x32xf32> to vector<1xf32>
    %12 = vector.shape_cast %11 : vector<1xf32> to vector<1x1xf32>
    %cst_6 = arith.constant 7.812500e-03 : f32
    %13 = vector.broadcast %cst_6 : f32 to vector<1x1xf32>
    %14 = arith.mulf %12, %13 : vector<1x1xf32>
    %15 = arith.mulf %10, %10 : vector<1x1xf32>
    %16 = arith.subf %14, %15 : vector<1x1xf32>
    %cst_7 = arith.constant 0.000000e+00 : f32
    %17 = vector.broadcast %cst_7 : f32 to vector<1x1xf32>
    %18 = arith.maximumf %16, %17 : vector<1x1xf32>
    %cst_8 = arith.constant 9.99999974E-6 : f32
    %19 = vector.broadcast %cst_8 : f32 to vector<1x1xf32>
    %20 = arith.addf %18, %19 : vector<1x1xf32>
    %21 = math.rsqrt %20 : vector<1x1xf32>
    %22 = vector.broadcast %10 : vector<1x1xf32> to vector<4x32xf32>
    %23 = arith.subf %1, %22 : vector<4x32xf32>
    %24 = vector.broadcast %21 : vector<1x1xf32> to vector<4x32xf32>
    %25 = arith.mulf %23, %24 : vector<4x32xf32>
    %c0_9 = arith.constant 0 : index
    %c0_10 = arith.constant 0 : index
    %26 = vector.load %arg2[%c0_9, %c0_10] : memref<1x32xf32, #tpu.memory_space<vmem>>, vector<1x32xf32>
    %27 = vector.broadcast %26 : vector<1x32xf32> to vector<4x32xf32>
    %28 = arith.mulf %25, %27 : vector<4x32xf32>
    %c0_11 = arith.constant 0 : index
    %c0_12 = arith.constant 0 : index
    %29 = vector.load %arg3[%c0_11, %c0_12] : memref<1x32xf32, #tpu.memory_space<vmem>>, vector<1x32xf32>
    %30 = vector.broadcast %29 : vector<1x32xf32> to vector<4x32xf32>
    %31 = arith.addf %28, %30 : vector<4x32xf32>
    %cst_13 = arith.constant 5.000000e-01 : f32
    %32 = vector.broadcast %cst_13 : f32 to vector<4x32xf32>
    %33 = arith.mulf %32, %31 : vector<4x32xf32>
    %cst_14 = arith.constant 4.471500e-02 : f32
    %34 = vector.broadcast %cst_14 : f32 to vector<4x32xf32>
    %35 = arith.mulf %34, %31 : vector<4x32xf32>
    %36 = arith.mulf %35, %31 : vector<4x32xf32>
    %37 = arith.mulf %36, %31 : vector<4x32xf32>
    %38 = arith.addf %31, %37 : vector<4x32xf32>
    %cst_15 = arith.constant 0.797884583 : f32
    %39 = vector.broadcast %cst_15 : f32 to vector<4x32xf32>
    %40 = arith.mulf %39, %38 : vector<4x32xf32>
    %41 = math.tanh %40 : vector<4x32xf32>
    %cst_16 = arith.constant 1.000000e+00 : f32
    %42 = vector.broadcast %cst_16 : f32 to vector<4x32xf32>
    %43 = arith.addf %42, %41 : vector<4x32xf32>
    %44 = arith.mulf %33, %43 : vector<4x32xf32>
    %c0_17 = arith.constant 0 : index
    %c0_18 = arith.constant 0 : index
    %c0_19 = arith.constant 0 : index
    %45 = vector.load %arg4[%c0_17, %c0_18, %c0_19] : memref<1x4x32xf32, #tpu.memory_space<vmem>>, vector<1x4x32xf32>
    %46 = vector.shape_cast %45 : vector<1x4x32xf32> to vector<4x32xf32>
    %47 = vector.shape_cast %44 : vector<4x32xf32> to vector<1x4x32xf32>
    tpu.vector_store %arg4[%c0_17, %c0_18, %c0_19], %47 {strides = array<i32>} : memref<1x4x32xf32, #tpu.memory_space<vmem>>, vector<1x4x32xf32>,
    return
  }
  func.func @transform_0(%arg0: i32) -> (i32, i32, i32) {
    %c0_i32 = arith.constant 0 : i32
    %c0_i32_0 = arith.constant 0 : i32
    %c0_i32_1 = arith.constant 0 : i32
    return %arg0, %c0_i32, %c0_i32_0 : i32, i32, i32
  }
  func.func @transform_1(%arg0: i32) -> (i32, i32) {
    %c0_i32 = arith.constant 0 : i32
    %c0_i32_0 = arith.constant 0 : i32
    %c0_i32_1 = arith.constant 0 : i32
    return %c0_i32, %c0_i32_0 : i32, i32
  }
  func.func @transform_2(%arg0: i32) -> (i32, i32) {
    %c0_i32 = arith.constant 0 : i32
    %c0_i32_0 = arith.constant 0 : i32
    %c0_i32_1 = arith.constant 0 : i32
    return %c0_i32, %c0_i32_0 : i32, i32
  }
  func.func @transform_3(%arg0: i32) -> (i32, i32, i32) {
    %c0_i32 = arith.constant 0 : i32
    %c0_i32_0 = arith.constant 0 : i32
    %c0_i32_1 = arith.constant 0 : i32
    return %arg0, %c0_i32, %c0_i32_0 : i32, i32, i32
  }
}

module attributes {stable_mosaic.version = 11 : i64} {
  func.func @_dw3x3_kernel(%arg0: i32, %arg1: memref<1x2x2x32xf32, #tpu.memory_space<vmem>>, %arg2: memref<3x3x32xf32, #tpu.memory_space<vmem>>, %arg3: memref<1x32xf32, #tpu.memory_space<vmem>>, %arg4: memref<1x2x2x32xf32, #tpu.memory_space<vmem>>) attributes {dimension_semantics = [#tpu.dimension_semantics<parallel>], iteration_bounds = array<i64: 2>, scalar_prefetch = 0 : i64, scratch_operands = 0 : i64, tpu.core_type = #tpu.core_type<tc>, window_params = [{transform_indices = @transform_0, window_bounds = array<i64: 1, 2, 2, 32>}, {pipeline_mode = #tpu.pipeline_mode<synchronous>, transform_indices = @transform_1, window_bounds = array<i64: 3, 3, 32>}, {pipeline_mode = #tpu.pipeline_mode<synchronous>, transform_indices = @transform_2, window_bounds = array<i64: 1, 32>}, {transform_indices = @transform_3, window_bounds = array<i64: 1, 2, 2, 32>}]} {
    %c0 = arith.constant 0 : index
    %c0_0 = arith.constant 0 : index
    %c0_1 = arith.constant 0 : index
    %c0_2 = arith.constant 0 : index
    %0 = vector.load %arg1[%c0, %c0_0, %c0_1, %c0_2] : memref<1x2x2x32xf32, #tpu.memory_space<vmem>>, vector<1x2x2x32xf32>
    %1 = vector.shape_cast %0 : vector<1x2x2x32xf32> to vector<2x2x32xf32>
    %c0_3 = arith.constant 0 : index
    %c0_4 = arith.constant 0 : index
    %c0_5 = arith.constant 0 : index
    %2 = vector.load %arg2[%c0_3, %c0_4, %c0_5] : memref<3x3x32xf32, #tpu.memory_space<vmem>>, vector<3x3x32xf32>
    %cst = arith.constant 0.000000e+00 : f32
    %3 = vector.broadcast %cst : f32 to vector<2x2x32xf32>
    %cst_6 = arith.constant 0.000000e+00 : f32
    %4 = vector.broadcast %cst_6 : f32 to vector<1x2x32xf32>
    %5 = vector.extract_strided_slice %1 {offsets = [0, 0, 0], sizes = [1, 2, 32], strides = [1, 1, 1]} : vector<2x2x32xf32> to vector<1x2x32xf32>
    %6 = tpu.concatenate %4, %5 in 0 : vector<1x2x32xf32>, vector<1x2x32xf32> -> vector<2x2x32xf32>
    %cst_7 = arith.constant 0.000000e+00 : f32
    %7 = vector.broadcast %cst_7 : f32 to vector<2x1x32xf32>
    %8 = vector.extract_strided_slice %6 {offsets = [0, 0, 0], sizes = [2, 1, 32], strides = [1, 1, 1]} : vector<2x2x32xf32> to vector<2x1x32xf32>
    %9 = tpu.concatenate %7, %8 in 1 : vector<2x1x32xf32>, vector<2x1x32xf32> -> vector<2x2x32xf32>
    %10 = vector.extract_strided_slice %2 {offsets = [0, 0, 0], sizes = [1, 1, 32], strides = [1, 1, 1]} : vector<3x3x32xf32> to vector<1x1x32xf32>
    %11 = vector.broadcast %10 : vector<1x1x32xf32> to vector<2x2x32xf32>
    %12 = arith.mulf %9, %11 : vector<2x2x32xf32>
    %13 = arith.addf %3, %12 : vector<2x2x32xf32>
    %14 = vector.extract_strided_slice %2 {offsets = [0, 1, 0], sizes = [1, 1, 32], strides = [1, 1, 1]} : vector<3x3x32xf32> to vector<1x1x32xf32>
    %15 = vector.broadcast %14 : vector<1x1x32xf32> to vector<2x2x32xf32>
    %16 = arith.mulf %6, %15 : vector<2x2x32xf32>
    %17 = arith.addf %13, %16 : vector<2x2x32xf32>
    %cst_8 = arith.constant 0.000000e+00 : f32
    %18 = vector.broadcast %cst_8 : f32 to vector<2x1x32xf32>
    %19 = vector.extract_strided_slice %6 {offsets = [0, 1, 0], sizes = [2, 1, 32], strides = [1, 1, 1]} : vector<2x2x32xf32> to vector<2x1x32xf32>
    %20 = tpu.concatenate %19, %18 in 1 : vector<2x1x32xf32>, vector<2x1x32xf32> -> vector<2x2x32xf32>
    %21 = vector.extract_strided_slice %2 {offsets = [0, 2, 0], sizes = [1, 1, 32], strides = [1, 1, 1]} : vector<3x3x32xf32> to vector<1x1x32xf32>
    %22 = vector.broadcast %21 : vector<1x1x32xf32> to vector<2x2x32xf32>
    %23 = arith.mulf %20, %22 : vector<2x2x32xf32>
    %24 = arith.addf %17, %23 : vector<2x2x32xf32>
    %cst_9 = arith.constant 0.000000e+00 : f32
    %25 = vector.broadcast %cst_9 : f32 to vector<2x1x32xf32>
    %26 = vector.extract_strided_slice %1 {offsets = [0, 0, 0], sizes = [2, 1, 32], strides = [1, 1, 1]} : vector<2x2x32xf32> to vector<2x1x32xf32>
    %27 = tpu.concatenate %25, %26 in 1 : vector<2x1x32xf32>, vector<2x1x32xf32> -> vector<2x2x32xf32>
    %28 = vector.extract_strided_slice %2 {offsets = [1, 0, 0], sizes = [1, 1, 32], strides = [1, 1, 1]} : vector<3x3x32xf32> to vector<1x1x32xf32>
    %29 = vector.broadcast %28 : vector<1x1x32xf32> to vector<2x2x32xf32>
    %30 = arith.mulf %27, %29 : vector<2x2x32xf32>
    %31 = arith.addf %24, %30 : vector<2x2x32xf32>
    %32 = vector.extract_strided_slice %2 {offsets = [1, 1, 0], sizes = [1, 1, 32], strides = [1, 1, 1]} : vector<3x3x32xf32> to vector<1x1x32xf32>
    %33 = vector.broadcast %32 : vector<1x1x32xf32> to vector<2x2x32xf32>
    %34 = arith.mulf %1, %33 : vector<2x2x32xf32>
    %35 = arith.addf %31, %34 : vector<2x2x32xf32>
    %cst_10 = arith.constant 0.000000e+00 : f32
    %36 = vector.broadcast %cst_10 : f32 to vector<2x1x32xf32>
    %37 = vector.extract_strided_slice %1 {offsets = [0, 1, 0], sizes = [2, 1, 32], strides = [1, 1, 1]} : vector<2x2x32xf32> to vector<2x1x32xf32>
    %38 = tpu.concatenate %37, %36 in 1 : vector<2x1x32xf32>, vector<2x1x32xf32> -> vector<2x2x32xf32>
    %39 = vector.extract_strided_slice %2 {offsets = [1, 2, 0], sizes = [1, 1, 32], strides = [1, 1, 1]} : vector<3x3x32xf32> to vector<1x1x32xf32>
    %40 = vector.broadcast %39 : vector<1x1x32xf32> to vector<2x2x32xf32>
    %41 = arith.mulf %38, %40 : vector<2x2x32xf32>
    %42 = arith.addf %35, %41 : vector<2x2x32xf32>
    %cst_11 = arith.constant 0.000000e+00 : f32
    %43 = vector.broadcast %cst_11 : f32 to vector<1x2x32xf32>
    %44 = vector.extract_strided_slice %1 {offsets = [1, 0, 0], sizes = [1, 2, 32], strides = [1, 1, 1]} : vector<2x2x32xf32> to vector<1x2x32xf32>
    %45 = tpu.concatenate %44, %43 in 0 : vector<1x2x32xf32>, vector<1x2x32xf32> -> vector<2x2x32xf32>
    %cst_12 = arith.constant 0.000000e+00 : f32
    %46 = vector.broadcast %cst_12 : f32 to vector<2x1x32xf32>
    %47 = vector.extract_strided_slice %45 {offsets = [0, 0, 0], sizes = [2, 1, 32], strides = [1, 1, 1]} : vector<2x2x32xf32> to vector<2x1x32xf32>
    %48 = tpu.concatenate %46, %47 in 1 : vector<2x1x32xf32>, vector<2x1x32xf32> -> vector<2x2x32xf32>
    %49 = vector.extract_strided_slice %2 {offsets = [2, 0, 0], sizes = [1, 1, 32], strides = [1, 1, 1]} : vector<3x3x32xf32> to vector<1x1x32xf32>
    %50 = vector.broadcast %49 : vector<1x1x32xf32> to vector<2x2x32xf32>
    %51 = arith.mulf %48, %50 : vector<2x2x32xf32>
    %52 = arith.addf %42, %51 : vector<2x2x32xf32>
    %53 = vector.extract_strided_slice %2 {offsets = [2, 1, 0], sizes = [1, 1, 32], strides = [1, 1, 1]} : vector<3x3x32xf32> to vector<1x1x32xf32>
    %54 = vector.broadcast %53 : vector<1x1x32xf32> to vector<2x2x32xf32>
    %55 = arith.mulf %45, %54 : vector<2x2x32xf32>
    %56 = arith.addf %52, %55 : vector<2x2x32xf32>
    %cst_13 = arith.constant 0.000000e+00 : f32
    %57 = vector.broadcast %cst_13 : f32 to vector<2x1x32xf32>
    %58 = vector.extract_strided_slice %45 {offsets = [0, 1, 0], sizes = [2, 1, 32], strides = [1, 1, 1]} : vector<2x2x32xf32> to vector<2x1x32xf32>
    %59 = tpu.concatenate %58, %57 in 1 : vector<2x1x32xf32>, vector<2x1x32xf32> -> vector<2x2x32xf32>
    %60 = vector.extract_strided_slice %2 {offsets = [2, 2, 0], sizes = [1, 1, 32], strides = [1, 1, 1]} : vector<3x3x32xf32> to vector<1x1x32xf32>
    %61 = vector.broadcast %60 : vector<1x1x32xf32> to vector<2x2x32xf32>
    %62 = arith.mulf %59, %61 : vector<2x2x32xf32>
    %63 = arith.addf %56, %62 : vector<2x2x32xf32>
    %c0_14 = arith.constant 0 : index
    %c0_15 = arith.constant 0 : index
    %64 = vector.load %arg3[%c0_14, %c0_15] : memref<1x32xf32, #tpu.memory_space<vmem>>, vector<1x32xf32>
    %65 = vector.shape_cast %64 : vector<1x32xf32> to vector<1x1x32xf32>
    %66 = vector.broadcast %65 : vector<1x1x32xf32> to vector<2x2x32xf32>
    %67 = arith.addf %63, %66 : vector<2x2x32xf32>
    %c0_16 = arith.constant 0 : index
    %c0_17 = arith.constant 0 : index
    %c0_18 = arith.constant 0 : index
    %c0_19 = arith.constant 0 : index
    %68 = vector.load %arg4[%c0_16, %c0_17, %c0_18, %c0_19] : memref<1x2x2x32xf32, #tpu.memory_space<vmem>>, vector<1x2x2x32xf32>
    %69 = vector.shape_cast %68 : vector<1x2x2x32xf32> to vector<2x2x32xf32>
    %70 = vector.shape_cast %67 : vector<2x2x32xf32> to vector<1x2x2x32xf32>
    tpu.vector_store %arg4[%c0_16, %c0_17, %c0_18, %c0_19], %70 {strides = array<i32>} : memref<1x2x2x32xf32, #tpu.memory_space<vmem>>, vector<1x2x2x32xf32>,
    return
  }
  func.func @transform_0(%arg0: i32) -> (i32, i32, i32, i32) {
    %c0_i32 = arith.constant 0 : i32
    %c0_i32_0 = arith.constant 0 : i32
    %c0_i32_1 = arith.constant 0 : i32
    %c0_i32_2 = arith.constant 0 : i32
    return %arg0, %c0_i32, %c0_i32_0, %c0_i32_1 : i32, i32, i32, i32
  }
  func.func @transform_1(%arg0: i32) -> (i32, i32, i32) {
    %c0_i32 = arith.constant 0 : i32
    %c0_i32_0 = arith.constant 0 : i32
    %c0_i32_1 = arith.constant 0 : i32
    %c0_i32_2 = arith.constant 0 : i32
    return %c0_i32, %c0_i32_0, %c0_i32_1 : i32, i32, i32
  }
  func.func @transform_2(%arg0: i32) -> (i32, i32) {
    %c0_i32 = arith.constant 0 : i32
    %c0_i32_0 = arith.constant 0 : i32
    %c0_i32_1 = arith.constant 0 : i32
    return %c0_i32, %c0_i32_0 : i32, i32
  }
  func.func @transform_3(%arg0: i32) -> (i32, i32, i32, i32) {
    %c0_i32 = arith.constant 0 : i32
    %c0_i32_0 = arith.constant 0 : i32
    %c0_i32_1 = arith.constant 0 : i32
    %c0_i32_2 = arith.constant 0 : i32
    return %arg0, %c0_i32, %c0_i32_0, %c0_i32_1 : i32, i32, i32, i32
  }
}

module attributes {stable_mosaic.version = 11 : i64} {
  func.func @_mm_dual_kernel(%arg0: i32, %arg1: i32, %arg2: i32, %arg3: memref<8x32xf32, #tpu.memory_space<vmem>>, %arg4: memref<32x32xf32, #tpu.memory_space<vmem>>, %arg5: memref<1x32xf32, #tpu.memory_space<vmem>>, %arg6: memref<32x32xf32, #tpu.memory_space<vmem>>, %arg7: memref<1x32xf32, #tpu.memory_space<vmem>>, %arg8: memref<8x32xf32, #tpu.memory_space<vmem>>, %arg9: memref<8x32xf32, #tpu.memory_space<vmem>>, %arg10: memref<8x32xf32, #tpu.memory_space<vmem>>) attributes {dimension_semantics = [#tpu.dimension_semantics<parallel>, #tpu.dimension_semantics<parallel>, #tpu.dimension_semantics<arbitrary>], iteration_bounds = array<i64: 1, 1, 1>, scalar_prefetch = 0 : i64, scratch_operands = 2 : i64, tpu.core_type = #tpu.core_type<tc>, window_params = [{transform_indices = @transform_0, window_bounds = array<i64: 8, 32>}, {transform_indices = @transform_1, window_bounds = array<i64: 32, 32>}, {transform_indices = @transform_2, window_bounds = array<i64: 1, 32>}, {transform_indices = @transform_3, window_bounds = array<i64: 32, 32>}, {transform_indices = @transform_4, window_bounds = array<i64: 1, 32>}, {transform_indices = @transform_5, window_bounds = array<i64: 8, 32>}]} {
    %c0_i32 = arith.constant 0 : i32
    %0 = arith.cmpi eq, %arg2, %c0_i32 : i32
    %1 = arith.extui %0 : i1 to i32
    %c0_i32_0 = arith.constant 0 : i32
    %2 = arith.cmpi ne, %1, %c0_i32_0 : i32
    scf.if %2 {
      %cst_17 = arith.constant 0.000000e+00 : f32
      %20 = vector.broadcast %cst_17 : f32 to vector<8x32xf32>
      %c0_18 = arith.constant 0 : index
      %c0_19 = arith.constant 0 : index
      %21 = vector.load %arg9[%c0_18, %c0_19] : memref<8x32xf32, #tpu.memory_space<vmem>>, vector<8x32xf32>
      tpu.vector_store %arg9[%c0_18, %c0_19], %20 {strides = array<i32>} : memref<8x32xf32, #tpu.memory_space<vmem>>, vector<8x32xf32>,
      %cst_20 = arith.constant 0.000000e+00 : f32
      %22 = vector.broadcast %cst_20 : f32 to vector<8x32xf32>
      %c0_21 = arith.constant 0 : index
      %c0_22 = arith.constant 0 : index
      %23 = vector.load %arg10[%c0_21, %c0_22] : memref<8x32xf32, #tpu.memory_space<vmem>>, vector<8x32xf32>
      tpu.vector_store %arg10[%c0_21, %c0_22], %22 {strides = array<i32>} : memref<8x32xf32, #tpu.memory_space<vmem>>, vector<8x32xf32>,
    } else {
    }
    %c0 = arith.constant 0 : index
    %c0_1 = arith.constant 0 : index
    %3 = vector.load %arg3[%c0, %c0_1] : memref<8x32xf32, #tpu.memory_space<vmem>>, vector<8x32xf32>
    %4 = arith.truncf %3 : vector<8x32xf32> to vector<8x32xbf16>
    %c0_2 = arith.constant 0 : index
    %c0_3 = arith.constant 0 : index
    %5 = vector.load %arg9[%c0_2, %c0_3] : memref<8x32xf32, #tpu.memory_space<vmem>>, vector<8x32xf32>
    %c0_4 = arith.constant 0 : index
    %c0_5 = arith.constant 0 : index
    %6 = vector.load %arg4[%c0_4, %c0_5] : memref<32x32xf32, #tpu.memory_space<vmem>>, vector<32x32xf32>
    %7 = arith.truncf %6 : vector<32x32xf32> to vector<32x32xbf16>
    %cst = arith.constant dense<0.000000e+00> : vector<8x32xf32>
    %8 = tpu.matmul %4, %7, %cst {dimension_numbers = #tpu.dot_dimension_numbers<[1], [0], [0], [1], [0, 0, 1, 1], [], []>} : vector<8x32xbf16>, vector<32x32xbf16>, vector<8x32xf32> -> vector<8x32xf32>
    %9 = arith.addf %5, %8 : vector<8x32xf32>
    %c0_6 = arith.constant 0 : index
    %c0_7 = arith.constant 0 : index
    %10 = vector.load %arg9[%c0_6, %c0_7] : memref<8x32xf32, #tpu.memory_space<vmem>>, vector<8x32xf32>
    tpu.vector_store %arg9[%c0_6, %c0_7], %9 {strides = array<i32>} : memref<8x32xf32, #tpu.memory_space<vmem>>, vector<8x32xf32>,
    %c0_8 = arith.constant 0 : index
    %c0_9 = arith.constant 0 : index
    %11 = vector.load %arg10[%c0_8, %c0_9] : memref<8x32xf32, #tpu.memory_space<vmem>>, vector<8x32xf32>
    %c0_10 = arith.constant 0 : index
    %c0_11 = arith.constant 0 : index
    %12 = vector.load %arg6[%c0_10, %c0_11] : memref<32x32xf32, #tpu.memory_space<vmem>>, vector<32x32xf32>
    %13 = arith.truncf %12 : vector<32x32xf32> to vector<32x32xbf16>
    %cst_12 = arith.constant dense<0.000000e+00> : vector<8x32xf32>
    %14 = tpu.matmul %4, %13, %cst_12 {dimension_numbers = #tpu.dot_dimension_numbers<[1], [0], [0], [1], [0, 0, 1, 1], [], []>} : vector<8x32xbf16>, vector<32x32xbf16>, vector<8x32xf32> -> vector<8x32xf32>
    %15 = arith.addf %11, %14 : vector<8x32xf32>
    %c0_13 = arith.constant 0 : index
    %c0_14 = arith.constant 0 : index
    %16 = vector.load %arg10[%c0_13, %c0_14] : memref<8x32xf32, #tpu.memory_space<vmem>>, vector<8x32xf32>
    tpu.vector_store %arg10[%c0_13, %c0_14], %15 {strides = array<i32>} : memref<8x32xf32, #tpu.memory_space<vmem>>, vector<8x32xf32>,
    %c0_i32_15 = arith.constant 0 : i32
    %17 = arith.cmpi eq, %arg2, %c0_i32_15 : i32
    %18 = arith.extui %17 : i1 to i32
    %c0_i32_16 = arith.constant 0 : i32
    %19 = arith.cmpi ne, %18, %c0_i32_16 : i32
    scf.if %19 {
      %c0_17 = arith.constant 0 : index
      %c0_18 = arith.constant 0 : index
      %20 = vector.load %arg9[%c0_17, %c0_18] : memref<8x32xf32, #tpu.memory_space<vmem>>, vector<8x32xf32>
      %c0_19 = arith.constant 0 : index
      %c0_20 = arith.constant 0 : index
      %21 = vector.load %arg5[%c0_19, %c0_20] : memref<1x32xf32, #tpu.memory_space<vmem>>, vector<1x32xf32>
      %22 = vector.broadcast %21 : vector<1x32xf32> to vector<8x32xf32>
      %23 = arith.addf %20, %22 : vector<8x32xf32>
      %cst_21 = arith.constant 5.000000e-01 : f32
      %24 = vector.broadcast %cst_21 : f32 to vector<8x32xf32>
      %25 = arith.mulf %24, %23 : vector<8x32xf32>
      %cst_22 = arith.constant 4.471500e-02 : f32
      %26 = vector.broadcast %cst_22 : f32 to vector<8x32xf32>
      %27 = arith.mulf %26, %23 : vector<8x32xf32>
      %28 = arith.mulf %27, %23 : vector<8x32xf32>
      %29 = arith.mulf %28, %23 : vector<8x32xf32>
      %30 = arith.addf %23, %29 : vector<8x32xf32>
      %cst_23 = arith.constant 0.797884583 : f32
      %31 = vector.broadcast %cst_23 : f32 to vector<8x32xf32>
      %32 = arith.mulf %31, %30 : vector<8x32xf32>
      %33 = math.tanh %32 : vector<8x32xf32>
      %cst_24 = arith.constant 1.000000e+00 : f32
      %34 = vector.broadcast %cst_24 : f32 to vector<8x32xf32>
      %35 = arith.addf %34, %33 : vector<8x32xf32>
      %36 = arith.mulf %25, %35 : vector<8x32xf32>
      %c0_25 = arith.constant 0 : index
      %c0_26 = arith.constant 0 : index
      %37 = vector.load %arg10[%c0_25, %c0_26] : memref<8x32xf32, #tpu.memory_space<vmem>>, vector<8x32xf32>
      %c0_27 = arith.constant 0 : index
      %c0_28 = arith.constant 0 : index
      %38 = vector.load %arg7[%c0_27, %c0_28] : memref<1x32xf32, #tpu.memory_space<vmem>>, vector<1x32xf32>
      %39 = vector.broadcast %38 : vector<1x32xf32> to vector<8x32xf32>
      %40 = arith.addf %37, %39 : vector<8x32xf32>
      %cst_29 = arith.constant 5.000000e-01 : f32
      %41 = vector.broadcast %cst_29 : f32 to vector<8x32xf32>
      %42 = arith.mulf %41, %40 : vector<8x32xf32>
      %cst_30 = arith.constant 4.471500e-02 : f32
      %43 = vector.broadcast %cst_30 : f32 to vector<8x32xf32>
      %44 = arith.mulf %43, %40 : vector<8x32xf32>
      %45 = arith.mulf %44, %40 : vector<8x32xf32>
      %46 = arith.mulf %45, %40 : vector<8x32xf32>
      %47 = arith.addf %40, %46 : vector<8x32xf32>
      %cst_31 = arith.constant 0.797884583 : f32
      %48 = vector.broadcast %cst_31 : f32 to vector<8x32xf32>
      %49 = arith.mulf %48, %47 : vector<8x32xf32>
      %50 = math.tanh %49 : vector<8x32xf32>
      %cst_32 = arith.constant 1.000000e+00 : f32
      %51 = vector.broadcast %cst_32 : f32 to vector<8x32xf32>
      %52 = arith.addf %51, %50 : vector<8x32xf32>
      %53 = arith.mulf %42, %52 : vector<8x32xf32>
      %54 = arith.addf %36, %53 : vector<8x32xf32>
      %c0_33 = arith.constant 0 : index
      %c0_34 = arith.constant 0 : index
      %55 = vector.load %arg8[%c0_33, %c0_34] : memref<8x32xf32, #tpu.memory_space<vmem>>, vector<8x32xf32>
      tpu.vector_store %arg8[%c0_33, %c0_34], %54 {strides = array<i32>} : memref<8x32xf32, #tpu.memory_space<vmem>>, vector<8x32xf32>,
    } else {
    }
    return
  }
  func.func @transform_0(%arg0: i32, %arg1: i32, %arg2: i32) -> (i32, i32) {
    %c0_i32 = arith.constant 0 : i32
    return %arg0, %arg2 : i32, i32
  }
  func.func @transform_1(%arg0: i32, %arg1: i32, %arg2: i32) -> (i32, i32) {
    %c0_i32 = arith.constant 0 : i32
    return %arg2, %arg1 : i32, i32
  }
  func.func @transform_2(%arg0: i32, %arg1: i32, %arg2: i32) -> (i32, i32) {
    %c0_i32 = arith.constant 0 : i32
    %c0_i32_0 = arith.constant 0 : i32
    return %c0_i32, %arg1 : i32, i32
  }
  func.func @transform_3(%arg0: i32, %arg1: i32, %arg2: i32) -> (i32, i32) {
    %c0_i32 = arith.constant 0 : i32
    return %arg2, %arg1 : i32, i32
  }
  func.func @transform_4(%arg0: i32, %arg1: i32, %arg2: i32) -> (i32, i32) {
    %c0_i32 = arith.constant 0 : i32
    %c0_i32_0 = arith.constant 0 : i32
    return %c0_i32, %arg1 : i32, i32
  }
  func.func @transform_5(%arg0: i32, %arg1: i32, %arg2: i32) -> (i32, i32) {
    %c0_i32 = arith.constant 0 : i32
    return %arg0, %arg1 : i32, i32
  }
}

module attributes {stable_mosaic.version = 11 : i64} {
  func.func @_mm_res_kernel(%arg0: i32, %arg1: i32, %arg2: i32, %arg3: memref<8x32xf32, #tpu.memory_space<vmem>>, %arg4: memref<32x32xf32, #tpu.memory_space<vmem>>, %arg5: memref<1x32xf32, #tpu.memory_space<vmem>>, %arg6: memref<8x32xf32, #tpu.memory_space<vmem>>, %arg7: memref<8x32xf32, #tpu.memory_space<vmem>>, %arg8: memref<8x32xf32, #tpu.memory_space<vmem>>) attributes {dimension_semantics = [#tpu.dimension_semantics<parallel>, #tpu.dimension_semantics<parallel>, #tpu.dimension_semantics<arbitrary>], iteration_bounds = array<i64: 1, 1, 1>, scalar_prefetch = 0 : i64, scratch_operands = 1 : i64, tpu.core_type = #tpu.core_type<tc>, window_params = [{transform_indices = @transform_0, window_bounds = array<i64: 8, 32>}, {transform_indices = @transform_1, window_bounds = array<i64: 32, 32>}, {transform_indices = @transform_2, window_bounds = array<i64: 1, 32>}, {transform_indices = @transform_3, window_bounds = array<i64: 8, 32>}, {transform_indices = @transform_4, window_bounds = array<i64: 8, 32>}]} {
    %c0_i32 = arith.constant 0 : i32
    %0 = arith.cmpi eq, %arg2, %c0_i32 : i32
    %1 = arith.extui %0 : i1 to i32
    %c0_i32_0 = arith.constant 0 : i32
    %2 = arith.cmpi ne, %1, %c0_i32_0 : i32
    scf.if %2 {
      %cst_10 = arith.constant 0.000000e+00 : f32
      %14 = vector.broadcast %cst_10 : f32 to vector<8x32xf32>
      %c0_11 = arith.constant 0 : index
      %c0_12 = arith.constant 0 : index
      %15 = vector.load %arg8[%c0_11, %c0_12] : memref<8x32xf32, #tpu.memory_space<vmem>>, vector<8x32xf32>
      tpu.vector_store %arg8[%c0_11, %c0_12], %14 {strides = array<i32>} : memref<8x32xf32, #tpu.memory_space<vmem>>, vector<8x32xf32>,
    } else {
    }
    %c0 = arith.constant 0 : index
    %c0_1 = arith.constant 0 : index
    %3 = vector.load %arg8[%c0, %c0_1] : memref<8x32xf32, #tpu.memory_space<vmem>>, vector<8x32xf32>
    %c0_2 = arith.constant 0 : index
    %c0_3 = arith.constant 0 : index
    %4 = vector.load %arg3[%c0_2, %c0_3] : memref<8x32xf32, #tpu.memory_space<vmem>>, vector<8x32xf32>
    %5 = arith.truncf %4 : vector<8x32xf32> to vector<8x32xbf16>
    %c0_4 = arith.constant 0 : index
    %c0_5 = arith.constant 0 : index
    %6 = vector.load %arg4[%c0_4, %c0_5] : memref<32x32xf32, #tpu.memory_space<vmem>>, vector<32x32xf32>
    %7 = arith.truncf %6 : vector<32x32xf32> to vector<32x32xbf16>
    %cst = arith.constant dense<0.000000e+00> : vector<8x32xf32>
    %8 = tpu.matmul %5, %7, %cst {dimension_numbers = #tpu.dot_dimension_numbers<[1], [0], [0], [1], [0, 0, 1, 1], [], []>} : vector<8x32xbf16>, vector<32x32xbf16>, vector<8x32xf32> -> vector<8x32xf32>
    %9 = arith.addf %3, %8 : vector<8x32xf32>
    %c0_6 = arith.constant 0 : index
    %c0_7 = arith.constant 0 : index
    %10 = vector.load %arg8[%c0_6, %c0_7] : memref<8x32xf32, #tpu.memory_space<vmem>>, vector<8x32xf32>
    tpu.vector_store %arg8[%c0_6, %c0_7], %9 {strides = array<i32>} : memref<8x32xf32, #tpu.memory_space<vmem>>, vector<8x32xf32>,
    %c0_i32_8 = arith.constant 0 : i32
    %11 = arith.cmpi eq, %arg2, %c0_i32_8 : i32
    %12 = arith.extui %11 : i1 to i32
    %c0_i32_9 = arith.constant 0 : i32
    %13 = arith.cmpi ne, %12, %c0_i32_9 : i32
    scf.if %13 {
      %c0_10 = arith.constant 0 : index
      %c0_11 = arith.constant 0 : index
      %14 = vector.load %arg8[%c0_10, %c0_11] : memref<8x32xf32, #tpu.memory_space<vmem>>, vector<8x32xf32>
      %c0_12 = arith.constant 0 : index
      %c0_13 = arith.constant 0 : index
      %15 = vector.load %arg5[%c0_12, %c0_13] : memref<1x32xf32, #tpu.memory_space<vmem>>, vector<1x32xf32>
      %16 = vector.broadcast %15 : vector<1x32xf32> to vector<8x32xf32>
      %17 = arith.addf %14, %16 : vector<8x32xf32>
      %c0_14 = arith.constant 0 : index
      %c0_15 = arith.constant 0 : index
      %18 = vector.load %arg6[%c0_14, %c0_15] : memref<8x32xf32, #tpu.memory_space<vmem>>, vector<8x32xf32>
      %19 = arith.addf %17, %18 : vector<8x32xf32>
      %c0_16 = arith.constant 0 : index
      %c0_17 = arith.constant 0 : index
      %20 = vector.load %arg7[%c0_16, %c0_17] : memref<8x32xf32, #tpu.memory_space<vmem>>, vector<8x32xf32>
      tpu.vector_store %arg7[%c0_16, %c0_17], %19 {strides = array<i32>} : memref<8x32xf32, #tpu.memory_space<vmem>>, vector<8x32xf32>,
    } else {
    }
    return
  }
  func.func @transform_0(%arg0: i32, %arg1: i32, %arg2: i32) -> (i32, i32) {
    %c0_i32 = arith.constant 0 : i32
    return %arg0, %arg2 : i32, i32
  }
  func.func @transform_1(%arg0: i32, %arg1: i32, %arg2: i32) -> (i32, i32) {
    %c0_i32 = arith.constant 0 : i32
    return %arg2, %arg1 : i32, i32
  }
  func.func @transform_2(%arg0: i32, %arg1: i32, %arg2: i32) -> (i32, i32) {
    %c0_i32 = arith.constant 0 : i32
    %c0_i32_0 = arith.constant 0 : i32
    return %c0_i32, %arg1 : i32, i32
  }
  func.func @transform_3(%arg0: i32, %arg1: i32, %arg2: i32) -> (i32, i32) {
    %c0_i32 = arith.constant 0 : i32
    return %arg0, %arg1 : i32, i32
  }
  func.func @transform_4(%arg0: i32, %arg1: i32, %arg2: i32) -> (i32, i32) {
    %c0_i32 = arith.constant 0 : i32
    return %arg0, %arg1 : i32, i32
  }
}

module attributes {stable_mosaic.version = 11 : i64} {
  func.func @_mm_kernel(%arg0: i32, %arg1: i32, %arg2: i32, %arg3: memref<8x32xf32, #tpu.memory_space<vmem>>, %arg4: memref<32x64xf32, #tpu.memory_space<vmem>>, %arg5: memref<1x64xf32, #tpu.memory_space<vmem>>, %arg6: memref<8x64xf32, #tpu.memory_space<vmem>>, %arg7: memref<8x64xf32, #tpu.memory_space<vmem>>) attributes {dimension_semantics = [#tpu.dimension_semantics<parallel>, #tpu.dimension_semantics<parallel>, #tpu.dimension_semantics<arbitrary>], iteration_bounds = array<i64: 1, 1, 1>, scalar_prefetch = 0 : i64, scratch_operands = 1 : i64, tpu.core_type = #tpu.core_type<tc>, window_params = [{transform_indices = @transform_0, window_bounds = array<i64: 8, 32>}, {transform_indices = @transform_1, window_bounds = array<i64: 32, 64>}, {transform_indices = @transform_2, window_bounds = array<i64: 1, 64>}, {transform_indices = @transform_3, window_bounds = array<i64: 8, 64>}]} {
    %c0_i32 = arith.constant 0 : i32
    %0 = arith.cmpi eq, %arg2, %c0_i32 : i32
    %1 = arith.extui %0 : i1 to i32
    %c0_i32_0 = arith.constant 0 : i32
    %2 = arith.cmpi ne, %1, %c0_i32_0 : i32
    scf.if %2 {
      %cst_10 = arith.constant 0.000000e+00 : f32
      %14 = vector.broadcast %cst_10 : f32 to vector<8x64xf32>
      %c0_11 = arith.constant 0 : index
      %c0_12 = arith.constant 0 : index
      %15 = vector.load %arg7[%c0_11, %c0_12] : memref<8x64xf32, #tpu.memory_space<vmem>>, vector<8x64xf32>
      tpu.vector_store %arg7[%c0_11, %c0_12], %14 {strides = array<i32>} : memref<8x64xf32, #tpu.memory_space<vmem>>, vector<8x64xf32>,
    } else {
    }
    %c0 = arith.constant 0 : index
    %c0_1 = arith.constant 0 : index
    %3 = vector.load %arg7[%c0, %c0_1] : memref<8x64xf32, #tpu.memory_space<vmem>>, vector<8x64xf32>
    %c0_2 = arith.constant 0 : index
    %c0_3 = arith.constant 0 : index
    %4 = vector.load %arg3[%c0_2, %c0_3] : memref<8x32xf32, #tpu.memory_space<vmem>>, vector<8x32xf32>
    %5 = arith.truncf %4 : vector<8x32xf32> to vector<8x32xbf16>
    %c0_4 = arith.constant 0 : index
    %c0_5 = arith.constant 0 : index
    %6 = vector.load %arg4[%c0_4, %c0_5] : memref<32x64xf32, #tpu.memory_space<vmem>>, vector<32x64xf32>
    %7 = arith.truncf %6 : vector<32x64xf32> to vector<32x64xbf16>
    %cst = arith.constant dense<0.000000e+00> : vector<8x64xf32>
    %8 = tpu.matmul %5, %7, %cst {dimension_numbers = #tpu.dot_dimension_numbers<[1], [0], [0], [1], [0, 0, 1, 1], [], []>} : vector<8x32xbf16>, vector<32x64xbf16>, vector<8x64xf32> -> vector<8x64xf32>
    %9 = arith.addf %3, %8 : vector<8x64xf32>
    %c0_6 = arith.constant 0 : index
    %c0_7 = arith.constant 0 : index
    %10 = vector.load %arg7[%c0_6, %c0_7] : memref<8x64xf32, #tpu.memory_space<vmem>>, vector<8x64xf32>
    tpu.vector_store %arg7[%c0_6, %c0_7], %9 {strides = array<i32>} : memref<8x64xf32, #tpu.memory_space<vmem>>, vector<8x64xf32>,
    %c0_i32_8 = arith.constant 0 : i32
    %11 = arith.cmpi eq, %arg2, %c0_i32_8 : i32
    %12 = arith.extui %11 : i1 to i32
    %c0_i32_9 = arith.constant 0 : i32
    %13 = arith.cmpi ne, %12, %c0_i32_9 : i32
    scf.if %13 {
      %c0_10 = arith.constant 0 : index
      %c0_11 = arith.constant 0 : index
      %14 = vector.load %arg7[%c0_10, %c0_11] : memref<8x64xf32, #tpu.memory_space<vmem>>, vector<8x64xf32>
      %c0_12 = arith.constant 0 : index
      %c0_13 = arith.constant 0 : index
      %15 = vector.load %arg5[%c0_12, %c0_13] : memref<1x64xf32, #tpu.memory_space<vmem>>, vector<1x64xf32>
      %16 = vector.broadcast %15 : vector<1x64xf32> to vector<8x64xf32>
      %17 = arith.addf %14, %16 : vector<8x64xf32>
      %cst_14 = arith.constant 5.000000e-01 : f32
      %18 = vector.broadcast %cst_14 : f32 to vector<8x64xf32>
      %19 = arith.mulf %18, %17 : vector<8x64xf32>
      %cst_15 = arith.constant 4.471500e-02 : f32
      %20 = vector.broadcast %cst_15 : f32 to vector<8x64xf32>
      %21 = arith.mulf %20, %17 : vector<8x64xf32>
      %22 = arith.mulf %21, %17 : vector<8x64xf32>
      %23 = arith.mulf %22, %17 : vector<8x64xf32>
      %24 = arith.addf %17, %23 : vector<8x64xf32>
      %cst_16 = arith.constant 0.797884583 : f32
      %25 = vector.broadcast %cst_16 : f32 to vector<8x64xf32>
      %26 = arith.mulf %25, %24 : vector<8x64xf32>
      %27 = math.tanh %26 : vector<8x64xf32>
      %cst_17 = arith.constant 1.000000e+00 : f32
      %28 = vector.broadcast %cst_17 : f32 to vector<8x64xf32>
      %29 = arith.addf %28, %27 : vector<8x64xf32>
      %30 = arith.mulf %19, %29 : vector<8x64xf32>
      %c0_18 = arith.constant 0 : index
      %c0_19 = arith.constant 0 : index
      %31 = vector.load %arg6[%c0_18, %c0_19] : memref<8x64xf32, #tpu.memory_space<vmem>>, vector<8x64xf32>
      tpu.vector_store %arg6[%c0_18, %c0_19], %30 {strides = array<i32>} : memref<8x64xf32, #tpu.memory_space<vmem>>, vector<8x64xf32>,
    } else {
    }
    return
  }
  func.func @transform_0(%arg0: i32, %arg1: i32, %arg2: i32) -> (i32, i32) {
    %c0_i32 = arith.constant 0 : i32
    return %arg0, %arg2 : i32, i32
  }
  func.func @transform_1(%arg0: i32, %arg1: i32, %arg2: i32) -> (i32, i32) {
    %c0_i32 = arith.constant 0 : i32
    return %arg2, %arg1 : i32, i32
  }
  func.func @transform_2(%arg0: i32, %arg1: i32, %arg2: i32) -> (i32, i32) {
    %c0_i32 = arith.constant 0 : i32
    %c0_i32_0 = arith.constant 0 : i32
    return %c0_i32, %arg1 : i32, i32
  }
  func.func @transform_3(%arg0: i32, %arg1: i32, %arg2: i32) -> (i32, i32) {
    %c0_i32 = arith.constant 0 : i32
    return %arg0, %arg1 : i32, i32
  }
}

module attributes {stable_mosaic.version = 11 : i64} {
  func.func @_mm_res_kernel(%arg0: i32, %arg1: i32, %arg2: i32, %arg3: memref<8x64xf32, #tpu.memory_space<vmem>>, %arg4: memref<64x32xf32, #tpu.memory_space<vmem>>, %arg5: memref<1x32xf32, #tpu.memory_space<vmem>>, %arg6: memref<8x32xf32, #tpu.memory_space<vmem>>, %arg7: memref<8x32xf32, #tpu.memory_space<vmem>>, %arg8: memref<8x32xf32, #tpu.memory_space<vmem>>) attributes {dimension_semantics = [#tpu.dimension_semantics<parallel>, #tpu.dimension_semantics<parallel>, #tpu.dimension_semantics<arbitrary>], iteration_bounds = array<i64: 1, 1, 1>, scalar_prefetch = 0 : i64, scratch_operands = 1 : i64, tpu.core_type = #tpu.core_type<tc>, window_params = [{transform_indices = @transform_0, window_bounds = array<i64: 8, 64>}, {transform_indices = @transform_1, window_bounds = array<i64: 64, 32>}, {transform_indices = @transform_2, window_bounds = array<i64: 1, 32>}, {transform_indices = @transform_3, window_bounds = array<i64: 8, 32>}, {transform_indices = @transform_4, window_bounds = array<i64: 8, 32>}]} {
    %c0_i32 = arith.constant 0 : i32
    %0 = arith.cmpi eq, %arg2, %c0_i32 : i32
    %1 = arith.extui %0 : i1 to i32
    %c0_i32_0 = arith.constant 0 : i32
    %2 = arith.cmpi ne, %1, %c0_i32_0 : i32
    scf.if %2 {
      %cst_10 = arith.constant 0.000000e+00 : f32
      %14 = vector.broadcast %cst_10 : f32 to vector<8x32xf32>
      %c0_11 = arith.constant 0 : index
      %c0_12 = arith.constant 0 : index
      %15 = vector.load %arg8[%c0_11, %c0_12] : memref<8x32xf32, #tpu.memory_space<vmem>>, vector<8x32xf32>
      tpu.vector_store %arg8[%c0_11, %c0_12], %14 {strides = array<i32>} : memref<8x32xf32, #tpu.memory_space<vmem>>, vector<8x32xf32>,
    } else {
    }
    %c0 = arith.constant 0 : index
    %c0_1 = arith.constant 0 : index
    %3 = vector.load %arg8[%c0, %c0_1] : memref<8x32xf32, #tpu.memory_space<vmem>>, vector<8x32xf32>
    %c0_2 = arith.constant 0 : index
    %c0_3 = arith.constant 0 : index
    %4 = vector.load %arg3[%c0_2, %c0_3] : memref<8x64xf32, #tpu.memory_space<vmem>>, vector<8x64xf32>
    %5 = arith.truncf %4 : vector<8x64xf32> to vector<8x64xbf16>
    %c0_4 = arith.constant 0 : index
    %c0_5 = arith.constant 0 : index
    %6 = vector.load %arg4[%c0_4, %c0_5] : memref<64x32xf32, #tpu.memory_space<vmem>>, vector<64x32xf32>
    %7 = arith.truncf %6 : vector<64x32xf32> to vector<64x32xbf16>
    %cst = arith.constant dense<0.000000e+00> : vector<8x32xf32>
    %8 = tpu.matmul %5, %7, %cst {dimension_numbers = #tpu.dot_dimension_numbers<[1], [0], [0], [1], [0, 0, 1, 1], [], []>} : vector<8x64xbf16>, vector<64x32xbf16>, vector<8x32xf32> -> vector<8x32xf32>
    %9 = arith.addf %3, %8 : vector<8x32xf32>
    %c0_6 = arith.constant 0 : index
    %c0_7 = arith.constant 0 : index
    %10 = vector.load %arg8[%c0_6, %c0_7] : memref<8x32xf32, #tpu.memory_space<vmem>>, vector<8x32xf32>
    tpu.vector_store %arg8[%c0_6, %c0_7], %9 {strides = array<i32>} : memref<8x32xf32, #tpu.memory_space<vmem>>, vector<8x32xf32>,
    %c0_i32_8 = arith.constant 0 : i32
    %11 = arith.cmpi eq, %arg2, %c0_i32_8 : i32
    %12 = arith.extui %11 : i1 to i32
    %c0_i32_9 = arith.constant 0 : i32
    %13 = arith.cmpi ne, %12, %c0_i32_9 : i32
    scf.if %13 {
      %c0_10 = arith.constant 0 : index
      %c0_11 = arith.constant 0 : index
      %14 = vector.load %arg8[%c0_10, %c0_11] : memref<8x32xf32, #tpu.memory_space<vmem>>, vector<8x32xf32>
      %c0_12 = arith.constant 0 : index
      %c0_13 = arith.constant 0 : index
      %15 = vector.load %arg5[%c0_12, %c0_13] : memref<1x32xf32, #tpu.memory_space<vmem>>, vector<1x32xf32>
      %16 = vector.broadcast %15 : vector<1x32xf32> to vector<8x32xf32>
      %17 = arith.addf %14, %16 : vector<8x32xf32>
      %c0_14 = arith.constant 0 : index
      %c0_15 = arith.constant 0 : index
      %18 = vector.load %arg6[%c0_14, %c0_15] : memref<8x32xf32, #tpu.memory_space<vmem>>, vector<8x32xf32>
      %19 = arith.addf %17, %18 : vector<8x32xf32>
      %c0_16 = arith.constant 0 : index
      %c0_17 = arith.constant 0 : index
      %20 = vector.load %arg7[%c0_16, %c0_17] : memref<8x32xf32, #tpu.memory_space<vmem>>, vector<8x32xf32>
      tpu.vector_store %arg7[%c0_16, %c0_17], %19 {strides = array<i32>} : memref<8x32xf32, #tpu.memory_space<vmem>>, vector<8x32xf32>,
    } else {
    }
    return
  }
  func.func @transform_0(%arg0: i32, %arg1: i32, %arg2: i32) -> (i32, i32) {
    %c0_i32 = arith.constant 0 : i32
    return %arg0, %arg2 : i32, i32
  }
  func.func @transform_1(%arg0: i32, %arg1: i32, %arg2: i32) -> (i32, i32) {
    %c0_i32 = arith.constant 0 : i32
    return %arg2, %arg1 : i32, i32
  }
  func.func @transform_2(%arg0: i32, %arg1: i32, %arg2: i32) -> (i32, i32) {
    %c0_i32 = arith.constant 0 : i32
    %c0_i32_0 = arith.constant 0 : i32
    return %c0_i32, %arg1 : i32, i32
  }
  func.func @transform_3(%arg0: i32, %arg1: i32, %arg2: i32) -> (i32, i32) {
    %c0_i32 = arith.constant 0 : i32
    return %arg0, %arg1 : i32, i32
  }
  func.func @transform_4(%arg0: i32, %arg1: i32, %arg2: i32) -> (i32, i32) {
    %c0_i32 = arith.constant 0 : i32
    return %arg0, %arg1 : i32, i32
  }
}

module attributes {stable_mosaic.version = 11 : i64} {
  func.func @_gn_pool_head_kernel(%arg0: i32, %arg1: memref<1x4x32xf32, #tpu.memory_space<vmem>>, %arg2: memref<1x32xf32, #tpu.memory_space<vmem>>, %arg3: memref<1x32xf32, #tpu.memory_space<vmem>>, %arg4: memref<32x128xf32, #tpu.memory_space<vmem>>, %arg5: memref<1x128xf32, #tpu.memory_space<vmem>>, %arg6: memref<1x1x128xf32, #tpu.memory_space<vmem>>) attributes {dimension_semantics = [#tpu.dimension_semantics<parallel>], iteration_bounds = array<i64: 2>, scalar_prefetch = 0 : i64, scratch_operands = 0 : i64, tpu.core_type = #tpu.core_type<tc>, window_params = [{transform_indices = @transform_0, window_bounds = array<i64: 1, 4, 32>}, {pipeline_mode = #tpu.pipeline_mode<synchronous>, transform_indices = @transform_1, window_bounds = array<i64: 1, 32>}, {pipeline_mode = #tpu.pipeline_mode<synchronous>, transform_indices = @transform_2, window_bounds = array<i64: 1, 32>}, {pipeline_mode = #tpu.pipeline_mode<synchronous>, transform_indices = @transform_3, window_bounds = array<i64: 32, 128>}, {pipeline_mode = #tpu.pipeline_mode<synchronous>, transform_indices = @transform_4, window_bounds = array<i64: 1, 128>}, {transform_indices = @transform_5, window_bounds = array<i64: 1, 1, 128>}]} {
    %c0 = arith.constant 0 : index
    %c0_0 = arith.constant 0 : index
    %c0_1 = arith.constant 0 : index
    %0 = vector.load %arg1[%c0, %c0_0, %c0_1] : memref<1x4x32xf32, #tpu.memory_space<vmem>>, vector<1x4x32xf32>
    %1 = vector.shape_cast %0 : vector<1x4x32xf32> to vector<4x32xf32>
    %cst = arith.constant dense<0.000000e+00> : vector<32xf32>
    %2 = vector.multi_reduction <add>, %1, %cst [0] : vector<4x32xf32> to vector<32xf32>
    %3 = vector.shape_cast %2 : vector<32xf32> to vector<1x32xf32>
    %4 = arith.mulf %1, %1 : vector<4x32xf32>
    %cst_2 = arith.constant dense<0.000000e+00> : vector<32xf32>
    %5 = vector.multi_reduction <add>, %4, %cst_2 [0] : vector<4x32xf32> to vector<32xf32>
    %6 = vector.shape_cast %5 : vector<32xf32> to vector<1x32xf32>
    %cst_3 = arith.constant dense<0.000000e+00> : vector<1xf32>
    %7 = vector.multi_reduction <add>, %3, %cst_3 [1] : vector<1x32xf32> to vector<1xf32>
    %8 = vector.shape_cast %7 : vector<1xf32> to vector<1x1xf32>
    %cst_4 = arith.constant 7.812500e-03 : f32
    %9 = vector.broadcast %cst_4 : f32 to vector<1x1xf32>
    %10 = arith.mulf %8, %9 : vector<1x1xf32>
    %cst_5 = arith.constant dense<0.000000e+00> : vector<1xf32>
    %11 = vector.multi_reduction <add>, %6, %cst_5 [1] : vector<1x32xf32> to vector<1xf32>
    %12 = vector.shape_cast %11 : vector<1xf32> to vector<1x1xf32>
    %cst_6 = arith.constant 7.812500e-03 : f32
    %13 = vector.broadcast %cst_6 : f32 to vector<1x1xf32>
    %14 = arith.mulf %12, %13 : vector<1x1xf32>
    %15 = arith.mulf %10, %10 : vector<1x1xf32>
    %16 = arith.subf %14, %15 : vector<1x1xf32>
    %cst_7 = arith.constant 0.000000e+00 : f32
    %17 = vector.broadcast %cst_7 : f32 to vector<1x1xf32>
    %18 = arith.maximumf %16, %17 : vector<1x1xf32>
    %cst_8 = arith.constant 9.99999974E-6 : f32
    %19 = vector.broadcast %cst_8 : f32 to vector<1x1xf32>
    %20 = arith.addf %18, %19 : vector<1x1xf32>
    %21 = math.rsqrt %20 : vector<1x1xf32>
    %cst_9 = arith.constant 2.500000e-01 : f32
    %22 = vector.broadcast %cst_9 : f32 to vector<1x32xf32>
    %23 = arith.mulf %3, %22 : vector<1x32xf32>
    %24 = vector.broadcast %10 : vector<1x1xf32> to vector<1x32xf32>
    %25 = arith.subf %23, %24 : vector<1x32xf32>
    %26 = vector.broadcast %21 : vector<1x1xf32> to vector<1x32xf32>
    %27 = arith.mulf %25, %26 : vector<1x32xf32>
    %c0_10 = arith.constant 0 : index
    %c0_11 = arith.constant 0 : index
    %28 = vector.load %arg2[%c0_10, %c0_11] : memref<1x32xf32, #tpu.memory_space<vmem>>, vector<1x32xf32>
    %29 = arith.mulf %27, %28 : vector<1x32xf32>
    %c0_12 = arith.constant 0 : index
    %c0_13 = arith.constant 0 : index
    %30 = vector.load %arg3[%c0_12, %c0_13] : memref<1x32xf32, #tpu.memory_space<vmem>>, vector<1x32xf32>
    %31 = arith.addf %29, %30 : vector<1x32xf32>
    %32 = arith.truncf %31 : vector<1x32xf32> to vector<1x32xbf16>
    %c0_14 = arith.constant 0 : index
    %c0_15 = arith.constant 0 : index
    %33 = vector.load %arg4[%c0_14, %c0_15] : memref<32x128xf32, #tpu.memory_space<vmem>>, vector<32x128xf32>
    %34 = arith.truncf %33 : vector<32x128xf32> to vector<32x128xbf16>
    %cst_16 = arith.constant dense<0.000000e+00> : vector<1x128xf32>
    %35 = tpu.matmul %32, %34, %cst_16 {dimension_numbers = #tpu.dot_dimension_numbers<[1], [0], [0], [1], [0, 0, 1, 1], [], []>} : vector<1x32xbf16>, vector<32x128xbf16>, vector<1x128xf32> -> vector<1x128xf32>
    %c0_17 = arith.constant 0 : index
    %c0_18 = arith.constant 0 : index
    %36 = vector.load %arg5[%c0_17, %c0_18] : memref<1x128xf32, #tpu.memory_space<vmem>>, vector<1x128xf32>
    %37 = arith.addf %35, %36 : vector<1x128xf32>
    %c0_19 = arith.constant 0 : index
    %c0_20 = arith.constant 0 : index
    %c0_21 = arith.constant 0 : index
    %38 = vector.load %arg6[%c0_19, %c0_20, %c0_21] : memref<1x1x128xf32, #tpu.memory_space<vmem>>, vector<1x1x128xf32>
    %39 = vector.shape_cast %38 : vector<1x1x128xf32> to vector<1x128xf32>
    %40 = vector.shape_cast %37 : vector<1x128xf32> to vector<1x1x128xf32>
    tpu.vector_store %arg6[%c0_19, %c0_20, %c0_21], %40 {strides = array<i32>} : memref<1x1x128xf32, #tpu.memory_space<vmem>>, vector<1x1x128xf32>,
    return
  }
  func.func @transform_0(%arg0: i32) -> (i32, i32, i32) {
    %c0_i32 = arith.constant 0 : i32
    %c0_i32_0 = arith.constant 0 : i32
    %c0_i32_1 = arith.constant 0 : i32
    return %arg0, %c0_i32, %c0_i32_0 : i32, i32, i32
  }
  func.func @transform_1(%arg0: i32) -> (i32, i32) {
    %c0_i32 = arith.constant 0 : i32
    %c0_i32_0 = arith.constant 0 : i32
    %c0_i32_1 = arith.constant 0 : i32
    return %c0_i32, %c0_i32_0 : i32, i32
  }
  func.func @transform_2(%arg0: i32) -> (i32, i32) {
    %c0_i32 = arith.constant 0 : i32
    %c0_i32_0 = arith.constant 0 : i32
    %c0_i32_1 = arith.constant 0 : i32
    return %c0_i32, %c0_i32_0 : i32, i32
  }
  func.func @transform_3(%arg0: i32) -> (i32, i32) {
    %c0_i32 = arith.constant 0 : i32
    %c0_i32_0 = arith.constant 0 : i32
    %c0_i32_1 = arith.constant 0 : i32
    return %c0_i32, %c0_i32_0 : i32, i32
  }
  func.func @transform_4(%arg0: i32) -> (i32, i32) {
    %c0_i32 = arith.constant 0 : i32
    %c0_i32_0 = arith.constant 0 : i32
    %c0_i32_1 = arith.constant 0 : i32
    return %c0_i32, %c0_i32_0 : i32, i32
  }
  func.func @transform_5(%arg0: i32) -> (i32, i32, i32) {
    %c0_i32 = arith.constant 0 : i32
    %c0_i32_0 = arith.constant 0 : i32
    %c0_i32_1 = arith.constant 0 : i32
    return %arg0, %c0_i32, %c0_i32_0 : i32, i32, i32
  }
}

</mosaic_0001>

<llo_original>
// kernel: snnmlp_forward.28
$region0: #{snnmlp_forward.28}
  #allocation0 [shape = 'u32[]', space=smem, size = 0x4, offset = 0x4, fixed_abs, tag = 'smem constant byte address 0x4 - core index']
  #allocation1 [shape = 'u32[144,128]{1,0:T(1,128)}', space=vmem, size = 0x12000, scoped, tag = 'internal scratch']
  %s0 = inlined_call_operand.vmem [shape: f32[2,16,16], index: 0, kind: input, shape index: {}]
  %s1 = inlined_call_operand.vmem [shape: f32[1,16], index: 1, kind: input, shape index: {}]
  %s2 = inlined_call_operand.vmem [shape: f32[1,16], index: 2, kind: input, shape index: {}]
  %s3 = inlined_call_operand.vmem [shape: f32[2,16,16], index: 3, kind: output, shape index: {}]
  %s4 = sld [smem:[#allocation0]]
  $region45: #{snnmlp_forward.28} parent=0
    _
  %s6 = ssub.s32 1, %s4
  %s7 = scalar_select 0, %s6, %s4
  loop: start=0, step=1, limit=4
  $region2: #{snnmlp_forward.28} parent=0 // loop_pre_header
    _
  $region3: #{snnmlp_forward.28} parent=0 // loop_header
    %s9 = sphi 0, %s13
    %p10 = scmp.ge.s32.totalorder %s9, 4
    %s19 = sphi 0, %s21
    %s22 = sphi 0, %s19
    %s23 = sphi 0, %s22
    %s39 = sphi 0, %s23
    %s43 = sphi 0, %s43
    %s45 = sphi 0, %s43
    %s46 = sphi 0, %s45
    %s60 = sphi 0, %s46
    %s64 = sphi 0, %s64
    %s66 = sphi 0, %s64
    %s67 = sphi 0, %s66
    %s81 = sphi 0, %s67
    %s87 = sphi 0, %s89
    %s90 = sphi 0, %s87
    %s91 = sphi 0, %s90
    %s107 = sphi 0, %s91
  $region4: #{snnmlp_forward.28} parent=0 // loop_header_branch
    %12 = sbr.rel (%p10) target = $region8
  $region5: #{snnmlp_forward.28} parent=0 // loop_body
    %s14 = ssub.s32 %s9, 1
    %s15 = ssub.s32 %s9, 2
    %s16 = sadd.s32 %s9, 1
    %s17 = ssub.s32 %s9, %s16
    %p18 = scmp.eq.s32.totalorder %s17, 0
    %s20 = sadd.s32 %s19, 1
    %s21 = scalar_select %p18, %s19, %s20
    %p24 = pneg %p18
    %p25 = scmp.eq.s32.totalorder %s9, 1
    %p26 = por %p24, %p25
    %p27 = scmp.ne.s32.totalorder %s19, %s22
    %p28 = scmp.eq.s32.totalorder %s9, 0
    %p29 = por %p27, %p28
    %p30 = scmp.ne.s32.totalorder %s19, %s22
    %p31 = scmp.eq.s32.totalorder %s14, 1
    %p32 = por %p30, %p31
    %p33 = scmp.ne.s32.totalorder %s22, %s23
    %p34 = scmp.eq.s32.totalorder %s14, 0
    %p35 = por %p33, %p34
    %p36 = scmp.ne.s32.totalorder %s22, %s23
    %p37 = scmp.eq.s32.totalorder %s15, 1
    %p38 = por %p36, %p37
    %p40 = scmp.ne.s32.totalorder %s23, %s39
    %p41 = scmp.eq.s32.totalorder %s15, 0
    %p42 = por %p40, %p41
    %s44 = sadd.s32 %s43, 1
    %p47 = scmp.eq.s32.totalorder %s9, 1
    %p48 = scmp.ne.s32.totalorder %s43, %s45
    %p49 = scmp.eq.s32.totalorder %s9, 0
    %p50 = por %p48, %p49
    %p51 = scmp.ne.s32.totalorder %s43, %s45
    %p52 = scmp.eq.s32.totalorder %s14, 1
    %p53 = por %p51, %p52
    %p54 = scmp.ne.s32.totalorder %s45, %s46
    %p55 = scmp.eq.s32.totalorder %s14, 0
    %p56 = por %p54, %p55
    %p57 = scmp.ne.s32.totalorder %s45, %s46
    %p58 = scmp.eq.s32.totalorder %s15, 1
    %p59 = por %p57, %p58
    %p61 = scmp.ne.s32.totalorder %s46, %s60
    %p62 = scmp.eq.s32.totalorder %s15, 0
    %p63 = por %p61, %p62
    %s65 = sadd.s32 %s64, 1
    %p68 = scmp.eq.s32.totalorder %s9, 1
    %p69 = scmp.ne.s32.totalorder %s64, %s66
    %p70 = scmp.eq.s32.totalorder %s9, 0
    %p71 = por %p69, %p70
    %p72 = scmp.ne.s32.totalorder %s64, %s66
    %p73 = scmp.eq.s32.totalorder %s14, 1
    %p74 = por %p72, %p73
    %p75 = scmp.ne.s32.totalorder %s66, %s67
    %p76 = scmp.eq.s32.totalorder %s14, 0
    %p77 = por %p75, %p76
    %p78 = scmp.ne.s32.totalorder %s66, %s67
    %p79 = scmp.eq.s32.totalorder %s15, 1
    %p80 = por %p78, %p79
    %p82 = scmp.ne.s32.totalorder %s67, %s81
    %p83 = scmp.eq.s32.totalorder %s15, 0
    %p84 = por %p82, %p83
    %s85 = ssub.s32 %s9, %s16
    %p86 = scmp.eq.s32.totalorder %s85, 0
    %s88 = sadd.s32 %s87, 1
    %s89 = scalar_select %p86, %s87, %s88
    %p92 = pneg %p86
    %p93 = scmp.eq.s32.totalorder %s9, 1
    %p94 = por %p92, %p93
    %p95 = scmp.ne.s32.totalorder %s87, %s90
    %p96 = scmp.eq.s32.totalorder %s9, 0
    %p97 = por %p95, %p96
    %p98 = scmp.ne.s32.totalorder %s87, %s90
    %p99 = scmp.eq.s32.totalorder %s14, 1
    %p100 = por %p98, %p99
    %p101 = scmp.ne.s32.totalorder %s90, %s91
    %p102 = scmp.eq.s32.totalorder %s14, 0
    %p103 = por %p101, %p102
    %p104 = scmp.ne.s32.totalorder %s90, %s91
    %p105 = scmp.eq.s32.totalorder %s15, 1
    %p106 = por %p104, %p105
    %p108 = scmp.ne.s32.totalorder %s91, %s107
    %p109 = scmp.eq.s32.totalorder %s15, 0
    %p110 = por %p108, %p109
    %p111 = scmp.le.s32.totalorder 1, %s9
    %p112 = scmp.lt.s32.totalorder %s9, 3
    %p113 = pnand %p111, %p112
    %p114 = pneg %p113
    // Predicated region
    $region9: #{snnmlp_forward.28} parent=5 // pred_check
      _
    $region10: #{snnmlp_forward.28} parent=5 // pred_check_branch
      %116 = sbr.rel (%p113) target = $region12
    $region11: #{snnmlp_forward.28} parent=5 // pred_region
      %s117 = ssub.s32 %s9, 1
      // Predicated region
      $region13: #{snnmlp_forward.28} parent=11 // pred_check
        %p118 = pneg %p56
      $region14: #{snnmlp_forward.28} parent=11 // pred_check_branch
        %120 = sbr.rel (%p118) target = $region16
      $region15: #{snnmlp_forward.28} parent=11 // pred_region
        _
      $region16: #{snnmlp_forward.28} parent=11 // pred_fallthru
        _
      // Predicated region
      $region17: #{snnmlp_forward.28} parent=11 // pred_check
        %p121 = pneg %p77
      $region18: #{snnmlp_forward.28} parent=11 // pred_check_branch
        %123 = sbr.rel (%p121) target = $region20
      $region19: #{snnmlp_forward.28} parent=11 // pred_region
        _
      $region20: #{snnmlp_forward.28} parent=11 // pred_fallthru
        _
    $region12: #{snnmlp_forward.28} parent=5 // pred_fallthru
      _
    %p124 = scmp.lt.s32.totalorder %s9, 2
    // Predicated region
    $region21: #{snnmlp_forward.28} parent=5 // pred_check
      %p125 = pneg %p124
    $region22: #{snnmlp_forward.28} parent=5 // pred_check_branch
      %127 = sbr.rel (%p125) target = $region24
    $region23: #{snnmlp_forward.28} parent=5 // pred_region
      // Predicated region
      $region25: #{snnmlp_forward.28} parent=23 // pred_check
        %p128 = pneg %p29
      $region26: #{snnmlp_forward.28} parent=23 // pred_check_branch
        %130 = sbr.rel (%p128) target = $region28
      $region27: #{snnmlp_forward.28} parent=23 // pred_region
        %p131 = scmp.lt.s32.totalorder %s9, 1
        %s132 = scalar_select %p131, %s9, 1
        %s133 = smul.addr %s132, 2
        %s134 = smul.addr %s133, 8
        %s135 = scalar_lea.vmem %s0, %s134
      $region28: #{snnmlp_forward.28} parent=23 // pred_fallthru
        _
    $region24: #{snnmlp_forward.28} parent=5 // pred_fallthru
      _
    %p136 = scmp.le.s32.totalorder 1, %s9
    %p137 = scmp.lt.s32.totalorder %s9, 3
    %p138 = pnand %p136, %p137
    %p139 = pneg %p138
    // Predicated region
    $region29: #{snnmlp_forward.28} parent=5 // pred_check
      _
    $region30: #{snnmlp_forward.28} parent=5 // pred_check_branch
      %141 = sbr.rel (%p138) target = $region32
    $region31: #{snnmlp_forward.28} parent=5 // pred_region
      %s142 = ssub.s32 %s9, 1
      %p143 = scmp.lt.s32.totalorder %s14, 1
      %s144 = scalar_select %p143, %s14, 1
      %s145 = smul.addr %s144, 2
      %s146 = smul.addr %s145, 8
      %s147 = scalar_lea.vmem %s0, %s146
      %p148 = pneg %p35
      %p149 = pneg %p32
      %p150 = pneg %p56
      %p151 = pneg %p53
      %p152 = pneg %p77
      %p153 = pneg %p74
      %p154 = pneg %p103
      %p155 = pneg %p100
      %p156 = scmp.lt.s32.totalorder %s14, 1
      %s157 = scalar_select %p156, %s14, 1
      %s158 = smul.addr %s157, 2
      %s159 = smul.addr %s158, 8
      %s160 = scalar_lea.vmem %s3, %s159
      %p161 = scmp.lt.s32.totalorder %s14, 1
      %s162 = scalar_select %p161, %s14, 1
      %s163 = smul.addr %s162, 2
      %s164 = smul.addr %s163, 8
      %s165 = scalar_lea.vmem %s0, %s164
      %p166 = scmp.lt.s32.totalorder %s14, 1
      %s167 = scalar_select %p166, %s14, 1
      %s168 = smul.addr %s167, 2
      %s169 = smul.addr %s168, 8
      %s170 = scalar_lea.vmem %s3, %s169
      %v171 = vld [vmem:[%s165] sm:$0xff]
      %v172 = vld [vmem:[%s165 + $0x8] sm:$0xff]
      %vm173 = vcmask 130048
      %v174 = vsel %vm173, %v171, 0.0
      %v175 = vsel %vm173, %v172, 0.0
      %v176 = vadd.f32 %v174, %v175
      %v177 = vrot.slane %v176, 4
      %v178 = vadd.f32 %v176, %v177
      %v179 = vrot.slane %v178, 2
      %v180 = vadd.f32 %v178, %v179
      %v181 = vrot.slane %v180, 1
      %v182 = vadd.f32 %v180, %v181
      %v183 = vmul.f32 %v171, %v171
      %v184 = vmul.f32 %v172, %v172
      %v185 = vsel %vm173, %v183, 0.0
      %v186 = vsel %vm173, %v184, 0.0
      %v187 = vadd.f32 %v185, %v186
      %v188 = vrot.slane %v187, 4
      %v189 = vadd.f32 %v187, %v188
      %v190 = vrot.slane %v189, 2
      %v191 = vadd.f32 %v189, %v190
      %v192 = vrot.slane %v191, 1
      %v193 = vadd.f32 %v191, %v192
      %v194 = vsel %vm173, %v182, 0.0
      %195 = vadd.xlane.f32.xlu0 %v194
      %v196 = vpop.xlane.xlu0 %195
      %v197 = vmul.f32 %v196, 0.00390625
      %v198 = vsel %vm173, %v193, 0.0
      %199 = vadd.xlane.f32.xlu0 %v198
      %v200 = vpop.xlane.xlu0 %199
      %v201 = vmul.f32 %v200, 0.00390625
      %v202 = vmul.f32 %v197, %v197
      %v203 = vsub.f32 %v201, %v202
      %v204 = vmax.f32 %v203, 0.0
      %v205 = vadd.f32 %v204, 1e-05
      %v206 = vrsqrt.pop %v205
      %v207 = vsub.f32 %v171, %v197
      %v208 = vsub.f32 %v172, %v197
      %v209 = vmul.f32 %v207, %v206
      %v210 = vmul.f32 %v208, %v206
      %v211 = vld [vmem:[%s1] sm:$0x1]
      %v213 = vlaneseq
      %v214 = vshrl.u32 %v213, 7
      %v215 = vsub.s32 0, %v214
      %v216 = vrot.slane %v211, %v215
      %v218 = vmul.f32 %v209, %v216
      %v219 = vmul.f32 %v210, %v216
      %v220 = vld [vmem:[%s2] sm:$0x1]
      %v222 = vlaneseq
      %v223 = vshrl.u32 %v222, 7
      %v224 = vsub.s32 0, %v223
      %v225 = vrot.slane %v220, %v224
      %v227 = vadd.f32 %v218, %v225
      %v228 = vadd.f32 %v219, %v225
      %229 = vst.msk [vmem:[%s170] sm:$0xff] %vm173, %v227
      %230 = vst.msk [vmem:[%s170 + $0x8] sm:$0xff] %vm173, %v228
      %p231 = scmp.lt.s32.totalorder %s14, 1
      %s232 = scalar_select %p231, %s14, 1
      %s233 = smul.addr %s232, 2
      %s234 = smul.addr %s233, 8
      %s235 = scalar_lea.vmem %s3, %s234
      // Predicated region
      $region33: #{snnmlp_forward.28} parent=31 // pred_check
        %p236 = pneg %p100
      $region34: #{snnmlp_forward.28} parent=31 // pred_check_branch
        %238 = sbr.rel (%p236) target = $region36
      $region35: #{snnmlp_forward.28} parent=31 // pred_region
        _
      $region36: #{snnmlp_forward.28} parent=31 // pred_fallthru
        _
    $region32: #{snnmlp_forward.28} parent=5 // pred_fallthru
      _
    %p239 = scmp.le.s32.totalorder 2, %s9
    // Predicated region
    $region37: #{snnmlp_forward.28} parent=5 // pred_check
      %p240 = pneg %p239
    $region38: #{snnmlp_forward.28} parent=5 // pred_check_branch
      %242 = sbr.rel (%p240) target = $region40
    $region39: #{snnmlp_forward.28} parent=5 // pred_region
      %s243 = ssub.s32 %s9, 2
      // Predicated region
      $region41: #{snnmlp_forward.28} parent=39 // pred_check
        %p244 = pneg %p106
      $region42: #{snnmlp_forward.28} parent=39 // pred_check_branch
        %246 = sbr.rel (%p244) target = $region44
      $region43: #{snnmlp_forward.28} parent=39 // pred_region
        %p247 = scmp.lt.s32.totalorder %s15, 1
        %s248 = scalar_select %p247, %s15, 1
        %s249 = smul.addr %s248, 2
        %s250 = smul.addr %s249, 8
        %s251 = scalar_lea.vmem %s3, %s250
      $region44: #{snnmlp_forward.28} parent=39 // pred_fallthru
        _
    $region40: #{snnmlp_forward.28} parent=5 // pred_fallthru
      _
  $region6: #{snnmlp_forward.28} parent=0 // loop_footer
    %s13 = sadd.s32 1, %s9
  $region7: #{snnmlp_forward.28} parent=0 // loop_footer_branch
    %8 = sbr.rel target = $region3
  $region8: #{snnmlp_forward.28} parent=0 // loop_exit
    _

// kernel: snnmlp_forward.27
$region0: #{snnmlp_forward.27}
  #allocation0 [shape = 'u32[]', space=smem, size = 0x4, offset = 0x4, fixed_abs, tag = 'smem constant byte address 0x4 - core index']
  #allocation1 [shape = 'u32[144,128]{1,0:T(1,128)}', space=vmem, size = 0x12000, scoped, tag = 'internal scratch']
  #allocation2 [shape = 'f32[32,16]{1,0:T(8,128)}', space=vmem, size = 0x4000, scoped, tag = 'scratch operand']
  %s0 = inlined_call_operand.vmem [shape: f32[32,48], index: 0, kind: input, shape index: {}]
  %s1 = inlined_call_operand.vmem [shape: f32[48,16], index: 1, kind: input, shape index: {}]
  %s2 = inlined_call_operand.vmem [shape: f32[1,16], index: 2, kind: input, shape index: {}]
  %s3 = inlined_call_operand.vmem [shape: f32[32,16], index: 3, kind: output, shape index: {}]
  %s4 = sld [smem:[#allocation0]]
  $region30: #{snnmlp_forward.27} parent=0
    _
  %s6 = ssub.s32 1, %s4
  %s7 = scalar_select 0, %s6, %s4
  // Predicated region
  $region2: #{snnmlp_forward.27} parent=0 // pred_check
    _
  $region3: #{snnmlp_forward.27} parent=0 // pred_check_branch
    %9 = sbr.rel (0) target = $region5
  $region4: #{snnmlp_forward.27} parent=0 // pred_region
    _
  $region5: #{snnmlp_forward.27} parent=0 // pred_fallthru
    _
  // Predicated region
  $region6: #{snnmlp_forward.27} parent=0 // pred_check
    _
  $region7: #{snnmlp_forward.27} parent=0 // pred_check_branch
    %11 = sbr.rel (0) target = $region9
  $region8: #{snnmlp_forward.27} parent=0 // pred_region
    _
  $region9: #{snnmlp_forward.27} parent=0 // pred_fallthru
    _
  // Predicated region
  $region10: #{snnmlp_forward.27} parent=0 // pred_check
    _
  $region11: #{snnmlp_forward.27} parent=0 // pred_check_branch
    %13 = sbr.rel (0) target = $region13
  $region12: #{snnmlp_forward.27} parent=0 // pred_region
    _
  $region13: #{snnmlp_forward.27} parent=0 // pred_fallthru
    _
  %p15 = scmp.eq.s32.totalorder 0, 0
  // Predicated region
  $region14: #{snnmlp_forward.27} parent=0 // pred_check
    %p16 = pneg %p15
  $region15: #{snnmlp_forward.27} parent=0 // pred_check_branch
    %18 = sbr.rel (%p16) target = $region17
  $region16: #{snnmlp_forward.27} parent=0 // pred_region
    %vm19 = vcmask 130048
    %20 = vst.msk [vmem:[#allocation2] sm:$0xff] %vm19, 0.0
    %21 = vst.msk [vmem:[#allocation2 + $0x8] sm:$0xff] %vm19, 0.0
    %22 = vst.msk [vmem:[#allocation2 + $0x10] sm:$0xff] %vm19, 0.0
    %23 = vst.msk [vmem:[#allocation2 + $0x18] sm:$0xff] %vm19, 0.0
  $region17: #{snnmlp_forward.27} parent=0 // pred_fallthru
    _
  %v24 = vld [vmem:[#allocation2] sm:$0xff]
  %v25 = vld [vmem:[#allocation2 + $0x8] sm:$0xff]
  %v26 = vld [vmem:[#allocation2 + $0x10] sm:$0xff]
  %v27 = vld [vmem:[#allocation2 + $0x18] sm:$0xff]
  %v28 = vld [vmem:[%s0] sm:$0xff]
  %v29 = vld [vmem:[%s0 + $0x8] sm:$0xff]
  %v30 = vld [vmem:[%s0 + $0x10] sm:$0xff]
  %v31 = vld [vmem:[%s0 + $0x18] sm:$0xff]
  %v32 = vpack.c.bf16 %v29, %v28
  %v33 = vpack.c.bf16 %v31, %v30
  %v34 = vld [vmem:[%s1] sm:$0xff]
  %v35 = vld [vmem:[%s1 + $0x8] sm:$0xff]
  %v36 = vld [vmem:[%s1 + $0x10] sm:$0xff]
  %v37 = vld [vmem:[%s1 + $0x18] sm:$0xff]
  %v38 = vld [vmem:[%s1 + $0x20] sm:$0xff]
  %v39 = vld [vmem:[%s1 + $0x28] sm:$0xff]
  %v40 = vpack.c.bf16 %v35, %v34
  %v41 = vpack.c.bf16 %v37, %v36
  %v42 = vpack.c.bf16 %v39, %v38
  %vm43 = vcmask 392192
  %v45 = vsel %vm43, %v32, 0
  %v48 = vsel %vm43, %v33, 0
  %50 = vmatprep.subr.bf16.mxu0 0
  %51 = vmatpush1.bf16.msra.mxu0 0
  %52 = vmatprep.subr.bf16.mxu0 0
  %53 = vmatpush1.bf16.msra.mxu0 0
  %54 = vmatprep.subr.bf16.mxu0 0
  %55 = vmatpush1.bf16.msra.mxu0 0
  %56 = vmatprep.subr.bf16.mxu0 0
  %57 = vmatpush1.bf16.msra.mxu0 0
  %58 = vmatprep.subr.bf16.mxu0 0
  %59 = vmatpush1.bf16.msra.mxu0 0
  %60 = vmatprep.subr.bf16.mxu0 0
  %61 = vmatpush1.bf16.msra.mxu0 %v42
  %62 = vmatprep.subr.bf16.mxu0 0
  %63 = vmatpush1.bf16.msra.mxu0 %v41
  %64 = vmatprep.subr.bf16.mxu0 0
  %65 = vmatpush1.bf16.msra.mxu0 %v40
  %66 = vmatprep.subr.bf16.mxu0 0
  %67 = vmatpush2.bf16.msra.mxu0 0
  %68 = vmatprep.subr.bf16.mxu0 0
  %69 = vmatpush2.bf16.msra.mxu0 0
  %70 = vmatprep.subr.bf16.mxu0 0
  %71 = vmatpush2.bf16.msra.mxu0 0
  %72 = vmatprep.subr.bf16.mxu0 0
  %73 = vmatpush2.bf16.msra.mxu0 0
  %74 = vmatprep.subr.bf16.mxu0 0
  %75 = vmatpush2.bf16.msra.mxu0 0
  %76 = vmatprep.subr.bf16.mxu0 0
  %77 = vmatpush2.bf16.msra.mxu0 0
  %78 = vmatprep.subr.bf16.mxu0 0
  %79 = vmatpush2.bf16.msra.mxu0 0
  %80 = vmatprep.subr.bf16.mxu0 0
  %81 = vmatpush2.bf16.msra.mxu0 0
  %82 = vmatprep.mubr.bf16.mxu0 0
  %83 = vmatmul.mubr.bf16.gmra.mxu0 %v45
  %v84 = vpop.f32.mrf.mxu0
  %v85 = vadd.f32 0.0, %v84
  %v86 = vpop.f32.mrf.mxu0
  %v87 = vpop.f32.mrf.mxu0
  %v88 = vadd.f32 0.0, %v87
  %v89 = vpop.f32.mrf.mxu0
  %90 = vmatprep.mubr.bf16.mxu0 0
  %91 = vmatmul.mubr.bf16.gmra.mxu0 %v48
  %v92 = vpop.f32.mrf.mxu0
  %v93 = vadd.f32 0.0, %v92
  %v94 = vpop.f32.mrf.mxu0
  %v95 = vpop.f32.mrf.mxu0
  %v96 = vadd.f32 0.0, %v95
  %v97 = vpop.f32.mrf.mxu0
  %98 = vdwg.mxu0
  %v99 = vadd.f32 %v24, %v85
  %v100 = vadd.f32 %v25, %v88
  %v101 = vadd.f32 %v26, %v93
  %v102 = vadd.f32 %v27, %v96
  %vm103 = vcmask 130048
  %104 = vst.msk [vmem:[#allocation2] sm:$0xff] %vm103, %v99
  %105 = vst.msk [vmem:[#allocation2 + $0x8] sm:$0xff] %vm103, %v100
  %106 = vst.msk [vmem:[#allocation2 + $0x10] sm:$0xff] %vm103, %v101
  %107 = vst.msk [vmem:[#allocation2 + $0x18] sm:$0xff] %vm103, %v102
  // Predicated region
  $region18: #{snnmlp_forward.27} parent=0 // pred_check
    %p108 = pneg %p15
  $region19: #{snnmlp_forward.27} parent=0 // pred_check_branch
    %110 = sbr.rel (%p108) target = $region21
  $region20: #{snnmlp_forward.27} parent=0 // pred_region
    %v111 = vld [vmem:[#allocation2] sm:$0xff]
    %v112 = vld [vmem:[#allocation2 + $0x8] sm:$0xff]
    %v113 = vld [vmem:[#allocation2 + $0x10] sm:$0xff]
    %v114 = vld [vmem:[#allocation2 + $0x18] sm:$0xff]
    %v115 = vld [vmem:[%s2] sm:$0x1]
    %v117 = vlaneseq
    %v118 = vshrl.u32 %v117, 7
    %v119 = vsub.s32 0, %v118
    %v120 = vrot.slane %v115, %v119
    %v122 = vadd.f32 %v111, %v120
    %v123 = vadd.f32 %v112, %v120
    %v124 = vadd.f32 %v113, %v120
    %v125 = vadd.f32 %v114, %v120
    %126 = vst.msk [vmem:[%s3] sm:$0xff] %vm103, %v122
    %127 = vst.msk [vmem:[%s3 + $0x8] sm:$0xff] %vm103, %v123
    %128 = vst.msk [vmem:[%s3 + $0x10] sm:$0xff] %vm103, %v124
    %129 = vst.msk [vmem:[%s3 + $0x18] sm:$0xff] %vm103, %v125
  $region21: #{snnmlp_forward.27} parent=0 // pred_fallthru
    _
  // Predicated region
  $region22: #{snnmlp_forward.27} parent=0 // pred_check
    _
  $region23: #{snnmlp_forward.27} parent=0 // pred_check_branch
    %131 = sbr.rel (0) target = $region25
  $region24: #{snnmlp_forward.27} parent=0 // pred_region
    _
  $region25: #{snnmlp_forward.27} parent=0 // pred_fallthru
    _
  // Predicated region
  $region26: #{snnmlp_forward.27} parent=0 // pred_check
    _
  $region27: #{snnmlp_forward.27} parent=0 // pred_check_branch
    %133 = sbr.rel (0) target = $region29
  $region28: #{snnmlp_forward.27} parent=0 // pred_region
    _
  $region29: #{snnmlp_forward.27} parent=0 // pred_fallthru
    _

// kernel: snnmlp_forward.30
$region0: #{snnmlp_forward.30}
  #allocation0 [shape = 'u32[]', space=smem, size = 0x4, offset = 0x4, fixed_abs, tag = 'smem constant byte address 0x4 - core index']
  #allocation1 [shape = 'u32[144,128]{1,0:T(1,128)}', space=vmem, size = 0x12000, scoped, tag = 'internal scratch']
  #allocation2 [shape = 'f32[32,16]{1,0:T(8,128)}', space=vmem, size = 0x4000, scoped, tag = 'scratch operand']
  %s0 = inlined_call_operand.vmem [shape: f32[32,16], index: 0, kind: input, shape index: {}]
  %s1 = inlined_call_operand.vmem [shape: f32[16,16], index: 1, kind: input, shape index: {}]
  %s2 = inlined_call_operand.vmem [shape: f32[1,16], index: 2, kind: input, shape index: {}]
  %s3 = inlined_call_operand.vmem [shape: f32[32,16], index: 3, kind: output, shape index: {}]
  %s4 = sld [smem:[#allocation0]]
  $region30: #{snnmlp_forward.30} parent=0
    _
  %s6 = ssub.s32 1, %s4
  %s7 = scalar_select 0, %s6, %s4
  // Predicated region
  $region2: #{snnmlp_forward.30} parent=0 // pred_check
    _
  $region3: #{snnmlp_forward.30} parent=0 // pred_check_branch
    %9 = sbr.rel (0) target = $region5
  $region4: #{snnmlp_forward.30} parent=0 // pred_region
    _
  $region5: #{snnmlp_forward.30} parent=0 // pred_fallthru
    _
  // Predicated region
  $region6: #{snnmlp_forward.30} parent=0 // pred_check
    _
  $region7: #{snnmlp_forward.30} parent=0 // pred_check_branch
    %11 = sbr.rel (0) target = $region9
  $region8: #{snnmlp_forward.30} parent=0 // pred_region
    _
  $region9: #{snnmlp_forward.30} parent=0 // pred_fallthru
    _
  // Predicated region
  $region10: #{snnmlp_forward.30} parent=0 // pred_check
    _
  $region11: #{snnmlp_forward.30} parent=0 // pred_check_branch
    %13 = sbr.rel (0) target = $region13
  $region12: #{snnmlp_forward.30} parent=0 // pred_region
    _
  $region13: #{snnmlp_forward.30} parent=0 // pred_fallthru
    _
  %p15 = scmp.eq.s32.totalorder 0, 0
  // Predicated region
  $region14: #{snnmlp_forward.30} parent=0 // pred_check
    %p16 = pneg %p15
  $region15: #{snnmlp_forward.30} parent=0 // pred_check_branch
    %18 = sbr.rel (%p16) target = $region17
  $region16: #{snnmlp_forward.30} parent=0 // pred_region
    %vm19 = vcmask 130048
    %20 = vst.msk [vmem:[#allocation2] sm:$0xff] %vm19, 0.0
    %21 = vst.msk [vmem:[#allocation2 + $0x8] sm:$0xff] %vm19, 0.0
    %22 = vst.msk [vmem:[#allocation2 + $0x10] sm:$0xff] %vm19, 0.0
    %23 = vst.msk [vmem:[#allocation2 + $0x18] sm:$0xff] %vm19, 0.0
  $region17: #{snnmlp_forward.30} parent=0 // pred_fallthru
    _
  %v24 = vld [vmem:[#allocation2] sm:$0xff]
  %v25 = vld [vmem:[#allocation2 + $0x8] sm:$0xff]
  %v26 = vld [vmem:[#allocation2 + $0x10] sm:$0xff]
  %v27 = vld [vmem:[#allocation2 + $0x18] sm:$0xff]
  %v28 = vld [vmem:[%s0] sm:$0xff]
  %v29 = vld [vmem:[%s0 + $0x8] sm:$0xff]
  %v30 = vld [vmem:[%s0 + $0x10] sm:$0xff]
  %v31 = vld [vmem:[%s0 + $0x18] sm:$0xff]
  %v32 = vpack.c.bf16 %v29, %v28
  %v33 = vpack.c.bf16 %v31, %v30
  %v34 = vld [vmem:[%s1] sm:$0xff]
  %v35 = vld [vmem:[%s1 + $0x8] sm:$0xff]
  %v36 = vpack.c.bf16 %v35, %v34
  %vm37 = vcmask 130048
  %v39 = vsel %vm37, %v32, 0
  %v42 = vsel %vm37, %v33, 0
  %44 = vmatprep.subr.bf16.mxu0 0
  %45 = vmatpush1.bf16.msra.mxu0 0
  %46 = vmatprep.subr.bf16.mxu0 0
  %47 = vmatpush1.bf16.msra.mxu0 0
  %48 = vmatprep.subr.bf16.mxu0 0
  %49 = vmatpush1.bf16.msra.mxu0 0
  %50 = vmatprep.subr.bf16.mxu0 0
  %51 = vmatpush1.bf16.msra.mxu0 0
  %52 = vmatprep.subr.bf16.mxu0 0
  %53 = vmatpush1.bf16.msra.mxu0 0
  %54 = vmatprep.subr.bf16.mxu0 0
  %55 = vmatpush1.bf16.msra.mxu0 0
  %56 = vmatprep.subr.bf16.mxu0 0
  %57 = vmatpush1.bf16.msra.mxu0 0
  %58 = vmatprep.subr.bf16.mxu0 0
  %59 = vmatpush1.bf16.msra.mxu0 %v36
  %60 = vmatprep.subr.bf16.mxu0 0
  %61 = vmatpush2.bf16.msra.mxu0 0
  %62 = vmatprep.subr.bf16.mxu0 0
  %63 = vmatpush2.bf16.msra.mxu0 0
  %64 = vmatprep.subr.bf16.mxu0 0
  %65 = vmatpush2.bf16.msra.mxu0 0
  %66 = vmatprep.subr.bf16.mxu0 0
  %67 = vmatpush2.bf16.msra.mxu0 0
  %68 = vmatprep.subr.bf16.mxu0 0
  %69 = vmatpush2.bf16.msra.mxu0 0
  %70 = vmatprep.subr.bf16.mxu0 0
  %71 = vmatpush2.bf16.msra.mxu0 0
  %72 = vmatprep.subr.bf16.mxu0 0
  %73 = vmatpush2.bf16.msra.mxu0 0
  %74 = vmatprep.subr.bf16.mxu0 0
  %75 = vmatpush2.bf16.msra.mxu0 0
  %76 = vmatprep.mubr.bf16.mxu0 0
  %77 = vmatmul.mubr.bf16.gmra.mxu0 %v39
  %v78 = vpop.f32.mrf.mxu0
  %v79 = vadd.f32 0.0, %v78
  %v80 = vpop.f32.mrf.mxu0
  %v81 = vpop.f32.mrf.mxu0
  %v82 = vadd.f32 0.0, %v81
  %v83 = vpop.f32.mrf.mxu0
  %84 = vmatprep.mubr.bf16.mxu0 0
  %85 = vmatmul.mubr.bf16.gmra.mxu0 %v42
  %v86 = vpop.f32.mrf.mxu0
  %v87 = vadd.f32 0.0, %v86
  %v88 = vpop.f32.mrf.mxu0
  %v89 = vpop.f32.mrf.mxu0
  %v90 = vadd.f32 0.0, %v89
  %v91 = vpop.f32.mrf.mxu0
  %92 = vdwg.mxu0
  %v93 = vadd.f32 %v24, %v79
  %v94 = vadd.f32 %v25, %v82
  %v95 = vadd.f32 %v26, %v87
  %v96 = vadd.f32 %v27, %v90
  %97 = vst.msk [vmem:[#allocation2] sm:$0xff] %vm37, %v93
  %98 = vst.msk [vmem:[#allocation2 + $0x8] sm:$0xff] %vm37, %v94
  %99 = vst.msk [vmem:[#allocation2 + $0x10] sm:$0xff] %vm37, %v95
  %100 = vst.msk [vmem:[#allocation2 + $0x18] sm:$0xff] %vm37, %v96
  // Predicated region
  $region18: #{snnmlp_forward.30} parent=0 // pred_check
    %p101 = pneg %p15
  $region19: #{snnmlp_forward.30} parent=0 // pred_check_branch
    %103 = sbr.rel (%p101) target = $region21
  $region20: #{snnmlp_forward.30} parent=0 // pred_region
    %v104 = vld [vmem:[#allocation2] sm:$0xff]
    %v105 = vld [vmem:[#allocation2 + $0x8] sm:$0xff]
    %v106 = vld [vmem:[#allocation2 + $0x10] sm:$0xff]
    %v107 = vld [vmem:[#allocation2 + $0x18] sm:$0xff]
    %v108 = vld [vmem:[%s2] sm:$0x1]
    %v110 = vlaneseq
    %v111 = vshrl.u32 %v110, 7
    %v112 = vsub.s32 0, %v111
    %v113 = vrot.slane %v108, %v112
    %v115 = vadd.f32 %v104, %v113
    %v116 = vadd.f32 %v105, %v113
    %v117 = vadd.f32 %v106, %v113
    %v118 = vadd.f32 %v107, %v113
    %119 = vst.msk [vmem:[%s3] sm:$0xff] %vm37, %v115
    %120 = vst.msk [vmem:[%s3 + $0x8] sm:$0xff] %vm37, %v116
    %121 = vst.msk [vmem:[%s3 + $0x10] sm:$0xff] %vm37, %v117
    %122 = vst.msk [vmem:[%s3 + $0x18] sm:$0xff] %vm37, %v118
  $region21: #{snnmlp_forward.30} parent=0 // pred_fallthru
    _
  // Predicated region
  $region22: #{snnmlp_forward.30} parent=0 // pred_check
    _
  $region23: #{snnmlp_forward.30} parent=0 // pred_check_branch
    %124 = sbr.rel (0) target = $region25
  $region24: #{snnmlp_forward.30} parent=0 // pred_region
    _
  $region25: #{snnmlp_forward.30} parent=0 // pred_fallthru
    _
  // Predicated region
  $region26: #{snnmlp_forward.30} parent=0 // pred_check
    _
  $region27: #{snnmlp_forward.30} parent=0 // pred_check_branch
    %126 = sbr.rel (0) target = $region29
  $region28: #{snnmlp_forward.30} parent=0 // pred_region
    _
  $region29: #{snnmlp_forward.30} parent=0 // pred_fallthru
    _

// kernel: snnmlp_forward.31
$region0: #{snnmlp_forward.31}
  #allocation0 [shape = 'u32[]', space=smem, size = 0x4, offset = 0x4, fixed_abs, tag = 'smem constant byte address 0x4 - core index']
  #allocation1 [shape = 'u32[144,128]{1,0:T(1,128)}', space=vmem, size = 0x12000, scoped, tag = 'internal scratch']
  %s0 = inlined_call_operand.vmem [shape: f32[2,16,16], index: 0, kind: input, shape index: {}]
  %s1 = inlined_call_operand.vmem [shape: f32[1,16], index: 1, kind: input, shape index: {}]
  %s2 = inlined_call_operand.vmem [shape: f32[1,16], index: 2, kind: input, shape index: {}]
  %s3 = inlined_call_operand.vmem [shape: f32[2,16,16], index: 3, kind: output, shape index: {}]
  %s4 = sld [smem:[#allocation0]]
  $region45: #{snnmlp_forward.31} parent=0
    _
  %s6 = ssub.s32 1, %s4
  %s7 = scalar_select 0, %s6, %s4
  loop: start=0, step=1, limit=4
  $region2: #{snnmlp_forward.31} parent=0 // loop_pre_header
    _
  $region3: #{snnmlp_forward.31} parent=0 // loop_header
    %s9 = sphi 0, %s13
    %p10 = scmp.ge.s32.totalorder %s9, 4
    %s19 = sphi 0, %s21
    %s22 = sphi 0, %s19
    %s23 = sphi 0, %s22
    %s39 = sphi 0, %s23
    %s43 = sphi 0, %s43
    %s45 = sphi 0, %s43
    %s46 = sphi 0, %s45
    %s60 = sphi 0, %s46
    %s64 = sphi 0, %s64
    %s66 = sphi 0, %s64
    %s67 = sphi 0, %s66
    %s81 = sphi 0, %s67
    %s87 = sphi 0, %s89
    %s90 = sphi 0, %s87
    %s91 = sphi 0, %s90
    %s107 = sphi 0, %s91
  $region4: #{snnmlp_forward.31} parent=0 // loop_header_branch
    %12 = sbr.rel (%p10) target = $region8
  $region5: #{snnmlp_forward.31} parent=0 // loop_body
    %s14 = ssub.s32 %s9, 1
    %s15 = ssub.s32 %s9, 2
    %s16 = sadd.s32 %s9, 1
    %s17 = ssub.s32 %s9, %s16
    %p18 = scmp.eq.s32.totalorder %s17, 0
    %s20 = sadd.s32 %s19, 1
    %s21 = scalar_select %p18, %s19, %s20
    %p24 = pneg %p18
    %p25 = scmp.eq.s32.totalorder %s9, 1
    %p26 = por %p24, %p25
    %p27 = scmp.ne.s32.totalorder %s19, %s22
    %p28 = scmp.eq.s32.totalorder %s9, 0
    %p29 = por %p27, %p28
    %p30 = scmp.ne.s32.totalorder %s19, %s22
    %p31 = scmp.eq.s32.totalorder %s14, 1
    %p32 = por %p30, %p31
    %p33 = scmp.ne.s32.totalorder %s22, %s23
    %p34 = scmp.eq.s32.totalorder %s14, 0
    %p35 = por %p33, %p34
    %p36 = scmp.ne.s32.totalorder %s22, %s23
    %p37 = scmp.eq.s32.totalorder %s15, 1
    %p38 = por %p36, %p37
    %p40 = scmp.ne.s32.totalorder %s23, %s39
    %p41 = scmp.eq.s32.totalorder %s15, 0
    %p42 = por %p40, %p41
    %s44 = sadd.s32 %s43, 1
    %p47 = scmp.eq.s32.totalorder %s9, 1
    %p48 = scmp.ne.s32.totalorder %s43, %s45
    %p49 = scmp.eq.s32.totalorder %s9, 0
    %p50 = por %p48, %p49
    %p51 = scmp.ne.s32.totalorder %s43, %s45
    %p52 = scmp.eq.s32.totalorder %s14, 1
    %p53 = por %p51, %p52
    %p54 = scmp.ne.s32.totalorder %s45, %s46
    %p55 = scmp.eq.s32.totalorder %s14, 0
    %p56 = por %p54, %p55
    %p57 = scmp.ne.s32.totalorder %s45, %s46
    %p58 = scmp.eq.s32.totalorder %s15, 1
    %p59 = por %p57, %p58
    %p61 = scmp.ne.s32.totalorder %s46, %s60
    %p62 = scmp.eq.s32.totalorder %s15, 0
    %p63 = por %p61, %p62
    %s65 = sadd.s32 %s64, 1
    %p68 = scmp.eq.s32.totalorder %s9, 1
    %p69 = scmp.ne.s32.totalorder %s64, %s66
    %p70 = scmp.eq.s32.totalorder %s9, 0
    %p71 = por %p69, %p70
    %p72 = scmp.ne.s32.totalorder %s64, %s66
    %p73 = scmp.eq.s32.totalorder %s14, 1
    %p74 = por %p72, %p73
    %p75 = scmp.ne.s32.totalorder %s66, %s67
    %p76 = scmp.eq.s32.totalorder %s14, 0
    %p77 = por %p75, %p76
    %p78 = scmp.ne.s32.totalorder %s66, %s67
    %p79 = scmp.eq.s32.totalorder %s15, 1
    %p80 = por %p78, %p79
    %p82 = scmp.ne.s32.totalorder %s67, %s81
    %p83 = scmp.eq.s32.totalorder %s15, 0
    %p84 = por %p82, %p83
    %s85 = ssub.s32 %s9, %s16
    %p86 = scmp.eq.s32.totalorder %s85, 0
    %s88 = sadd.s32 %s87, 1
    %s89 = scalar_select %p86, %s87, %s88
    %p92 = pneg %p86
    %p93 = scmp.eq.s32.totalorder %s9, 1
    %p94 = por %p92, %p93
    %p95 = scmp.ne.s32.totalorder %s87, %s90
    %p96 = scmp.eq.s32.totalorder %s9, 0
    %p97 = por %p95, %p96
    %p98 = scmp.ne.s32.totalorder %s87, %s90
    %p99 = scmp.eq.s32.totalorder %s14, 1
    %p100 = por %p98, %p99
    %p101 = scmp.ne.s32.totalorder %s90, %s91
    %p102 = scmp.eq.s32.totalorder %s14, 0
    %p103 = por %p101, %p102
    %p104 = scmp.ne.s32.totalorder %s90, %s91
    %p105 = scmp.eq.s32.totalorder %s15, 1
    %p106 = por %p104, %p105
    %p108 = scmp.ne.s32.totalorder %s91, %s107
    %p109 = scmp.eq.s32.totalorder %s15, 0
    %p110 = por %p108, %p109
    %p111 = scmp.le.s32.totalorder 1, %s9
    %p112 = scmp.lt.s32.totalorder %s9, 3
    %p113 = pnand %p111, %p112
    %p114 = pneg %p113
    // Predicated region
    $region9: #{snnmlp_forward.31} parent=5 // pred_check
      _
    $region10: #{snnmlp_forward.31} parent=5 // pred_check_branch
      %116 = sbr.rel (%p113) target = $region12
    $region11: #{snnmlp_forward.31} parent=5 // pred_region
      %s117 = ssub.s32 %s9, 1
      // Predicated region
      $region13: #{snnmlp_forward.31} parent=11 // pred_check
        %p118 = pneg %p56
      $region14: #{snnmlp_forward.31} parent=11 // pred_check_branch
        %120 = sbr.rel (%p118) target = $region16
      $region15: #{snnmlp_forward.31} parent=11 // pred_region
        _
      $region16: #{snnmlp_forward.31} parent=11 // pred_fallthru
        _
      // Predicated region
      $region17: #{snnmlp_forward.31} parent=11 // pred_check
        %p121 = pneg %p77
      $region18: #{snnmlp_forward.31} parent=11 // pred_check_branch
        %123 = sbr.rel (%p121) target = $region20
      $region19: #{snnmlp_forward.31} parent=11 // pred_region
        _
      $region20: #{snnmlp_forward.31} parent=11 // pred_fallthru
        _
    $region12: #{snnmlp_forward.31} parent=5 // pred_fallthru
      _
    %p124 = scmp.lt.s32.totalorder %s9, 2
    // Predicated region
    $region21: #{snnmlp_forward.31} parent=5 // pred_check
      %p125 = pneg %p124
    $region22: #{snnmlp_forward.31} parent=5 // pred_check_branch
      %127 = sbr.rel (%p125) target = $region24
    $region23: #{snnmlp_forward.31} parent=5 // pred_region
      // Predicated region
      $region25: #{snnmlp_forward.31} parent=23 // pred_check
        %p128 = pneg %p29
      $region26: #{snnmlp_forward.31} parent=23 // pred_check_branch
        %130 = sbr.rel (%p128) target = $region28
      $region27: #{snnmlp_forward.31} parent=23 // pred_region
        %p131 = scmp.lt.s32.totalorder %s9, 1
        %s132 = scalar_select %p131, %s9, 1
        %s133 = smul.addr %s132, 2
        %s134 = smul.addr %s133, 8
        %s135 = scalar_lea.vmem %s0, %s134
      $region28: #{snnmlp_forward.31} parent=23 // pred_fallthru
        _
    $region24: #{snnmlp_forward.31} parent=5 // pred_fallthru
      _
    %p136 = scmp.le.s32.totalorder 1, %s9
    %p137 = scmp.lt.s32.totalorder %s9, 3
    %p138 = pnand %p136, %p137
    %p139 = pneg %p138
    // Predicated region
    $region29: #{snnmlp_forward.31} parent=5 // pred_check
      _
    $region30: #{snnmlp_forward.31} parent=5 // pred_check_branch
      %141 = sbr.rel (%p138) target = $region32
    $region31: #{snnmlp_forward.31} parent=5 // pred_region
      %s142 = ssub.s32 %s9, 1
      %p143 = scmp.lt.s32.totalorder %s14, 1
      %s144 = scalar_select %p143, %s14, 1
      %s145 = smul.addr %s144, 2
      %s146 = smul.addr %s145, 8
      %s147 = scalar_lea.vmem %s0, %s146
      %p148 = pneg %p35
      %p149 = pneg %p32
      %p150 = pneg %p56
      %p151 = pneg %p53
      %p152 = pneg %p77
      %p153 = pneg %p74
      %p154 = pneg %p103
      %p155 = pneg %p100
      %p156 = scmp.lt.s32.totalorder %s14, 1
      %s157 = scalar_select %p156, %s14, 1
      %s158 = smul.addr %s157, 2
      %s159 = smul.addr %s158, 8
      %s160 = scalar_lea.vmem %s3, %s159
      %p161 = scmp.lt.s32.totalorder %s14, 1
      %s162 = scalar_select %p161, %s14, 1
      %s163 = smul.addr %s162, 2
      %s164 = smul.addr %s163, 8
      %s165 = scalar_lea.vmem %s0, %s164
      %p166 = scmp.lt.s32.totalorder %s14, 1
      %s167 = scalar_select %p166, %s14, 1
      %s168 = smul.addr %s167, 2
      %s169 = smul.addr %s168, 8
      %s170 = scalar_lea.vmem %s3, %s169
      %v171 = vld [vmem:[%s165] sm:$0xff]
      %v172 = vld [vmem:[%s165 + $0x8] sm:$0xff]
      %vm173 = vcmask 130048
      %v174 = vsel %vm173, %v171, 0.0
      %v175 = vsel %vm173, %v172, 0.0
      %v176 = vadd.f32 %v174, %v175
      %v177 = vrot.slane %v176, 4
      %v178 = vadd.f32 %v176, %v177
      %v179 = vrot.slane %v178, 2
      %v180 = vadd.f32 %v178, %v179
      %v181 = vrot.slane %v180, 1
      %v182 = vadd.f32 %v180, %v181
      %v183 = vmul.f32 %v171, %v171
      %v184 = vmul.f32 %v172, %v172
      %v185 = vsel %vm173, %v183, 0.0
      %v186 = vsel %vm173, %v184, 0.0
      %v187 = vadd.f32 %v185, %v186
      %v188 = vrot.slane %v187, 4
      %v189 = vadd.f32 %v187, %v188
      %v190 = vrot.slane %v189, 2
      %v191 = vadd.f32 %v189, %v190
      %v192 = vrot.slane %v191, 1
      %v193 = vadd.f32 %v191, %v192
      %v194 = vsel %vm173, %v182, 0.0
      %195 = vadd.xlane.f32.xlu0 %v194
      %v196 = vpop.xlane.xlu0 %195
      %v197 = vmul.f32 %v196, 0.00390625
      %v198 = vsel %vm173, %v193, 0.0
      %199 = vadd.xlane.f32.xlu0 %v198
      %v200 = vpop.xlane.xlu0 %199
      %v201 = vmul.f32 %v200, 0.00390625
      %v202 = vmul.f32 %v197, %v197
      %v203 = vsub.f32 %v201, %v202
      %v204 = vmax.f32 %v203, 0.0
      %v205 = vadd.f32 %v204, 1e-05
      %v206 = vrsqrt.pop %v205
      %v207 = vsub.f32 %v171, %v197
      %v208 = vsub.f32 %v172, %v197
      %v209 = vmul.f32 %v207, %v206
      %v210 = vmul.f32 %v208, %v206
      %v211 = vld [vmem:[%s1] sm:$0x1]
      %v213 = vlaneseq
      %v214 = vshrl.u32 %v213, 7
      %v215 = vsub.s32 0, %v214
      %v216 = vrot.slane %v211, %v215
      %v218 = vmul.f32 %v209, %v216
      %v219 = vmul.f32 %v210, %v216
      %v220 = vld [vmem:[%s2] sm:$0x1]
      %v222 = vlaneseq
      %v223 = vshrl.u32 %v222, 7
      %v224 = vsub.s32 0, %v223
      %v225 = vrot.slane %v220, %v224
      %v227 = vadd.f32 %v218, %v225
      %v228 = vadd.f32 %v219, %v225
      %v229 = vmul.f32 %v227, 0.5
      %v230 = vmul.f32 %v228, 0.5
      %v231 = vmul.f32 %v227, 0.044715
      %v232 = vmul.f32 %v228, 0.044715
      %v233 = vmul.f32 %v231, %v227
      %v234 = vmul.f32 %v232, %v228
      %v235 = vmul.f32 %v233, %v227
      %v236 = vmul.f32 %v234, %v228
      %v237 = vadd.f32 %v227, %v235
      %v238 = vadd.f32 %v228, %v236
      %v239 = vmul.f32 %v237, 0.7978846
      %v240 = vmul.f32 %v238, 0.7978846
      %v241 = vtanh.pop %v239
      %v242 = vtanh.pop %v240
      %v243 = vadd.f32 %v241, 1.0
      %v244 = vadd.f32 %v242, 1.0
      %v245 = vmul.f32 %v229, %v243
      %v246 = vmul.f32 %v230, %v244
      %247 = vst.msk [vmem:[%s170] sm:$0xff] %vm173, %v245
      %248 = vst.msk [vmem:[%s170 + $0x8] sm:$0xff] %vm173, %v246
      %p249 = scmp.lt.s32.totalorder %s14, 1
      %s250 = scalar_select %p249, %s14, 1
      %s251 = smul.addr %s250, 2
      %s252 = smul.addr %s251, 8
      %s253 = scalar_lea.vmem %s3, %s252
      // Predicated region
      $region33: #{snnmlp_forward.31} parent=31 // pred_check
        %p254 = pneg %p100
      $region34: #{snnmlp_forward.31} parent=31 // pred_check_branch
        %256 = sbr.rel (%p254) target = $region36
      $region35: #{snnmlp_forward.31} parent=31 // pred_region
        _
      $region36: #{snnmlp_forward.31} parent=31 // pred_fallthru
        _
    $region32: #{snnmlp_forward.31} parent=5 // pred_fallthru
      _
    %p257 = scmp.le.s32.totalorder 2, %s9
    // Predicated region
    $region37: #{snnmlp_forward.31} parent=5 // pred_check
      %p258 = pneg %p257
    $region38: #{snnmlp_forward.31} parent=5 // pred_check_branch
      %260 = sbr.rel (%p258) target = $region40
    $region39: #{snnmlp_forward.31} parent=5 // pred_region
      %s261 = ssub.s32 %s9, 2
      // Predicated region
      $region41: #{snnmlp_forward.31} parent=39 // pred_check
        %p262 = pneg %p106
      $region42: #{snnmlp_forward.31} parent=39 // pred_check_branch
        %264 = sbr.rel (%p262) target = $region44
      $region43: #{snnmlp_forward.31} parent=39 // pred_region
        %p265 = scmp.lt.s32.totalorder %s15, 1
        %s266 = scalar_select %p265, %s15, 1
        %s267 = smul.addr %s266, 2
        %s268 = smul.addr %s267, 8
        %s269 = scalar_lea.vmem %s3, %s268
      $region44: #{snnmlp_forward.31} parent=39 // pred_fallthru
        _
    $region40: #{snnmlp_forward.31} parent=5 // pred_fallthru
      _
  $region6: #{snnmlp_forward.31} parent=0 // loop_footer
    %s13 = sadd.s32 1, %s9
  $region7: #{snnmlp_forward.31} parent=0 // loop_footer_branch
    %8 = sbr.rel target = $region3
  $region8: #{snnmlp_forward.31} parent=0 // loop_exit
    _

// kernel: snnmlp_forward.36
$region0: #{snnmlp_forward.36}
  #allocation0 [shape = 'u32[]', space=smem, size = 0x4, offset = 0x4, fixed_abs, tag = 'smem constant byte address 0x4 - core index']
  #allocation1 [shape = 'u32[144,128]{1,0:T(1,128)}', space=vmem, size = 0x12000, scoped, tag = 'internal scratch']
  #allocation2 [shape = 'f32[32,16]{1,0:T(8,128)}', space=vmem, size = 0x4000, scoped, tag = 'scratch operand']
  %s0 = inlined_call_operand.vmem [shape: f32[32,16], index: 0, kind: input, shape index: {}]
  %s1 = inlined_call_operand.vmem [shape: f32[16,16], index: 1, kind: input, shape index: {}]
  %s2 = inlined_call_operand.vmem [shape: f32[1,16], index: 2, kind: input, shape index: {}]
  %s3 = inlined_call_operand.vmem [shape: f32[32,16], index: 3, kind: input, shape index: {}]
  %s4 = inlined_call_operand.vmem [shape: f32[32,16], index: 4, kind: output, shape index: {}]
  %s5 = sld [smem:[#allocation0]]
  $region34: #{snnmlp_forward.36} parent=0
    _
  %s7 = ssub.s32 1, %s5
  %s8 = scalar_select 0, %s7, %s5
  // Predicated region
  $region2: #{snnmlp_forward.36} parent=0 // pred_check
    _
  $region3: #{snnmlp_forward.36} parent=0 // pred_check_branch
    %10 = sbr.rel (0) target = $region5
  $region4: #{snnmlp_forward.36} parent=0 // pred_region
    _
  $region5: #{snnmlp_forward.36} parent=0 // pred_fallthru
    _
  // Predicated region
  $region6: #{snnmlp_forward.36} parent=0 // pred_check
    _
  $region7: #{snnmlp_forward.36} parent=0 // pred_check_branch
    %12 = sbr.rel (0) target = $region9
  $region8: #{snnmlp_forward.36} parent=0 // pred_region
    _
  $region9: #{snnmlp_forward.36} parent=0 // pred_fallthru
    _
  // Predicated region
  $region10: #{snnmlp_forward.36} parent=0 // pred_check
    _
  $region11: #{snnmlp_forward.36} parent=0 // pred_check_branch
    %14 = sbr.rel (0) target = $region13
  $region12: #{snnmlp_forward.36} parent=0 // pred_region
    _
  $region13: #{snnmlp_forward.36} parent=0 // pred_fallthru
    _
  // Predicated region
  $region14: #{snnmlp_forward.36} parent=0 // pred_check
    _
  $region15: #{snnmlp_forward.36} parent=0 // pred_check_branch
    %16 = sbr.rel (0) target = $region17
  $region16: #{snnmlp_forward.36} parent=0 // pred_region
    _
  $region17: #{snnmlp_forward.36} parent=0 // pred_fallthru
    _
  %p18 = scmp.eq.s32.totalorder 0, 0
  // Predicated region
  $region18: #{snnmlp_forward.36} parent=0 // pred_check
    %p19 = pneg %p18
  $region19: #{snnmlp_forward.36} parent=0 // pred_check_branch
    %21 = sbr.rel (%p19) target = $region21
  $region20: #{snnmlp_forward.36} parent=0 // pred_region
    %vm22 = vcmask 130048
    %23 = vst.msk [vmem:[#allocation2] sm:$0xff] %vm22, 0.0
    %24 = vst.msk [vmem:[#allocation2 + $0x8] sm:$0xff] %vm22, 0.0
    %25 = vst.msk [vmem:[#allocation2 + $0x10] sm:$0xff] %vm22, 0.0
    %26 = vst.msk [vmem:[#allocation2 + $0x18] sm:$0xff] %vm22, 0.0
  $region21: #{snnmlp_forward.36} parent=0 // pred_fallthru
    _
  %v27 = vld [vmem:[#allocation2] sm:$0xff]
  %v28 = vld [vmem:[#allocation2 + $0x8] sm:$0xff]
  %v29 = vld [vmem:[#allocation2 + $0x10] sm:$0xff]
  %v30 = vld [vmem:[#allocation2 + $0x18] sm:$0xff]
  %v31 = vld [vmem:[%s0] sm:$0xff]
  %v32 = vld [vmem:[%s0 + $0x8] sm:$0xff]
  %v33 = vld [vmem:[%s0 + $0x10] sm:$0xff]
  %v34 = vld [vmem:[%s0 + $0x18] sm:$0xff]
  %v35 = vpack.c.bf16 %v32, %v31
  %v36 = vpack.c.bf16 %v34, %v33
  %v37 = vld [vmem:[%s1] sm:$0xff]
  %v38 = vld [vmem:[%s1 + $0x8] sm:$0xff]
  %v39 = vpack.c.bf16 %v38, %v37
  %vm40 = vcmask 130048
  %v42 = vsel %vm40, %v35, 0
  %v45 = vsel %vm40, %v36, 0
  %47 = vmatprep.subr.bf16.mxu0 0
  %48 = vmatpush1.bf16.msra.mxu0 0
  %49 = vmatprep.subr.bf16.mxu0 0
  %50 = vmatpush1.bf16.msra.mxu0 0
  %51 = vmatprep.subr.bf16.mxu0 0
  %52 = vmatpush1.bf16.msra.mxu0 0
  %53 = vmatprep.subr.bf16.mxu0 0
  %54 = vmatpush1.bf16.msra.mxu0 0
  %55 = vmatprep.subr.bf16.mxu0 0
  %56 = vmatpush1.bf16.msra.mxu0 0
  %57 = vmatprep.subr.bf16.mxu0 0
  %58 = vmatpush1.bf16.msra.mxu0 0
  %59 = vmatprep.subr.bf16.mxu0 0
  %60 = vmatpush1.bf16.msra.mxu0 0
  %61 = vmatprep.subr.bf16.mxu0 0
  %62 = vmatpush1.bf16.msra.mxu0 %v39
  %63 = vmatprep.subr.bf16.mxu0 0
  %64 = vmatpush2.bf16.msra.mxu0 0
  %65 = vmatprep.subr.bf16.mxu0 0
  %66 = vmatpush2.bf16.msra.mxu0 0
  %67 = vmatprep.subr.bf16.mxu0 0
  %68 = vmatpush2.bf16.msra.mxu0 0
  %69 = vmatprep.subr.bf16.mxu0 0
  %70 = vmatpush2.bf16.msra.mxu0 0
  %71 = vmatprep.subr.bf16.mxu0 0
  %72 = vmatpush2.bf16.msra.mxu0 0
  %73 = vmatprep.subr.bf16.mxu0 0
  %74 = vmatpush2.bf16.msra.mxu0 0
  %75 = vmatprep.subr.bf16.mxu0 0
  %76 = vmatpush2.bf16.msra.mxu0 0
  %77 = vmatprep.subr.bf16.mxu0 0
  %78 = vmatpush2.bf16.msra.mxu0 0
  %79 = vmatprep.mubr.bf16.mxu0 0
  %80 = vmatmul.mubr.bf16.gmra.mxu0 %v42
  %v81 = vpop.f32.mrf.mxu0
  %v82 = vadd.f32 0.0, %v81
  %v83 = vpop.f32.mrf.mxu0
  %v84 = vpop.f32.mrf.mxu0
  %v85 = vadd.f32 0.0, %v84
  %v86 = vpop.f32.mrf.mxu0
  %87 = vmatprep.mubr.bf16.mxu0 0
  %88 = vmatmul.mubr.bf16.gmra.mxu0 %v45
  %v89 = vpop.f32.mrf.mxu0
  %v90 = vadd.f32 0.0, %v89
  %v91 = vpop.f32.mrf.mxu0
  %v92 = vpop.f32.mrf.mxu0
  %v93 = vadd.f32 0.0, %v92
  %v94 = vpop.f32.mrf.mxu0
  %95 = vdwg.mxu0
  %v96 = vadd.f32 %v27, %v82
  %v97 = vadd.f32 %v28, %v85
  %v98 = vadd.f32 %v29, %v90
  %v99 = vadd.f32 %v30, %v93
  %100 = vst.msk [vmem:[#allocation2] sm:$0xff] %vm40, %v96
  %101 = vst.msk [vmem:[#allocation2 + $0x8] sm:$0xff] %vm40, %v97
  %102 = vst.msk [vmem:[#allocation2 + $0x10] sm:$0xff] %vm40, %v98
  %103 = vst.msk [vmem:[#allocation2 + $0x18] sm:$0xff] %vm40, %v99
  // Predicated region
  $region22: #{snnmlp_forward.36} parent=0 // pred_check
    %p104 = pneg %p18
  $region23: #{snnmlp_forward.36} parent=0 // pred_check_branch
    %106 = sbr.rel (%p104) target = $region25
  $region24: #{snnmlp_forward.36} parent=0 // pred_region
    %v107 = vld [vmem:[#allocation2] sm:$0xff]
    %v108 = vld [vmem:[#allocation2 + $0x8] sm:$0xff]
    %v109 = vld [vmem:[#allocation2 + $0x10] sm:$0xff]
    %v110 = vld [vmem:[#allocation2 + $0x18] sm:$0xff]
    %v111 = vld [vmem:[%s2] sm:$0x1]
    %v113 = vlaneseq
    %v114 = vshrl.u32 %v113, 7
    %v115 = vsub.s32 0, %v114
    %v116 = vrot.slane %v111, %v115
    %v118 = vadd.f32 %v107, %v116
    %v119 = vadd.f32 %v108, %v116
    %v120 = vadd.f32 %v109, %v116
    %v121 = vadd.f32 %v110, %v116
    %v122 = vld [vmem:[%s3] sm:$0xff]
    %v123 = vld [vmem:[%s3 + $0x8] sm:$0xff]
    %v124 = vld [vmem:[%s3 + $0x10] sm:$0xff]
    %v125 = vld [vmem:[%s3 + $0x18] sm:$0xff]
    %v126 = vadd.f32 %v118, %v122
    %v127 = vadd.f32 %v119, %v123
    %v128 = vadd.f32 %v120, %v124
    %v129 = vadd.f32 %v121, %v125
    %130 = vst.msk [vmem:[%s4] sm:$0xff] %vm40, %v126
    %131 = vst.msk [vmem:[%s4 + $0x8] sm:$0xff] %vm40, %v127
    %132 = vst.msk [vmem:[%s4 + $0x10] sm:$0xff] %vm40, %v128
    %133 = vst.msk [vmem:[%s4 + $0x18] sm:$0xff] %vm40, %v129
  $region25: #{snnmlp_forward.36} parent=0 // pred_fallthru
    _
  // Predicated region
  $region26: #{snnmlp_forward.36} parent=0 // pred_check
    _
  $region27: #{snnmlp_forward.36} parent=0 // pred_check_branch
    %135 = sbr.rel (0) target = $region29
  $region28: #{snnmlp_forward.36} parent=0 // pred_region
    _
  $region29: #{snnmlp_forward.36} parent=0 // pred_fallthru
    _
  // Predicated region
  $region30: #{snnmlp_forward.36} parent=0 // pred_check
    _
  $region31: #{snnmlp_forward.36} parent=0 // pred_check_branch
    %137 = sbr.rel (0) target = $region33
  $region32: #{snnmlp_forward.36} parent=0 // pred_region
    _
  $region33: #{snnmlp_forward.36} parent=0 // pred_fallthru
    _

// kernel: snnmlp_forward.38
$region0: #{snnmlp_forward.38}
  #allocation0 [shape = 'u32[]', space=smem, size = 0x4, offset = 0x4, fixed_abs, tag = 'smem constant byte address 0x4 - core index']
  #allocation1 [shape = 'u32[144,128]{1,0:T(1,128)}', space=vmem, size = 0x12000, scoped, tag = 'internal scratch']
  #allocation2 [shape = 'f32[32,32]{1,0:T(8,128)}', space=vmem, size = 0x4000, scoped, tag = 'scratch operand']
  %s0 = inlined_call_operand.vmem [shape: f32[32,16], index: 0, kind: input, shape index: {}]
  %s1 = inlined_call_operand.vmem [shape: f32[16,32], index: 1, kind: input, shape index: {}]
  %s2 = inlined_call_operand.vmem [shape: f32[1,32], index: 2, kind: input, shape index: {}]
  %s3 = inlined_call_operand.vmem [shape: f32[32,32], index: 3, kind: output, shape index: {}]
  %s4 = sld [smem:[#allocation0]]
  $region30: #{snnmlp_forward.38} parent=0
    _
  %s6 = ssub.s32 1, %s4
  %s7 = scalar_select 0, %s6, %s4
  // Predicated region
  $region2: #{snnmlp_forward.38} parent=0 // pred_check
    _
  $region3: #{snnmlp_forward.38} parent=0 // pred_check_branch
    %9 = sbr.rel (0) target = $region5
  $region4: #{snnmlp_forward.38} parent=0 // pred_region
    _
  $region5: #{snnmlp_forward.38} parent=0 // pred_fallthru
    _
  // Predicated region
  $region6: #{snnmlp_forward.38} parent=0 // pred_check
    _
  $region7: #{snnmlp_forward.38} parent=0 // pred_check_branch
    %11 = sbr.rel (0) target = $region9
  $region8: #{snnmlp_forward.38} parent=0 // pred_region
    _
  $region9: #{snnmlp_forward.38} parent=0 // pred_fallthru
    _
  // Predicated region
  $region10: #{snnmlp_forward.38} parent=0 // pred_check
    _
  $region11: #{snnmlp_forward.38} parent=0 // pred_check_branch
    %13 = sbr.rel (0) target = $region13
  $region12: #{snnmlp_forward.38} parent=0 // pred_region
    _
  $region13: #{snnmlp_forward.38} parent=0 // pred_fallthru
    _
  %p15 = scmp.eq.s32.totalorder 0, 0
  // Predicated region
  $region14: #{snnmlp_forward.38} parent=0 // pred_check
    %p16 = pneg %p15
  $region15: #{snnmlp_forward.38} parent=0 // pred_check_branch
    %18 = sbr.rel (%p16) target = $region17
  $region16: #{snnmlp_forward.38} parent=0 // pred_region
    %vm19 = vcmask 261120
    %20 = vst.msk [vmem:[#allocation2] sm:$0xff] %vm19, 0.0
    %21 = vst.msk [vmem:[#allocation2 + $0x8] sm:$0xff] %vm19, 0.0
    %22 = vst.msk [vmem:[#allocation2 + $0x10] sm:$0xff] %vm19, 0.0
    %23 = vst.msk [vmem:[#allocation2 + $0x18] sm:$0xff] %vm19, 0.0
  $region17: #{snnmlp_forward.38} parent=0 // pred_fallthru
    _
  %v24 = vld [vmem:[#allocation2] sm:$0xff]
  %v25 = vld [vmem:[#allocation2 + $0x8] sm:$0xff]
  %v26 = vld [vmem:[#allocation2 + $0x10] sm:$0xff]
  %v27 = vld [vmem:[#allocation2 + $0x18] sm:$0xff]
  %v28 = vld [vmem:[%s0] sm:$0xff]
  %v29 = vld [vmem:[%s0 + $0x8] sm:$0xff]
  %v30 = vld [vmem:[%s0 + $0x10] sm:$0xff]
  %v31 = vld [vmem:[%s0 + $0x18] sm:$0xff]
  %v32 = vpack.c.bf16 %v29, %v28
  %v33 = vpack.c.bf16 %v31, %v30
  %v34 = vld [vmem:[%s1] sm:$0xff]
  %v35 = vld [vmem:[%s1 + $0x8] sm:$0xff]
  %v36 = vpack.c.bf16 %v35, %v34
  %vm37 = vcmask 130048
  %v39 = vsel %vm37, %v32, 0
  %v42 = vsel %vm37, %v33, 0
  %44 = vmatprep.subr.bf16.mxu0 0
  %45 = vmatpush1.bf16.msra.mxu0 0
  %46 = vmatprep.subr.bf16.mxu0 0
  %47 = vmatpush1.bf16.msra.mxu0 0
  %48 = vmatprep.subr.bf16.mxu0 0
  %49 = vmatpush1.bf16.msra.mxu0 0
  %50 = vmatprep.subr.bf16.mxu0 0
  %51 = vmatpush1.bf16.msra.mxu0 0
  %52 = vmatprep.subr.bf16.mxu0 0
  %53 = vmatpush1.bf16.msra.mxu0 0
  %54 = vmatprep.subr.bf16.mxu0 0
  %55 = vmatpush1.bf16.msra.mxu0 0
  %56 = vmatprep.subr.bf16.mxu0 0
  %57 = vmatpush1.bf16.msra.mxu0 0
  %58 = vmatprep.subr.bf16.mxu0 0
  %59 = vmatpush1.bf16.msra.mxu0 %v36
  %60 = vmatprep.subr.bf16.mxu0 0
  %61 = vmatpush2.bf16.msra.mxu0 0
  %62 = vmatprep.subr.bf16.mxu0 0
  %63 = vmatpush2.bf16.msra.mxu0 0
  %64 = vmatprep.subr.bf16.mxu0 0
  %65 = vmatpush2.bf16.msra.mxu0 0
  %66 = vmatprep.subr.bf16.mxu0 0
  %67 = vmatpush2.bf16.msra.mxu0 0
  %68 = vmatprep.subr.bf16.mxu0 0
  %69 = vmatpush2.bf16.msra.mxu0 0
  %70 = vmatprep.subr.bf16.mxu0 0
  %71 = vmatpush2.bf16.msra.mxu0 0
  %72 = vmatprep.subr.bf16.mxu0 0
  %73 = vmatpush2.bf16.msra.mxu0 0
  %74 = vmatprep.subr.bf16.mxu0 0
  %75 = vmatpush2.bf16.msra.mxu0 0
  %76 = vmatprep.mubr.bf16.mxu0 0
  %77 = vmatmul.mubr.bf16.gmra.mxu0 %v39
  %v78 = vpop.f32.mrf.mxu0
  %v79 = vadd.f32 0.0, %v78
  %v80 = vpop.f32.mrf.mxu0
  %v81 = vpop.f32.mrf.mxu0
  %v82 = vadd.f32 0.0, %v81
  %v83 = vpop.f32.mrf.mxu0
  %84 = vmatprep.mubr.bf16.mxu0 0
  %85 = vmatmul.mubr.bf16.gmra.mxu0 %v42
  %v86 = vpop.f32.mrf.mxu0
  %v87 = vadd.f32 0.0, %v86
  %v88 = vpop.f32.mrf.mxu0
  %v89 = vpop.f32.mrf.mxu0
  %v90 = vadd.f32 0.0, %v89
  %v91 = vpop.f32.mrf.mxu0
  %92 = vdwg.mxu0
  %v93 = vadd.f32 %v24, %v79
  %v94 = vadd.f32 %v25, %v82
  %v95 = vadd.f32 %v26, %v87
  %v96 = vadd.f32 %v27, %v90
  %vm97 = vcmask 261120
  %98 = vst.msk [vmem:[#allocation2] sm:$0xff] %vm97, %v93
  %99 = vst.msk [vmem:[#allocation2 + $0x8] sm:$0xff] %vm97, %v94
  %100 = vst.msk [vmem:[#allocation2 + $0x10] sm:$0xff] %vm97, %v95
  %101 = vst.msk [vmem:[#allocation2 + $0x18] sm:$0xff] %vm97, %v96
  // Predicated region
  $region18: #{snnmlp_forward.38} parent=0 // pred_check
    %p102 = pneg %p15
  $region19: #{snnmlp_forward.38} parent=0 // pred_check_branch
    %104 = sbr.rel (%p102) target = $region21
  $region20: #{snnmlp_forward.38} parent=0 // pred_region
    %v105 = vld [vmem:[#allocation2] sm:$0xff]
    %v106 = vld [vmem:[#allocation2 + $0x8] sm:$0xff]
    %v107 = vld [vmem:[#allocation2 + $0x10] sm:$0xff]
    %v108 = vld [vmem:[#allocation2 + $0x18] sm:$0xff]
    %v109 = vld [vmem:[%s2] sm:$0x1]
    %v111 = vlaneseq
    %v112 = vshrl.u32 %v111, 7
    %v113 = vsub.s32 0, %v112
    %v114 = vrot.slane %v109, %v113
    %v116 = vadd.f32 %v105, %v114
    %v117 = vadd.f32 %v106, %v114
    %v118 = vadd.f32 %v107, %v114
    %v119 = vadd.f32 %v108, %v114
    %v120 = vmul.f32 %v116, 0.5
    %v121 = vmul.f32 %v117, 0.5
    %v122 = vmul.f32 %v118, 0.5
    %v123 = vmul.f32 %v119, 0.5
    %v124 = vmul.f32 %v116, 0.044715
    %v125 = vmul.f32 %v117, 0.044715
    %v126 = vmul.f32 %v118, 0.044715
    %v127 = vmul.f32 %v119, 0.044715
    %v128 = vmul.f32 %v124, %v116
    %v129 = vmul.f32 %v125, %v117
    %v130 = vmul.f32 %v126, %v118
    %v131 = vmul.f32 %v127, %v119
    %v132 = vmul.f32 %v128, %v116
    %v133 = vmul.f32 %v129, %v117
    %v134 = vmul.f32 %v130, %v118
    %v135 = vmul.f32 %v131, %v119
    %v136 = vadd.f32 %v116, %v132
    %v137 = vadd.f32 %v117, %v133
    %v138 = vadd.f32 %v118, %v134
    %v139 = vadd.f32 %v119, %v135
    %v140 = vmul.f32 %v136, 0.7978846
    %v141 = vmul.f32 %v137, 0.7978846
    %v142 = vmul.f32 %v138, 0.7978846
    %v143 = vmul.f32 %v139, 0.7978846
    %v144 = vtanh.pop %v140
    %v145 = vtanh.pop %v141
    %v146 = vtanh.pop %v142
    %v147 = vtanh.pop %v143
    %v148 = vadd.f32 %v144, 1.0
    %v149 = vadd.f32 %v145, 1.0
    %v150 = vadd.f32 %v146, 1.0
    %v151 = vadd.f32 %v147, 1.0
    %v152 = vmul.f32 %v120, %v148
    %v153 = vmul.f32 %v121, %v149
    %v154 = vmul.f32 %v122, %v150
    %v155 = vmul.f32 %v123, %v151
    %156 = vst.msk [vmem:[%s3] sm:$0xff] %vm97, %v152
    %157 = vst.msk [vmem:[%s3 + $0x8] sm:$0xff] %vm97, %v153
    %158 = vst.msk [vmem:[%s3 + $0x10] sm:$0xff] %vm97, %v154
    %159 = vst.msk [vmem:[%s3 + $0x18] sm:$0xff] %vm97, %v155
  $region21: #{snnmlp_forward.38} parent=0 // pred_fallthru
    _
  // Predicated region
  $region22: #{snnmlp_forward.38} parent=0 // pred_check
    _
  $region23: #{snnmlp_forward.38} parent=0 // pred_check_branch
    %161 = sbr.rel (0) target = $region25
  $region24: #{snnmlp_forward.38} parent=0 // pred_region
    _
  $region25: #{snnmlp_forward.38} parent=0 // pred_fallthru
    _
  // Predicated region
  $region26: #{snnmlp_forward.38} parent=0 // pred_check
    _
  $region27: #{snnmlp_forward.38} parent=0 // pred_check_branch
    %163 = sbr.rel (0) target = $region29
  $region28: #{snnmlp_forward.38} parent=0 // pred_region
    _
  $region29: #{snnmlp_forward.38} parent=0 // pred_fallthru
    _

// kernel: snnmlp_forward.32
$region0: #{snnmlp_forward.32}
  #allocation0 [shape = 'u32[]', space=smem, size = 0x4, offset = 0x4, fixed_abs, tag = 'smem constant byte address 0x4 - core index']
  #allocation1 [shape = 'u32[144,128]{1,0:T(1,128)}', space=vmem, size = 0x12000, scoped, tag = 'internal scratch']
  %s0 = inlined_call_operand.vmem [shape: f32[2,4,4,16], index: 0, kind: input, shape index: {}]
  %s1 = inlined_call_operand.vmem [shape: f32[3,3,16], index: 1, kind: input, shape index: {}]
  %s2 = inlined_call_operand.vmem [shape: f32[1,16], index: 2, kind: input, shape index: {}]
  %s3 = inlined_call_operand.vmem [shape: f32[2,4,4,16], index: 3, kind: output, shape index: {}]
  %s4 = sld [smem:[#allocation0]]
  $region45: #{snnmlp_forward.32} parent=0
    _
  %s6 = ssub.s32 1, %s4
  %s7 = scalar_select 0, %s6, %s4
  loop: start=0, step=1, limit=4
  $region2: #{snnmlp_forward.32} parent=0 // loop_pre_header
    _
  $region3: #{snnmlp_forward.32} parent=0 // loop_header
    %s9 = sphi 0, %s13
    %p10 = scmp.ge.s32.totalorder %s9, 4
    %s19 = sphi 0, %s21
    %s22 = sphi 0, %s19
    %s23 = sphi 0, %s22
    %s39 = sphi 0, %s23
    %s43 = sphi 0, %s43
    %s45 = sphi 0, %s43
    %s46 = sphi 0, %s45
    %s60 = sphi 0, %s46
    %s64 = sphi 0, %s64
    %s66 = sphi 0, %s64
    %s67 = sphi 0, %s66
    %s81 = sphi 0, %s67
    %s87 = sphi 0, %s89
    %s90 = sphi 0, %s87
    %s91 = sphi 0, %s90
    %s107 = sphi 0, %s91
  $region4: #{snnmlp_forward.32} parent=0 // loop_header_branch
    %12 = sbr.rel (%p10) target = $region8
  $region5: #{snnmlp_forward.32} parent=0 // loop_body
    %s14 = ssub.s32 %s9, 1
    %s15 = ssub.s32 %s9, 2
    %s16 = sadd.s32 %s9, 1
    %s17 = ssub.s32 %s9, %s16
    %p18 = scmp.eq.s32.totalorder %s17, 0
    %s20 = sadd.s32 %s19, 1
    %s21 = scalar_select %p18, %s19, %s20
    %p24 = pneg %p18
    %p25 = scmp.eq.s32.totalorder %s9, 1
    %p26 = por %p24, %p25
    %p27 = scmp.ne.s32.totalorder %s19, %s22
    %p28 = scmp.eq.s32.totalorder %s9, 0
    %p29 = por %p27, %p28
    %p30 = scmp.ne.s32.totalorder %s19, %s22
    %p31 = scmp.eq.s32.totalorder %s14, 1
    %p32 = por %p30, %p31
    %p33 = scmp.ne.s32.totalorder %s22, %s23
    %p34 = scmp.eq.s32.totalorder %s14, 0
    %p35 = por %p33, %p34
    %p36 = scmp.ne.s32.totalorder %s22, %s23
    %p37 = scmp.eq.s32.totalorder %s15, 1
    %p38 = por %p36, %p37
    %p40 = scmp.ne.s32.totalorder %s23, %s39
    %p41 = scmp.eq.s32.totalorder %s15, 0
    %p42 = por %p40, %p41
    %s44 = sadd.s32 %s43, 1
    %p47 = scmp.eq.s32.totalorder %s9, 1
    %p48 = scmp.ne.s32.totalorder %s43, %s45
    %p49 = scmp.eq.s32.totalorder %s9, 0
    %p50 = por %p48, %p49
    %p51 = scmp.ne.s32.totalorder %s43, %s45
    %p52 = scmp.eq.s32.totalorder %s14, 1
    %p53 = por %p51, %p52
    %p54 = scmp.ne.s32.totalorder %s45, %s46
    %p55 = scmp.eq.s32.totalorder %s14, 0
    %p56 = por %p54, %p55
    %p57 = scmp.ne.s32.totalorder %s45, %s46
    %p58 = scmp.eq.s32.totalorder %s15, 1
    %p59 = por %p57, %p58
    %p61 = scmp.ne.s32.totalorder %s46, %s60
    %p62 = scmp.eq.s32.totalorder %s15, 0
    %p63 = por %p61, %p62
    %s65 = sadd.s32 %s64, 1
    %p68 = scmp.eq.s32.totalorder %s9, 1
    %p69 = scmp.ne.s32.totalorder %s64, %s66
    %p70 = scmp.eq.s32.totalorder %s9, 0
    %p71 = por %p69, %p70
    %p72 = scmp.ne.s32.totalorder %s64, %s66
    %p73 = scmp.eq.s32.totalorder %s14, 1
    %p74 = por %p72, %p73
    %p75 = scmp.ne.s32.totalorder %s66, %s67
    %p76 = scmp.eq.s32.totalorder %s14, 0
    %p77 = por %p75, %p76
    %p78 = scmp.ne.s32.totalorder %s66, %s67
    %p79 = scmp.eq.s32.totalorder %s15, 1
    %p80 = por %p78, %p79
    %p82 = scmp.ne.s32.totalorder %s67, %s81
    %p83 = scmp.eq.s32.totalorder %s15, 0
    %p84 = por %p82, %p83
    %s85 = ssub.s32 %s9, %s16
    %p86 = scmp.eq.s32.totalorder %s85, 0
    %s88 = sadd.s32 %s87, 1
    %s89 = scalar_select %p86, %s87, %s88
    %p92 = pneg %p86
    %p93 = scmp.eq.s32.totalorder %s9, 1
    %p94 = por %p92, %p93
    %p95 = scmp.ne.s32.totalorder %s87, %s90
    %p96 = scmp.eq.s32.totalorder %s9, 0
    %p97 = por %p95, %p96
    %p98 = scmp.ne.s32.totalorder %s87, %s90
    %p99 = scmp.eq.s32.totalorder %s14, 1
    %p100 = por %p98, %p99
    %p101 = scmp.ne.s32.totalorder %s90, %s91
    %p102 = scmp.eq.s32.totalorder %s14, 0
    %p103 = por %p101, %p102
    %p104 = scmp.ne.s32.totalorder %s90, %s91
    %p105 = scmp.eq.s32.totalorder %s15, 1
    %p106 = por %p104, %p105
    %p108 = scmp.ne.s32.totalorder %s91, %s107
    %p109 = scmp.eq.s32.totalorder %s15, 0
    %p110 = por %p108, %p109
    %p111 = scmp.le.s32.totalorder 1, %s9
    %p112 = scmp.lt.s32.totalorder %s9, 3
    %p113 = pnand %p111, %p112
    %p114 = pneg %p113
    // Predicated region
    $region9: #{snnmlp_forward.32} parent=5 // pred_check
      _
    $region10: #{snnmlp_forward.32} parent=5 // pred_check_branch
      %116 = sbr.rel (%p113) target = $region12
    $region11: #{snnmlp_forward.32} parent=5 // pred_region
      %s117 = ssub.s32 %s9, 1
      // Predicated region
      $region13: #{snnmlp_forward.32} parent=11 // pred_check
        %p118 = pneg %p56
      $region14: #{snnmlp_forward.32} parent=11 // pred_check_branch
        %120 = sbr.rel (%p118) target = $region16
      $region15: #{snnmlp_forward.32} parent=11 // pred_region
        _
      $region16: #{snnmlp_forward.32} parent=11 // pred_fallthru
        _
      // Predicated region
      $region17: #{snnmlp_forward.32} parent=11 // pred_check
        %p121 = pneg %p77
      $region18: #{snnmlp_forward.32} parent=11 // pred_check_branch
        %123 = sbr.rel (%p121) target = $region20
      $region19: #{snnmlp_forward.32} parent=11 // pred_region
        _
      $region20: #{snnmlp_forward.32} parent=11 // pred_fallthru
        _
    $region12: #{snnmlp_forward.32} parent=5 // pred_fallthru
      _
    %p124 = scmp.lt.s32.totalorder %s9, 2
    // Predicated region
    $region21: #{snnmlp_forward.32} parent=5 // pred_check
      %p125 = pneg %p124
    $region22: #{snnmlp_forward.32} parent=5 // pred_check_branch
      %127 = sbr.rel (%p125) target = $region24
    $region23: #{snnmlp_forward.32} parent=5 // pred_region
      // Predicated region
      $region25: #{snnmlp_forward.32} parent=23 // pred_check
        %p128 = pneg %p29
      $region26: #{snnmlp_forward.32} parent=23 // pred_check_branch
        %130 = sbr.rel (%p128) target = $region28
      $region27: #{snnmlp_forward.32} parent=23 // pred_region
        %p131 = scmp.lt.s32.totalorder %s9, 1
        %s132 = scalar_select %p131, %s9, 1
        %s133 = smul.addr %s132, 4
        %s134 = smul.addr %s133, 4
        %s135 = scalar_lea.vmem %s0, %s134
      $region28: #{snnmlp_forward.32} parent=23 // pred_fallthru
        _
    $region24: #{snnmlp_forward.32} parent=5 // pred_fallthru
      _
    %p136 = scmp.le.s32.totalorder 1, %s9
    %p137 = scmp.lt.s32.totalorder %s9, 3
    %p138 = pnand %p136, %p137
    %p139 = pneg %p138
    // Predicated region
    $region29: #{snnmlp_forward.32} parent=5 // pred_check
      _
    $region30: #{snnmlp_forward.32} parent=5 // pred_check_branch
      %141 = sbr.rel (%p138) target = $region32
    $region31: #{snnmlp_forward.32} parent=5 // pred_region
      %s142 = ssub.s32 %s9, 1
      %p143 = scmp.lt.s32.totalorder %s14, 1
      %s144 = scalar_select %p143, %s14, 1
      %s145 = smul.addr %s144, 4
      %s146 = smul.addr %s145, 4
      %s147 = scalar_lea.vmem %s0, %s146
      %p148 = pneg %p35
      %p149 = pneg %p32
      %p150 = pneg %p56
      %p151 = pneg %p53
      %p152 = pneg %p77
      %p153 = pneg %p74
      %p154 = pneg %p103
      %p155 = pneg %p100
      %p156 = scmp.lt.s32.totalorder %s14, 1
      %s157 = scalar_select %p156, %s14, 1
      %s158 = smul.addr %s157, 4
      %s159 = smul.addr %s158, 4
      %s160 = scalar_lea.vmem %s3, %s159
      %p161 = scmp.lt.s32.totalorder %s14, 1
      %s162 = scalar_select %p161, %s14, 1
      %s163 = smul.addr %s162, 4
      %s164 = smul.addr %s163, 4
      %s165 = scalar_lea.vmem %s0, %s164
      %p166 = scmp.lt.s32.totalorder %s14, 1
      %s167 = scalar_select %p166, %s14, 1
      %s168 = smul.addr %s167, 4
      %s169 = smul.addr %s168, 4
      %s170 = scalar_lea.vmem %s3, %s169
      %v171 = vld [vmem:[%s165] sm:$0xf]
      %v172 = vld [vmem:[%s165 + $0x4] sm:$0xf]
      %v173 = vld [vmem:[%s165 + $0x8] sm:$0xf]
      %v174 = vld [vmem:[%s165 + $0xc] sm:$0xf]
      %v175 = vld [vmem:[%s1] sm:$0x7]
      %v176 = vld [vmem:[%s1 + $0x4] sm:$0x7]
      %v177 = vld [vmem:[%s1 + $0x8] sm:$0x7]
      %v182 = vrot.slane 0.0, 7
      %v183 = vrot.slane %v171, 7
      %v184 = vrot.slane %v172, 7
      %v185 = vrot.slane %v173, 7
      %vm190 = vcmask 1040384
      %v191 = vsel %vm190, 0.0, %v182
      %v192 = vsel %vm190, 0.0, %v183
      %v193 = vsel %vm190, 0.0, %v184
      %v194 = vsel %vm190, 0.0, %v185
      %v195 = vlaneseq
      %v196 = vshrl.u32 %v195, 7
      %v197 = vsub.s32 0, %v196
      %v198 = vrot.slane %v175, %v197
      %v199 = vmul.f32 %v191, %v198
      %v200 = vmul.f32 %v192, %v198
      %v201 = vmul.f32 %v193, %v198
      %v202 = vmul.f32 %v194, %v198
      %v203 = vadd.f32 %v199, 0.0
      %v204 = vadd.f32 %v200, 0.0
      %v205 = vadd.f32 %v201, 0.0
      %v206 = vadd.f32 %v202, 0.0
      %v207 = vlaneseq
      %v208 = vshrl.u32 %v207, 7
      %v209 = vsub.s32 1, %v208
      %v210 = vrot.slane %v175, %v209
      %v211 = vmul.f32 %v210, 0.0
      %v212 = vmul.f32 %v171, %v210
      %v213 = vmul.f32 %v172, %v210
      %v214 = vmul.f32 %v173, %v210
      %v215 = vadd.f32 %v203, %v211
      %v216 = vadd.f32 %v204, %v212
      %v217 = vadd.f32 %v205, %v213
      %v218 = vadd.f32 %v206, %v214
      %v219 = vrot.slane 0.0, 1
      %v220 = vrot.slane %v171, 1
      %v221 = vrot.slane %v172, 1
      %v222 = vrot.slane %v173, 1
      %vm227 = vcmask 1042432
      %v228 = vsel %vm227, %v219, 0.0
      %v229 = vsel %vm227, %v220, 0.0
      %v230 = vsel %vm227, %v221, 0.0
      %v231 = vsel %vm227, %v222, 0.0
      %v232 = vlaneseq
      %v233 = vshrl.u32 %v232, 7
      %v234 = vsub.s32 2, %v233
      %v235 = vrot.slane %v175, %v234
      %v236 = vmul.f32 %v228, %v235
      %v237 = vmul.f32 %v229, %v235
      %v238 = vmul.f32 %v230, %v235
      %v239 = vmul.f32 %v231, %v235
      %v240 = vadd.f32 %v215, %v236
      %v241 = vadd.f32 %v216, %v237
      %v242 = vadd.f32 %v217, %v238
      %v243 = vadd.f32 %v218, %v239
      %v245 = vrot.slane %v174, 7
      %v247 = vsel %vm190, 0.0, %v245
      %v248 = vlaneseq
      %v249 = vshrl.u32 %v248, 7
      %v250 = vsub.s32 0, %v249
      %v251 = vrot.slane %v176, %v250
      %v252 = vmul.f32 %v192, %v251
      %v253 = vmul.f32 %v193, %v251
      %v254 = vmul.f32 %v194, %v251
      %v255 = vmul.f32 %v247, %v251
      %v256 = vadd.f32 %v240, %v252
      %v257 = vadd.f32 %v241, %v253
      %v258 = vadd.f32 %v242, %v254
      %v259 = vadd.f32 %v243, %v255
      %v260 = vlaneseq
      %v261 = vshrl.u32 %v260, 7
      %v262 = vsub.s32 1, %v261
      %v263 = vrot.slane %v176, %v262
      %v264 = vmul.f32 %v171, %v263
      %v265 = vmul.f32 %v172, %v263
      %v266 = vmul.f32 %v173, %v263
      %v267 = vmul.f32 %v174, %v263
      %v268 = vadd.f32 %v256, %v264
      %v269 = vadd.f32 %v257, %v265
      %v270 = vadd.f32 %v258, %v266
      %v271 = vadd.f32 %v259, %v267
      %v272 = vrot.slane %v174, 1
      %v274 = vsel %vm227, %v272, 0.0
      %v275 = vlaneseq
      %v276 = vshrl.u32 %v275, 7
      %v277 = vsub.s32 2, %v276
      %v278 = vrot.slane %v176, %v277
      %v279 = vmul.f32 %v229, %v278
      %v280 = vmul.f32 %v230, %v278
      %v281 = vmul.f32 %v231, %v278
      %v282 = vmul.f32 %v274, %v278
      %v283 = vadd.f32 %v268, %v279
      %v284 = vadd.f32 %v269, %v280
      %v285 = vadd.f32 %v270, %v281
      %v286 = vadd.f32 %v271, %v282
      %v287 = vlaneseq
      %v288 = vshrl.u32 %v287, 7
      %v289 = vsub.s32 0, %v288
      %v290 = vrot.slane %v177, %v289
      %v291 = vmul.f32 %v193, %v290
      %v292 = vmul.f32 %v194, %v290
      %v293 = vmul.f32 %v247, %v290
      %v294 = vmul.f32 %v191, %v290
      %v295 = vadd.f32 %v283, %v291
      %v296 = vadd.f32 %v284, %v292
      %v297 = vadd.f32 %v285, %v293
      %v298 = vadd.f32 %v286, %v294
      %v299 = vlaneseq
      %v300 = vshrl.u32 %v299, 7
      %v301 = vsub.s32 1, %v300
      %v302 = vrot.slane %v177, %v301
      %v303 = vmul.f32 %v172, %v302
      %v304 = vmul.f32 %v173, %v302
      %v305 = vmul.f32 %v174, %v302
      %v306 = vmul.f32 %v302, 0.0
      %v307 = vadd.f32 %v295, %v303
      %v308 = vadd.f32 %v296, %v304
      %v309 = vadd.f32 %v297, %v305
      %v310 = vadd.f32 %v298, %v306
      %v311 = vlaneseq
      %v312 = vshrl.u32 %v311, 7
      %v313 = vsub.s32 2, %v312
      %v314 = vrot.slane %v177, %v313
      %v315 = vmul.f32 %v230, %v314
      %v316 = vmul.f32 %v231, %v314
      %v317 = vmul.f32 %v274, %v314
      %v318 = vmul.f32 %v228, %v314
      %v319 = vadd.f32 %v307, %v315
      %v320 = vadd.f32 %v308, %v316
      %v321 = vadd.f32 %v309, %v317
      %v322 = vadd.f32 %v310, %v318
      %v323 = vld [vmem:[%s2] sm:$0x1]
      %v325 = vlaneseq
      %v326 = vshrl.u32 %v325, 7
      %v327 = vsub.s32 0, %v326
      %v328 = vrot.slane %v323, %v327
      %v330 = vadd.f32 %v319, %v328
      %v331 = vadd.f32 %v320, %v328
      %v332 = vadd.f32 %v321, %v328
      %v333 = vadd.f32 %v322, %v328
      %vm334 = vcmask 125952
      %335 = vst.msk [vmem:[%s170] sm:$0xf] %vm334, %v330
      %336 = vst.msk [vmem:[%s170 + $0x4] sm:$0xf] %vm334, %v331
      %337 = vst.msk [vmem:[%s170 + $0x8] sm:$0xf] %vm334, %v332
      %338 = vst.msk [vmem:[%s170 + $0xc] sm:$0xf] %vm334, %v333
      %p339 = scmp.lt.s32.totalorder %s14, 1
      %s340 = scalar_select %p339, %s14, 1
      %s341 = smul.addr %s340, 4
      %s342 = smul.addr %s341, 4
      %s343 = scalar_lea.vmem %s3, %s342
      // Predicated region
      $region33: #{snnmlp_forward.32} parent=31 // pred_check
        %p344 = pneg %p100
      $region34: #{snnmlp_forward.32} parent=31 // pred_check_branch
        %346 = sbr.rel (%p344) target = $region36
      $region35: #{snnmlp_forward.32} parent=31 // pred_region
        _
      $region36: #{snnmlp_forward.32} parent=31 // pred_fallthru
        _
    $region32: #{snnmlp_forward.32} parent=5 // pred_fallthru
      _
    %p347 = scmp.le.s32.totalorder 2, %s9
    // Predicated region
    $region37: #{snnmlp_forward.32} parent=5 // pred_check
      %p348 = pneg %p347
    $region38: #{snnmlp_forward.32} parent=5 // pred_check_branch
      %350 = sbr.rel (%p348) target = $region40
    $region39: #{snnmlp_forward.32} parent=5 // pred_region
      %s351 = ssub.s32 %s9, 2
      // Predicated region
      $region41: #{snnmlp_forward.32} parent=39 // pred_check
        %p352 = pneg %p106
      $region42: #{snnmlp_forward.32} parent=39 // pred_check_branch
        %354 = sbr.rel (%p352) target = $region44
      $region43: #{snnmlp_forward.32} parent=39 // pred_region
        %p355 = scmp.lt.s32.totalorder %s15, 1
        %s356 = scalar_select %p355, %s15, 1
        %s357 = smul.addr %s356, 4
        %s358 = smul.addr %s357, 4
        %s359 = scalar_lea.vmem %s3, %s358
      $region44: #{snnmlp_forward.32} parent=39 // pred_fallthru
        _
    $region40: #{snnmlp_forward.32} parent=5 // pred_fallthru
      _
  $region6: #{snnmlp_forward.32} parent=0 // loop_footer
    %s13 = sadd.s32 1, %s9
  $region7: #{snnmlp_forward.32} parent=0 // loop_footer_branch
    %8 = sbr.rel target = $region3
  $region8: #{snnmlp_forward.32} parent=0 // loop_exit
    _

// kernel: snnmlp_forward.34
$region0: #{snnmlp_forward.34}
  #allocation0 [shape = 'u32[]', space=smem, size = 0x4, offset = 0x4, fixed_abs, tag = 'smem constant byte address 0x4 - core index']
  #allocation1 [shape = 'u32[144,128]{1,0:T(1,128)}', space=vmem, size = 0x12000, scoped, tag = 'internal scratch']
  #allocation2 [shape = 'f32[32,16]{1,0:T(8,128)}', space=vmem, size = 0x4000, scoped, tag = 'scratch operand']
  #allocation3 [shape = 'f32[32,16]{1,0:T(8,128)}', space=vmem, size = 0x4000, scoped, tag = 'scratch operand']
  %s0 = inlined_call_operand.vmem [shape: f32[32,16], index: 0, kind: input, shape index: {}]
  %s1 = inlined_call_operand.vmem [shape: f32[16,16], index: 1, kind: input, shape index: {}]
  %s2 = inlined_call_operand.vmem [shape: f32[1,16], index: 2, kind: input, shape index: {}]
  %s3 = inlined_call_operand.vmem [shape: f32[16,16], index: 3, kind: input, shape index: {}]
  %s4 = inlined_call_operand.vmem [shape: f32[1,16], index: 4, kind: input, shape index: {}]
  %s5 = inlined_call_operand.vmem [shape: f32[32,16], index: 5, kind: output, shape index: {}]
  %s6 = sld [smem:[#allocation0]]
  $region38: #{snnmlp_forward.34} parent=0
    _
  %s8 = ssub.s32 1, %s6
  %s9 = scalar_select 0, %s8, %s6
  // Predicated region
  $region2: #{snnmlp_forward.34} parent=0 // pred_check
    _
  $region3: #{snnmlp_forward.34} parent=0 // pred_check_branch
    %11 = sbr.rel (0) target = $region5
  $region4: #{snnmlp_forward.34} parent=0 // pred_region
    _
  $region5: #{snnmlp_forward.34} parent=0 // pred_fallthru
    _
  // Predicated region
  $region6: #{snnmlp_forward.34} parent=0 // pred_check
    _
  $region7: #{snnmlp_forward.34} parent=0 // pred_check_branch
    %13 = sbr.rel (0) target = $region9
  $region8: #{snnmlp_forward.34} parent=0 // pred_region
    _
  $region9: #{snnmlp_forward.34} parent=0 // pred_fallthru
    _
  // Predicated region
  $region10: #{snnmlp_forward.34} parent=0 // pred_check
    _
  $region11: #{snnmlp_forward.34} parent=0 // pred_check_branch
    %15 = sbr.rel (0) target = $region13
  $region12: #{snnmlp_forward.34} parent=0 // pred_region
    _
  $region13: #{snnmlp_forward.34} parent=0 // pred_fallthru
    _
  // Predicated region
  $region14: #{snnmlp_forward.34} parent=0 // pred_check
    _
  $region15: #{snnmlp_forward.34} parent=0 // pred_check_branch
    %17 = sbr.rel (0) target = $region17
  $region16: #{snnmlp_forward.34} parent=0 // pred_region
    _
  $region17: #{snnmlp_forward.34} parent=0 // pred_fallthru
    _
  // Predicated region
  $region18: #{snnmlp_forward.34} parent=0 // pred_check
    _
  $region19: #{snnmlp_forward.34} parent=0 // pred_check_branch
    %19 = sbr.rel (0) target = $region21
  $region20: #{snnmlp_forward.34} parent=0 // pred_region
    _
  $region21: #{snnmlp_forward.34} parent=0 // pred_fallthru
    _
  %p21 = scmp.eq.s32.totalorder 0, 0
  // Predicated region
  $region22: #{snnmlp_forward.34} parent=0 // pred_check
    %p22 = pneg %p21
  $region23: #{snnmlp_forward.34} parent=0 // pred_check_branch
    %24 = sbr.rel (%p22) target = $region25
  $region24: #{snnmlp_forward.34} parent=0 // pred_region
    %vm25 = vcmask 130048
    %26 = vst.msk [vmem:[#allocation2] sm:$0xff] %vm25, 0.0
    %27 = vst.msk [vmem:[#allocation2 + $0x8] sm:$0xff] %vm25, 0.0
    %28 = vst.msk [vmem:[#allocation2 + $0x10] sm:$0xff] %vm25, 0.0
    %29 = vst.msk [vmem:[#allocation2 + $0x18] sm:$0xff] %vm25, 0.0
    %30 = vst.msk [vmem:[#allocation3] sm:$0xff] %vm25, 0.0
    %31 = vst.msk [vmem:[#allocation3 + $0x8] sm:$0xff] %vm25, 0.0
    %32 = vst.msk [vmem:[#allocation3 + $0x10] sm:$0xff] %vm25, 0.0
    %33 = vst.msk [vmem:[#allocation3 + $0x18] sm:$0xff] %vm25, 0.0
  $region25: #{snnmlp_forward.34} parent=0 // pred_fallthru
    _
  %v34 = vld [vmem:[%s0] sm:$0xff]
  %v35 = vld [vmem:[%s0 + $0x8] sm:$0xff]
  %v36 = vld [vmem:[%s0 + $0x10] sm:$0xff]
  %v37 = vld [vmem:[%s0 + $0x18] sm:$0xff]
  %v38 = vpack.c.bf16 %v35, %v34
  %v39 = vpack.c.bf16 %v37, %v36
  %v40 = vld [vmem:[#allocation2] sm:$0xff]
  %v41 = vld [vmem:[#allocation2 + $0x8] sm:$0xff]
  %v42 = vld [vmem:[#allocation2 + $0x10] sm:$0xff]
  %v43 = vld [vmem:[#allocation2 + $0x18] sm:$0xff]
  %v44 = vld [vmem:[%s1] sm:$0xff]
  %v45 = vld [vmem:[%s1 + $0x8] sm:$0xff]
  %v46 = vpack.c.bf16 %v45, %v44
  %vm47 = vcmask 130048
  %v49 = vsel %vm47, %v38, 0
  %v52 = vsel %vm47, %v39, 0
  %54 = vmatprep.subr.bf16.mxu0 0
  %55 = vmatpush1.bf16.msra.mxu0 0
  %56 = vmatprep.subr.bf16.mxu0 0
  %57 = vmatpush1.bf16.msra.mxu0 0
  %58 = vmatprep.subr.bf16.mxu0 0
  %59 = vmatpush1.bf16.msra.mxu0 0
  %60 = vmatprep.subr.bf16.mxu0 0
  %61 = vmatpush1.bf16.msra.mxu0 0
  %62 = vmatprep.subr.bf16.mxu0 0
  %63 = vmatpush1.bf16.msra.mxu0 0
  %64 = vmatprep.subr.bf16.mxu0 0
  %65 = vmatpush1.bf16.msra.mxu0 0
  %66 = vmatprep.subr.bf16.mxu0 0
  %67 = vmatpush1.bf16.msra.mxu0 0
  %68 = vmatprep.subr.bf16.mxu0 0
  %69 = vmatpush1.bf16.msra.mxu0 %v46
  %70 = vmatprep.subr.bf16.mxu0 0
  %71 = vmatpush2.bf16.msra.mxu0 0
  %72 = vmatprep.subr.bf16.mxu0 0
  %73 = vmatpush2.bf16.msra.mxu0 0
  %74 = vmatprep.subr.bf16.mxu0 0
  %75 = vmatpush2.bf16.msra.mxu0 0
  %76 = vmatprep.subr.bf16.mxu0 0
  %77 = vmatpush2.bf16.msra.mxu0 0
  %78 = vmatprep.subr.bf16.mxu0 0
  %79 = vmatpush2.bf16.msra.mxu0 0
  %80 = vmatprep.subr.bf16.mxu0 0
  %81 = vmatpush2.bf16.msra.mxu0 0
  %82 = vmatprep.subr.bf16.mxu0 0
  %83 = vmatpush2.bf16.msra.mxu0 0
  %84 = vmatprep.subr.bf16.mxu0 0
  %85 = vmatpush2.bf16.msra.mxu0 0
  %86 = vmatprep.mubr.bf16.mxu0 0
  %87 = vmatmul.mubr.bf16.gmra.mxu0 %v49
  %v88 = vpop.f32.mrf.mxu0
  %v89 = vadd.f32 0.0, %v88
  %v90 = vpop.f32.mrf.mxu0
  %v91 = vpop.f32.mrf.mxu0
  %v92 = vadd.f32 0.0, %v91
  %v93 = vpop.f32.mrf.mxu0
  %94 = vmatprep.mubr.bf16.mxu0 0
  %95 = vmatmul.mubr.bf16.gmra.mxu0 %v52
  %v96 = vpop.f32.mrf.mxu0
  %v97 = vadd.f32 0.0, %v96
  %v98 = vpop.f32.mrf.mxu0
  %v99 = vpop.f32.mrf.mxu0
  %v100 = vadd.f32 0.0, %v99
  %v101 = vpop.f32.mrf.mxu0
  %102 = vdwg.mxu0
  %v103 = vadd.f32 %v40, %v89
  %v104 = vadd.f32 %v41, %v92
  %v105 = vadd.f32 %v42, %v97
  %v106 = vadd.f32 %v43, %v100
  %107 = vst.msk [vmem:[#allocation2] sm:$0xff] %vm47, %v103
  %108 = vst.msk [vmem:[#allocation2 + $0x8] sm:$0xff] %vm47, %v104
  %109 = vst.msk [vmem:[#allocation2 + $0x10] sm:$0xff] %vm47, %v105
  %110 = vst.msk [vmem:[#allocation2 + $0x18] sm:$0xff] %vm47, %v106
  %v111 = vld [vmem:[#allocation3] sm:$0xff]
  %v112 = vld [vmem:[#allocation3 + $0x8] sm:$0xff]
  %v113 = vld [vmem:[#allocation3 + $0x10] sm:$0xff]
  %v114 = vld [vmem:[#allocation3 + $0x18] sm:$0xff]
  %v115 = vld [vmem:[%s3] sm:$0xff]
  %v116 = vld [vmem:[%s3 + $0x8] sm:$0xff]
  %v117 = vpack.c.bf16 %v116, %v115
  %118 = vmatprep.subr.bf16.mxu0 0
  %119 = vmatpush1.bf16.msra.mxu0 0
  %120 = vmatprep.subr.bf16.mxu0 0
  %121 = vmatpush1.bf16.msra.mxu0 0
  %122 = vmatprep.subr.bf16.mxu0 0
  %123 = vmatpush1.bf16.msra.mxu0 0
  %124 = vmatprep.subr.bf16.mxu0 0
  %125 = vmatpush1.bf16.msra.mxu0 0
  %126 = vmatprep.subr.bf16.mxu0 0
  %127 = vmatpush1.bf16.msra.mxu0 0
  %128 = vmatprep.subr.bf16.mxu0 0
  %129 = vmatpush1.bf16.msra.mxu0 0
  %130 = vmatprep.subr.bf16.mxu0 0
  %131 = vmatpush1.bf16.msra.mxu0 0
  %132 = vmatprep.subr.bf16.mxu0 0
  %133 = vmatpush1.bf16.msra.mxu0 %v117
  %134 = vmatprep.subr.bf16.mxu0 0
  %135 = vmatpush2.bf16.msra.mxu0 0
  %136 = vmatprep.subr.bf16.mxu0 0
  %137 = vmatpush2.bf16.msra.mxu0 0
  %138 = vmatprep.subr.bf16.mxu0 0
  %139 = vmatpush2.bf16.msra.mxu0 0
  %140 = vmatprep.subr.bf16.mxu0 0
  %141 = vmatpush2.bf16.msra.mxu0 0
  %142 = vmatprep.subr.bf16.mxu0 0
  %143 = vmatpush2.bf16.msra.mxu0 0
  %144 = vmatprep.subr.bf16.mxu0 0
  %145 = vmatpush2.bf16.msra.mxu0 0
  %146 = vmatprep.subr.bf16.mxu0 0
  %147 = vmatpush2.bf16.msra.mxu0 0
  %148 = vmatprep.subr.bf16.mxu0 0
  %149 = vmatpush2.bf16.msra.mxu0 0
  %150 = vmatprep.mubr.bf16.mxu0 0
  %151 = vmatmul.mubr.bf16.gmra.mxu0 %v49
  %v152 = vpop.f32.mrf.mxu0
  %v153 = vadd.f32 0.0, %v152
  %v154 = vpop.f32.mrf.mxu0
  %v155 = vpop.f32.mrf.mxu0
  %v156 = vadd.f32 0.0, %v155
  %v157 = vpop.f32.mrf.mxu0
  %158 = vmatprep.mubr.bf16.mxu0 0
  %159 = vmatmul.mubr.bf16.gmra.mxu0 %v52
  %v160 = vpop.f32.mrf.mxu0
  %v161 = vadd.f32 0.0, %v160
  %v162 = vpop.f32.mrf.mxu0
  %v163 = vpop.f32.mrf.mxu0
  %v164 = vadd.f32 0.0, %v163
  %v165 = vpop.f32.mrf.mxu0
  %166 = vdwg.mxu0
  %v167 = vadd.f32 %v111, %v153
  %v168 = vadd.f32 %v112, %v156
  %v169 = vadd.f32 %v113, %v161
  %v170 = vadd.f32 %v114, %v164
  %171 = vst.msk [vmem:[#allocation3] sm:$0xff] %vm47, %v167
  %172 = vst.msk [vmem:[#allocation3 + $0x8] sm:$0xff] %vm47, %v168
  %173 = vst.msk [vmem:[#allocation3 + $0x10] sm:$0xff] %vm47, %v169
  %174 = vst.msk [vmem:[#allocation3 + $0x18] sm:$0xff] %vm47, %v170
  // Predicated region
  $region26: #{snnmlp_forward.34} parent=0 // pred_check
    %p175 = pneg %p21
  $region27: #{snnmlp_forward.34} parent=0 // pred_check_branch
    %177 = sbr.rel (%p175) target = $region29
  $region28: #{snnmlp_forward.34} parent=0 // pred_region
    %v178 = vld [vmem:[#allocation2] sm:$0xff]
    %v179 = vld [vmem:[#allocation2 + $0x8] sm:$0xff]
    %v180 = vld [vmem:[#allocation2 + $0x10] sm:$0xff]
    %v181 = vld [vmem:[#allocation2 + $0x18] sm:$0xff]
    %v182 = vld [vmem:[%s2] sm:$0x1]
    %v184 = vlaneseq
    %v185 = vshrl.u32 %v184, 7
    %v186 = vsub.s32 0, %v185
    %v187 = vrot.slane %v182, %v186
    %v189 = vadd.f32 %v178, %v187
    %v190 = vadd.f32 %v179, %v187
    %v191 = vadd.f32 %v180, %v187
    %v192 = vadd.f32 %v181, %v187
    %v193 = vmul.f32 %v189, 0.5
    %v194 = vmul.f32 %v190, 0.5
    %v195 = vmul.f32 %v191, 0.5
    %v196 = vmul.f32 %v192, 0.5
    %v197 = vmul.f32 %v189, 0.044715
    %v198 = vmul.f32 %v190, 0.044715
    %v199 = vmul.f32 %v191, 0.044715
    %v200 = vmul.f32 %v192, 0.044715
    %v201 = vmul.f32 %v197, %v189
    %v202 = vmul.f32 %v198, %v190
    %v203 = vmul.f32 %v199, %v191
    %v204 = vmul.f32 %v200, %v192
    %v205 = vmul.f32 %v201, %v189
    %v206 = vmul.f32 %v202, %v190
    %v207 = vmul.f32 %v203, %v191
    %v208 = vmul.f32 %v204, %v192
    %v209 = vadd.f32 %v189, %v205
    %v210 = vadd.f32 %v190, %v206
    %v211 = vadd.f32 %v191, %v207
    %v212 = vadd.f32 %v192, %v208
    %v213 = vmul.f32 %v209, 0.7978846
    %v214 = vmul.f32 %v210, 0.7978846
    %v215 = vmul.f32 %v211, 0.7978846
    %v216 = vmul.f32 %v212, 0.7978846
    %v217 = vtanh.pop %v213
    %v218 = vtanh.pop %v214
    %v219 = vtanh.pop %v215
    %v220 = vtanh.pop %v216
    %v221 = vadd.f32 %v217, 1.0
    %v222 = vadd.f32 %v218, 1.0
    %v223 = vadd.f32 %v219, 1.0
    %v224 = vadd.f32 %v220, 1.0
    %v225 = vmul.f32 %v193, %v221
    %v226 = vmul.f32 %v194, %v222
    %v227 = vmul.f32 %v195, %v223
    %v228 = vmul.f32 %v196, %v224
    %v229 = vld [vmem:[#allocation3] sm:$0xff]
    %v230 = vld [vmem:[#allocation3 + $0x8] sm:$0xff]
    %v231 = vld [vmem:[#allocation3 + $0x10] sm:$0xff]
    %v232 = vld [vmem:[#allocation3 + $0x18] sm:$0xff]
    %v233 = vld [vmem:[%s4] sm:$0x1]
    %v235 = vlaneseq
    %v236 = vshrl.u32 %v235, 7
    %v237 = vsub.s32 0, %v236
    %v238 = vrot.slane %v233, %v237
    %v240 = vadd.f32 %v229, %v238
    %v241 = vadd.f32 %v230, %v238
    %v242 = vadd.f32 %v231, %v238
    %v243 = vadd.f32 %v232, %v238
    %v244 = vmul.f32 %v240, 0.5
    %v245 = vmul.f32 %v241, 0.5
    %v246 = vmul.f32 %v242, 0.5
    %v247 = vmul.f32 %v243, 0.5
    %v248 = vmul.f32 %v240, 0.044715
    %v249 = vmul.f32 %v241, 0.044715
    %v250 = vmul.f32 %v242, 0.044715
    %v251 = vmul.f32 %v243, 0.044715
    %v252 = vmul.f32 %v248, %v240
    %v253 = vmul.f32 %v249, %v241
    %v254 = vmul.f32 %v250, %v242
    %v255 = vmul.f32 %v251, %v243
    %v256 = vmul.f32 %v252, %v240
    %v257 = vmul.f32 %v253, %v241
    %v258 = vmul.f32 %v254, %v242
    %v259 = vmul.f32 %v255, %v243
    %v260 = vadd.f32 %v240, %v256
    %v261 = vadd.f32 %v241, %v257
    %v262 = vadd.f32 %v242, %v258
    %v263 = vadd.f32 %v243, %v259
    %v264 = vmul.f32 %v260, 0.7978846
    %v265 = vmul.f32 %v261, 0.7978846
    %v266 = vmul.f32 %v262, 0.7978846
    %v267 = vmul.f32 %v263, 0.7978846
    %v268 = vtanh.pop %v264
    %v269 = vtanh.pop %v265
    %v270 = vtanh.pop %v266
    %v271 = vtanh.pop %v267
    %v272 = vadd.f32 %v268, 1.0
    %v273 = vadd.f32 %v269, 1.0
    %v274 = vadd.f32 %v270, 1.0
    %v275 = vadd.f32 %v271, 1.0
    %v276 = vmul.f32 %v244, %v272
    %v277 = vmul.f32 %v245, %v273
    %v278 = vmul.f32 %v246, %v274
    %v279 = vmul.f32 %v247, %v275
    %v280 = vadd.f32 %v225, %v276
    %v281 = vadd.f32 %v226, %v277
    %v282 = vadd.f32 %v227, %v278
    %v283 = vadd.f32 %v228, %v279
    %284 = vst.msk [vmem:[%s5] sm:$0xff] %vm47, %v280
    %285 = vst.msk [vmem:[%s5 + $0x8] sm:$0xff] %vm47, %v281
    %286 = vst.msk [vmem:[%s5 + $0x10] sm:$0xff] %vm47, %v282
    %287 = vst.msk [vmem:[%s5 + $0x18] sm:$0xff] %vm47, %v283
  $region29: #{snnmlp_forward.34} parent=0 // pred_fallthru
    _
  // Predicated region
  $region30: #{snnmlp_forward.34} parent=0 // pred_check
    _
  $region31: #{snnmlp_forward.34} parent=0 // pred_check_branch
    %289 = sbr.rel (0) target = $region33
  $region32: #{snnmlp_forward.34} parent=0 // pred_region
    _
  $region33: #{snnmlp_forward.34} parent=0 // pred_fallthru
    _
  // Predicated region
  $region34: #{snnmlp_forward.34} parent=0 // pred_check
    _
  $region35: #{snnmlp_forward.34} parent=0 // pred_check_branch
    %291 = sbr.rel (0) target = $region37
  $region36: #{snnmlp_forward.34} parent=0 // pred_region
    _
  $region37: #{snnmlp_forward.34} parent=0 // pred_fallthru
    _

// kernel: snnmlp_forward.39
$region0: #{snnmlp_forward.39}
  #allocation0 [shape = 'u32[]', space=smem, size = 0x4, offset = 0x4, fixed_abs, tag = 'smem constant byte address 0x4 - core index']
  #allocation1 [shape = 'u32[144,128]{1,0:T(1,128)}', space=vmem, size = 0x12000, scoped, tag = 'internal scratch']
  #allocation2 [shape = 'f32[32,16]{1,0:T(8,128)}', space=vmem, size = 0x4000, scoped, tag = 'scratch operand']
  %s0 = inlined_call_operand.vmem [shape: f32[32,32], index: 0, kind: input, shape index: {}]
  %s1 = inlined_call_operand.vmem [shape: f32[32,16], index: 1, kind: input, shape index: {}]
  %s2 = inlined_call_operand.vmem [shape: f32[1,16], index: 2, kind: input, shape index: {}]
  %s3 = inlined_call_operand.vmem [shape: f32[32,16], index: 3, kind: input, shape index: {}]
  %s4 = inlined_call_operand.vmem [shape: f32[32,16], index: 4, kind: output, shape index: {}]
  %s5 = sld [smem:[#allocation0]]
  $region34: #{snnmlp_forward.39} parent=0
    _
  %s7 = ssub.s32 1, %s5
  %s8 = scalar_select 0, %s7, %s5
  // Predicated region
  $region2: #{snnmlp_forward.39} parent=0 // pred_check
    _
  $region3: #{snnmlp_forward.39} parent=0 // pred_check_branch
    %10 = sbr.rel (0) target = $region5
  $region4: #{snnmlp_forward.39} parent=0 // pred_region
    _
  $region5: #{snnmlp_forward.39} parent=0 // pred_fallthru
    _
  // Predicated region
  $region6: #{snnmlp_forward.39} parent=0 // pred_check
    _
  $region7: #{snnmlp_forward.39} parent=0 // pred_check_branch
    %12 = sbr.rel (0) target = $region9
  $region8: #{snnmlp_forward.39} parent=0 // pred_region
    _
  $region9: #{snnmlp_forward.39} parent=0 // pred_fallthru
    _
  // Predicated region
  $region10: #{snnmlp_forward.39} parent=0 // pred_check
    _
  $region11: #{snnmlp_forward.39} parent=0 // pred_check_branch
    %14 = sbr.rel (0) target = $region13
  $region12: #{snnmlp_forward.39} parent=0 // pred_region
    _
  $region13: #{snnmlp_forward.39} parent=0 // pred_fallthru
    _
  // Predicated region
  $region14: #{snnmlp_forward.39} parent=0 // pred_check
    _
  $region15: #{snnmlp_forward.39} parent=0 // pred_check_branch
    %16 = sbr.rel (0) target = $region17
  $region16: #{snnmlp_forward.39} parent=0 // pred_region
    _
  $region17: #{snnmlp_forward.39} parent=0 // pred_fallthru
    _
  %p18 = scmp.eq.s32.totalorder 0, 0
  // Predicated region
  $region18: #{snnmlp_forward.39} parent=0 // pred_check
    %p19 = pneg %p18
  $region19: #{snnmlp_forward.39} parent=0 // pred_check_branch
    %21 = sbr.rel (%p19) target = $region21
  $region20: #{snnmlp_forward.39} parent=0 // pred_region
    %vm22 = vcmask 130048
    %23 = vst.msk [vmem:[#allocation2] sm:$0xff] %vm22, 0.0
    %24 = vst.msk [vmem:[#allocation2 + $0x8] sm:$0xff] %vm22, 0.0
    %25 = vst.msk [vmem:[#allocation2 + $0x10] sm:$0xff] %vm22, 0.0
    %26 = vst.msk [vmem:[#allocation2 + $0x18] sm:$0xff] %vm22, 0.0
  $region21: #{snnmlp_forward.39} parent=0 // pred_fallthru
    _
  %v27 = vld [vmem:[#allocation2] sm:$0xff]
  %v28 = vld [vmem:[#allocation2 + $0x8] sm:$0xff]
  %v29 = vld [vmem:[#allocation2 + $0x10] sm:$0xff]
  %v30 = vld [vmem:[#allocation2 + $0x18] sm:$0xff]
  %v31 = vld [vmem:[%s0] sm:$0xff]
  %v32 = vld [vmem:[%s0 + $0x8] sm:$0xff]
  %v33 = vld [vmem:[%s0 + $0x10] sm:$0xff]
  %v34 = vld [vmem:[%s0 + $0x18] sm:$0xff]
  %v35 = vpack.c.bf16 %v32, %v31
  %v36 = vpack.c.bf16 %v34, %v33
  %v37 = vld [vmem:[%s1] sm:$0xff]
  %v38 = vld [vmem:[%s1 + $0x8] sm:$0xff]
  %v39 = vld [vmem:[%s1 + $0x10] sm:$0xff]
  %v40 = vld [vmem:[%s1 + $0x18] sm:$0xff]
  %v41 = vpack.c.bf16 %v38, %v37
  %v42 = vpack.c.bf16 %v40, %v39
  %vm43 = vcmask 261120
  %v45 = vsel %vm43, %v35, 0
  %v48 = vsel %vm43, %v36, 0
  %50 = vmatprep.subr.bf16.mxu0 0
  %51 = vmatpush1.bf16.msra.mxu0 0
  %52 = vmatprep.subr.bf16.mxu0 0
  %53 = vmatpush1.bf16.msra.mxu0 0
  %54 = vmatprep.subr.bf16.mxu0 0
  %55 = vmatpush1.bf16.msra.mxu0 0
  %56 = vmatprep.subr.bf16.mxu0 0
  %57 = vmatpush1.bf16.msra.mxu0 0
  %58 = vmatprep.subr.bf16.mxu0 0
  %59 = vmatpush1.bf16.msra.mxu0 0
  %60 = vmatprep.subr.bf16.mxu0 0
  %61 = vmatpush1.bf16.msra.mxu0 0
  %62 = vmatprep.subr.bf16.mxu0 0
  %63 = vmatpush1.bf16.msra.mxu0 %v42
  %64 = vmatprep.subr.bf16.mxu0 0
  %65 = vmatpush1.bf16.msra.mxu0 %v41
  %66 = vmatprep.subr.bf16.mxu0 0
  %67 = vmatpush2.bf16.msra.mxu0 0
  %68 = vmatprep.subr.bf16.mxu0 0
  %69 = vmatpush2.bf16.msra.mxu0 0
  %70 = vmatprep.subr.bf16.mxu0 0
  %71 = vmatpush2.bf16.msra.mxu0 0
  %72 = vmatprep.subr.bf16.mxu0 0
  %73 = vmatpush2.bf16.msra.mxu0 0
  %74 = vmatprep.subr.bf16.mxu0 0
  %75 = vmatpush2.bf16.msra.mxu0 0
  %76 = vmatprep.subr.bf16.mxu0 0
  %77 = vmatpush2.bf16.msra.mxu0 0
  %78 = vmatprep.subr.bf16.mxu0 0
  %79 = vmatpush2.bf16.msra.mxu0 0
  %80 = vmatprep.subr.bf16.mxu0 0
  %81 = vmatpush2.bf16.msra.mxu0 0
  %82 = vmatprep.mubr.bf16.mxu0 0
  %83 = vmatmul.mubr.bf16.gmra.mxu0 %v45
  %v84 = vpop.f32.mrf.mxu0
  %v85 = vadd.f32 0.0, %v84
  %v86 = vpop.f32.mrf.mxu0
  %v87 = vpop.f32.mrf.mxu0
  %v88 = vadd.f32 0.0, %v87
  %v89 = vpop.f32.mrf.mxu0
  %90 = vmatprep.mubr.bf16.mxu0 0
  %91 = vmatmul.mubr.bf16.gmra.mxu0 %v48
  %v92 = vpop.f32.mrf.mxu0
  %v93 = vadd.f32 0.0, %v92
  %v94 = vpop.f32.mrf.mxu0
  %v95 = vpop.f32.mrf.mxu0
  %v96 = vadd.f32 0.0, %v95
  %v97 = vpop.f32.mrf.mxu0
  %98 = vdwg.mxu0
  %v99 = vadd.f32 %v27, %v85
  %v100 = vadd.f32 %v28, %v88
  %v101 = vadd.f32 %v29, %v93
  %v102 = vadd.f32 %v30, %v96
  %vm103 = vcmask 130048
  %104 = vst.msk [vmem:[#allocation2] sm:$0xff] %vm103, %v99
  %105 = vst.msk [vmem:[#allocation2 + $0x8] sm:$0xff] %vm103, %v100
  %106 = vst.msk [vmem:[#allocation2 + $0x10] sm:$0xff] %vm103, %v101
  %107 = vst.msk [vmem:[#allocation2 + $0x18] sm:$0xff] %vm103, %v102
  // Predicated region
  $region22: #{snnmlp_forward.39} parent=0 // pred_check
    %p108 = pneg %p18
  $region23: #{snnmlp_forward.39} parent=0 // pred_check_branch
    %110 = sbr.rel (%p108) target = $region25
  $region24: #{snnmlp_forward.39} parent=0 // pred_region
    %v111 = vld [vmem:[#allocation2] sm:$0xff]
    %v112 = vld [vmem:[#allocation2 + $0x8] sm:$0xff]
    %v113 = vld [vmem:[#allocation2 + $0x10] sm:$0xff]
    %v114 = vld [vmem:[#allocation2 + $0x18] sm:$0xff]
    %v115 = vld [vmem:[%s2] sm:$0x1]
    %v117 = vlaneseq
    %v118 = vshrl.u32 %v117, 7
    %v119 = vsub.s32 0, %v118
    %v120 = vrot.slane %v115, %v119
    %v122 = vadd.f32 %v111, %v120
    %v123 = vadd.f32 %v112, %v120
    %v124 = vadd.f32 %v113, %v120
    %v125 = vadd.f32 %v114, %v120
    %v126 = vld [vmem:[%s3] sm:$0xff]
    %v127 = vld [vmem:[%s3 + $0x8] sm:$0xff]
    %v128 = vld [vmem:[%s3 + $0x10] sm:$0xff]
    %v129 = vld [vmem:[%s3 + $0x18] sm:$0xff]
    %v130 = vadd.f32 %v122, %v126
    %v131 = vadd.f32 %v123, %v127
    %v132 = vadd.f32 %v124, %v128
    %v133 = vadd.f32 %v125, %v129
    %134 = vst.msk [vmem:[%s4] sm:$0xff] %vm103, %v130
    %135 = vst.msk [vmem:[%s4 + $0x8] sm:$0xff] %vm103, %v131
    %136 = vst.msk [vmem:[%s4 + $0x10] sm:$0xff] %vm103, %v132
    %137 = vst.msk [vmem:[%s4 + $0x18] sm:$0xff] %vm103, %v133
  $region25: #{snnmlp_forward.39} parent=0 // pred_fallthru
    _
  // Predicated region
  $region26: #{snnmlp_forward.39} parent=0 // pred_check
    _
  $region27: #{snnmlp_forward.39} parent=0 // pred_check_branch
    %139 = sbr.rel (0) target = $region29
  $region28: #{snnmlp_forward.39} parent=0 // pred_region
    _
  $region29: #{snnmlp_forward.39} parent=0 // pred_fallthru
    _
  // Predicated region
  $region30: #{snnmlp_forward.39} parent=0 // pred_check
    _
  $region31: #{snnmlp_forward.39} parent=0 // pred_check_branch
    %141 = sbr.rel (0) target = $region33
  $region32: #{snnmlp_forward.39} parent=0 // pred_region
    _
  $region33: #{snnmlp_forward.39} parent=0 // pred_fallthru
    _

// kernel: snnmlp_forward.40
$region0: #{snnmlp_forward.40}
  #allocation0 [shape = 'u32[]', space=smem, size = 0x4, offset = 0x4, fixed_abs, tag = 'smem constant byte address 0x4 - core index']
  #allocation1 [shape = 'u32[144,128]{1,0:T(1,128)}', space=vmem, size = 0x12000, scoped, tag = 'internal scratch']
  %s0 = inlined_call_operand.vmem [shape: f32[2,4,64], index: 0, kind: input, shape index: {}]
  %s1 = inlined_call_operand.vmem [shape: f32[1,64], index: 1, kind: input, shape index: {}]
  %s2 = inlined_call_operand.vmem [shape: f32[1,64], index: 2, kind: input, shape index: {}]
  %s3 = inlined_call_operand.vmem [shape: f32[2,4,64], index: 3, kind: output, shape index: {}]
  %s4 = sld [smem:[#allocation0]]
  $region45: #{snnmlp_forward.40} parent=0
    _
  %s6 = ssub.s32 1, %s4
  %s7 = scalar_select 0, %s6, %s4
  loop: start=0, step=1, limit=4
  $region2: #{snnmlp_forward.40} parent=0 // loop_pre_header
    _
  $region3: #{snnmlp_forward.40} parent=0 // loop_header
    %s9 = sphi 0, %s13
    %p10 = scmp.ge.s32.totalorder %s9, 4
    %s19 = sphi 0, %s21
    %s22 = sphi 0, %s19
    %s23 = sphi 0, %s22
    %s39 = sphi 0, %s23
    %s43 = sphi 0, %s43
    %s45 = sphi 0, %s43
    %s46 = sphi 0, %s45
    %s60 = sphi 0, %s46
    %s64 = sphi 0, %s64
    %s66 = sphi 0, %s64
    %s67 = sphi 0, %s66
    %s81 = sphi 0, %s67
    %s87 = sphi 0, %s89
    %s90 = sphi 0, %s87
    %s91 = sphi 0, %s90
    %s107 = sphi 0, %s91
  $region4: #{snnmlp_forward.40} parent=0 // loop_header_branch
    %12 = sbr.rel (%p10) target = $region8
  $region5: #{snnmlp_forward.40} parent=0 // loop_body
    %s14 = ssub.s32 %s9, 1
    %s15 = ssub.s32 %s9, 2
    %s16 = sadd.s32 %s9, 1
    %s17 = ssub.s32 %s9, %s16
    %p18 = scmp.eq.s32.totalorder %s17, 0
    %s20 = sadd.s32 %s19, 1
    %s21 = scalar_select %p18, %s19, %s20
    %p24 = pneg %p18
    %p25 = scmp.eq.s32.totalorder %s9, 1
    %p26 = por %p24, %p25
    %p27 = scmp.ne.s32.totalorder %s19, %s22
    %p28 = scmp.eq.s32.totalorder %s9, 0
    %p29 = por %p27, %p28
    %p30 = scmp.ne.s32.totalorder %s19, %s22
    %p31 = scmp.eq.s32.totalorder %s14, 1
    %p32 = por %p30, %p31
    %p33 = scmp.ne.s32.totalorder %s22, %s23
    %p34 = scmp.eq.s32.totalorder %s14, 0
    %p35 = por %p33, %p34
    %p36 = scmp.ne.s32.totalorder %s22, %s23
    %p37 = scmp.eq.s32.totalorder %s15, 1
    %p38 = por %p36, %p37
    %p40 = scmp.ne.s32.totalorder %s23, %s39
    %p41 = scmp.eq.s32.totalorder %s15, 0
    %p42 = por %p40, %p41
    %s44 = sadd.s32 %s43, 1
    %p47 = scmp.eq.s32.totalorder %s9, 1
    %p48 = scmp.ne.s32.totalorder %s43, %s45
    %p49 = scmp.eq.s32.totalorder %s9, 0
    %p50 = por %p48, %p49
    %p51 = scmp.ne.s32.totalorder %s43, %s45
    %p52 = scmp.eq.s32.totalorder %s14, 1
    %p53 = por %p51, %p52
    %p54 = scmp.ne.s32.totalorder %s45, %s46
    %p55 = scmp.eq.s32.totalorder %s14, 0
    %p56 = por %p54, %p55
    %p57 = scmp.ne.s32.totalorder %s45, %s46
    %p58 = scmp.eq.s32.totalorder %s15, 1
    %p59 = por %p57, %p58
    %p61 = scmp.ne.s32.totalorder %s46, %s60
    %p62 = scmp.eq.s32.totalorder %s15, 0
    %p63 = por %p61, %p62
    %s65 = sadd.s32 %s64, 1
    %p68 = scmp.eq.s32.totalorder %s9, 1
    %p69 = scmp.ne.s32.totalorder %s64, %s66
    %p70 = scmp.eq.s32.totalorder %s9, 0
    %p71 = por %p69, %p70
    %p72 = scmp.ne.s32.totalorder %s64, %s66
    %p73 = scmp.eq.s32.totalorder %s14, 1
    %p74 = por %p72, %p73
    %p75 = scmp.ne.s32.totalorder %s66, %s67
    %p76 = scmp.eq.s32.totalorder %s14, 0
    %p77 = por %p75, %p76
    %p78 = scmp.ne.s32.totalorder %s66, %s67
    %p79 = scmp.eq.s32.totalorder %s15, 1
    %p80 = por %p78, %p79
    %p82 = scmp.ne.s32.totalorder %s67, %s81
    %p83 = scmp.eq.s32.totalorder %s15, 0
    %p84 = por %p82, %p83
    %s85 = ssub.s32 %s9, %s16
    %p86 = scmp.eq.s32.totalorder %s85, 0
    %s88 = sadd.s32 %s87, 1
    %s89 = scalar_select %p86, %s87, %s88
    %p92 = pneg %p86
    %p93 = scmp.eq.s32.totalorder %s9, 1
    %p94 = por %p92, %p93
    %p95 = scmp.ne.s32.totalorder %s87, %s90
    %p96 = scmp.eq.s32.totalorder %s9, 0
    %p97 = por %p95, %p96
    %p98 = scmp.ne.s32.totalorder %s87, %s90
    %p99 = scmp.eq.s32.totalorder %s14, 1
    %p100 = por %p98, %p99
    %p101 = scmp.ne.s32.totalorder %s90, %s91
    %p102 = scmp.eq.s32.totalorder %s14, 0
    %p103 = por %p101, %p102
    %p104 = scmp.ne.s32.totalorder %s90, %s91
    %p105 = scmp.eq.s32.totalorder %s15, 1
    %p106 = por %p104, %p105
    %p108 = scmp.ne.s32.totalorder %s91, %s107
    %p109 = scmp.eq.s32.totalorder %s15, 0
    %p110 = por %p108, %p109
    %p111 = scmp.le.s32.totalorder 1, %s9
    %p112 = scmp.lt.s32.totalorder %s9, 3
    %p113 = pnand %p111, %p112
    %p114 = pneg %p113
    // Predicated region
    $region9: #{snnmlp_forward.40} parent=5 // pred_check
      _
    $region10: #{snnmlp_forward.40} parent=5 // pred_check_branch
      %116 = sbr.rel (%p113) target = $region12
    $region11: #{snnmlp_forward.40} parent=5 // pred_region
      %s117 = ssub.s32 %s9, 1
      // Predicated region
      $region13: #{snnmlp_forward.40} parent=11 // pred_check
        %p118 = pneg %p56
      $region14: #{snnmlp_forward.40} parent=11 // pred_check_branch
        %120 = sbr.rel (%p118) target = $region16
      $region15: #{snnmlp_forward.40} parent=11 // pred_region
        _
      $region16: #{snnmlp_forward.40} parent=11 // pred_fallthru
        _
      // Predicated region
      $region17: #{snnmlp_forward.40} parent=11 // pred_check
        %p121 = pneg %p77
      $region18: #{snnmlp_forward.40} parent=11 // pred_check_branch
        %123 = sbr.rel (%p121) target = $region20
      $region19: #{snnmlp_forward.40} parent=11 // pred_region
        _
      $region20: #{snnmlp_forward.40} parent=11 // pred_fallthru
        _
    $region12: #{snnmlp_forward.40} parent=5 // pred_fallthru
      _
    %p124 = scmp.lt.s32.totalorder %s9, 2
    // Predicated region
    $region21: #{snnmlp_forward.40} parent=5 // pred_check
      %p125 = pneg %p124
    $region22: #{snnmlp_forward.40} parent=5 // pred_check_branch
      %127 = sbr.rel (%p125) target = $region24
    $region23: #{snnmlp_forward.40} parent=5 // pred_region
      // Predicated region
      $region25: #{snnmlp_forward.40} parent=23 // pred_check
        %p128 = pneg %p29
      $region26: #{snnmlp_forward.40} parent=23 // pred_check_branch
        %130 = sbr.rel (%p128) target = $region28
      $region27: #{snnmlp_forward.40} parent=23 // pred_region
        %p131 = scmp.lt.s32.totalorder %s9, 1
        %s132 = scalar_select %p131, %s9, 1
        %s133 = smul.addr %s132, 4
        %s134 = scalar_lea.vmem %s0, %s133
      $region28: #{snnmlp_forward.40} parent=23 // pred_fallthru
        _
    $region24: #{snnmlp_forward.40} parent=5 // pred_fallthru
      _
    %p135 = scmp.le.s32.totalorder 1, %s9
    %p136 = scmp.lt.s32.totalorder %s9, 3
    %p137 = pnand %p135, %p136
    %p138 = pneg %p137
    // Predicated region
    $region29: #{snnmlp_forward.40} parent=5 // pred_check
      _
    $region30: #{snnmlp_forward.40} parent=5 // pred_check_branch
      %140 = sbr.rel (%p137) target = $region32
    $region31: #{snnmlp_forward.40} parent=5 // pred_region
      %s141 = ssub.s32 %s9, 1
      %p142 = scmp.lt.s32.totalorder %s14, 1
      %s143 = scalar_select %p142, %s14, 1
      %s144 = smul.addr %s143, 4
      %s145 = scalar_lea.vmem %s0, %s144
      %p146 = pneg %p35
      %p147 = pneg %p32
      %p148 = pneg %p56
      %p149 = pneg %p53
      %p150 = pneg %p77
      %p151 = pneg %p74
      %p152 = pneg %p103
      %p153 = pneg %p100
      %p154 = scmp.lt.s32.totalorder %s14, 1
      %s155 = scalar_select %p154, %s14, 1
      %s156 = smul.addr %s155, 4
      %s157 = scalar_lea.vmem %s3, %s156
      %p158 = scmp.lt.s32.totalorder %s14, 1
      %s159 = scalar_select %p158, %s14, 1
      %s160 = smul.addr %s159, 4
      %s161 = scalar_lea.vmem %s0, %s160
      %p162 = scmp.lt.s32.totalorder %s14, 1
      %s163 = scalar_select %p162, %s14, 1
      %s164 = smul.addr %s163, 4
      %s165 = scalar_lea.vmem %s3, %s164
      %v166 = vld [vmem:[%s161] sm:$0xf]
      %vm167 = vcmask 519168
      %v168 = vsel %vm167, %v166, 0.0
      %v169 = vrot.slane %v168, 4
      %v170 = vadd.f32 %v168, %v169
      %v171 = vrot.slane %v170, 2
      %v172 = vadd.f32 %v170, %v171
      %v173 = vrot.slane %v172, 1
      %v174 = vadd.f32 %v172, %v173
      %v175 = vmul.f32 %v166, %v166
      %v176 = vsel %vm167, %v175, 0.0
      %v177 = vrot.slane %v176, 4
      %v178 = vadd.f32 %v176, %v177
      %v179 = vrot.slane %v178, 2
      %v180 = vadd.f32 %v178, %v179
      %v181 = vrot.slane %v180, 1
      %v182 = vadd.f32 %v180, %v181
      %vm183 = vcmask 523264
      %v184 = vsel %vm183, %v174, 0.0
      %185 = vadd.xlane.f32.xlu0 %v184
      %v186 = vpop.xlane.xlu0 %185
      %v187 = vmul.f32 %v186, 0.00390625
      %v188 = vsel %vm183, %v182, 0.0
      %189 = vadd.xlane.f32.xlu0 %v188
      %v190 = vpop.xlane.xlu0 %189
      %v191 = vmul.f32 %v190, 0.00390625
      %v192 = vmul.f32 %v187, %v187
      %v193 = vsub.f32 %v191, %v192
      %v194 = vmax.f32 %v193, 0.0
      %v195 = vadd.f32 %v194, 1e-05
      %v196 = vrsqrt.pop %v195
      %v197 = vsub.f32 %v166, %v187
      %v198 = vmul.f32 %v197, %v196
      %v199 = vld [vmem:[%s1] sm:$0x1]
      %v201 = vlaneseq
      %v202 = vshrl.u32 %v201, 7
      %v203 = vsub.s32 0, %v202
      %v204 = vrot.slane %v199, %v203
      %v206 = vmul.f32 %v198, %v204
      %v207 = vld [vmem:[%s2] sm:$0x1]
      %v209 = vlaneseq
      %v210 = vshrl.u32 %v209, 7
      %v211 = vsub.s32 0, %v210
      %v212 = vrot.slane %v207, %v211
      %v214 = vadd.f32 %v206, %v212
      %215 = vst.msk [vmem:[%s165] sm:$0xf] %vm167, %v214
      %p216 = scmp.lt.s32.totalorder %s14, 1
      %s217 = scalar_select %p216, %s14, 1
      %s218 = smul.addr %s217, 4
      %s219 = scalar_lea.vmem %s3, %s218
      // Predicated region
      $region33: #{snnmlp_forward.40} parent=31 // pred_check
        %p220 = pneg %p100
      $region34: #{snnmlp_forward.40} parent=31 // pred_check_branch
        %222 = sbr.rel (%p220) target = $region36
      $region35: #{snnmlp_forward.40} parent=31 // pred_region
        _
      $region36: #{snnmlp_forward.40} parent=31 // pred_fallthru
        _
    $region32: #{snnmlp_forward.40} parent=5 // pred_fallthru
      _
    %p223 = scmp.le.s32.totalorder 2, %s9
    // Predicated region
    $region37: #{snnmlp_forward.40} parent=5 // pred_check
      %p224 = pneg %p223
    $region38: #{snnmlp_forward.40} parent=5 // pred_check_branch
      %226 = sbr.rel (%p224) target = $region40
    $region39: #{snnmlp_forward.40} parent=5 // pred_region
      %s227 = ssub.s32 %s9, 2
      // Predicated region
      $region41: #{snnmlp_forward.40} parent=39 // pred_check
        %p228 = pneg %p106
      $region42: #{snnmlp_forward.40} parent=39 // pred_check_branch
        %230 = sbr.rel (%p228) target = $region44
      $region43: #{snnmlp_forward.40} parent=39 // pred_region
        %p231 = scmp.lt.s32.totalorder %s15, 1
        %s232 = scalar_select %p231, %s15, 1
        %s233 = smul.addr %s232, 4
        %s234 = scalar_lea.vmem %s3, %s233
      $region44: #{snnmlp_forward.40} parent=39 // pred_fallthru
        _
    $region40: #{snnmlp_forward.40} parent=5 // pred_fallthru
      _
  $region6: #{snnmlp_forward.40} parent=0 // loop_footer
    %s13 = sadd.s32 1, %s9
  $region7: #{snnmlp_forward.40} parent=0 // loop_footer_branch
    %8 = sbr.rel target = $region3
  $region8: #{snnmlp_forward.40} parent=0 // loop_exit
    _

// kernel: snnmlp_forward.41
$region0: #{snnmlp_forward.41}
  #allocation0 [shape = 'u32[]', space=smem, size = 0x4, offset = 0x4, fixed_abs, tag = 'smem constant byte address 0x4 - core index']
  #allocation1 [shape = 'u32[144,128]{1,0:T(1,128)}', space=vmem, size = 0x12000, scoped, tag = 'internal scratch']
  #allocation2 [shape = 'f32[8,32]{1,0:T(8,128)}', space=vmem, size = 0x1000, scoped, tag = 'scratch operand']
  %s0 = inlined_call_operand.vmem [shape: f32[8,64], index: 0, kind: input, shape index: {}]
  %s1 = inlined_call_operand.vmem [shape: f32[64,32], index: 1, kind: input, shape index: {}]
  %s2 = inlined_call_operand.vmem [shape: f32[1,32], index: 2, kind: input, shape index: {}]
  %s3 = inlined_call_operand.vmem [shape: f32[8,32], index: 3, kind: output, shape index: {}]
  %s4 = sld [smem:[#allocation0]]
  $region30: #{snnmlp_forward.41} parent=0
    _
  %s6 = ssub.s32 1, %s4
  %s7 = scalar_select 0, %s6, %s4
  // Predicated region
  $region2: #{snnmlp_forward.41} parent=0 // pred_check
    _
  $region3: #{snnmlp_forward.41} parent=0 // pred_check_branch
    %9 = sbr.rel (0) target = $region5
  $region4: #{snnmlp_forward.41} parent=0 // pred_region
    _
  $region5: #{snnmlp_forward.41} parent=0 // pred_fallthru
    _
  // Predicated region
  $region6: #{snnmlp_forward.41} parent=0 // pred_check
    _
  $region7: #{snnmlp_forward.41} parent=0 // pred_check_branch
    %11 = sbr.rel (0) target = $region9
  $region8: #{snnmlp_forward.41} parent=0 // pred_region
    _
  $region9: #{snnmlp_forward.41} parent=0 // pred_fallthru
    _
  // Predicated region
  $region10: #{snnmlp_forward.41} parent=0 // pred_check
    _
  $region11: #{snnmlp_forward.41} parent=0 // pred_check_branch
    %13 = sbr.rel (0) target = $region13
  $region12: #{snnmlp_forward.41} parent=0 // pred_region
    _
  $region13: #{snnmlp_forward.41} parent=0 // pred_fallthru
    _
  %p15 = scmp.eq.s32.totalorder 0, 0
  // Predicated region
  $region14: #{snnmlp_forward.41} parent=0 // pred_check
    %p16 = pneg %p15
  $region15: #{snnmlp_forward.41} parent=0 // pred_check_branch
    %18 = sbr.rel (%p16) target = $region17
  $region16: #{snnmlp_forward.41} parent=0 // pred_region
    %vm19 = vcmask 261120
    %20 = vst.msk [vmem:[#allocation2] sm:$0xff] %vm19, 0.0
  $region17: #{snnmlp_forward.41} parent=0 // pred_fallthru
    _
  %v21 = vld [vmem:[#allocation2] sm:$0xff]
  %v22 = vld [vmem:[%s0] sm:$0xff]
  %v23 = vpack.c.bf16 %v22, %v22
  %v24 = vld [vmem:[%s1] sm:$0xff]
  %v25 = vld [vmem:[%s1 + $0x8] sm:$0xff]
  %v26 = vld [vmem:[%s1 + $0x10] sm:$0xff]
  %v27 = vld [vmem:[%s1 + $0x18] sm:$0xff]
  %v28 = vld [vmem:[%s1 + $0x20] sm:$0xff]
  %v29 = vld [vmem:[%s1 + $0x28] sm:$0xff]
  %v30 = vld [vmem:[%s1 + $0x30] sm:$0xff]
  %v31 = vld [vmem:[%s1 + $0x38] sm:$0xff]
  %v32 = vpack.c.bf16 %v25, %v24
  %v33 = vpack.c.bf16 %v27, %v26
  %v34 = vpack.c.bf16 %v29, %v28
  %v35 = vpack.c.bf16 %v31, %v30
  %vm36 = vcmask 523264
  %v38 = vsel %vm36, %v23, 0
  %40 = vmatprep.subr.bf16.mxu0 0
  %41 = vmatpush1.bf16.msra.mxu0 0
  %42 = vmatprep.subr.bf16.mxu0 0
  %43 = vmatpush1.bf16.msra.mxu0 0
  %44 = vmatprep.subr.bf16.mxu0 0
  %45 = vmatpush1.bf16.msra.mxu0 0
  %46 = vmatprep.subr.bf16.mxu0 0
  %47 = vmatpush1.bf16.msra.mxu0 0
  %48 = vmatprep.subr.bf16.mxu0 0
  %49 = vmatpush1.bf16.msra.mxu0 %v35
  %50 = vmatprep.subr.bf16.mxu0 0
  %51 = vmatpush1.bf16.msra.mxu0 %v34
  %52 = vmatprep.subr.bf16.mxu0 0
  %53 = vmatpush1.bf16.msra.mxu0 %v33
  %54 = vmatprep.subr.bf16.mxu0 0
  %55 = vmatpush1.bf16.msra.mxu0 %v32
  %56 = vmatprep.subr.bf16.mxu0 0
  %57 = vmatpush2.bf16.msra.mxu0 0
  %58 = vmatprep.subr.bf16.mxu0 0
  %59 = vmatpush2.bf16.msra.mxu0 0
  %60 = vmatprep.subr.bf16.mxu0 0
  %61 = vmatpush2.bf16.msra.mxu0 0
  %62 = vmatprep.subr.bf16.mxu0 0
  %63 = vmatpush2.bf16.msra.mxu0 0
  %64 = vmatprep.subr.bf16.mxu0 0
  %65 = vmatpush2.bf16.msra.mxu0 0
  %66 = vmatprep.subr.bf16.mxu0 0
  %67 = vmatpush2.bf16.msra.mxu0 0
  %68 = vmatprep.subr.bf16.mxu0 0
  %69 = vmatpush2.bf16.msra.mxu0 0
  %70 = vmatprep.subr.bf16.mxu0 0
  %71 = vmatpush2.bf16.msra.mxu0 0
  %72 = vmatprep.mubr.bf16.mxu0 0
  %73 = vmatmul.mubr.bf16.gmra.mxu0 %v38
  %v74 = vpop.f32.mrf.mxu0
  %v75 = vadd.f32 0.0, %v74
  %v76 = vpop.f32.mrf.mxu0
  %v77 = vpop.f32.mrf.mxu0
  %v78 = vpop.f32.mrf.mxu0
  %79 = vdwg.mxu0
  %v80 = vadd.f32 %v21, %v75
  %vm81 = vcmask 261120
  %82 = vst.msk [vmem:[#allocation2] sm:$0xff] %vm81, %v80
  // Predicated region
  $region18: #{snnmlp_forward.41} parent=0 // pred_check
    %p83 = pneg %p15
  $region19: #{snnmlp_forward.41} parent=0 // pred_check_branch
    %85 = sbr.rel (%p83) target = $region21
  $region20: #{snnmlp_forward.41} parent=0 // pred_region
    %v86 = vld [vmem:[#allocation2] sm:$0xff]
    %v87 = vld [vmem:[%s2] sm:$0x1]
    %v89 = vlaneseq
    %v90 = vshrl.u32 %v89, 7
    %v91 = vsub.s32 0, %v90
    %v92 = vrot.slane %v87, %v91
    %v94 = vadd.f32 %v86, %v92
    %95 = vst.msk [vmem:[%s3] sm:$0xff] %vm81, %v94
  $region21: #{snnmlp_forward.41} parent=0 // pred_fallthru
    _
  // Predicated region
  $region22: #{snnmlp_forward.41} parent=0 // pred_check
    _
  $region23: #{snnmlp_forward.41} parent=0 // pred_check_branch
    %97 = sbr.rel (0) target = $region25
  $region24: #{snnmlp_forward.41} parent=0 // pred_region
    _
  $region25: #{snnmlp_forward.41} parent=0 // pred_fallthru
    _
  // Predicated region
  $region26: #{snnmlp_forward.41} parent=0 // pred_check
    _
  $region27: #{snnmlp_forward.41} parent=0 // pred_check_branch
    %99 = sbr.rel (0) target = $region29
  $region28: #{snnmlp_forward.41} parent=0 // pred_region
    _
  $region29: #{snnmlp_forward.41} parent=0 // pred_fallthru
    _

// kernel: snnmlp_forward.42
$region0: #{snnmlp_forward.42}
  #allocation0 [shape = 'u32[]', space=smem, size = 0x4, offset = 0x4, fixed_abs, tag = 'smem constant byte address 0x4 - core index']
  #allocation1 [shape = 'u32[144,128]{1,0:T(1,128)}', space=vmem, size = 0x12000, scoped, tag = 'internal scratch']
  %s0 = inlined_call_operand.vmem [shape: f32[2,4,32], index: 0, kind: input, shape index: {}]
  %s1 = inlined_call_operand.vmem [shape: f32[1,32], index: 1, kind: input, shape index: {}]
  %s2 = inlined_call_operand.vmem [shape: f32[1,32], index: 2, kind: input, shape index: {}]
  %s3 = inlined_call_operand.vmem [shape: f32[2,4,32], index: 3, kind: output, shape index: {}]
  %s4 = sld [smem:[#allocation0]]
  $region45: #{snnmlp_forward.42} parent=0
    _
  %s6 = ssub.s32 1, %s4
  %s7 = scalar_select 0, %s6, %s4
  loop: start=0, step=1, limit=4
  $region2: #{snnmlp_forward.42} parent=0 // loop_pre_header
    _
  $region3: #{snnmlp_forward.42} parent=0 // loop_header
    %s9 = sphi 0, %s13
    %p10 = scmp.ge.s32.totalorder %s9, 4
    %s19 = sphi 0, %s21
    %s22 = sphi 0, %s19
    %s23 = sphi 0, %s22
    %s39 = sphi 0, %s23
    %s43 = sphi 0, %s43
    %s45 = sphi 0, %s43
    %s46 = sphi 0, %s45
    %s60 = sphi 0, %s46
    %s64 = sphi 0, %s64
    %s66 = sphi 0, %s64
    %s67 = sphi 0, %s66
    %s81 = sphi 0, %s67
    %s87 = sphi 0, %s89
    %s90 = sphi 0, %s87
    %s91 = sphi 0, %s90
    %s107 = sphi 0, %s91
  $region4: #{snnmlp_forward.42} parent=0 // loop_header_branch
    %12 = sbr.rel (%p10) target = $region8
  $region5: #{snnmlp_forward.42} parent=0 // loop_body
    %s14 = ssub.s32 %s9, 1
    %s15 = ssub.s32 %s9, 2
    %s16 = sadd.s32 %s9, 1
    %s17 = ssub.s32 %s9, %s16
    %p18 = scmp.eq.s32.totalorder %s17, 0
    %s20 = sadd.s32 %s19, 1
    %s21 = scalar_select %p18, %s19, %s20
    %p24 = pneg %p18
    %p25 = scmp.eq.s32.totalorder %s9, 1
    %p26 = por %p24, %p25
    %p27 = scmp.ne.s32.totalorder %s19, %s22
    %p28 = scmp.eq.s32.totalorder %s9, 0
    %p29 = por %p27, %p28
    %p30 = scmp.ne.s32.totalorder %s19, %s22
    %p31 = scmp.eq.s32.totalorder %s14, 1
    %p32 = por %p30, %p31
    %p33 = scmp.ne.s32.totalorder %s22, %s23
    %p34 = scmp.eq.s32.totalorder %s14, 0
    %p35 = por %p33, %p34
    %p36 = scmp.ne.s32.totalorder %s22, %s23
    %p37 = scmp.eq.s32.totalorder %s15, 1
    %p38 = por %p36, %p37
    %p40 = scmp.ne.s32.totalorder %s23, %s39
    %p41 = scmp.eq.s32.totalorder %s15, 0
    %p42 = por %p40, %p41
    %s44 = sadd.s32 %s43, 1
    %p47 = scmp.eq.s32.totalorder %s9, 1
    %p48 = scmp.ne.s32.totalorder %s43, %s45
    %p49 = scmp.eq.s32.totalorder %s9, 0
    %p50 = por %p48, %p49
    %p51 = scmp.ne.s32.totalorder %s43, %s45
    %p52 = scmp.eq.s32.totalorder %s14, 1
    %p53 = por %p51, %p52
    %p54 = scmp.ne.s32.totalorder %s45, %s46
    %p55 = scmp.eq.s32.totalorder %s14, 0
    %p56 = por %p54, %p55
    %p57 = scmp.ne.s32.totalorder %s45, %s46
    %p58 = scmp.eq.s32.totalorder %s15, 1
    %p59 = por %p57, %p58
    %p61 = scmp.ne.s32.totalorder %s46, %s60
    %p62 = scmp.eq.s32.totalorder %s15, 0
    %p63 = por %p61, %p62
    %s65 = sadd.s32 %s64, 1
    %p68 = scmp.eq.s32.totalorder %s9, 1
    %p69 = scmp.ne.s32.totalorder %s64, %s66
    %p70 = scmp.eq.s32.totalorder %s9, 0
    %p71 = por %p69, %p70
    %p72 = scmp.ne.s32.totalorder %s64, %s66
    %p73 = scmp.eq.s32.totalorder %s14, 1
    %p74 = por %p72, %p73
    %p75 = scmp.ne.s32.totalorder %s66, %s67
    %p76 = scmp.eq.s32.totalorder %s14, 0
    %p77 = por %p75, %p76
    %p78 = scmp.ne.s32.totalorder %s66, %s67
    %p79 = scmp.eq.s32.totalorder %s15, 1
    %p80 = por %p78, %p79
    %p82 = scmp.ne.s32.totalorder %s67, %s81
    %p83 = scmp.eq.s32.totalorder %s15, 0
    %p84 = por %p82, %p83
    %s85 = ssub.s32 %s9, %s16
    %p86 = scmp.eq.s32.totalorder %s85, 0
    %s88 = sadd.s32 %s87, 1
    %s89 = scalar_select %p86, %s87, %s88
    %p92 = pneg %p86
    %p93 = scmp.eq.s32.totalorder %s9, 1
    %p94 = por %p92, %p93
    %p95 = scmp.ne.s32.totalorder %s87, %s90
    %p96 = scmp.eq.s32.totalorder %s9, 0
    %p97 = por %p95, %p96
    %p98 = scmp.ne.s32.totalorder %s87, %s90
    %p99 = scmp.eq.s32.totalorder %s14, 1
    %p100 = por %p98, %p99
    %p101 = scmp.ne.s32.totalorder %s90, %s91
    %p102 = scmp.eq.s32.totalorder %s14, 0
    %p103 = por %p101, %p102
    %p104 = scmp.ne.s32.totalorder %s90, %s91
    %p105 = scmp.eq.s32.totalorder %s15, 1
    %p106 = por %p104, %p105
    %p108 = scmp.ne.s32.totalorder %s91, %s107
    %p109 = scmp.eq.s32.totalorder %s15, 0
    %p110 = por %p108, %p109
    %p111 = scmp.le.s32.totalorder 1, %s9
    %p112 = scmp.lt.s32.totalorder %s9, 3
    %p113 = pnand %p111, %p112
    %p114 = pneg %p113
    // Predicated region
    $region9: #{snnmlp_forward.42} parent=5 // pred_check
      _
    $region10: #{snnmlp_forward.42} parent=5 // pred_check_branch
      %116 = sbr.rel (%p113) target = $region12
    $region11: #{snnmlp_forward.42} parent=5 // pred_region
      %s117 = ssub.s32 %s9, 1
      // Predicated region
      $region13: #{snnmlp_forward.42} parent=11 // pred_check
        %p118 = pneg %p56
      $region14: #{snnmlp_forward.42} parent=11 // pred_check_branch
        %120 = sbr.rel (%p118) target = $region16
      $region15: #{snnmlp_forward.42} parent=11 // pred_region
        _
      $region16: #{snnmlp_forward.42} parent=11 // pred_fallthru
        _
      // Predicated region
      $region17: #{snnmlp_forward.42} parent=11 // pred_check
        %p121 = pneg %p77
      $region18: #{snnmlp_forward.42} parent=11 // pred_check_branch
        %123 = sbr.rel (%p121) target = $region20
      $region19: #{snnmlp_forward.42} parent=11 // pred_region
        _
      $region20: #{snnmlp_forward.42} parent=11 // pred_fallthru
        _
    $region12: #{snnmlp_forward.42} parent=5 // pred_fallthru
      _
    %p124 = scmp.lt.s32.totalorder %s9, 2
    // Predicated region
    $region21: #{snnmlp_forward.42} parent=5 // pred_check
      %p125 = pneg %p124
    $region22: #{snnmlp_forward.42} parent=5 // pred_check_branch
      %127 = sbr.rel (%p125) target = $region24
    $region23: #{snnmlp_forward.42} parent=5 // pred_region
      // Predicated region
      $region25: #{snnmlp_forward.42} parent=23 // pred_check
        %p128 = pneg %p29
      $region26: #{snnmlp_forward.42} parent=23 // pred_check_branch
        %130 = sbr.rel (%p128) target = $region28
      $region27: #{snnmlp_forward.42} parent=23 // pred_region
        %p131 = scmp.lt.s32.totalorder %s9, 1
        %s132 = scalar_select %p131, %s9, 1
        %s133 = smul.addr %s132, 4
        %s134 = scalar_lea.vmem %s0, %s133
      $region28: #{snnmlp_forward.42} parent=23 // pred_fallthru
        _
    $region24: #{snnmlp_forward.42} parent=5 // pred_fallthru
      _
    %p135 = scmp.le.s32.totalorder 1, %s9
    %p136 = scmp.lt.s32.totalorder %s9, 3
    %p137 = pnand %p135, %p136
    %p138 = pneg %p137
    // Predicated region
    $region29: #{snnmlp_forward.42} parent=5 // pred_check
      _
    $region30: #{snnmlp_forward.42} parent=5 // pred_check_branch
      %140 = sbr.rel (%p137) target = $region32
    $region31: #{snnmlp_forward.42} parent=5 // pred_region
      %s141 = ssub.s32 %s9, 1
      %p142 = scmp.lt.s32.totalorder %s14, 1
      %s143 = scalar_select %p142, %s14, 1
      %s144 = smul.addr %s143, 4
      %s145 = scalar_lea.vmem %s0, %s144
      %p146 = pneg %p35
      %p147 = pneg %p32
      %p148 = pneg %p56
      %p149 = pneg %p53
      %p150 = pneg %p77
      %p151 = pneg %p74
      %p152 = pneg %p103
      %p153 = pneg %p100
      %p154 = scmp.lt.s32.totalorder %s14, 1
      %s155 = scalar_select %p154, %s14, 1
      %s156 = smul.addr %s155, 4
      %s157 = scalar_lea.vmem %s3, %s156
      %p158 = scmp.lt.s32.totalorder %s14, 1
      %s159 = scalar_select %p158, %s14, 1
      %s160 = smul.addr %s159, 4
      %s161 = scalar_lea.vmem %s0, %s160
      %p162 = scmp.lt.s32.totalorder %s14, 1
      %s163 = scalar_select %p162, %s14, 1
      %s164 = smul.addr %s163, 4
      %s165 = scalar_lea.vmem %s3, %s164
      %v166 = vld [vmem:[%s161] sm:$0xf]
      %vm167 = vcmask 257024
      %v168 = vsel %vm167, %v166, 0.0
      %v169 = vrot.slane %v168, 4
      %v170 = vadd.f32 %v168, %v169
      %v171 = vrot.slane %v170, 2
      %v172 = vadd.f32 %v170, %v171
      %v173 = vrot.slane %v172, 1
      %v174 = vadd.f32 %v172, %v173
      %v175 = vmul.f32 %v166, %v166
      %v176 = vsel %vm167, %v175, 0.0
      %v177 = vrot.slane %v176, 4
      %v178 = vadd.f32 %v176, %v177
      %v179 = vrot.slane %v178, 2
      %v180 = vadd.f32 %v178, %v179
      %v181 = vrot.slane %v180, 1
      %v182 = vadd.f32 %v180, %v181
      %vm183 = vcmask 261120
      %v184 = vsel %vm183, %v174, 0.0
      %185 = vadd.xlane.f32.xlu0 %v184
      %v186 = vpop.xlane.xlu0 %185
      %v187 = vmul.f32 %v186, 0.0078125
      %v188 = vsel %vm183, %v182, 0.0
      %189 = vadd.xlane.f32.xlu0 %v188
      %v190 = vpop.xlane.xlu0 %189
      %v191 = vmul.f32 %v190, 0.0078125
      %v192 = vmul.f32 %v187, %v187
      %v193 = vsub.f32 %v191, %v192
      %v194 = vmax.f32 %v193, 0.0
      %v195 = vadd.f32 %v194, 1e-05
      %v196 = vrsqrt.pop %v195
      %v197 = vsub.f32 %v166, %v187
      %v198 = vmul.f32 %v197, %v196
      %v199 = vld [vmem:[%s1] sm:$0x1]
      %v201 = vlaneseq
      %v202 = vshrl.u32 %v201, 7
      %v203 = vsub.s32 0, %v202
      %v204 = vrot.slane %v199, %v203
      %v206 = vmul.f32 %v198, %v204
      %v207 = vld [vmem:[%s2] sm:$0x1]
      %v209 = vlaneseq
      %v210 = vshrl.u32 %v209, 7
      %v211 = vsub.s32 0, %v210
      %v212 = vrot.slane %v207, %v211
      %v214 = vadd.f32 %v206, %v212
      %215 = vst.msk [vmem:[%s165] sm:$0xf] %vm167, %v214
      %p216 = scmp.lt.s32.totalorder %s14, 1
      %s217 = scalar_select %p216, %s14, 1
      %s218 = smul.addr %s217, 4
      %s219 = scalar_lea.vmem %s3, %s218
      // Predicated region
      $region33: #{snnmlp_forward.42} parent=31 // pred_check
        %p220 = pneg %p100
      $region34: #{snnmlp_forward.42} parent=31 // pred_check_branch
        %222 = sbr.rel (%p220) target = $region36
      $region35: #{snnmlp_forward.42} parent=31 // pred_region
        _
      $region36: #{snnmlp_forward.42} parent=31 // pred_fallthru
        _
    $region32: #{snnmlp_forward.42} parent=5 // pred_fallthru
      _
    %p223 = scmp.le.s32.totalorder 2, %s9
    // Predicated region
    $region37: #{snnmlp_forward.42} parent=5 // pred_check
      %p224 = pneg %p223
    $region38: #{snnmlp_forward.42} parent=5 // pred_check_branch
      %226 = sbr.rel (%p224) target = $region40
    $region39: #{snnmlp_forward.42} parent=5 // pred_region
      %s227 = ssub.s32 %s9, 2
      // Predicated region
      $region41: #{snnmlp_forward.42} parent=39 // pred_check
        %p228 = pneg %p106
      $region42: #{snnmlp_forward.42} parent=39 // pred_check_branch
        %230 = sbr.rel (%p228) target = $region44
      $region43: #{snnmlp_forward.42} parent=39 // pred_region
        %p231 = scmp.lt.s32.totalorder %s15, 1
        %s232 = scalar_select %p231, %s15, 1
        %s233 = smul.addr %s232, 4
        %s234 = scalar_lea.vmem %s3, %s233
      $region44: #{snnmlp_forward.42} parent=39 // pred_fallthru
        _
    $region40: #{snnmlp_forward.42} parent=5 // pred_fallthru
      _
  $region6: #{snnmlp_forward.42} parent=0 // loop_footer
    %s13 = sadd.s32 1, %s9
  $region7: #{snnmlp_forward.42} parent=0 // loop_footer_branch
    %8 = sbr.rel target = $region3
  $region8: #{snnmlp_forward.42} parent=0 // loop_exit
    _

// kernel: snnmlp_forward.43
$region0: #{snnmlp_forward.43}
  #allocation0 [shape = 'u32[]', space=smem, size = 0x4, offset = 0x4, fixed_abs, tag = 'smem constant byte address 0x4 - core index']
  #allocation1 [shape = 'u32[144,128]{1,0:T(1,128)}', space=vmem, size = 0x12000, scoped, tag = 'internal scratch']
  #allocation2 [shape = 'f32[8,32]{1,0:T(8,128)}', space=vmem, size = 0x1000, scoped, tag = 'scratch operand']
  %s0 = inlined_call_operand.vmem [shape: f32[8,32], index: 0, kind: input, shape index: {}]
  %s1 = inlined_call_operand.vmem [shape: f32[32,32], index: 1, kind: input, shape index: {}]
  %s2 = inlined_call_operand.vmem [shape: f32[1,32], index: 2, kind: input, shape index: {}]
  %s3 = inlined_call_operand.vmem [shape: f32[8,32], index: 3, kind: output, shape index: {}]
  %s4 = sld [smem:[#allocation0]]
  $region30: #{snnmlp_forward.43} parent=0
    _
  %s6 = ssub.s32 1, %s4
  %s7 = scalar_select 0, %s6, %s4
  // Predicated region
  $region2: #{snnmlp_forward.43} parent=0 // pred_check
    _
  $region3: #{snnmlp_forward.43} parent=0 // pred_check_branch
    %9 = sbr.rel (0) target = $region5
  $region4: #{snnmlp_forward.43} parent=0 // pred_region
    _
  $region5: #{snnmlp_forward.43} parent=0 // pred_fallthru
    _
  // Predicated region
  $region6: #{snnmlp_forward.43} parent=0 // pred_check
    _
  $region7: #{snnmlp_forward.43} parent=0 // pred_check_branch
    %11 = sbr.rel (0) target = $region9
  $region8: #{snnmlp_forward.43} parent=0 // pred_region
    _
  $region9: #{snnmlp_forward.43} parent=0 // pred_fallthru
    _
  // Predicated region
  $region10: #{snnmlp_forward.43} parent=0 // pred_check
    _
  $region11: #{snnmlp_forward.43} parent=0 // pred_check_branch
    %13 = sbr.rel (0) target = $region13
  $region12: #{snnmlp_forward.43} parent=0 // pred_region
    _
  $region13: #{snnmlp_forward.43} parent=0 // pred_fallthru
    _
  %p15 = scmp.eq.s32.totalorder 0, 0
  // Predicated region
  $region14: #{snnmlp_forward.43} parent=0 // pred_check
    %p16 = pneg %p15
  $region15: #{snnmlp_forward.43} parent=0 // pred_check_branch
    %18 = sbr.rel (%p16) target = $region17
  $region16: #{snnmlp_forward.43} parent=0 // pred_region
    %vm19 = vcmask 261120
    %20 = vst.msk [vmem:[#allocation2] sm:$0xff] %vm19, 0.0
  $region17: #{snnmlp_forward.43} parent=0 // pred_fallthru
    _
  %v21 = vld [vmem:[#allocation2] sm:$0xff]
  %v22 = vld [vmem:[%s0] sm:$0xff]
  %v23 = vpack.c.bf16 %v22, %v22
  %v24 = vld [vmem:[%s1] sm:$0xff]
  %v25 = vld [vmem:[%s1 + $0x8] sm:$0xff]
  %v26 = vld [vmem:[%s1 + $0x10] sm:$0xff]
  %v27 = vld [vmem:[%s1 + $0x18] sm:$0xff]
  %v28 = vpack.c.bf16 %v25, %v24
  %v29 = vpack.c.bf16 %v27, %v26
  %vm30 = vcmask 261120
  %v32 = vsel %vm30, %v23, 0
  %34 = vmatprep.subr.bf16.mxu0 0
  %35 = vmatpush1.bf16.msra.mxu0 0
  %36 = vmatprep.subr.bf16.mxu0 0
  %37 = vmatpush1.bf16.msra.mxu0 0
  %38 = vmatprep.subr.bf16.mxu0 0
  %39 = vmatpush1.bf16.msra.mxu0 0
  %40 = vmatprep.subr.bf16.mxu0 0
  %41 = vmatpush1.bf16.msra.mxu0 0
  %42 = vmatprep.subr.bf16.mxu0 0
  %43 = vmatpush1.bf16.msra.mxu0 0
  %44 = vmatprep.subr.bf16.mxu0 0
  %45 = vmatpush1.bf16.msra.mxu0 0
  %46 = vmatprep.subr.bf16.mxu0 0
  %47 = vmatpush1.bf16.msra.mxu0 %v29
  %48 = vmatprep.subr.bf16.mxu0 0
  %49 = vmatpush1.bf16.msra.mxu0 %v28
  %50 = vmatprep.subr.bf16.mxu0 0
  %51 = vmatpush2.bf16.msra.mxu0 0
  %52 = vmatprep.subr.bf16.mxu0 0
  %53 = vmatpush2.bf16.msra.mxu0 0
  %54 = vmatprep.subr.bf16.mxu0 0
  %55 = vmatpush2.bf16.msra.mxu0 0
  %56 = vmatprep.subr.bf16.mxu0 0
  %57 = vmatpush2.bf16.msra.mxu0 0
  %58 = vmatprep.subr.bf16.mxu0 0
  %59 = vmatpush2.bf16.msra.mxu0 0
  %60 = vmatprep.subr.bf16.mxu0 0
  %61 = vmatpush2.bf16.msra.mxu0 0
  %62 = vmatprep.subr.bf16.mxu0 0
  %63 = vmatpush2.bf16.msra.mxu0 0
  %64 = vmatprep.subr.bf16.mxu0 0
  %65 = vmatpush2.bf16.msra.mxu0 0
  %66 = vmatprep.mubr.bf16.mxu0 0
  %67 = vmatmul.mubr.bf16.gmra.mxu0 %v32
  %v68 = vpop.f32.mrf.mxu0
  %v69 = vadd.f32 0.0, %v68
  %v70 = vpop.f32.mrf.mxu0
  %v71 = vpop.f32.mrf.mxu0
  %v72 = vpop.f32.mrf.mxu0
  %73 = vdwg.mxu0
  %v74 = vadd.f32 %v21, %v69
  %75 = vst.msk [vmem:[#allocation2] sm:$0xff] %vm30, %v74
  // Predicated region
  $region18: #{snnmlp_forward.43} parent=0 // pred_check
    %p76 = pneg %p15
  $region19: #{snnmlp_forward.43} parent=0 // pred_check_branch
    %78 = sbr.rel (%p76) target = $region21
  $region20: #{snnmlp_forward.43} parent=0 // pred_region
    %v79 = vld [vmem:[#allocation2] sm:$0xff]
    %v80 = vld [vmem:[%s2] sm:$0x1]
    %v82 = vlaneseq
    %v83 = vshrl.u32 %v82, 7
    %v84 = vsub.s32 0, %v83
    %v85 = vrot.slane %v80, %v84
    %v87 = vadd.f32 %v79, %v85
    %88 = vst.msk [vmem:[%s3] sm:$0xff] %vm30, %v87
  $region21: #{snnmlp_forward.43} parent=0 // pred_fallthru
    _
  // Predicated region
  $region22: #{snnmlp_forward.43} parent=0 // pred_check
    _
  $region23: #{snnmlp_forward.43} parent=0 // pred_check_branch
    %90 = sbr.rel (0) target = $region25
  $region24: #{snnmlp_forward.43} parent=0 // pred_region
    _
  $region25: #{snnmlp_forward.43} parent=0 // pred_fallthru
    _
  // Predicated region
  $region26: #{snnmlp_forward.43} parent=0 // pred_check
    _
  $region27: #{snnmlp_forward.43} parent=0 // pred_check_branch
    %92 = sbr.rel (0) target = $region29
  $region28: #{snnmlp_forward.43} parent=0 // pred_region
    _
  $region29: #{snnmlp_forward.43} parent=0 // pred_fallthru
    _

// kernel: snnmlp_forward.44
$region0: #{snnmlp_forward.44}
  #allocation0 [shape = 'u32[]', space=smem, size = 0x4, offset = 0x4, fixed_abs, tag = 'smem constant byte address 0x4 - core index']
  #allocation1 [shape = 'u32[144,128]{1,0:T(1,128)}', space=vmem, size = 0x12000, scoped, tag = 'internal scratch']
  %s0 = inlined_call_operand.vmem [shape: f32[2,4,32], index: 0, kind: input, shape index: {}]
  %s1 = inlined_call_operand.vmem [shape: f32[1,32], index: 1, kind: input, shape index: {}]
  %s2 = inlined_call_operand.vmem [shape: f32[1,32], index: 2, kind: input, shape index: {}]
  %s3 = inlined_call_operand.vmem [shape: f32[2,4,32], index: 3, kind: output, shape index: {}]
  %s4 = sld [smem:[#allocation0]]
  $region45: #{snnmlp_forward.44} parent=0
    _
  %s6 = ssub.s32 1, %s4
  %s7 = scalar_select 0, %s6, %s4
  loop: start=0, step=1, limit=4
  $region2: #{snnmlp_forward.44} parent=0 // loop_pre_header
    _
  $region3: #{snnmlp_forward.44} parent=0 // loop_header
    %s9 = sphi 0, %s13
    %p10 = scmp.ge.s32.totalorder %s9, 4
    %s19 = sphi 0, %s21
    %s22 = sphi 0, %s19
    %s23 = sphi 0, %s22
    %s39 = sphi 0, %s23
    %s43 = sphi 0, %s43
    %s45 = sphi 0, %s43
    %s46 = sphi 0, %s45
    %s60 = sphi 0, %s46
    %s64 = sphi 0, %s64
    %s66 = sphi 0, %s64
    %s67 = sphi 0, %s66
    %s81 = sphi 0, %s67
    %s87 = sphi 0, %s89
    %s90 = sphi 0, %s87
    %s91 = sphi 0, %s90
    %s107 = sphi 0, %s91
  $region4: #{snnmlp_forward.44} parent=0 // loop_header_branch
    %12 = sbr.rel (%p10) target = $region8
  $region5: #{snnmlp_forward.44} parent=0 // loop_body
    %s14 = ssub.s32 %s9, 1
    %s15 = ssub.s32 %s9, 2
    %s16 = sadd.s32 %s9, 1
    %s17 = ssub.s32 %s9, %s16
    %p18 = scmp.eq.s32.totalorder %s17, 0
    %s20 = sadd.s32 %s19, 1
    %s21 = scalar_select %p18, %s19, %s20
    %p24 = pneg %p18
    %p25 = scmp.eq.s32.totalorder %s9, 1
    %p26 = por %p24, %p25
    %p27 = scmp.ne.s32.totalorder %s19, %s22
    %p28 = scmp.eq.s32.totalorder %s9, 0
    %p29 = por %p27, %p28
    %p30 = scmp.ne.s32.totalorder %s19, %s22
    %p31 = scmp.eq.s32.totalorder %s14, 1
    %p32 = por %p30, %p31
    %p33 = scmp.ne.s32.totalorder %s22, %s23
    %p34 = scmp.eq.s32.totalorder %s14, 0
    %p35 = por %p33, %p34
    %p36 = scmp.ne.s32.totalorder %s22, %s23
    %p37 = scmp.eq.s32.totalorder %s15, 1
    %p38 = por %p36, %p37
    %p40 = scmp.ne.s32.totalorder %s23, %s39
    %p41 = scmp.eq.s32.totalorder %s15, 0
    %p42 = por %p40, %p41
    %s44 = sadd.s32 %s43, 1
    %p47 = scmp.eq.s32.totalorder %s9, 1
    %p48 = scmp.ne.s32.totalorder %s43, %s45
    %p49 = scmp.eq.s32.totalorder %s9, 0
    %p50 = por %p48, %p49
    %p51 = scmp.ne.s32.totalorder %s43, %s45
    %p52 = scmp.eq.s32.totalorder %s14, 1
    %p53 = por %p51, %p52
    %p54 = scmp.ne.s32.totalorder %s45, %s46
    %p55 = scmp.eq.s32.totalorder %s14, 0
    %p56 = por %p54, %p55
    %p57 = scmp.ne.s32.totalorder %s45, %s46
    %p58 = scmp.eq.s32.totalorder %s15, 1
    %p59 = por %p57, %p58
    %p61 = scmp.ne.s32.totalorder %s46, %s60
    %p62 = scmp.eq.s32.totalorder %s15, 0
    %p63 = por %p61, %p62
    %s65 = sadd.s32 %s64, 1
    %p68 = scmp.eq.s32.totalorder %s9, 1
    %p69 = scmp.ne.s32.totalorder %s64, %s66
    %p70 = scmp.eq.s32.totalorder %s9, 0
    %p71 = por %p69, %p70
    %p72 = scmp.ne.s32.totalorder %s64, %s66
    %p73 = scmp.eq.s32.totalorder %s14, 1
    %p74 = por %p72, %p73
    %p75 = scmp.ne.s32.totalorder %s66, %s67
    %p76 = scmp.eq.s32.totalorder %s14, 0
    %p77 = por %p75, %p76
    %p78 = scmp.ne.s32.totalorder %s66, %s67
    %p79 = scmp.eq.s32.totalorder %s15, 1
    %p80 = por %p78, %p79
    %p82 = scmp.ne.s32.totalorder %s67, %s81
    %p83 = scmp.eq.s32.totalorder %s15, 0
    %p84 = por %p82, %p83
    %s85 = ssub.s32 %s9, %s16
    %p86 = scmp.eq.s32.totalorder %s85, 0
    %s88 = sadd.s32 %s87, 1
    %s89 = scalar_select %p86, %s87, %s88
    %p92 = pneg %p86
    %p93 = scmp.eq.s32.totalorder %s9, 1
    %p94 = por %p92, %p93
    %p95 = scmp.ne.s32.totalorder %s87, %s90
    %p96 = scmp.eq.s32.totalorder %s9, 0
    %p97 = por %p95, %p96
    %p98 = scmp.ne.s32.totalorder %s87, %s90
    %p99 = scmp.eq.s32.totalorder %s14, 1
    %p100 = por %p98, %p99
    %p101 = scmp.ne.s32.totalorder %s90, %s91
    %p102 = scmp.eq.s32.totalorder %s14, 0
    %p103 = por %p101, %p102
    %p104 = scmp.ne.s32.totalorder %s90, %s91
    %p105 = scmp.eq.s32.totalorder %s15, 1
    %p106 = por %p104, %p105
    %p108 = scmp.ne.s32.totalorder %s91, %s107
    %p109 = scmp.eq.s32.totalorder %s15, 0
    %p110 = por %p108, %p109
    %p111 = scmp.le.s32.totalorder 1, %s9
    %p112 = scmp.lt.s32.totalorder %s9, 3
    %p113 = pnand %p111, %p112
    %p114 = pneg %p113
    // Predicated region
    $region9: #{snnmlp_forward.44} parent=5 // pred_check
      _
    $region10: #{snnmlp_forward.44} parent=5 // pred_check_branch
      %116 = sbr.rel (%p113) target = $region12
    $region11: #{snnmlp_forward.44} parent=5 // pred_region
      %s117 = ssub.s32 %s9, 1
      // Predicated region
      $region13: #{snnmlp_forward.44} parent=11 // pred_check
        %p118 = pneg %p56
      $region14: #{snnmlp_forward.44} parent=11 // pred_check_branch
        %120 = sbr.rel (%p118) target = $region16
      $region15: #{snnmlp_forward.44} parent=11 // pred_region
        _
      $region16: #{snnmlp_forward.44} parent=11 // pred_fallthru
        _
      // Predicated region
      $region17: #{snnmlp_forward.44} parent=11 // pred_check
        %p121 = pneg %p77
      $region18: #{snnmlp_forward.44} parent=11 // pred_check_branch
        %123 = sbr.rel (%p121) target = $region20
      $region19: #{snnmlp_forward.44} parent=11 // pred_region
        _
      $region20: #{snnmlp_forward.44} parent=11 // pred_fallthru
        _
    $region12: #{snnmlp_forward.44} parent=5 // pred_fallthru
      _
    %p124 = scmp.lt.s32.totalorder %s9, 2
    // Predicated region
    $region21: #{snnmlp_forward.44} parent=5 // pred_check
      %p125 = pneg %p124
    $region22: #{snnmlp_forward.44} parent=5 // pred_check_branch
      %127 = sbr.rel (%p125) target = $region24
    $region23: #{snnmlp_forward.44} parent=5 // pred_region
      // Predicated region
      $region25: #{snnmlp_forward.44} parent=23 // pred_check
        %p128 = pneg %p29
      $region26: #{snnmlp_forward.44} parent=23 // pred_check_branch
        %130 = sbr.rel (%p128) target = $region28
      $region27: #{snnmlp_forward.44} parent=23 // pred_region
        %p131 = scmp.lt.s32.totalorder %s9, 1
        %s132 = scalar_select %p131, %s9, 1
        %s133 = smul.addr %s132, 4
        %s134 = scalar_lea.vmem %s0, %s133
      $region28: #{snnmlp_forward.44} parent=23 // pred_fallthru
        _
    $region24: #{snnmlp_forward.44} parent=5 // pred_fallthru
      _
    %p135 = scmp.le.s32.totalorder 1, %s9
    %p136 = scmp.lt.s32.totalorder %s9, 3
    %p137 = pnand %p135, %p136
    %p138 = pneg %p137
    // Predicated region
    $region29: #{snnmlp_forward.44} parent=5 // pred_check
      _
    $region30: #{snnmlp_forward.44} parent=5 // pred_check_branch
      %140 = sbr.rel (%p137) target = $region32
    $region31: #{snnmlp_forward.44} parent=5 // pred_region
      %s141 = ssub.s32 %s9, 1
      %p142 = scmp.lt.s32.totalorder %s14, 1
      %s143 = scalar_select %p142, %s14, 1
      %s144 = smul.addr %s143, 4
      %s145 = scalar_lea.vmem %s0, %s144
      %p146 = pneg %p35
      %p147 = pneg %p32
      %p148 = pneg %p56
      %p149 = pneg %p53
      %p150 = pneg %p77
      %p151 = pneg %p74
      %p152 = pneg %p103
      %p153 = pneg %p100
      %p154 = scmp.lt.s32.totalorder %s14, 1
      %s155 = scalar_select %p154, %s14, 1
      %s156 = smul.addr %s155, 4
      %s157 = scalar_lea.vmem %s3, %s156
      %p158 = scmp.lt.s32.totalorder %s14, 1
      %s159 = scalar_select %p158, %s14, 1
      %s160 = smul.addr %s159, 4
      %s161 = scalar_lea.vmem %s0, %s160
      %p162 = scmp.lt.s32.totalorder %s14, 1
      %s163 = scalar_select %p162, %s14, 1
      %s164 = smul.addr %s163, 4
      %s165 = scalar_lea.vmem %s3, %s164
      %v166 = vld [vmem:[%s161] sm:$0xf]
      %vm167 = vcmask 257024
      %v168 = vsel %vm167, %v166, 0.0
      %v169 = vrot.slane %v168, 4
      %v170 = vadd.f32 %v168, %v169
      %v171 = vrot.slane %v170, 2
      %v172 = vadd.f32 %v170, %v171
      %v173 = vrot.slane %v172, 1
      %v174 = vadd.f32 %v172, %v173
      %v175 = vmul.f32 %v166, %v166
      %v176 = vsel %vm167, %v175, 0.0
      %v177 = vrot.slane %v176, 4
      %v178 = vadd.f32 %v176, %v177
      %v179 = vrot.slane %v178, 2
      %v180 = vadd.f32 %v178, %v179
      %v181 = vrot.slane %v180, 1
      %v182 = vadd.f32 %v180, %v181
      %vm183 = vcmask 261120
      %v184 = vsel %vm183, %v174, 0.0
      %185 = vadd.xlane.f32.xlu0 %v184
      %v186 = vpop.xlane.xlu0 %185
      %v187 = vmul.f32 %v186, 0.0078125
      %v188 = vsel %vm183, %v182, 0.0
      %189 = vadd.xlane.f32.xlu0 %v188
      %v190 = vpop.xlane.xlu0 %189
      %v191 = vmul.f32 %v190, 0.0078125
      %v192 = vmul.f32 %v187, %v187
      %v193 = vsub.f32 %v191, %v192
      %v194 = vmax.f32 %v193, 0.0
      %v195 = vadd.f32 %v194, 1e-05
      %v196 = vrsqrt.pop %v195
      %v197 = vsub.f32 %v166, %v187
      %v198 = vmul.f32 %v197, %v196
      %v199 = vld [vmem:[%s1] sm:$0x1]
      %v201 = vlaneseq
      %v202 = vshrl.u32 %v201, 7
      %v203 = vsub.s32 0, %v202
      %v204 = vrot.slane %v199, %v203
      %v206 = vmul.f32 %v198, %v204
      %v207 = vld [vmem:[%s2] sm:$0x1]
      %v209 = vlaneseq
      %v210 = vshrl.u32 %v209, 7
      %v211 = vsub.s32 0, %v210
      %v212 = vrot.slane %v207, %v211
      %v214 = vadd.f32 %v206, %v212
      %v215 = vmul.f32 %v214, 0.5
      %v216 = vmul.f32 %v214, 0.044715
      %v217 = vmul.f32 %v216, %v214
      %v218 = vmul.f32 %v217, %v214
      %v219 = vadd.f32 %v214, %v218
      %v220 = vmul.f32 %v219, 0.7978846
      %v221 = vtanh.pop %v220
      %v222 = vadd.f32 %v221, 1.0
      %v223 = vmul.f32 %v215, %v222
      %224 = vst.msk [vmem:[%s165] sm:$0xf] %vm167, %v223
      %p225 = scmp.lt.s32.totalorder %s14, 1
      %s226 = scalar_select %p225, %s14, 1
      %s227 = smul.addr %s226, 4
      %s228 = scalar_lea.vmem %s3, %s227
      // Predicated region
      $region33: #{snnmlp_forward.44} parent=31 // pred_check
        %p229 = pneg %p100
      $region34: #{snnmlp_forward.44} parent=31 // pred_check_branch
        %231 = sbr.rel (%p229) target = $region36
      $region35: #{snnmlp_forward.44} parent=31 // pred_region
        _
      $region36: #{snnmlp_forward.44} parent=31 // pred_fallthru
        _
    $region32: #{snnmlp_forward.44} parent=5 // pred_fallthru
      _
    %p232 = scmp.le.s32.totalorder 2, %s9
    // Predicated region
    $region37: #{snnmlp_forward.44} parent=5 // pred_check
      %p233 = pneg %p232
    $region38: #{snnmlp_forward.44} parent=5 // pred_check_branch
      %235 = sbr.rel (%p233) target = $region40
    $region39: #{snnmlp_forward.44} parent=5 // pred_region
      %s236 = ssub.s32 %s9, 2
      // Predicated region
      $region41: #{snnmlp_forward.44} parent=39 // pred_check
        %p237 = pneg %p106
      $region42: #{snnmlp_forward.44} parent=39 // pred_check_branch
        %239 = sbr.rel (%p237) target = $region44
      $region43: #{snnmlp_forward.44} parent=39 // pred_region
        %p240 = scmp.lt.s32.totalorder %s15, 1
        %s241 = scalar_select %p240, %s15, 1
        %s242 = smul.addr %s241, 4
        %s243 = scalar_lea.vmem %s3, %s242
      $region44: #{snnmlp_forward.44} parent=39 // pred_fallthru
        _
    $region40: #{snnmlp_forward.44} parent=5 // pred_fallthru
      _
  $region6: #{snnmlp_forward.44} parent=0 // loop_footer
    %s13 = sadd.s32 1, %s9
  $region7: #{snnmlp_forward.44} parent=0 // loop_footer_branch
    %8 = sbr.rel target = $region3
  $region8: #{snnmlp_forward.44} parent=0 // loop_exit
    _

// kernel: snnmlp_forward.45
$region0: #{snnmlp_forward.45}
  #allocation0 [shape = 'u32[]', space=smem, size = 0x4, offset = 0x4, fixed_abs, tag = 'smem constant byte address 0x4 - core index']
  #allocation1 [shape = 'u32[144,128]{1,0:T(1,128)}', space=vmem, size = 0x12000, scoped, tag = 'internal scratch']
  %s0 = inlined_call_operand.vmem [shape: f32[2,2,2,32], index: 0, kind: input, shape index: {}]
  %s1 = inlined_call_operand.vmem [shape: f32[3,3,32], index: 1, kind: input, shape index: {}]
  %s2 = inlined_call_operand.vmem [shape: f32[1,32], index: 2, kind: input, shape index: {}]
  %s3 = inlined_call_operand.vmem [shape: f32[2,2,2,32], index: 3, kind: output, shape index: {}]
  %s4 = sld [smem:[#allocation0]]
  $region45: #{snnmlp_forward.45} parent=0
    _
  %s6 = ssub.s32 1, %s4
  %s7 = scalar_select 0, %s6, %s4
  loop: start=0, step=1, limit=4
  $region2: #{snnmlp_forward.45} parent=0 // loop_pre_header
    _
  $region3: #{snnmlp_forward.45} parent=0 // loop_header
    %s9 = sphi 0, %s13
    %p10 = scmp.ge.s32.totalorder %s9, 4
    %s19 = sphi 0, %s21
    %s22 = sphi 0, %s19
    %s23 = sphi 0, %s22
    %s39 = sphi 0, %s23
    %s43 = sphi 0, %s43
    %s45 = sphi 0, %s43
    %s46 = sphi 0, %s45
    %s60 = sphi 0, %s46
    %s64 = sphi 0, %s64
    %s66 = sphi 0, %s64
    %s67 = sphi 0, %s66
    %s81 = sphi 0, %s67
    %s87 = sphi 0, %s89
    %s90 = sphi 0, %s87
    %s91 = sphi 0, %s90
    %s107 = sphi 0, %s91
  $region4: #{snnmlp_forward.45} parent=0 // loop_header_branch
    %12 = sbr.rel (%p10) target = $region8
  $region5: #{snnmlp_forward.45} parent=0 // loop_body
    %s14 = ssub.s32 %s9, 1
    %s15 = ssub.s32 %s9, 2
    %s16 = sadd.s32 %s9, 1
    %s17 = ssub.s32 %s9, %s16
    %p18 = scmp.eq.s32.totalorder %s17, 0
    %s20 = sadd.s32 %s19, 1
    %s21 = scalar_select %p18, %s19, %s20
    %p24 = pneg %p18
    %p25 = scmp.eq.s32.totalorder %s9, 1
    %p26 = por %p24, %p25
    %p27 = scmp.ne.s32.totalorder %s19, %s22
    %p28 = scmp.eq.s32.totalorder %s9, 0
    %p29 = por %p27, %p28
    %p30 = scmp.ne.s32.totalorder %s19, %s22
    %p31 = scmp.eq.s32.totalorder %s14, 1
    %p32 = por %p30, %p31
    %p33 = scmp.ne.s32.totalorder %s22, %s23
    %p34 = scmp.eq.s32.totalorder %s14, 0
    %p35 = por %p33, %p34
    %p36 = scmp.ne.s32.totalorder %s22, %s23
    %p37 = scmp.eq.s32.totalorder %s15, 1
    %p38 = por %p36, %p37
    %p40 = scmp.ne.s32.totalorder %s23, %s39
    %p41 = scmp.eq.s32.totalorder %s15, 0
    %p42 = por %p40, %p41
    %s44 = sadd.s32 %s43, 1
    %p47 = scmp.eq.s32.totalorder %s9, 1
    %p48 = scmp.ne.s32.totalorder %s43, %s45
    %p49 = scmp.eq.s32.totalorder %s9, 0
    %p50 = por %p48, %p49
    %p51 = scmp.ne.s32.totalorder %s43, %s45
    %p52 = scmp.eq.s32.totalorder %s14, 1
    %p53 = por %p51, %p52
    %p54 = scmp.ne.s32.totalorder %s45, %s46
    %p55 = scmp.eq.s32.totalorder %s14, 0
    %p56 = por %p54, %p55
    %p57 = scmp.ne.s32.totalorder %s45, %s46
    %p58 = scmp.eq.s32.totalorder %s15, 1
    %p59 = por %p57, %p58
    %p61 = scmp.ne.s32.totalorder %s46, %s60
    %p62 = scmp.eq.s32.totalorder %s15, 0
    %p63 = por %p61, %p62
    %s65 = sadd.s32 %s64, 1
    %p68 = scmp.eq.s32.totalorder %s9, 1
    %p69 = scmp.ne.s32.totalorder %s64, %s66
    %p70 = scmp.eq.s32.totalorder %s9, 0
    %p71 = por %p69, %p70
    %p72 = scmp.ne.s32.totalorder %s64, %s66
    %p73 = scmp.eq.s32.totalorder %s14, 1
    %p74 = por %p72, %p73
    %p75 = scmp.ne.s32.totalorder %s66, %s67
    %p76 = scmp.eq.s32.totalorder %s14, 0
    %p77 = por %p75, %p76
    %p78 = scmp.ne.s32.totalorder %s66, %s67
    %p79 = scmp.eq.s32.totalorder %s15, 1
    %p80 = por %p78, %p79
    %p82 = scmp.ne.s32.totalorder %s67, %s81
    %p83 = scmp.eq.s32.totalorder %s15, 0
    %p84 = por %p82, %p83
    %s85 = ssub.s32 %s9, %s16
    %p86 = scmp.eq.s32.totalorder %s85, 0
    %s88 = sadd.s32 %s87, 1
    %s89 = scalar_select %p86, %s87, %s88
    %p92 = pneg %p86
    %p93 = scmp.eq.s32.totalorder %s9, 1
    %p94 = por %p92, %p93
    %p95 = scmp.ne.s32.totalorder %s87, %s90
    %p96 = scmp.eq.s32.totalorder %s9, 0
    %p97 = por %p95, %p96
    %p98 = scmp.ne.s32.totalorder %s87, %s90
    %p99 = scmp.eq.s32.totalorder %s14, 1
    %p100 = por %p98, %p99
    %p101 = scmp.ne.s32.totalorder %s90, %s91
    %p102 = scmp.eq.s32.totalorder %s14, 0
    %p103 = por %p101, %p102
    %p104 = scmp.ne.s32.totalorder %s90, %s91
    %p105 = scmp.eq.s32.totalorder %s15, 1
    %p106 = por %p104, %p105
    %p108 = scmp.ne.s32.totalorder %s91, %s107
    %p109 = scmp.eq.s32.totalorder %s15, 0
    %p110 = por %p108, %p109
    %p111 = scmp.le.s32.totalorder 1, %s9
    %p112 = scmp.lt.s32.totalorder %s9, 3
    %p113 = pnand %p111, %p112
    %p114 = pneg %p113
    // Predicated region
    $region9: #{snnmlp_forward.45} parent=5 // pred_check
      _
    $region10: #{snnmlp_forward.45} parent=5 // pred_check_branch
      %116 = sbr.rel (%p113) target = $region12
    $region11: #{snnmlp_forward.45} parent=5 // pred_region
      %s117 = ssub.s32 %s9, 1
      // Predicated region
      $region13: #{snnmlp_forward.45} parent=11 // pred_check
        %p118 = pneg %p56
      $region14: #{snnmlp_forward.45} parent=11 // pred_check_branch
        %120 = sbr.rel (%p118) target = $region16
      $region15: #{snnmlp_forward.45} parent=11 // pred_region
        _
      $region16: #{snnmlp_forward.45} parent=11 // pred_fallthru
        _
      // Predicated region
      $region17: #{snnmlp_forward.45} parent=11 // pred_check
        %p121 = pneg %p77
      $region18: #{snnmlp_forward.45} parent=11 // pred_check_branch
        %123 = sbr.rel (%p121) target = $region20
      $region19: #{snnmlp_forward.45} parent=11 // pred_region
        _
      $region20: #{snnmlp_forward.45} parent=11 // pred_fallthru
        _
    $region12: #{snnmlp_forward.45} parent=5 // pred_fallthru
      _
    %p124 = scmp.lt.s32.totalorder %s9, 2
    // Predicated region
    $region21: #{snnmlp_forward.45} parent=5 // pred_check
      %p125 = pneg %p124
    $region22: #{snnmlp_forward.45} parent=5 // pred_check_branch
      %127 = sbr.rel (%p125) target = $region24
    $region23: #{snnmlp_forward.45} parent=5 // pred_region
      // Predicated region
      $region25: #{snnmlp_forward.45} parent=23 // pred_check
        %p128 = pneg %p29
      $region26: #{snnmlp_forward.45} parent=23 // pred_check_branch
        %130 = sbr.rel (%p128) target = $region28
      $region27: #{snnmlp_forward.45} parent=23 // pred_region
        %p131 = scmp.lt.s32.totalorder %s9, 1
        %s132 = scalar_select %p131, %s9, 1
        %s133 = smul.addr %s132, 2
        %s134 = smul.addr %s133, 2
        %s135 = scalar_lea.vmem %s0, %s134
      $region28: #{snnmlp_forward.45} parent=23 // pred_fallthru
        _
    $region24: #{snnmlp_forward.45} parent=5 // pred_fallthru
      _
    %p136 = scmp.le.s32.totalorder 1, %s9
    %p137 = scmp.lt.s32.totalorder %s9, 3
    %p138 = pnand %p136, %p137
    %p139 = pneg %p138
    // Predicated region
    $region29: #{snnmlp_forward.45} parent=5 // pred_check
      _
    $region30: #{snnmlp_forward.45} parent=5 // pred_check_branch
      %141 = sbr.rel (%p138) target = $region32
    $region31: #{snnmlp_forward.45} parent=5 // pred_region
      %s142 = ssub.s32 %s9, 1
      %p143 = scmp.lt.s32.totalorder %s14, 1
      %s144 = scalar_select %p143, %s14, 1
      %s145 = smul.addr %s144, 2
      %s146 = smul.addr %s145, 2
      %s147 = scalar_lea.vmem %s0, %s146
      %p148 = pneg %p35
      %p149 = pneg %p32
      %p150 = pneg %p56
      %p151 = pneg %p53
      %p152 = pneg %p77
      %p153 = pneg %p74
      %p154 = pneg %p103
      %p155 = pneg %p100
      %p156 = scmp.lt.s32.totalorder %s14, 1
      %s157 = scalar_select %p156, %s14, 1
      %s158 = smul.addr %s157, 2
      %s159 = smul.addr %s158, 2
      %s160 = scalar_lea.vmem %s3, %s159
      %p161 = scmp.lt.s32.totalorder %s14, 1
      %s162 = scalar_select %p161, %s14, 1
      %s163 = smul.addr %s162, 2
      %s164 = smul.addr %s163, 2
      %s165 = scalar_lea.vmem %s0, %s164
      %p166 = scmp.lt.s32.totalorder %s14, 1
      %s167 = scalar_select %p166, %s14, 1
      %s168 = smul.addr %s167, 2
      %s169 = smul.addr %s168, 2
      %s170 = scalar_lea.vmem %s3, %s169
      %v171 = vld [vmem:[%s165] sm:$0x3]
      %v172 = vld [vmem:[%s165 + $0x2] sm:$0x3]
      %v173 = vld [vmem:[%s1] sm:$0x7]
      %v174 = vld [vmem:[%s1 + $0x4] sm:$0x7]
      %v175 = vld [vmem:[%s1 + $0x8] sm:$0x7]
      %v178 = vrot.slane 0.0, 7
      %v179 = vrot.slane %v171, 7
      %vm182 = vcmask 1040384
      %v183 = vsel %vm182, 0.0, %v178
      %v184 = vsel %vm182, 0.0, %v179
      %v185 = vlaneseq
      %v186 = vshrl.u32 %v185, 7
      %v187 = vsub.s32 0, %v186
      %v188 = vrot.slane %v173, %v187
      %v189 = vmul.f32 %v183, %v188
      %v190 = vmul.f32 %v184, %v188
      %v191 = vadd.f32 %v189, 0.0
      %v192 = vadd.f32 %v190, 0.0
      %v193 = vlaneseq
      %v194 = vshrl.u32 %v193, 7
      %v195 = vsub.s32 1, %v194
      %v196 = vrot.slane %v173, %v195
      %v197 = vmul.f32 %v196, 0.0
      %v198 = vmul.f32 %v171, %v196
      %v199 = vadd.f32 %v191, %v197
      %v200 = vadd.f32 %v192, %v198
      %v201 = vrot.slane 0.0, 1
      %v202 = vrot.slane %v171, 1
      %v205 = vsel %vm182, %v201, 0.0
      %v206 = vsel %vm182, %v202, 0.0
      %v207 = vlaneseq
      %v208 = vshrl.u32 %v207, 7
      %v209 = vsub.s32 2, %v208
      %v210 = vrot.slane %v173, %v209
      %v211 = vmul.f32 %v205, %v210
      %v212 = vmul.f32 %v206, %v210
      %v213 = vadd.f32 %v199, %v211
      %v214 = vadd.f32 %v200, %v212
      %v216 = vrot.slane %v172, 7
      %v218 = vsel %vm182, 0.0, %v216
      %v219 = vlaneseq
      %v220 = vshrl.u32 %v219, 7
      %v221 = vsub.s32 0, %v220
      %v222 = vrot.slane %v174, %v221
      %v223 = vmul.f32 %v184, %v222
      %v224 = vmul.f32 %v218, %v222
      %v225 = vadd.f32 %v213, %v223
      %v226 = vadd.f32 %v214, %v224
      %v227 = vlaneseq
      %v228 = vshrl.u32 %v227, 7
      %v229 = vsub.s32 1, %v228
      %v230 = vrot.slane %v174, %v229
      %v231 = vmul.f32 %v171, %v230
      %v232 = vmul.f32 %v172, %v230
      %v233 = vadd.f32 %v225, %v231
      %v234 = vadd.f32 %v226, %v232
      %v235 = vrot.slane %v172, 1
      %v237 = vsel %vm182, %v235, 0.0
      %v238 = vlaneseq
      %v239 = vshrl.u32 %v238, 7
      %v240 = vsub.s32 2, %v239
      %v241 = vrot.slane %v174, %v240
      %v242 = vmul.f32 %v206, %v241
      %v243 = vmul.f32 %v237, %v241
      %v244 = vadd.f32 %v233, %v242
      %v245 = vadd.f32 %v234, %v243
      %v246 = vlaneseq
      %v247 = vshrl.u32 %v246, 7
      %v248 = vsub.s32 0, %v247
      %v249 = vrot.slane %v175, %v248
      %v250 = vmul.f32 %v218, %v249
      %v251 = vmul.f32 %v183, %v249
      %v252 = vadd.f32 %v244, %v250
      %v253 = vadd.f32 %v245, %v251
      %v254 = vlaneseq
      %v255 = vshrl.u32 %v254, 7
      %v256 = vsub.s32 1, %v255
      %v257 = vrot.slane %v175, %v256
      %v258 = vmul.f32 %v172, %v257
      %v259 = vmul.f32 %v257, 0.0
      %v260 = vadd.f32 %v252, %v258
      %v261 = vadd.f32 %v253, %v259
      %v262 = vlaneseq
      %v263 = vshrl.u32 %v262, 7
      %v264 = vsub.s32 2, %v263
      %v265 = vrot.slane %v175, %v264
      %v266 = vmul.f32 %v237, %v265
      %v267 = vmul.f32 %v205, %v265
      %v268 = vadd.f32 %v260, %v266
      %v269 = vadd.f32 %v261, %v267
      %v270 = vld [vmem:[%s2] sm:$0x1]
      %v272 = vlaneseq
      %v273 = vshrl.u32 %v272, 7
      %v274 = vsub.s32 0, %v273
      %v275 = vrot.slane %v270, %v274
      %v277 = vadd.f32 %v268, %v275
      %v278 = vadd.f32 %v269, %v275
      %vm279 = vcmask 254976
      %280 = vst.msk [vmem:[%s170] sm:$0x3] %vm279, %v277
      %281 = vst.msk [vmem:[%s170 + $0x2] sm:$0x3] %vm279, %v278
      %p282 = scmp.lt.s32.totalorder %s14, 1
      %s283 = scalar_select %p282, %s14, 1
      %s284 = smul.addr %s283, 2
      %s285 = smul.addr %s284, 2
      %s286 = scalar_lea.vmem %s3, %s285
      // Predicated region
      $region33: #{snnmlp_forward.45} parent=31 // pred_check
        %p287 = pneg %p100
      $region34: #{snnmlp_forward.45} parent=31 // pred_check_branch
        %289 = sbr.rel (%p287) target = $region36
      $region35: #{snnmlp_forward.45} parent=31 // pred_region
        _
      $region36: #{snnmlp_forward.45} parent=31 // pred_fallthru
        _
    $region32: #{snnmlp_forward.45} parent=5 // pred_fallthru
      _
    %p290 = scmp.le.s32.totalorder 2, %s9
    // Predicated region
    $region37: #{snnmlp_forward.45} parent=5 // pred_check
      %p291 = pneg %p290
    $region38: #{snnmlp_forward.45} parent=5 // pred_check_branch
      %293 = sbr.rel (%p291) target = $region40
    $region39: #{snnmlp_forward.45} parent=5 // pred_region
      %s294 = ssub.s32 %s9, 2
      // Predicated region
      $region41: #{snnmlp_forward.45} parent=39 // pred_check
        %p295 = pneg %p106
      $region42: #{snnmlp_forward.45} parent=39 // pred_check_branch
        %297 = sbr.rel (%p295) target = $region44
      $region43: #{snnmlp_forward.45} parent=39 // pred_region
        %p298 = scmp.lt.s32.totalorder %s15, 1
        %s299 = scalar_select %p298, %s15, 1
        %s300 = smul.addr %s299, 2
        %s301 = smul.addr %s300, 2
        %s302 = scalar_lea.vmem %s3, %s301
      $region44: #{snnmlp_forward.45} parent=39 // pred_fallthru
        _
    $region40: #{snnmlp_forward.45} parent=5 // pred_fallthru
      _
  $region6: #{snnmlp_forward.45} parent=0 // loop_footer
    %s13 = sadd.s32 1, %s9
  $region7: #{snnmlp_forward.45} parent=0 // loop_footer_branch
    %8 = sbr.rel target = $region3
  $region8: #{snnmlp_forward.45} parent=0 // loop_exit
    _

// kernel: snnmlp_forward.47
$region0: #{snnmlp_forward.47}
  #allocation0 [shape = 'u32[]', space=smem, size = 0x4, offset = 0x4, fixed_abs, tag = 'smem constant byte address 0x4 - core index']
  #allocation1 [shape = 'u32[144,128]{1,0:T(1,128)}', space=vmem, size = 0x12000, scoped, tag = 'internal scratch']
  #allocation2 [shape = 'f32[8,32]{1,0:T(8,128)}', space=vmem, size = 0x1000, scoped, tag = 'scratch operand']
  #allocation3 [shape = 'f32[8,32]{1,0:T(8,128)}', space=vmem, size = 0x1000, scoped, tag = 'scratch operand']
  %s0 = inlined_call_operand.vmem [shape: f32[8,32], index: 0, kind: input, shape index: {}]
  %s1 = inlined_call_operand.vmem [shape: f32[32,32], index: 1, kind: input, shape index: {}]
  %s2 = inlined_call_operand.vmem [shape: f32[1,32], index: 2, kind: input, shape index: {}]
  %s3 = inlined_call_operand.vmem [shape: f32[32,32], index: 3, kind: input, shape index: {}]
  %s4 = inlined_call_operand.vmem [shape: f32[1,32], index: 4, kind: input, shape index: {}]
  %s5 = inlined_call_operand.vmem [shape: f32[8,32], index: 5, kind: output, shape index: {}]
  %s6 = sld [smem:[#allocation0]]
  $region38: #{snnmlp_forward.47} parent=0
    _
  %s8 = ssub.s32 1, %s6
  %s9 = scalar_select 0, %s8, %s6
  // Predicated region
  $region2: #{snnmlp_forward.47} parent=0 // pred_check
    _
  $region3: #{snnmlp_forward.47} parent=0 // pred_check_branch
    %11 = sbr.rel (0) target = $region5
  $region4: #{snnmlp_forward.47} parent=0 // pred_region
    _
  $region5: #{snnmlp_forward.47} parent=0 // pred_fallthru
    _
  // Predicated region
  $region6: #{snnmlp_forward.47} parent=0 // pred_check
    _
  $region7: #{snnmlp_forward.47} parent=0 // pred_check_branch
    %13 = sbr.rel (0) target = $region9
  $region8: #{snnmlp_forward.47} parent=0 // pred_region
    _
  $region9: #{snnmlp_forward.47} parent=0 // pred_fallthru
    _
  // Predicated region
  $region10: #{snnmlp_forward.47} parent=0 // pred_check
    _
  $region11: #{snnmlp_forward.47} parent=0 // pred_check_branch
    %15 = sbr.rel (0) target = $region13
  $region12: #{snnmlp_forward.47} parent=0 // pred_region
    _
  $region13: #{snnmlp_forward.47} parent=0 // pred_fallthru
    _
  // Predicated region
  $region14: #{snnmlp_forward.47} parent=0 // pred_check
    _
  $region15: #{snnmlp_forward.47} parent=0 // pred_check_branch
    %17 = sbr.rel (0) target = $region17
  $region16: #{snnmlp_forward.47} parent=0 // pred_region
    _
  $region17: #{snnmlp_forward.47} parent=0 // pred_fallthru
    _
  // Predicated region
  $region18: #{snnmlp_forward.47} parent=0 // pred_check
    _
  $region19: #{snnmlp_forward.47} parent=0 // pred_check_branch
    %19 = sbr.rel (0) target = $region21
  $region20: #{snnmlp_forward.47} parent=0 // pred_region
    _
  $region21: #{snnmlp_forward.47} parent=0 // pred_fallthru
    _
  %p21 = scmp.eq.s32.totalorder 0, 0
  // Predicated region
  $region22: #{snnmlp_forward.47} parent=0 // pred_check
    %p22 = pneg %p21
  $region23: #{snnmlp_forward.47} parent=0 // pred_check_branch
    %24 = sbr.rel (%p22) target = $region25
  $region24: #{snnmlp_forward.47} parent=0 // pred_region
    %vm25 = vcmask 261120
    %26 = vst.msk [vmem:[#allocation2] sm:$0xff] %vm25, 0.0
    %27 = vst.msk [vmem:[#allocation3] sm:$0xff] %vm25, 0.0
  $region25: #{snnmlp_forward.47} parent=0 // pred_fallthru
    _
  %v28 = vld [vmem:[%s0] sm:$0xff]
  %v29 = vpack.c.bf16 %v28, %v28
  %v30 = vld [vmem:[#allocation2] sm:$0xff]
  %v31 = vld [vmem:[%s1] sm:$0xff]
  %v32 = vld [vmem:[%s1 + $0x8] sm:$0xff]
  %v33 = vld [vmem:[%s1 + $0x10] sm:$0xff]
  %v34 = vld [vmem:[%s1 + $0x18] sm:$0xff]
  %v35 = vpack.c.bf16 %v32, %v31
  %v36 = vpack.c.bf16 %v34, %v33
  %vm37 = vcmask 261120
  %v39 = vsel %vm37, %v29, 0
  %41 = vmatprep.subr.bf16.mxu0 0
  %42 = vmatpush1.bf16.msra.mxu0 0
  %43 = vmatprep.subr.bf16.mxu0 0
  %44 = vmatpush1.bf16.msra.mxu0 0
  %45 = vmatprep.subr.bf16.mxu0 0
  %46 = vmatpush1.bf16.msra.mxu0 0
  %47 = vmatprep.subr.bf16.mxu0 0
  %48 = vmatpush1.bf16.msra.mxu0 0
  %49 = vmatprep.subr.bf16.mxu0 0
  %50 = vmatpush1.bf16.msra.mxu0 0
  %51 = vmatprep.subr.bf16.mxu0 0
  %52 = vmatpush1.bf16.msra.mxu0 0
  %53 = vmatprep.subr.bf16.mxu0 0
  %54 = vmatpush1.bf16.msra.mxu0 %v36
  %55 = vmatprep.subr.bf16.mxu0 0
  %56 = vmatpush1.bf16.msra.mxu0 %v35
  %57 = vmatprep.subr.bf16.mxu0 0
  %58 = vmatpush2.bf16.msra.mxu0 0
  %59 = vmatprep.subr.bf16.mxu0 0
  %60 = vmatpush2.bf16.msra.mxu0 0
  %61 = vmatprep.subr.bf16.mxu0 0
  %62 = vmatpush2.bf16.msra.mxu0 0
  %63 = vmatprep.subr.bf16.mxu0 0
  %64 = vmatpush2.bf16.msra.mxu0 0
  %65 = vmatprep.subr.bf16.mxu0 0
  %66 = vmatpush2.bf16.msra.mxu0 0
  %67 = vmatprep.subr.bf16.mxu0 0
  %68 = vmatpush2.bf16.msra.mxu0 0
  %69 = vmatprep.subr.bf16.mxu0 0
  %70 = vmatpush2.bf16.msra.mxu0 0
  %71 = vmatprep.subr.bf16.mxu0 0
  %72 = vmatpush2.bf16.msra.mxu0 0
  %73 = vmatprep.mubr.bf16.mxu0 0
  %74 = vmatmul.mubr.bf16.gmra.mxu0 %v39
  %v75 = vpop.f32.mrf.mxu0
  %v76 = vadd.f32 0.0, %v75
  %v77 = vpop.f32.mrf.mxu0
  %v78 = vpop.f32.mrf.mxu0
  %v79 = vpop.f32.mrf.mxu0
  %80 = vdwg.mxu0
  %v81 = vadd.f32 %v30, %v76
  %82 = vst.msk [vmem:[#allocation2] sm:$0xff] %vm37, %v81
  %v83 = vld [vmem:[#allocation3] sm:$0xff]
  %v84 = vld [vmem:[%s3] sm:$0xff]
  %v85 = vld [vmem:[%s3 + $0x8] sm:$0xff]
  %v86 = vld [vmem:[%s3 + $0x10] sm:$0xff]
  %v87 = vld [vmem:[%s3 + $0x18] sm:$0xff]
  %v88 = vpack.c.bf16 %v85, %v84
  %v89 = vpack.c.bf16 %v87, %v86
  %90 = vmatprep.subr.bf16.mxu0 0
  %91 = vmatpush1.bf16.msra.mxu0 0
  %92 = vmatprep.subr.bf16.mxu0 0
  %93 = vmatpush1.bf16.msra.mxu0 0
  %94 = vmatprep.subr.bf16.mxu0 0
  %95 = vmatpush1.bf16.msra.mxu0 0
  %96 = vmatprep.subr.bf16.mxu0 0
  %97 = vmatpush1.bf16.msra.mxu0 0
  %98 = vmatprep.subr.bf16.mxu0 0
  %99 = vmatpush1.bf16.msra.mxu0 0
  %100 = vmatprep.subr.bf16.mxu0 0
  %101 = vmatpush1.bf16.msra.mxu0 0
  %102 = vmatprep.subr.bf16.mxu0 0
  %103 = vmatpush1.bf16.msra.mxu0 %v89
  %104 = vmatprep.subr.bf16.mxu0 0
  %105 = vmatpush1.bf16.msra.mxu0 %v88
  %106 = vmatprep.subr.bf16.mxu0 0
  %107 = vmatpush2.bf16.msra.mxu0 0
  %108 = vmatprep.subr.bf16.mxu0 0
  %109 = vmatpush2.bf16.msra.mxu0 0
  %110 = vmatprep.subr.bf16.mxu0 0
  %111 = vmatpush2.bf16.msra.mxu0 0
  %112 = vmatprep.subr.bf16.mxu0 0
  %113 = vmatpush2.bf16.msra.mxu0 0
  %114 = vmatprep.subr.bf16.mxu0 0
  %115 = vmatpush2.bf16.msra.mxu0 0
  %116 = vmatprep.subr.bf16.mxu0 0
  %117 = vmatpush2.bf16.msra.mxu0 0
  %118 = vmatprep.subr.bf16.mxu0 0
  %119 = vmatpush2.bf16.msra.mxu0 0
  %120 = vmatprep.subr.bf16.mxu0 0
  %121 = vmatpush2.bf16.msra.mxu0 0
  %122 = vmatprep.mubr.bf16.mxu0 0
  %123 = vmatmul.mubr.bf16.gmra.mxu0 %v39
  %v124 = vpop.f32.mrf.mxu0
  %v125 = vadd.f32 0.0, %v124
  %v126 = vpop.f32.mrf.mxu0
  %v127 = vpop.f32.mrf.mxu0
  %v128 = vpop.f32.mrf.mxu0
  %129 = vdwg.mxu0
  %v130 = vadd.f32 %v83, %v125
  %131 = vst.msk [vmem:[#allocation3] sm:$0xff] %vm37, %v130
  // Predicated region
  $region26: #{snnmlp_forward.47} parent=0 // pred_check
    %p132 = pneg %p21
  $region27: #{snnmlp_forward.47} parent=0 // pred_check_branch
    %134 = sbr.rel (%p132) target = $region29
  $region28: #{snnmlp_forward.47} parent=0 // pred_region
    %v135 = vld [vmem:[#allocation2] sm:$0xff]
    %v136 = vld [vmem:[%s2] sm:$0x1]
    %v138 = vlaneseq
    %v139 = vshrl.u32 %v138, 7
    %v140 = vsub.s32 0, %v139
    %v141 = vrot.slane %v136, %v140
    %v143 = vadd.f32 %v135, %v141
    %v144 = vmul.f32 %v143, 0.5
    %v145 = vmul.f32 %v143, 0.044715
    %v146 = vmul.f32 %v145, %v143
    %v147 = vmul.f32 %v146, %v143
    %v148 = vadd.f32 %v143, %v147
    %v149 = vmul.f32 %v148, 0.7978846
    %v150 = vtanh.pop %v149
    %v151 = vadd.f32 %v150, 1.0
    %v152 = vmul.f32 %v144, %v151
    %v153 = vld [vmem:[#allocation3] sm:$0xff]
    %v154 = vld [vmem:[%s4] sm:$0x1]
    %v156 = vlaneseq
    %v157 = vshrl.u32 %v156, 7
    %v158 = vsub.s32 0, %v157
    %v159 = vrot.slane %v154, %v158
    %v161 = vadd.f32 %v153, %v159
    %v162 = vmul.f32 %v161, 0.5
    %v163 = vmul.f32 %v161, 0.044715
    %v164 = vmul.f32 %v163, %v161
    %v165 = vmul.f32 %v164, %v161
    %v166 = vadd.f32 %v161, %v165
    %v167 = vmul.f32 %v166, 0.7978846
    %v168 = vtanh.pop %v167
    %v169 = vadd.f32 %v168, 1.0
    %v170 = vmul.f32 %v162, %v169
    %v171 = vadd.f32 %v152, %v170
    %172 = vst.msk [vmem:[%s5] sm:$0xff] %vm37, %v171
  $region29: #{snnmlp_forward.47} parent=0 // pred_fallthru
    _
  // Predicated region
  $region30: #{snnmlp_forward.47} parent=0 // pred_check
    _
  $region31: #{snnmlp_forward.47} parent=0 // pred_check_branch
    %174 = sbr.rel (0) target = $region33
  $region32: #{snnmlp_forward.47} parent=0 // pred_region
    _
  $region33: #{snnmlp_forward.47} parent=0 // pred_fallthru
    _
  // Predicated region
  $region34: #{snnmlp_forward.47} parent=0 // pred_check
    _
  $region35: #{snnmlp_forward.47} parent=0 // pred_check_branch
    %176 = sbr.rel (0) target = $region37
  $region36: #{snnmlp_forward.47} parent=0 // pred_region
    _
  $region37: #{snnmlp_forward.47} parent=0 // pred_fallthru
    _

// kernel: snnmlp_forward.49
$region0: #{snnmlp_forward.49}
  #allocation0 [shape = 'u32[]', space=smem, size = 0x4, offset = 0x4, fixed_abs, tag = 'smem constant byte address 0x4 - core index']
  #allocation1 [shape = 'u32[144,128]{1,0:T(1,128)}', space=vmem, size = 0x12000, scoped, tag = 'internal scratch']
  #allocation2 [shape = 'f32[8,32]{1,0:T(8,128)}', space=vmem, size = 0x1000, scoped, tag = 'scratch operand']
  %s0 = inlined_call_operand.vmem [shape: f32[8,32], index: 0, kind: input, shape index: {}]
  %s1 = inlined_call_operand.vmem [shape: f32[32,32], index: 1, kind: input, shape index: {}]
  %s2 = inlined_call_operand.vmem [shape: f32[1,32], index: 2, kind: input, shape index: {}]
  %s3 = inlined_call_operand.vmem [shape: f32[8,32], index: 3, kind: input, shape index: {}]
  %s4 = inlined_call_operand.vmem [shape: f32[8,32], index: 4, kind: output, shape index: {}]
  %s5 = sld [smem:[#allocation0]]
  $region34: #{snnmlp_forward.49} parent=0
    _
  %s7 = ssub.s32 1, %s5
  %s8 = scalar_select 0, %s7, %s5
  // Predicated region
  $region2: #{snnmlp_forward.49} parent=0 // pred_check
    _
  $region3: #{snnmlp_forward.49} parent=0 // pred_check_branch
    %10 = sbr.rel (0) target = $region5
  $region4: #{snnmlp_forward.49} parent=0 // pred_region
    _
  $region5: #{snnmlp_forward.49} parent=0 // pred_fallthru
    _
  // Predicated region
  $region6: #{snnmlp_forward.49} parent=0 // pred_check
    _
  $region7: #{snnmlp_forward.49} parent=0 // pred_check_branch
    %12 = sbr.rel (0) target = $region9
  $region8: #{snnmlp_forward.49} parent=0 // pred_region
    _
  $region9: #{snnmlp_forward.49} parent=0 // pred_fallthru
    _
  // Predicated region
  $region10: #{snnmlp_forward.49} parent=0 // pred_check
    _
  $region11: #{snnmlp_forward.49} parent=0 // pred_check_branch
    %14 = sbr.rel (0) target = $region13
  $region12: #{snnmlp_forward.49} parent=0 // pred_region
    _
  $region13: #{snnmlp_forward.49} parent=0 // pred_fallthru
    _
  // Predicated region
  $region14: #{snnmlp_forward.49} parent=0 // pred_check
    _
  $region15: #{snnmlp_forward.49} parent=0 // pred_check_branch
    %16 = sbr.rel (0) target = $region17
  $region16: #{snnmlp_forward.49} parent=0 // pred_region
    _
  $region17: #{snnmlp_forward.49} parent=0 // pred_fallthru
    _
  %p18 = scmp.eq.s32.totalorder 0, 0
  // Predicated region
  $region18: #{snnmlp_forward.49} parent=0 // pred_check
    %p19 = pneg %p18
  $region19: #{snnmlp_forward.49} parent=0 // pred_check_branch
    %21 = sbr.rel (%p19) target = $region21
  $region20: #{snnmlp_forward.49} parent=0 // pred_region
    %vm22 = vcmask 261120
    %23 = vst.msk [vmem:[#allocation2] sm:$0xff] %vm22, 0.0
  $region21: #{snnmlp_forward.49} parent=0 // pred_fallthru
    _
  %v24 = vld [vmem:[#allocation2] sm:$0xff]
  %v25 = vld [vmem:[%s0] sm:$0xff]
  %v26 = vpack.c.bf16 %v25, %v25
  %v27 = vld [vmem:[%s1] sm:$0xff]
  %v28 = vld [vmem:[%s1 + $0x8] sm:$0xff]
  %v29 = vld [vmem:[%s1 + $0x10] sm:$0xff]
  %v30 = vld [vmem:[%s1 + $0x18] sm:$0xff]
  %v31 = vpack.c.bf16 %v28, %v27
  %v32 = vpack.c.bf16 %v30, %v29
  %vm33 = vcmask 261120
  %v35 = vsel %vm33, %v26, 0
  %37 = vmatprep.subr.bf16.mxu0 0
  %38 = vmatpush1.bf16.msra.mxu0 0
  %39 = vmatprep.subr.bf16.mxu0 0
  %40 = vmatpush1.bf16.msra.mxu0 0
  %41 = vmatprep.subr.bf16.mxu0 0
  %42 = vmatpush1.bf16.msra.mxu0 0
  %43 = vmatprep.subr.bf16.mxu0 0
  %44 = vmatpush1.bf16.msra.mxu0 0
  %45 = vmatprep.subr.bf16.mxu0 0
  %46 = vmatpush1.bf16.msra.mxu0 0
  %47 = vmatprep.subr.bf16.mxu0 0
  %48 = vmatpush1.bf16.msra.mxu0 0
  %49 = vmatprep.subr.bf16.mxu0 0
  %50 = vmatpush1.bf16.msra.mxu0 %v32
  %51 = vmatprep.subr.bf16.mxu0 0
  %52 = vmatpush1.bf16.msra.mxu0 %v31
  %53 = vmatprep.subr.bf16.mxu0 0
  %54 = vmatpush2.bf16.msra.mxu0 0
  %55 = vmatprep.subr.bf16.mxu0 0
  %56 = vmatpush2.bf16.msra.mxu0 0
  %57 = vmatprep.subr.bf16.mxu0 0
  %58 = vmatpush2.bf16.msra.mxu0 0
  %59 = vmatprep.subr.bf16.mxu0 0
  %60 = vmatpush2.bf16.msra.mxu0 0
  %61 = vmatprep.subr.bf16.mxu0 0
  %62 = vmatpush2.bf16.msra.mxu0 0
  %63 = vmatprep.subr.bf16.mxu0 0
  %64 = vmatpush2.bf16.msra.mxu0 0
  %65 = vmatprep.subr.bf16.mxu0 0
  %66 = vmatpush2.bf16.msra.mxu0 0
  %67 = vmatprep.subr.bf16.mxu0 0
  %68 = vmatpush2.bf16.msra.mxu0 0
  %69 = vmatprep.mubr.bf16.mxu0 0
  %70 = vmatmul.mubr.bf16.gmra.mxu0 %v35
  %v71 = vpop.f32.mrf.mxu0
  %v72 = vadd.f32 0.0, %v71
  %v73 = vpop.f32.mrf.mxu0
  %v74 = vpop.f32.mrf.mxu0
  %v75 = vpop.f32.mrf.mxu0
  %76 = vdwg.mxu0
  %v77 = vadd.f32 %v24, %v72
  %78 = vst.msk [vmem:[#allocation2] sm:$0xff] %vm33, %v77
  // Predicated region
  $region22: #{snnmlp_forward.49} parent=0 // pred_check
    %p79 = pneg %p18
  $region23: #{snnmlp_forward.49} parent=0 // pred_check_branch
    %81 = sbr.rel (%p79) target = $region25
  $region24: #{snnmlp_forward.49} parent=0 // pred_region
    %v82 = vld [vmem:[#allocation2] sm:$0xff]
    %v83 = vld [vmem:[%s2] sm:$0x1]
    %v85 = vlaneseq
    %v86 = vshrl.u32 %v85, 7
    %v87 = vsub.s32 0, %v86
    %v88 = vrot.slane %v83, %v87
    %v90 = vadd.f32 %v82, %v88
    %v91 = vld [vmem:[%s3] sm:$0xff]
    %v92 = vadd.f32 %v90, %v91
    %93 = vst.msk [vmem:[%s4] sm:$0xff] %vm33, %v92
  $region25: #{snnmlp_forward.49} parent=0 // pred_fallthru
    _
  // Predicated region
  $region26: #{snnmlp_forward.49} parent=0 // pred_check
    _
  $region27: #{snnmlp_forward.49} parent=0 // pred_check_branch
    %95 = sbr.rel (0) target = $region29
  $region28: #{snnmlp_forward.49} parent=0 // pred_region
    _
  $region29: #{snnmlp_forward.49} parent=0 // pred_fallthru
    _
  // Predicated region
  $region30: #{snnmlp_forward.49} parent=0 // pred_check
    _
  $region31: #{snnmlp_forward.49} parent=0 // pred_check_branch
    %97 = sbr.rel (0) target = $region33
  $region32: #{snnmlp_forward.49} parent=0 // pred_region
    _
  $region33: #{snnmlp_forward.49} parent=0 // pred_fallthru
    _

// kernel: snnmlp_forward.51
$region0: #{snnmlp_forward.51}
  #allocation0 [shape = 'u32[]', space=smem, size = 0x4, offset = 0x4, fixed_abs, tag = 'smem constant byte address 0x4 - core index']
  #allocation1 [shape = 'u32[144,128]{1,0:T(1,128)}', space=vmem, size = 0x12000, scoped, tag = 'internal scratch']
  #allocation2 [shape = 'f32[8,64]{1,0:T(8,128)}', space=vmem, size = 0x1000, scoped, tag = 'scratch operand']
  %s0 = inlined_call_operand.vmem [shape: f32[8,32], index: 0, kind: input, shape index: {}]
  %s1 = inlined_call_operand.vmem [shape: f32[32,64], index: 1, kind: input, shape index: {}]
  %s2 = inlined_call_operand.vmem [shape: f32[1,64], index: 2, kind: input, shape index: {}]
  %s3 = inlined_call_operand.vmem [shape: f32[8,64], index: 3, kind: output, shape index: {}]
  %s4 = sld [smem:[#allocation0]]
  $region30: #{snnmlp_forward.51} parent=0
    _
  %s6 = ssub.s32 1, %s4
  %s7 = scalar_select 0, %s6, %s4
  // Predicated region
  $region2: #{snnmlp_forward.51} parent=0 // pred_check
    _
  $region3: #{snnmlp_forward.51} parent=0 // pred_check_branch
    %9 = sbr.rel (0) target = $region5
  $region4: #{snnmlp_forward.51} parent=0 // pred_region
    _
  $region5: #{snnmlp_forward.51} parent=0 // pred_fallthru
    _
  // Predicated region
  $region6: #{snnmlp_forward.51} parent=0 // pred_check
    _
  $region7: #{snnmlp_forward.51} parent=0 // pred_check_branch
    %11 = sbr.rel (0) target = $region9
  $region8: #{snnmlp_forward.51} parent=0 // pred_region
    _
  $region9: #{snnmlp_forward.51} parent=0 // pred_fallthru
    _
  // Predicated region
  $region10: #{snnmlp_forward.51} parent=0 // pred_check
    _
  $region11: #{snnmlp_forward.51} parent=0 // pred_check_branch
    %13 = sbr.rel (0) target = $region13
  $region12: #{snnmlp_forward.51} parent=0 // pred_region
    _
  $region13: #{snnmlp_forward.51} parent=0 // pred_fallthru
    _
  %p15 = scmp.eq.s32.totalorder 0, 0
  // Predicated region
  $region14: #{snnmlp_forward.51} parent=0 // pred_check
    %p16 = pneg %p15
  $region15: #{snnmlp_forward.51} parent=0 // pred_check_branch
    %18 = sbr.rel (%p16) target = $region17
  $region16: #{snnmlp_forward.51} parent=0 // pred_region
    %vm19 = vcmask 523264
    %20 = vst.msk [vmem:[#allocation2] sm:$0xff] %vm19, 0.0
  $region17: #{snnmlp_forward.51} parent=0 // pred_fallthru
    _
  %v21 = vld [vmem:[#allocation2] sm:$0xff]
  %v22 = vld [vmem:[%s0] sm:$0xff]
  %v23 = vpack.c.bf16 %v22, %v22
  %v24 = vld [vmem:[%s1] sm:$0xff]
  %v25 = vld [vmem:[%s1 + $0x8] sm:$0xff]
  %v26 = vld [vmem:[%s1 + $0x10] sm:$0xff]
  %v27 = vld [vmem:[%s1 + $0x18] sm:$0xff]
  %v28 = vpack.c.bf16 %v25, %v24
  %v29 = vpack.c.bf16 %v27, %v26
  %vm30 = vcmask 261120
  %v32 = vsel %vm30, %v23, 0
  %34 = vmatprep.subr.bf16.mxu0 0
  %35 = vmatpush1.bf16.msra.mxu0 0
  %36 = vmatprep.subr.bf16.mxu0 0
  %37 = vmatpush1.bf16.msra.mxu0 0
  %38 = vmatprep.subr.bf16.mxu0 0
  %39 = vmatpush1.bf16.msra.mxu0 0
  %40 = vmatprep.subr.bf16.mxu0 0
  %41 = vmatpush1.bf16.msra.mxu0 0
  %42 = vmatprep.subr.bf16.mxu0 0
  %43 = vmatpush1.bf16.msra.mxu0 0
  %44 = vmatprep.subr.bf16.mxu0 0
  %45 = vmatpush1.bf16.msra.mxu0 0
  %46 = vmatprep.subr.bf16.mxu0 0
  %47 = vmatpush1.bf16.msra.mxu0 %v29
  %48 = vmatprep.subr.bf16.mxu0 0
  %49 = vmatpush1.bf16.msra.mxu0 %v28
  %50 = vmatprep.subr.bf16.mxu0 0
  %51 = vmatpush2.bf16.msra.mxu0 0
  %52 = vmatprep.subr.bf16.mxu0 0
  %53 = vmatpush2.bf16.msra.mxu0 0
  %54 = vmatprep.subr.bf16.mxu0 0
  %55 = vmatpush2.bf16.msra.mxu0 0
  %56 = vmatprep.subr.bf16.mxu0 0
  %57 = vmatpush2.bf16.msra.mxu0 0
  %58 = vmatprep.subr.bf16.mxu0 0
  %59 = vmatpush2.bf16.msra.mxu0 0
  %60 = vmatprep.subr.bf16.mxu0 0
  %61 = vmatpush2.bf16.msra.mxu0 0
  %62 = vmatprep.subr.bf16.mxu0 0
  %63 = vmatpush2.bf16.msra.mxu0 0
  %64 = vmatprep.subr.bf16.mxu0 0
  %65 = vmatpush2.bf16.msra.mxu0 0
  %66 = vmatprep.mubr.bf16.mxu0 0
  %67 = vmatmul.mubr.bf16.gmra.mxu0 %v32
  %v68 = vpop.f32.mrf.mxu0
  %v69 = vadd.f32 0.0, %v68
  %v70 = vpop.f32.mrf.mxu0
  %v71 = vpop.f32.mrf.mxu0
  %v72 = vpop.f32.mrf.mxu0
  %73 = vdwg.mxu0
  %v74 = vadd.f32 %v21, %v69
  %vm75 = vcmask 523264
  %76 = vst.msk [vmem:[#allocation2] sm:$0xff] %vm75, %v74
  // Predicated region
  $region18: #{snnmlp_forward.51} parent=0 // pred_check
    %p77 = pneg %p15
  $region19: #{snnmlp_forward.51} parent=0 // pred_check_branch
    %79 = sbr.rel (%p77) target = $region21
  $region20: #{snnmlp_forward.51} parent=0 // pred_region
    %v80 = vld [vmem:[#allocation2] sm:$0xff]
    %v81 = vld [vmem:[%s2] sm:$0x1]
    %v83 = vlaneseq
    %v84 = vshrl.u32 %v83, 7
    %v85 = vsub.s32 0, %v84
    %v86 = vrot.slane %v81, %v85
    %v88 = vadd.f32 %v80, %v86
    %v89 = vmul.f32 %v88, 0.5
    %v90 = vmul.f32 %v88, 0.044715
    %v91 = vmul.f32 %v90, %v88
    %v92 = vmul.f32 %v91, %v88
    %v93 = vadd.f32 %v88, %v92
    %v94 = vmul.f32 %v93, 0.7978846
    %v95 = vtanh.pop %v94
    %v96 = vadd.f32 %v95, 1.0
    %v97 = vmul.f32 %v89, %v96
    %98 = vst.msk [vmem:[%s3] sm:$0xff] %vm75, %v97
  $region21: #{snnmlp_forward.51} parent=0 // pred_fallthru
    _
  // Predicated region
  $region22: #{snnmlp_forward.51} parent=0 // pred_check
    _
  $region23: #{snnmlp_forward.51} parent=0 // pred_check_branch
    %100 = sbr.rel (0) target = $region25
  $region24: #{snnmlp_forward.51} parent=0 // pred_region
    _
  $region25: #{snnmlp_forward.51} parent=0 // pred_fallthru
    _
  // Predicated region
  $region26: #{snnmlp_forward.51} parent=0 // pred_check
    _
  $region27: #{snnmlp_forward.51} parent=0 // pred_check_branch
    %102 = sbr.rel (0) target = $region29
  $region28: #{snnmlp_forward.51} parent=0 // pred_region
    _
  $region29: #{snnmlp_forward.51} parent=0 // pred_fallthru
    _

// kernel: snnmlp_forward.52
$region0: #{snnmlp_forward.52}
  #allocation0 [shape = 'u32[]', space=smem, size = 0x4, offset = 0x4, fixed_abs, tag = 'smem constant byte address 0x4 - core index']
  #allocation1 [shape = 'u32[144,128]{1,0:T(1,128)}', space=vmem, size = 0x12000, scoped, tag = 'internal scratch']
  #allocation2 [shape = 'f32[8,32]{1,0:T(8,128)}', space=vmem, size = 0x1000, scoped, tag = 'scratch operand']
  %s0 = inlined_call_operand.vmem [shape: f32[8,64], index: 0, kind: input, shape index: {}]
  %s1 = inlined_call_operand.vmem [shape: f32[64,32], index: 1, kind: input, shape index: {}]
  %s2 = inlined_call_operand.vmem [shape: f32[1,32], index: 2, kind: input, shape index: {}]
  %s3 = inlined_call_operand.vmem [shape: f32[8,32], index: 3, kind: input, shape index: {}]
  %s4 = inlined_call_operand.vmem [shape: f32[8,32], index: 4, kind: output, shape index: {}]
  %s5 = sld [smem:[#allocation0]]
  $region34: #{snnmlp_forward.52} parent=0
    _
  %s7 = ssub.s32 1, %s5
  %s8 = scalar_select 0, %s7, %s5
  // Predicated region
  $region2: #{snnmlp_forward.52} parent=0 // pred_check
    _
  $region3: #{snnmlp_forward.52} parent=0 // pred_check_branch
    %10 = sbr.rel (0) target = $region5
  $region4: #{snnmlp_forward.52} parent=0 // pred_region
    _
  $region5: #{snnmlp_forward.52} parent=0 // pred_fallthru
    _
  // Predicated region
  $region6: #{snnmlp_forward.52} parent=0 // pred_check
    _
  $region7: #{snnmlp_forward.52} parent=0 // pred_check_branch
    %12 = sbr.rel (0) target = $region9
  $region8: #{snnmlp_forward.52} parent=0 // pred_region
    _
  $region9: #{snnmlp_forward.52} parent=0 // pred_fallthru
    _
  // Predicated region
  $region10: #{snnmlp_forward.52} parent=0 // pred_check
    _
  $region11: #{snnmlp_forward.52} parent=0 // pred_check_branch
    %14 = sbr.rel (0) target = $region13
  $region12: #{snnmlp_forward.52} parent=0 // pred_region
    _
  $region13: #{snnmlp_forward.52} parent=0 // pred_fallthru
    _
  // Predicated region
  $region14: #{snnmlp_forward.52} parent=0 // pred_check
    _
  $region15: #{snnmlp_forward.52} parent=0 // pred_check_branch
    %16 = sbr.rel (0) target = $region17
  $region16: #{snnmlp_forward.52} parent=0 // pred_region
    _
  $region17: #{snnmlp_forward.52} parent=0 // pred_fallthru
    _
  %p18 = scmp.eq.s32.totalorder 0, 0
  // Predicated region
  $region18: #{snnmlp_forward.52} parent=0 // pred_check
    %p19 = pneg %p18
  $region19: #{snnmlp_forward.52} parent=0 // pred_check_branch
    %21 = sbr.rel (%p19) target = $region21
  $region20: #{snnmlp_forward.52} parent=0 // pred_region
    %vm22 = vcmask 261120
    %23 = vst.msk [vmem:[#allocation2] sm:$0xff] %vm22, 0.0
  $region21: #{snnmlp_forward.52} parent=0 // pred_fallthru
    _
  %v24 = vld [vmem:[#allocation2] sm:$0xff]
  %v25 = vld [vmem:[%s0] sm:$0xff]
  %v26 = vpack.c.bf16 %v25, %v25
  %v27 = vld [vmem:[%s1] sm:$0xff]
  %v28 = vld [vmem:[%s1 + $0x8] sm:$0xff]
  %v29 = vld [vmem:[%s1 + $0x10] sm:$0xff]
  %v30 = vld [vmem:[%s1 + $0x18] sm:$0xff]
  %v31 = vld [vmem:[%s1 + $0x20] sm:$0xff]
  %v32 = vld [vmem:[%s1 + $0x28] sm:$0xff]
  %v33 = vld [vmem:[%s1 + $0x30] sm:$0xff]
  %v34 = vld [vmem:[%s1 + $0x38] sm:$0xff]
  %v35 = vpack.c.bf16 %v28, %v27
  %v36 = vpack.c.bf16 %v30, %v29
  %v37 = vpack.c.bf16 %v32, %v31
  %v38 = vpack.c.bf16 %v34, %v33
  %vm39 = vcmask 523264
  %v41 = vsel %vm39, %v26, 0
  %43 = vmatprep.subr.bf16.mxu0 0
  %44 = vmatpush1.bf16.msra.mxu0 0
  %45 = vmatprep.subr.bf16.mxu0 0
  %46 = vmatpush1.bf16.msra.mxu0 0
  %47 = vmatprep.subr.bf16.mxu0 0
  %48 = vmatpush1.bf16.msra.mxu0 0
  %49 = vmatprep.subr.bf16.mxu0 0
  %50 = vmatpush1.bf16.msra.mxu0 0
  %51 = vmatprep.subr.bf16.mxu0 0
  %52 = vmatpush1.bf16.msra.mxu0 %v38
  %53 = vmatprep.subr.bf16.mxu0 0
  %54 = vmatpush1.bf16.msra.mxu0 %v37
  %55 = vmatprep.subr.bf16.mxu0 0
  %56 = vmatpush1.bf16.msra.mxu0 %v36
  %57 = vmatprep.subr.bf16.mxu0 0
  %58 = vmatpush1.bf16.msra.mxu0 %v35
  %59 = vmatprep.subr.bf16.mxu0 0
  %60 = vmatpush2.bf16.msra.mxu0 0
  %61 = vmatprep.subr.bf16.mxu0 0
  %62 = vmatpush2.bf16.msra.mxu0 0
  %63 = vmatprep.subr.bf16.mxu0 0
  %64 = vmatpush2.bf16.msra.mxu0 0
  %65 = vmatprep.subr.bf16.mxu0 0
  %66 = vmatpush2.bf16.msra.mxu0 0
  %67 = vmatprep.subr.bf16.mxu0 0
  %68 = vmatpush2.bf16.msra.mxu0 0
  %69 = vmatprep.subr.bf16.mxu0 0
  %70 = vmatpush2.bf16.msra.mxu0 0
  %71 = vmatprep.subr.bf16.mxu0 0
  %72 = vmatpush2.bf16.msra.mxu0 0
  %73 = vmatprep.subr.bf16.mxu0 0
  %74 = vmatpush2.bf16.msra.mxu0 0
  %75 = vmatprep.mubr.bf16.mxu0 0
  %76 = vmatmul.mubr.bf16.gmra.mxu0 %v41
  %v77 = vpop.f32.mrf.mxu0
  %v78 = vadd.f32 0.0, %v77
  %v79 = vpop.f32.mrf.mxu0
  %v80 = vpop.f32.mrf.mxu0
  %v81 = vpop.f32.mrf.mxu0
  %82 = vdwg.mxu0
  %v83 = vadd.f32 %v24, %v78
  %vm84 = vcmask 261120
  %85 = vst.msk [vmem:[#allocation2] sm:$0xff] %vm84, %v83
  // Predicated region
  $region22: #{snnmlp_forward.52} parent=0 // pred_check
    %p86 = pneg %p18
  $region23: #{snnmlp_forward.52} parent=0 // pred_check_branch
    %88 = sbr.rel (%p86) target = $region25
  $region24: #{snnmlp_forward.52} parent=0 // pred_region
    %v89 = vld [vmem:[#allocation2] sm:$0xff]
    %v90 = vld [vmem:[%s2] sm:$0x1]
    %v92 = vlaneseq
    %v93 = vshrl.u32 %v92, 7
    %v94 = vsub.s32 0, %v93
    %v95 = vrot.slane %v90, %v94
    %v97 = vadd.f32 %v89, %v95
    %v98 = vld [vmem:[%s3] sm:$0xff]
    %v99 = vadd.f32 %v97, %v98
    %100 = vst.msk [vmem:[%s4] sm:$0xff] %vm84, %v99
  $region25: #{snnmlp_forward.52} parent=0 // pred_fallthru
    _
  // Predicated region
  $region26: #{snnmlp_forward.52} parent=0 // pred_check
    _
  $region27: #{snnmlp_forward.52} parent=0 // pred_check_branch
    %102 = sbr.rel (0) target = $region29
  $region28: #{snnmlp_forward.52} parent=0 // pred_region
    _
  $region29: #{snnmlp_forward.52} parent=0 // pred_fallthru
    _
  // Predicated region
  $region30: #{snnmlp_forward.52} parent=0 // pred_check
    _
  $region31: #{snnmlp_forward.52} parent=0 // pred_check_branch
    %104 = sbr.rel (0) target = $region33
  $region32: #{snnmlp_forward.52} parent=0 // pred_region
    _
  $region33: #{snnmlp_forward.52} parent=0 // pred_fallthru
    _

// kernel: snnmlp_forward.53
$region0: #{snnmlp_forward.53}
  #allocation0 [shape = 'u32[]', space=smem, size = 0x4, offset = 0x4, fixed_abs, tag = 'smem constant byte address 0x4 - core index']
  #allocation1 [shape = 'u32[144,128]{1,0:T(1,128)}', space=vmem, size = 0x12000, scoped, tag = 'internal scratch']
  %s0 = inlined_call_operand.vmem [shape: f32[2,4,32], index: 0, kind: input, shape index: {}]
  %s1 = inlined_call_operand.vmem [shape: f32[1,32], index: 1, kind: input, shape index: {}]
  %s2 = inlined_call_operand.vmem [shape: f32[1,32], index: 2, kind: input, shape index: {}]
  %s3 = inlined_call_operand.vmem [shape: f32[32,128], index: 3, kind: input, shape index: {}]
  %s4 = inlined_call_operand.vmem [shape: f32[1,128], index: 4, kind: input, shape index: {}]
  %s5 = inlined_call_operand.hbm [shape: f32[2,1,128], index: 5, kind: output, shape index: {}]
  %s6 = sld [smem:[#allocation0]]
  $region53: #{snnmlp_forward.53} parent=0
    _
  %s8 = ssub.s32 1, %s6
  %s9 = scalar_select 0, %s8, %s6
  $region1: #{snnmlp_forward.53} parent=0
    #allocation2 [shape = 'u8[1024]{0}', space=vmem, size = 0x400, scoped, tag = 'output window, operand 0']
    #allocation3 [shape = 's32[2]{0}', space=sflag, size = 0x8, scoped, tag = 'scoped memory for snnmlp_forward.53']
    %10 = vsyncpa [#allocation3], 0
    %s11 = scalar_lea.sflag [#allocation3], 1
    %12 = vsyncpa %s11, 0
    loop: start=0, step=1, limit=4
    $region2: #{snnmlp_forward.53} parent=1 // loop_pre_header
      _
    $region3: #{snnmlp_forward.53} parent=1 // loop_header
      %s14 = sphi 0, %s18
      %p15 = scmp.ge.s32.totalorder %s14, 4
      %s24 = sphi 0, %s26
      %s27 = sphi 0, %s24
      %s28 = sphi 0, %s27
      %s44 = sphi 0, %s28
      %s48 = sphi 0, %s48
      %s50 = sphi 0, %s48
      %s51 = sphi 0, %s50
      %s65 = sphi 0, %s51
      %s69 = sphi 0, %s69
      %s71 = sphi 0, %s69
      %s72 = sphi 0, %s71
      %s86 = sphi 0, %s72
      %s90 = sphi 0, %s90
      %s92 = sphi 0, %s90
      %s93 = sphi 0, %s92
      %s107 = sphi 0, %s93
      %s111 = sphi 0, %s111
      %s113 = sphi 0, %s111
      %s114 = sphi 0, %s113
      %s128 = sphi 0, %s114
      %s134 = sphi 0, %s136
      %s137 = sphi 0, %s134
      %s138 = sphi 0, %s137
      %s154 = sphi 0, %s138
    $region4: #{snnmlp_forward.53} parent=1 // loop_header_branch
      %17 = sbr.rel (%p15) target = $region8
    $region5: #{snnmlp_forward.53} parent=1 // loop_body
      %s19 = ssub.s32 %s14, 1
      %s20 = ssub.s32 %s14, 2
      %s21 = sadd.s32 %s14, 1
      %s22 = ssub.s32 %s14, %s21
      %p23 = scmp.eq.s32.totalorder %s22, 0
      %s25 = sadd.s32 %s24, 1
      %s26 = scalar_select %p23, %s24, %s25
      %p29 = pneg %p23
      %p30 = scmp.eq.s32.totalorder %s14, 1
      %p31 = por %p29, %p30
      %p32 = scmp.ne.s32.totalorder %s24, %s27
      %p33 = scmp.eq.s32.totalorder %s14, 0
      %p34 = por %p32, %p33
      %p35 = scmp.ne.s32.totalorder %s24, %s27
      %p36 = scmp.eq.s32.totalorder %s19, 1
      %p37 = por %p35, %p36
      %p38 = scmp.ne.s32.totalorder %s27, %s28
      %p39 = scmp.eq.s32.totalorder %s19, 0
      %p40 = por %p38, %p39
      %p41 = scmp.ne.s32.totalorder %s27, %s28
      %p42 = scmp.eq.s32.totalorder %s20, 1
      %p43 = por %p41, %p42
      %p45 = scmp.ne.s32.totalorder %s28, %s44
      %p46 = scmp.eq.s32.totalorder %s20, 0
      %p47 = por %p45, %p46
      %s49 = sadd.s32 %s48, 1
      %p52 = scmp.eq.s32.totalorder %s14, 1
      %p53 = scmp.ne.s32.totalorder %s48, %s50
      %p54 = scmp.eq.s32.totalorder %s14, 0
      %p55 = por %p53, %p54
      %p56 = scmp.ne.s32.totalorder %s48, %s50
      %p57 = scmp.eq.s32.totalorder %s19, 1
      %p58 = por %p56, %p57
      %p59 = scmp.ne.s32.totalorder %s50, %s51
      %p60 = scmp.eq.s32.totalorder %s19, 0
      %p61 = por %p59, %p60
      %p62 = scmp.ne.s32.totalorder %s50, %s51
      %p63 = scmp.eq.s32.totalorder %s20, 1
      %p64 = por %p62, %p63
      %p66 = scmp.ne.s32.totalorder %s51, %s65
      %p67 = scmp.eq.s32.totalorder %s20, 0
      %p68 = por %p66, %p67
      %s70 = sadd.s32 %s69, 1
      %p73 = scmp.eq.s32.totalorder %s14, 1
      %p74 = scmp.ne.s32.totalorder %s69, %s71
      %p75 = scmp.eq.s32.totalorder %s14, 0
      %p76 = por %p74, %p75
      %p77 = scmp.ne.s32.totalorder %s69, %s71
      %p78 = scmp.eq.s32.totalorder %s19, 1
      %p79 = por %p77, %p78
      %p80 = scmp.ne.s32.totalorder %s71, %s72
      %p81 = scmp.eq.s32.totalorder %s19, 0
      %p82 = por %p80, %p81
      %p83 = scmp.ne.s32.totalorder %s71, %s72
      %p84 = scmp.eq.s32.totalorder %s20, 1
      %p85 = por %p83, %p84
      %p87 = scmp.ne.s32.totalorder %s72, %s86
      %p88 = scmp.eq.s32.totalorder %s20, 0
      %p89 = por %p87, %p88
      %s91 = sadd.s32 %s90, 1
      %p94 = scmp.eq.s32.totalorder %s14, 1
      %p95 = scmp.ne.s32.totalorder %s90, %s92
      %p96 = scmp.eq.s32.totalorder %s14, 0
      %p97 = por %p95, %p96
      %p98 = scmp.ne.s32.totalorder %s90, %s92
      %p99 = scmp.eq.s32.totalorder %s19, 1
      %p100 = por %p98, %p99
      %p101 = scmp.ne.s32.totalorder %s92, %s93
      %p102 = scmp.eq.s32.totalorder %s19, 0
      %p103 = por %p101, %p102
      %p104 = scmp.ne.s32.totalorder %s92, %s93
      %p105 = scmp.eq.s32.totalorder %s20, 1
      %p106 = por %p104, %p105
      %p108 = scmp.ne.s32.totalorder %s93, %s107
      %p109 = scmp.eq.s32.totalorder %s20, 0
      %p110 = por %p108, %p109
      %s112 = sadd.s32 %s111, 1
      %p115 = scmp.eq.s32.totalorder %s14, 1
      %p116 = scmp.ne.s32.totalorder %s111, %s113
      %p117 = scmp.eq.s32.totalorder %s14, 0
      %p118 = por %p116, %p117
      %p119 = scmp.ne.s32.totalorder %s111, %s113
      %p120 = scmp.eq.s32.totalorder %s19, 1
      %p121 = por %p119, %p120
      %p122 = scmp.ne.s32.totalorder %s113, %s114
      %p123 = scmp.eq.s32.totalorder %s19, 0
      %p124 = por %p122, %p123
      %p125 = scmp.ne.s32.totalorder %s113, %s114
      %p126 = scmp.eq.s32.totalorder %s20, 1
      %p127 = por %p125, %p126
      %p129 = scmp.ne.s32.totalorder %s114, %s128
      %p130 = scmp.eq.s32.totalorder %s20, 0
      %p131 = por %p129, %p130
      %s132 = ssub.s32 %s14, %s21
      %p133 = scmp.eq.s32.totalorder %s132, 0
      %s135 = sadd.s32 %s134, 1
      %s136 = scalar_select %p133, %s134, %s135
      %p139 = pneg %p133
      %p140 = scmp.eq.s32.totalorder %s14, 1
      %p141 = por %p139, %p140
      %p142 = scmp.ne.s32.totalorder %s134, %s137
      %p143 = scmp.eq.s32.totalorder %s14, 0
      %p144 = por %p142, %p143
      %p145 = scmp.ne.s32.totalorder %s134, %s137
      %p146 = scmp.eq.s32.totalorder %s19, 1
      %p147 = por %p145, %p146
      %p148 = scmp.ne.s32.totalorder %s137, %s138
      %p149 = scmp.eq.s32.totalorder %s19, 0
      %p150 = por %p148, %p149
      %p151 = scmp.ne.s32.totalorder %s137, %s138
      %p152 = scmp.eq.s32.totalorder %s20, 1
      %p153 = por %p151, %p152
      %p155 = scmp.ne.s32.totalorder %s138, %s154
      %p156 = scmp.eq.s32.totalorder %s20, 0
      %p157 = por %p155, %p156
      %p158 = scmp.le.s32.totalorder 1, %s14
      %p159 = scmp.lt.s32.totalorder %s14, 3
      %p160 = pnand %p158, %p159
      %p161 = pneg %p160
      // Predicated region
      $region9: #{snnmlp_forward.53} parent=5 // pred_check
        _
      $region10: #{snnmlp_forward.53} parent=5 // pred_check_branch
        %163 = sbr.rel (%p160) target = $region12
      $region11: #{snnmlp_forward.53} parent=5 // pred_region
        %s164 = ssub.s32 %s14, 1
        // Predicated region
        $region13: #{snnmlp_forward.53} parent=11 // pred_check
          %p165 = pneg %p61
        $region14: #{snnmlp_forward.53} parent=11 // pred_check_branch
          %167 = sbr.rel (%p165) target = $region16
        $region15: #{snnmlp_forward.53} parent=11 // pred_region
          _
        $region16: #{snnmlp_forward.53} parent=11 // pred_fallthru
          _
        // Predicated region
        $region17: #{snnmlp_forward.53} parent=11 // pred_check
          %p168 = pneg %p82
        $region18: #{snnmlp_forward.53} parent=11 // pred_check_branch
          %170 = sbr.rel (%p168) target = $region20
        $region19: #{snnmlp_forward.53} parent=11 // pred_region
          _
        $region20: #{snnmlp_forward.53} parent=11 // pred_fallthru
          _
        // Predicated region
        $region21: #{snnmlp_forward.53} parent=11 // pred_check
          %p171 = pneg %p103
        $region22: #{snnmlp_forward.53} parent=11 // pred_check_branch
          %173 = sbr.rel (%p171) target = $region24
        $region23: #{snnmlp_forward.53} parent=11 // pred_region
          _
        $region24: #{snnmlp_forward.53} parent=11 // pred_fallthru
          _
        // Predicated region
        $region25: #{snnmlp_forward.53} parent=11 // pred_check
          %p174 = pneg %p124
        $region26: #{snnmlp_forward.53} parent=11 // pred_check_branch
          %176 = sbr.rel (%p174) target = $region28
        $region27: #{snnmlp_forward.53} parent=11 // pred_region
          _
        $region28: #{snnmlp_forward.53} parent=11 // pred_fallthru
          _
      $region12: #{snnmlp_forward.53} parent=5 // pred_fallthru
        _
      %p177 = scmp.lt.s32.totalorder %s14, 2
      // Predicated region
      $region29: #{snnmlp_forward.53} parent=5 // pred_check
        %p178 = pneg %p177
      $region30: #{snnmlp_forward.53} parent=5 // pred_check_branch
        %180 = sbr.rel (%p178) target = $region32
      $region31: #{snnmlp_forward.53} parent=5 // pred_region
        // Predicated region
        $region33: #{snnmlp_forward.53} parent=31 // pred_check
          %p181 = pneg %p34
        $region34: #{snnmlp_forward.53} parent=31 // pred_check_branch
          %183 = sbr.rel (%p181) target = $region36
        $region35: #{snnmlp_forward.53} parent=31 // pred_region
          %p184 = scmp.lt.s32.totalorder %s14, 1
          %s185 = scalar_select %p184, %s14, 1
          %s186 = smul.addr %s185, 4
          %s187 = scalar_lea.vmem %s0, %s186
        $region36: #{snnmlp_forward.53} parent=31 // pred_fallthru
          _
      $region32: #{snnmlp_forward.53} parent=5 // pred_fallthru
        _
      %p188 = scmp.le.s32.totalorder 1, %s14
      %p189 = scmp.lt.s32.totalorder %s14, 3
      %p190 = pnand %p188, %p189
      %p191 = pneg %p190
      // Predicated region
      $region37: #{snnmlp_forward.53} parent=5 // pred_check
        _
      $region38: #{snnmlp_forward.53} parent=5 // pred_check_branch
        %193 = sbr.rel (%p190) target = $region40
      $region39: #{snnmlp_forward.53} parent=5 // pred_region
        %s194 = ssub.s32 %s14, 1
        %p195 = scmp.lt.s32.totalorder %s19, 1
        %s196 = scalar_select %p195, %s19, 1
        %s197 = smul.addr %s196, 4
        %s198 = scalar_lea.vmem %s0, %s197
        %p199 = pneg %p40
        %p200 = pneg %p37
        %p201 = pneg %p61
        %p202 = pneg %p58
        %p203 = pneg %p82
        %p204 = pneg %p79
        %p205 = pneg %p103
        %p206 = pneg %p100
        %p207 = pneg %p124
        %p208 = pneg %p121
        %p209 = pneg %p150
        %p210 = pneg %p147
        %s211 = sand.u32 %s137, 1
        %s212 = scalar_lea.sflag [#allocation3], %s211
        %s213 = sand.u32 %s137, 1
        %s214 = scalar_lea.vmem [#allocation2], %s213
        %p215 = scmp.lt.s32.totalorder %s19, 1
        %s216 = scalar_select %p215, %s19, 1
        %s217 = smul.addr %s216, 4
        %s218 = scalar_lea.vmem %s0, %s217
        %v220 = vld [vmem:[%s218] sm:$0xf]
        %vm221 = vcmask 257024
        %v222 = vsel %vm221, %v220, 0.0
        %v223 = vrot.slane %v222, 4
        %v224 = vadd.f32 %v222, %v223
        %v225 = vrot.slane %v224, 2
        %v226 = vadd.f32 %v224, %v225
        %v227 = vrot.slane %v226, 1
        %v228 = vadd.f32 %v226, %v227
        %v229 = vmul.f32 %v220, %v220
        %v230 = vsel %vm221, %v229, 0.0
        %v231 = vrot.slane %v230, 4
        %v232 = vadd.f32 %v230, %v231
        %v233 = vrot.slane %v232, 2
        %v234 = vadd.f32 %v232, %v233
        %v235 = vrot.slane %v234, 1
        %v236 = vadd.f32 %v234, %v235
        %vm237 = vcmask 261120
        %v238 = vsel %vm237, %v228, 0.0
        %239 = vadd.xlane.f32.xlu0 %v238
        %v240 = vpop.xlane.xlu0 %239
        %v241 = vmul.f32 %v240, 0.0078125
        %v242 = vsel %vm237, %v236, 0.0
        %243 = vadd.xlane.f32.xlu0 %v242
        %v244 = vpop.xlane.xlu0 %243
        %v245 = vmul.f32 %v244, 0.0078125
        %v246 = vmul.f32 %v241, %v241
        %v247 = vsub.f32 %v245, %v246
        %v248 = vmax.f32 %v247, 0.0
        %v249 = vadd.f32 %v248, 1e-05
        %v250 = vrsqrt.pop %v249
        %v251 = vmul.f32 %v228, 0.25
        %v252 = vsub.f32 %v251, %v241
        %v253 = vmul.f32 %v252, %v250
        %v254 = vld [vmem:[%s1] sm:$0x1]
        %v255 = vmul.f32 %v253, %v254
        %v256 = vld [vmem:[%s2] sm:$0x1]
        %v257 = vadd.f32 %v255, %v256
        %v258 = vpack.c.bf16 %v257, %v257
        %v259 = vld [vmem:[%s3] sm:$0xff]
        %v260 = vld [vmem:[%s3 + $0x8] sm:$0xff]
        %v261 = vld [vmem:[%s3 + $0x10] sm:$0xff]
        %v262 = vld [vmem:[%s3 + $0x18] sm:$0xff]
        %v263 = vpack.c.bf16 %v260, %v259
        %v264 = vpack.c.bf16 %v262, %v261
        %v265 = vld [vmem:[%s4] sm:$0x1]
        %v267 = vsel %vm237, %v258, 0
        %269 = vmatprep.subr.bf16.mxu0 0
        %270 = vmatpush1.bf16.msra.mxu0 0
        %271 = vmatprep.subr.bf16.mxu0 0
        %272 = vmatpush1.bf16.msra.mxu0 0
        %273 = vmatprep.subr.bf16.mxu0 0
        %274 = vmatpush1.bf16.msra.mxu0 0
        %275 = vmatprep.subr.bf16.mxu0 0
        %276 = vmatpush1.bf16.msra.mxu0 0
        %277 = vmatprep.subr.bf16.mxu0 0
        %278 = vmatpush1.bf16.msra.mxu0 0
        %279 = vmatprep.subr.bf16.mxu0 0
        %280 = vmatpush1.bf16.msra.mxu0 0
        %281 = vmatprep.subr.bf16.mxu0 0
        %282 = vmatpush1.bf16.msra.mxu0 %v264
        %283 = vmatprep.subr.bf16.mxu0 0
        %284 = vmatpush1.bf16.msra.mxu0 %v263
        %285 = vmatprep.subr.bf16.mxu0 0
        %286 = vmatpush2.bf16.msra.mxu0 0
        %287 = vmatprep.subr.bf16.mxu0 0
        %288 = vmatpush2.bf16.msra.mxu0 0
        %289 = vmatprep.subr.bf16.mxu0 0
        %290 = vmatpush2.bf16.msra.mxu0 0
        %291 = vmatprep.subr.bf16.mxu0 0
        %292 = vmatpush2.bf16.msra.mxu0 0
        %293 = vmatprep.subr.bf16.mxu0 0
        %294 = vmatpush2.bf16.msra.mxu0 0
        %295 = vmatprep.subr.bf16.mxu0 0
        %296 = vmatpush2.bf16.msra.mxu0 0
        %297 = vmatprep.subr.bf16.mxu0 0
        %298 = vmatpush2.bf16.msra.mxu0 0
        %299 = vmatprep.subr.bf16.mxu0 0
        %300 = vmatpush2.bf16.msra.mxu0 0
        %301 = vmatprep.mubr.bf16.mxu0 0
        %302 = vmatmul.mubr.bf16.gmra.mxu0 %v267
        %v303 = vpop.f32.mrf.mxu0
        %v304 = vadd.f32 %v265, %v303
        %v305 = vpop.f32.mrf.mxu0
        %v306 = vpop.f32.mrf.mxu0
        %v307 = vpop.f32.mrf.mxu0
        %308 = vdwg.mxu0
        %309 = vst [vmem:[%s214] sm:$0x1] %v304
        %s310 = sand.u32 %s137, 1
        %s311 = scalar_lea.sflag [#allocation3], %s310
        %s312 = sand.u32 %s137, 1
        %s313 = scalar_lea.vmem [#allocation2], %s312
        // Predicated region
        $region41: #{snnmlp_forward.53} parent=39 // pred_check
          %p314 = pneg %p147
        $region42: #{snnmlp_forward.53} parent=39 // pred_check_branch
          %316 = sbr.rel (%p314) target = $region44
        $region43: #{snnmlp_forward.53} parent=39 // pred_region
          %s318 = ssub.s32 16, 16
          %319 = vsyncadd %s311, %s318
          %s320 = smul.addr %s19, 16
          %s321 = scalar_lea.hbm %s5, %s320
          %s323 = sshll.u32 %s313, 4
          %s324 = int_to_ptr.vmem [resolvable:$true] %s323
          %326 = dma.vmem_to_hbm [thread:$0]  %s324, 16, %s321, %s311
        $region44: #{snnmlp_forward.53} parent=39 // pred_fallthru
          _
      $region40: #{snnmlp_forward.53} parent=5 // pred_fallthru
        _
      %p327 = scmp.le.s32.totalorder 2, %s14
      // Predicated region
      $region45: #{snnmlp_forward.53} parent=5 // pred_check
        %p328 = pneg %p327
      $region46: #{snnmlp_forward.53} parent=5 // pred_check_branch
        %330 = sbr.rel (%p328) target = $region48
      $region47: #{snnmlp_forward.53} parent=5 // pred_region
        %s331 = ssub.s32 %s14, 2
        // Predicated region
        $region49: #{snnmlp_forward.53} parent=47 // pred_check
          %p332 = pneg %p153
        $region50: #{snnmlp_forward.53} parent=47 // pred_check_branch
          %334 = sbr.rel (%p332) target = $region52
        $region51: #{snnmlp_forward.53} parent=47 // pred_region
          %s335 = sand.u32 %s138, 1
          %s336 = scalar_lea.sflag [#allocation3], %s335
          %s337 = sand.u32 %s138, 1
          %s338 = scalar_lea.vmem [#allocation2], %s337
          %339 = dma.done %s336, 16
        $region52: #{snnmlp_forward.53} parent=47 // pred_fallthru
          _
      $region48: #{snnmlp_forward.53} parent=5 // pred_fallthru
        _
    $region6: #{snnmlp_forward.53} parent=1 // loop_footer
      %s18 = sadd.s32 1, %s14
    $region7: #{snnmlp_forward.53} parent=1 // loop_footer_branch
      %13 = sbr.rel target = $region3
    $region8: #{snnmlp_forward.53} parent=1 // loop_exit
      _
    %340 = vsyncpa [#allocation3], 1
    %s341 = scalar_lea.sflag [#allocation3], 1
    %342 = vsyncpa %s341, 1

</llo_original>
